<compile_context>
chip_gen: v5e
topology: v5e:2x2
jax: 0.10.0
libtpu: 0.0.40
codegen_flags: <defaults>
</compile_context>

<pallas_src>
import functools
import math

import numpy as np
import jax
import jax.numpy as jnp
from jax.experimental import pallas as pl
from jax.experimental.pallas import tpu as pltpu


NEG_BIAS = -1.0e4   # additive mask value (matches the masking constant of the reference)


# ---------------------------------------------------------------------------
# Shared numerics helpers (pure jnp: usable inside kernels and in the reference)
# ---------------------------------------------------------------------------
def _layer_norm(x, gamma, beta, eps=1e-5):
    mean = jnp.mean(x, axis=-1, keepdims=True)
    xc = x - mean
    var = jnp.mean(xc * xc, axis=-1, keepdims=True)
    return xc * jax.lax.rsqrt(var + eps) * gamma + beta


def _bf16_mm(a, b):
    # TPU inference matmul policy: bf16 MXU operands, f32 accumulation.
    return jnp.matmul(a.astype(jnp.bfloat16), b.astype(jnp.bfloat16),
                      preferred_element_type=jnp.float32)


# ---------------------------------------------------------------------------
# Fused encoder stack kernel: grid = (batch, layer); h lives in VMEM scratch
# ---------------------------------------------------------------------------
def _encoder_stack_kernel(lens_ref,                       # SMEM (B,) int32  [scalar prefetch]
                          h0_ref,                         # (1, T, H) f32
                          wqkv_ref, bqkv_ref,             # (1, H, 3H) bf16 / (1, 1, 3H) f32
                          wo_ref, bo_ref,                 # (1, nh, d, H) bf16 / (1, 1, H) f32
                          g1_ref, be1_ref,                # (1, 1, H) f32
                          w1_ref, bf1_ref,                # (1, k, H, F) bf16 / (1, 1, F) f32
                          w2_ref, bf2_ref,                # (1, k, F, H) bf16 / (1, 1, H) f32
                          g2_ref, be2_ref,                # (1, 1, H) f32
                          out_ref,                        # (1, T, H) f32
                          h_sc,                           # VMEM (T, H) f32 scratch
                          *, n_heads, kernel_size):
    b = pl.program_id(0)
    l = pl.program_id(1)
    T, H = h_sc.shape
    d = H // n_heads
    L = lens_ref[b]

    # Layer 0: load the (already masked) embedding block into the resident scratch.
    @pl.when(l == 0)
    def _():
        h_sc[...] = h0_ref[0]

    x = h_sc[...]                                                  # (T, H) f32

    # Masks rebuilt in-kernel from the scalar length (no (T,1)/(1,T) HBM inputs).
    col_ids = jax.lax.broadcasted_iota(jnp.int32, (T, 1), 0)
    mcol = (col_ids < L).astype(jnp.float32)                       # (T, 1)
    row_ids = jax.lax.broadcasted_iota(jnp.int32, (1, T), 1)
    key_bias = jnp.where(row_ids < L, 0.0, NEG_BIAS).astype(jnp.float32)   # (1, T)

    # --- masked multi-head self-attention (fused QKV projection on the MXU) --------------
    xb = x.astype(jnp.bfloat16)
    qkv = jnp.dot(xb, wqkv_ref[0], preferred_element_type=jnp.float32) + bqkv_ref[0]
    qkvb = qkv.astype(jnp.bfloat16)                                # (T, 3H), Q scale pre-folded

    y = jnp.zeros((T, H), jnp.float32) + bo_ref[0]
    for h in range(n_heads):
        qh = qkvb[:, h * d:(h + 1) * d]
        kh = qkvb[:, H + h * d:H + (h + 1) * d]
        vh = qkvb[:, 2 * H + h * d:2 * H + (h + 1) * d]
        s = jnp.einsum("td,sd->ts", qh, kh,
                       preferred_element_type=jnp.float32) + key_bias       # (T, T) f32
        m = jnp.max(s, axis=-1, keepdims=True)
        e = jnp.exp(s - m)
        p = e * pl.reciprocal(jnp.sum(e, axis=-1, keepdims=True), approx=True)
        o = jnp.dot(p.astype(jnp.bfloat16), vh, preferred_element_type=jnp.float32)  # (T, d)
        y = y + jnp.dot(o.astype(jnp.bfloat16), wo_ref[0, h],
                        preferred_element_type=jnp.float32)
    x = _layer_norm(x + y, g1_ref[0], be1_ref[0])

    # --- conv1d FFN: kernel_size taps as shifted bf16 MXU matmuls -------------------------
    pad_l = (kernel_size - 1) // 2
    taps = []                                   # validity masks hoisted, shared by both convs
    for j in range(kernel_size):
        off = j - pad_l
        if off == 0:
            taps.append((off, None))
        else:
            valid = jnp.logical_and(col_ids + off >= 0, col_ids + off <= T - 1)
            taps.append((off, valid))

    def shift_rows(a, off, valid):
        # b[t] = a[t + off], zero outside [0, T) — roll on the XLU, boundary via mask.
        if off == 0:
            return a
        rolled = pltpu.roll(a, shift=(-off) % T, axis=0)
        return jnp.where(valid, rolled, 0.0)

    F_ = w1_ref.shape[3]
    xm = x * mcol
    yf = jnp.zeros((T, F_), jnp.float32) + bf1_ref[0]
    for j, (off, valid) in enumerate(taps):
        yf = yf + jnp.dot(shift_rows(xm, off, valid).astype(jnp.bfloat16), w1_ref[0, j],
                          preferred_element_type=jnp.float32)
    yf = jnp.maximum(yf, 0.0) * mcol
    z = jnp.zeros((T, H), jnp.float32) + bf2_ref[0]
    for j, (off, valid) in enumerate(taps):
        z = z + jnp.dot(shift_rows(yf, off, valid).astype(jnp.bfloat16), w2_ref[0, j],
                        preferred_element_type=jnp.float32)
    z = z * mcol

    x = _layer_norm(x + z, g2_ref[0], be2_ref[0])
    h_sc[...] = x

    @pl.when(l == pl.num_programs(1) - 1)
    def _():
        out_ref[0] = x


# ---------------------------------------------------------------------------
# Weight preparation: stack per-layer params, fuse QKV (scale folded), cast bf16
# ---------------------------------------------------------------------------
def _prepare_encoder_weights(params, n_heads):
    H = params["emb_tok"].shape[1]
    n_layers = len(params["layers"])
    d = H // n_heads
    q_scale = 1.0 / math.sqrt(d)

    def stack(name):
        return jnp.stack([lyr[name] for lyr in params["layers"]])

    wqkv = jnp.concatenate([stack("wq") * q_scale, stack("wk"), stack("wv")],
                           axis=-1).astype(jnp.bfloat16)                    # (L, H, 3H)
    bqkv = jnp.concatenate([stack("bq") * q_scale, stack("bk"), stack("bv")],
                           axis=-1).astype(jnp.float32)                     # (L, 1, 3H)
    wo = stack("wo").reshape(n_layers, n_heads, d, H).astype(jnp.bfloat16)  # (L, nh, d, H)
    return [wqkv, bqkv, wo, stack("bo"),
            stack("g1"), stack("be1"),
            stack("w1").astype(jnp.bfloat16), stack("bf1"),
            stack("w2").astype(jnp.bfloat16), stack("bf2"),
            stack("g2"), stack("be2")]


# ---------------------------------------------------------------------------
# Full forward wrapper
# ---------------------------------------------------------------------------
def text_encoder_forward(params, tokens, x_lengths, notepitch, notedur,
                         *, n_heads, kernel_size):
    B, T = tokens.shape
    H = params["emb_tok"].shape[1]
    n_layers = len(params["layers"])
    T_pad = max(128, -(-T // 128) * 128)          # bucket sequence length to a 128 multiple
    pad_t = T_pad - T
    x_lengths = x_lengths.astype(jnp.int32)

    # Embedding gathers as plain XLA indexing (feedback: drop the one-hot MXU gathers).
    # (notedur * 172 - 3).clamp_min_(0).long(); clip to the table size (PyTorch would error OOB).
    dur_ids = jnp.clip(
        jnp.floor(jnp.maximum(notedur.astype(jnp.float32) * 172.0 - 3.0, 0.0)),
        0, params["emb_dur"].shape[0] - 1).astype(jnp.int32)
    emb = (params["emb_tok"][tokens.astype(jnp.int32)] * math.sqrt(H)
           + params["emb_dur"][dur_ids]
           + params["emb_pitch"][notepitch.astype(jnp.int32)]).astype(jnp.float32)

    mask = (jnp.arange(T_pad)[None, :] < x_lengths[:, None]).astype(jnp.float32)
    h0 = jnp.pad(emb, ((0, 0), (0, pad_t), (0, 0))) * mask[:, :, None]      # x * x_mask

    weights = _prepare_encoder_weights(params, n_heads)

    def layer_spec(a):
        nd = a.ndim
        return pl.BlockSpec((1,) + tuple(a.shape[1:]),
                            lambda b, l, lens, nd=nd: (l,) + (0,) * (nd - 1))

    in_specs = ([pl.BlockSpec((1, T_pad, H), lambda b, l, lens: (b, 0, 0))]
                + [layer_spec(w) for w in weights])

    kern = functools.partial(_encoder_stack_kernel,
                             n_heads=n_heads, kernel_size=kernel_size)

    h = pl.pallas_call(
        kern,
        out_shape=jax.ShapeDtypeStruct((B, T_pad, H), jnp.float32),
        grid_spec=pltpu.PrefetchScalarGridSpec(
            num_scalar_prefetch=1,
            grid=(B, n_layers),
            in_specs=in_specs,
            out_specs=pl.BlockSpec((1, T_pad, H), lambda b, l, lens: (b, 0, 0)),
            scratch_shapes=[pltpu.VMEM((T_pad, H), jnp.float32)]),
        compiler_params=pltpu.CompilerParams(
            dimension_semantics=("parallel", "arbitrary"),
            vmem_limit_bytes=48 * 1024 * 1024),
    )(x_lengths, h0, *weights)

    x_mask = mask[:, None, :T]                                     # (B, 1, T)
    # Final x * x_mask + layout back to the PyTorch channel-first (B, H, T) contract.
    out = jnp.transpose(h[:, :T, :], (0, 2, 1)) * x_mask
    return out, x_mask


# ---------------------------------------------------------------------------
# Parameter construction (f32 "logical" params; head structure implicit in column/row blocks)
# ---------------------------------------------------------------------------
def init_params(key, n_vocab, hidden, filter_channels, n_heads, n_layers, kernel_size):
    assert hidden == 192, "pitch/duration embeddings are hard-coded to 192 channels"
    assert hidden % n_heads == 0
    H, Fc = hidden, filter_channels
    k_emb, k_pitch, k_dur, k_layers = jax.random.split(key, 4)

    def nrm(k_, shape, scale):
        return (jax.random.normal(k_, shape) * scale).astype(jnp.float32)

    params = {
        "emb_tok": nrm(k_emb, (n_vocab, H), H ** -0.5),
        "emb_pitch": nrm(k_pitch, (121, H), 0.02),
        "emb_dur": nrm(k_dur, (1200, H), 0.02),
        "layers": [],
    }
    for lk in jax.random.split(k_layers, n_layers):
        ks = jax.random.split(lk, 16)
        layer = {
            "wq": nrm(ks[0], (H, H), H ** -0.5),  "bq": nrm(ks[1], (1, H), 0.01),
            "wk": nrm(ks[2], (H, H), H ** -0.5),  "bk": nrm(ks[3], (1, H), 0.01),
            "wv": nrm(ks[4], (H, H), H ** -0.5),  "bv": nrm(ks[5], (1, H), 0.01),
            "wo": nrm(ks[6], (H, H), H ** -0.5),  "bo": nrm(ks[7], (1, H), 0.01),
            "g1": 1.0 + nrm(ks[8], (1, H), 0.05), "be1": nrm(ks[9], (1, H), 0.02),
            "w1": nrm(ks[10], (kernel_size, H, Fc), (H * kernel_size) ** -0.5),
            "bf1": nrm(ks[11], (1, Fc), 0.01),
            "w2": nrm(ks[12], (kernel_size, Fc, H), (Fc * kernel_size) ** -0.5),
            "bf2": nrm(ks[13], (1, H), 0.01),
            "g2": 1.0 + nrm(ks[14], (1, H), 0.05), "be2": nrm(ks[15], (1, H), 0.02),
        }
        params["layers"].append(layer)
    return params


# ---------------------------------------------------------------------------
# Pure-JAX reference (same math, unpadded sequence length, same bf16-MXU policy)
# ---------------------------------------------------------------------------
def _reference_forward(params, tokens, x_lengths, notepitch, notedur,
                       *, n_heads, kernel_size):
    B, T = tokens.shape
    H = params["emb_tok"].shape[1]
    d = H // n_heads
    q_scale = 1.0 / math.sqrt(d)
    dur_ids = jnp.clip(
        jnp.floor(jnp.maximum(notedur.astype(jnp.float32) * 172.0 - 3.0, 0.0)),
        0, params["emb_dur"].shape[0] - 1).astype(jnp.int32)
    x = (params["emb_tok"][tokens.astype(jnp.int32)] * math.sqrt(H)
         + params["emb_dur"][dur_ids]
         + params["emb_pitch"][notepitch.astype(jnp.int32)]).astype(jnp.float32)
    mask = (jnp.arange(T)[None, :] < x_lengths[:, None]).astype(jnp.float32)
    mc = mask[:, :, None]
    x = x * mc
    attn_valid = (mc * mask[:, None, :]) > 0.0
    pad_l = (kernel_size - 1) // 2
    pad_r = kernel_size // 2
    for layer in params["layers"]:
        q = _bf16_mm(x, layer["wq"] * q_scale) + layer["bq"] * q_scale
        k = _bf16_mm(x, layer["wk"]) + layer["bk"]
        v = _bf16_mm(x, layer["wv"]) + layer["bv"]
        y = jnp.zeros((B, T, H), jnp.float32) + layer["bo"]
        for hh in range(n_heads):
            qh = q[..., hh * d:(hh + 1) * d]
            kh = k[..., hh * d:(hh + 1) * d]
            vh = v[..., hh * d:(hh + 1) * d]
            s = jnp.einsum("btd,bsd->bts", qh.astype(jnp.bfloat16), kh.astype(jnp.bfloat16),
                           preferred_element_type=jnp.float32)
            s = jnp.where(attn_valid, s, NEG_BIAS)
            m = jnp.max(s, axis=-1, keepdims=True)
            e = jnp.exp(s - m)
            p = e / jnp.sum(e, axis=-1, keepdims=True)
            o = jnp.einsum("bts,bsd->btd", p.astype(jnp.bfloat16), vh.astype(jnp.bfloat16),
                           preferred_element_type=jnp.float32)
            y = y + _bf16_mm(o, layer["wo"][hh * d:(hh + 1) * d, :])
        x = _layer_norm(x + y, layer["g1"], layer["be1"])
        xm = x * mc
        xp = jnp.pad(xm, ((0, 0), (pad_l, pad_r), (0, 0)))
        Fc = layer["w1"].shape[2]
        yf = jnp.zeros((B, T, Fc), jnp.float32) + layer["bf1"]
        for j in range(kernel_size):
            yf = yf + _bf16_mm(xp[:, j:j + T, :], layer["w1"][j])
        yf = jnp.maximum(yf, 0.0) * mc
        yp = jnp.pad(yf, ((0, 0), (pad_l, pad_r), (0, 0)))
        z = jnp.zeros((B, T, H), jnp.float32) + layer["bf2"]
        for j in range(kernel_size):
            z = z + _bf16_mm(yp[:, j:j + T, :], layer["w2"][j])
        z = z * mc
        x = _layer_norm(x + z, layer["g2"], layer["be2"])
    x = x * mc
    return jnp.transpose(x, (0, 2, 1)), mask[:, None, :]


# ---------------------------------------------------------------------------
# Demo / self-check
# ---------------------------------------------------------------------------
if __name__ == "__main__":
    key = jax.random.PRNGKey(0)
    k1, k2, k3, k4 = jax.random.split(key, 4)

    # Small shapes; hidden_channels is fixed to 192 by the module's pitch/duration tables.
    B, T = 2, 16
    n_vocab, hidden, filter_channels = 40, 192, 384
    n_heads, n_layers, kernel_size = 2, 2, 3

    tokens = jax.random.randint(k1, (B, T), 0, n_vocab)
    notepitch = jax.random.randint(k2, (B, T), 0, 121)
    notedur = jax.random.uniform(k3, (B, T), minval=0.0, maxval=4.0)
    x_lengths = jnp.array([T, 11], dtype=jnp.int32)   # second sequence is partially masked

    params = init_params(k4, n_vocab, hidden, filter_channels,
                         n_heads, n_layers, kernel_size)

    fwd = jax.jit(functools.partial(text_encoder_forward,
                                    n_heads=n_heads, kernel_size=kernel_size))
    out, x_mask = fwd(params, tokens, x_lengths, notepitch, notedur)
    jax.block_until_ready((out, x_mask))

    ref_out, ref_mask = _reference_forward(params, tokens, x_lengths, notepitch, notedur,
                                           n_heads=n_heads, kernel_size=kernel_size)
    # Tolerance covers the approximate-reciprocal softmax and bf16 rounding-order differences.
    np.testing.assert_allclose(np.asarray(out), np.asarray(ref_out), rtol=3e-2, atol=3e-2)
    np.testing.assert_allclose(np.asarray(x_mask), np.asarray(ref_mask), rtol=0, atol=0)
    assert out.shape == (B, hidden, T) and x_mask.shape == (B, 1, T)

    print("KERNEL_OK")
</pallas_src>

<mosaic_0001>
module attributes {stable_mosaic.version = 11 : i64} {
  func.func @_encoder_stack_kernel(%arg0: i32, %arg1: i32, %arg2: memref<2xi32, #tpu.memory_space<smem>>, %arg3: memref<1x128x192xf32, #tpu.memory_space<vmem>>, %arg4: memref<1x192x576xbf16, #tpu.memory_space<vmem>>, %arg5: memref<1x1x576xf32, #tpu.memory_space<vmem>>, %arg6: memref<1x2x96x192xbf16, #tpu.memory_space<vmem>>, %arg7: memref<1x1x192xf32, #tpu.memory_space<vmem>>, %arg8: memref<1x1x192xf32, #tpu.memory_space<vmem>>, %arg9: memref<1x1x192xf32, #tpu.memory_space<vmem>>, %arg10: memref<1x3x192x384xbf16, #tpu.memory_space<vmem>>, %arg11: memref<1x1x384xf32, #tpu.memory_space<vmem>>, %arg12: memref<1x3x384x192xbf16, #tpu.memory_space<vmem>>, %arg13: memref<1x1x192xf32, #tpu.memory_space<vmem>>, %arg14: memref<1x1x192xf32, #tpu.memory_space<vmem>>, %arg15: memref<1x1x192xf32, #tpu.memory_space<vmem>>, %arg16: memref<1x128x192xf32, #tpu.memory_space<vmem>>, %arg17: memref<128x192xf32, #tpu.memory_space<vmem>>) attributes {dimension_semantics = [#tpu.dimension_semantics<parallel>, #tpu.dimension_semantics<arbitrary>], iteration_bounds = array<i64: 2, 2>, scalar_prefetch = 1 : i64, scratch_operands = 1 : i64, tpu.core_type = #tpu.core_type<tc>, window_params = [{transform_indices = @transform_0, window_bounds = array<i64: 1, 128, 192>}, {transform_indices = @transform_1, window_bounds = array<i64: 1, 192, 576>}, {transform_indices = @transform_2, window_bounds = array<i64: 1, 1, 576>}, {transform_indices = @transform_3, window_bounds = array<i64: 1, 2, 96, 192>}, {transform_indices = @transform_4, window_bounds = array<i64: 1, 1, 192>}, {transform_indices = @transform_5, window_bounds = array<i64: 1, 1, 192>}, {transform_indices = @transform_6, window_bounds = array<i64: 1, 1, 192>}, {transform_indices = @transform_7, window_bounds = array<i64: 1, 3, 192, 384>}, {transform_indices = @transform_8, window_bounds = array<i64: 1, 1, 384>}, {transform_indices = @transform_9, window_bounds = array<i64: 1, 3, 384, 192>}, {transform_indices = @transform_10, window_bounds = array<i64: 1, 1, 192>}, {transform_indices = @transform_11, window_bounds = array<i64: 1, 1, 192>}, {transform_indices = @transform_12, window_bounds = array<i64: 1, 1, 192>}, {transform_indices = @transform_13, window_bounds = array<i64: 1, 128, 192>}]} {
    %0 = arith.index_cast %arg0 : i32 to index
    %1 = memref.load %arg2[%0] : memref<2xi32, #tpu.memory_space<smem>>
    %c0_i32 = arith.constant 0 : i32
    %2 = arith.cmpi eq, %arg1, %c0_i32 : i32
    %3 = arith.extui %2 : i1 to i32
    %c0_i32_0 = arith.constant 0 : i32
    %4 = arith.cmpi ne, %3, %c0_i32_0 : i32
    scf.if %4 {
      %c0_108 = arith.constant 0 : index
      %c0_109 = arith.constant 0 : index
      %c0_110 = arith.constant 0 : index
      %217 = vector.load %arg3[%c0_108, %c0_109, %c0_110] : memref<1x128x192xf32, #tpu.memory_space<vmem>>, vector<1x128x192xf32>
      %218 = vector.shape_cast %217 : vector<1x128x192xf32> to vector<128x192xf32>
      %c0_111 = arith.constant 0 : index
      %c0_112 = arith.constant 0 : index
      %219 = vector.load %arg17[%c0_111, %c0_112] : memref<128x192xf32, #tpu.memory_space<vmem>>, vector<128x192xf32>
      tpu.vector_store %arg17[%c0_111, %c0_112], %218 {strides = array<i32>} : memref<128x192xf32, #tpu.memory_space<vmem>>, vector<128x192xf32>,
    } else {
    }
    %c0 = arith.constant 0 : index
    %c0_1 = arith.constant 0 : index
    %5 = vector.load %arg17[%c0, %c0_1] : memref<128x192xf32, #tpu.memory_space<vmem>>, vector<128x192xf32>
    %6 = tpu.iota {dimensions = array<i32: 0>} : vector<128x1xi32>
    %7 = vector.broadcast %1 : i32 to vector<128x1xi32>
    %8 = arith.cmpi slt, %6, %7 : vector<128x1xi32>
    %9 = arith.extui %8 : vector<128x1xi1> to vector<128x1xi32>
    %10 = arith.sitofp %9 : vector<128x1xi32> to vector<128x1xf32>
    %11 = tpu.iota {dimensions = array<i32: 1>} : vector<1x128xi32>
    %12 = vector.broadcast %1 : i32 to vector<1x128xi32>
    %13 = arith.cmpi slt, %11, %12 : vector<1x128xi32>
    %cst = arith.constant 0.000000e+00 : f32
    %cst_2 = arith.constant -1.000000e+04 : f32
    %14 = vector.broadcast %cst : f32 to vector<1x128xf32>
    %15 = vector.broadcast %cst_2 : f32 to vector<1x128xf32>
    %16 = arith.select %13, %14, %15 : vector<1x128xi1>, vector<1x128xf32>
    %17 = arith.truncf %5 : vector<128x192xf32> to vector<128x192xbf16>
    %c0_3 = arith.constant 0 : index
    %c0_4 = arith.constant 0 : index
    %c0_5 = arith.constant 0 : index
    %18 = vector.load %arg4[%c0_3, %c0_4, %c0_5] : memref<1x192x576xbf16, #tpu.memory_space<vmem>>, vector<1x192x576xbf16>
    %19 = vector.shape_cast %18 : vector<1x192x576xbf16> to vector<192x576xbf16>
    %cst_6 = arith.constant dense<0.000000e+00> : vector<128x576xf32>
    %20 = tpu.matmul %17, %19, %cst_6 {dimension_numbers = #tpu.dot_dimension_numbers<[1], [0], [0], [1], [0, 0, 1, 1], [], []>} : vector<128x192xbf16>, vector<192x576xbf16>, vector<128x576xf32> -> vector<128x576xf32>
    %c0_7 = arith.constant 0 : index
    %c0_8 = arith.constant 0 : index
    %c0_9 = arith.constant 0 : index
    %21 = vector.load %arg5[%c0_7, %c0_8, %c0_9] : memref<1x1x576xf32, #tpu.memory_space<vmem>>, vector<1x1x576xf32>
    %22 = vector.shape_cast %21 : vector<1x1x576xf32> to vector<1x576xf32>
    %23 = vector.broadcast %22 : vector<1x576xf32> to vector<128x576xf32>
    %24 = arith.addf %20, %23 : vector<128x576xf32>
    %25 = arith.truncf %24 : vector<128x576xf32> to vector<128x576xbf16>
    %cst_10 = arith.constant 0.000000e+00 : f32
    %26 = vector.broadcast %cst_10 : f32 to vector<128x192xf32>
    %c0_11 = arith.constant 0 : index
    %c0_12 = arith.constant 0 : index
    %c0_13 = arith.constant 0 : index
    %27 = vector.load %arg7[%c0_11, %c0_12, %c0_13] : memref<1x1x192xf32, #tpu.memory_space<vmem>>, vector<1x1x192xf32>
    %28 = vector.shape_cast %27 : vector<1x1x192xf32> to vector<1x192xf32>
    %29 = vector.broadcast %28 : vector<1x192xf32> to vector<128x192xf32>
    %30 = arith.addf %26, %29 : vector<128x192xf32>
    %31 = vector.extract_strided_slice %25 {offsets = [0, 0], sizes = [128, 96], strides = [1, 1]} : vector<128x576xbf16> to vector<128x96xbf16>
    %32 = vector.extract_strided_slice %25 {offsets = [0, 192], sizes = [128, 96], strides = [1, 1]} : vector<128x576xbf16> to vector<128x96xbf16>
    %33 = vector.extract_strided_slice %25 {offsets = [0, 384], sizes = [128, 96], strides = [1, 1]} : vector<128x576xbf16> to vector<128x96xbf16>
    "tpu.trace_start"() <{level = 10 : i32, message = "td,sd->ts"}> : () -> ()
    %cst_14 = arith.constant dense<0.000000e+00> : vector<128x128xf32>
    %34 = tpu.matmul %31, %32, %cst_14 {dimension_numbers = #tpu.dot_dimension_numbers<[1], [1], [0], [0], [0, 0, 1, 0], [], []>} : vector<128x96xbf16>, vector<128x96xbf16>, vector<128x128xf32> -> vector<128x128xf32>
    "tpu.trace_stop"() : () -> ()
    %35 = vector.broadcast %16 : vector<1x128xf32> to vector<128x128xf32>
    %36 = arith.addf %34, %35 : vector<128x128xf32>
    %cst_15 = arith.constant dense<0xFF800000> : vector<128xf32>
    %37 = vector.multi_reduction <maximumf>, %36, %cst_15 [1] : vector<128x128xf32> to vector<128xf32>
    %38 = vector.shape_cast %37 : vector<128xf32> to vector<128x1xf32>
    %39 = vector.broadcast %38 : vector<128x1xf32> to vector<128x128xf32>
    %40 = arith.subf %36, %39 : vector<128x128xf32>
    %41 = math.exp %40 : vector<128x128xf32>
    %cst_16 = arith.constant dense<0.000000e+00> : vector<128xf32>
    %42 = vector.multi_reduction <add>, %41, %cst_16 [1] : vector<128x128xf32> to vector<128xf32>
    %43 = vector.shape_cast %42 : vector<128xf32> to vector<128x1xf32>
    %44 = tpu.reciprocal %43 {approx = true} : vector<128x1xf32> -> vector<128x1xf32>
    %45 = vector.broadcast %44 : vector<128x1xf32> to vector<128x128xf32>
    %46 = arith.mulf %41, %45 : vector<128x128xf32>
    %47 = arith.truncf %46 : vector<128x128xf32> to vector<128x128xbf16>
    %cst_17 = arith.constant dense<0.000000e+00> : vector<128x96xf32>
    %48 = tpu.matmul %47, %33, %cst_17 {dimension_numbers = #tpu.dot_dimension_numbers<[1], [0], [0], [1], [0, 0, 1, 1], [], []>} : vector<128x128xbf16>, vector<128x96xbf16>, vector<128x96xf32> -> vector<128x96xf32>
    %49 = arith.truncf %48 : vector<128x96xf32> to vector<128x96xbf16>
    %c0_18 = arith.constant 0 : index
    %c0_19 = arith.constant 0 : index
    %c0_20 = arith.constant 0 : index
    %c0_21 = arith.constant 0 : index
    %50 = vector.load %arg6[%c0_18, %c0_19, %c0_20, %c0_21] : memref<1x2x96x192xbf16, #tpu.memory_space<vmem>>, vector<1x1x96x192xbf16>
    %51 = vector.shape_cast %50 : vector<1x1x96x192xbf16> to vector<96x192xbf16>
    %cst_22 = arith.constant dense<0.000000e+00> : vector<128x192xf32>
    %52 = tpu.matmul %49, %51, %cst_22 {dimension_numbers = #tpu.dot_dimension_numbers<[1], [0], [0], [1], [0, 0, 1, 1], [], []>} : vector<128x96xbf16>, vector<96x192xbf16>, vector<128x192xf32> -> vector<128x192xf32>
    %53 = arith.addf %30, %52 : vector<128x192xf32>
    %54 = vector.extract_strided_slice %25 {offsets = [0, 96], sizes = [128, 96], strides = [1, 1]} : vector<128x576xbf16> to vector<128x96xbf16>
    %55 = vector.extract_strided_slice %25 {offsets = [0, 288], sizes = [128, 96], strides = [1, 1]} : vector<128x576xbf16> to vector<128x96xbf16>
    %56 = vector.extract_strided_slice %25 {offsets = [0, 480], sizes = [128, 96], strides = [1, 1]} : vector<128x576xbf16> to vector<128x96xbf16>
    "tpu.trace_start"() <{level = 10 : i32, message = "td,sd->ts"}> : () -> ()
    %cst_23 = arith.constant dense<0.000000e+00> : vector<128x128xf32>
    %57 = tpu.matmul %54, %55, %cst_23 {dimension_numbers = #tpu.dot_dimension_numbers<[1], [1], [0], [0], [0, 0, 1, 0], [], []>} : vector<128x96xbf16>, vector<128x96xbf16>, vector<128x128xf32> -> vector<128x128xf32>
    "tpu.trace_stop"() : () -> ()
    %58 = vector.broadcast %16 : vector<1x128xf32> to vector<128x128xf32>
    %59 = arith.addf %57, %58 : vector<128x128xf32>
    %cst_24 = arith.constant dense<0xFF800000> : vector<128xf32>
    %60 = vector.multi_reduction <maximumf>, %59, %cst_24 [1] : vector<128x128xf32> to vector<128xf32>
    %61 = vector.shape_cast %60 : vector<128xf32> to vector<128x1xf32>
    %62 = vector.broadcast %61 : vector<128x1xf32> to vector<128x128xf32>
    %63 = arith.subf %59, %62 : vector<128x128xf32>
    %64 = math.exp %63 : vector<128x128xf32>
    %cst_25 = arith.constant dense<0.000000e+00> : vector<128xf32>
    %65 = vector.multi_reduction <add>, %64, %cst_25 [1] : vector<128x128xf32> to vector<128xf32>
    %66 = vector.shape_cast %65 : vector<128xf32> to vector<128x1xf32>
    %67 = tpu.reciprocal %66 {approx = true} : vector<128x1xf32> -> vector<128x1xf32>
    %68 = vector.broadcast %67 : vector<128x1xf32> to vector<128x128xf32>
    %69 = arith.mulf %64, %68 : vector<128x128xf32>
    %70 = arith.truncf %69 : vector<128x128xf32> to vector<128x128xbf16>
    %cst_26 = arith.constant dense<0.000000e+00> : vector<128x96xf32>
    %71 = tpu.matmul %70, %56, %cst_26 {dimension_numbers = #tpu.dot_dimension_numbers<[1], [0], [0], [1], [0, 0, 1, 1], [], []>} : vector<128x128xbf16>, vector<128x96xbf16>, vector<128x96xf32> -> vector<128x96xf32>
    %72 = arith.truncf %71 : vector<128x96xf32> to vector<128x96xbf16>
    %c0_27 = arith.constant 0 : index
    %c1 = arith.constant 1 : index
    %c0_28 = arith.constant 0 : index
    %c0_29 = arith.constant 0 : index
    %73 = vector.load %arg6[%c0_27, %c1, %c0_28, %c0_29] : memref<1x2x96x192xbf16, #tpu.memory_space<vmem>>, vector<1x1x96x192xbf16>
    %74 = vector.shape_cast %73 : vector<1x1x96x192xbf16> to vector<96x192xbf16>
    %cst_30 = arith.constant dense<0.000000e+00> : vector<128x192xf32>
    %75 = tpu.matmul %72, %74, %cst_30 {dimension_numbers = #tpu.dot_dimension_numbers<[1], [0], [0], [1], [0, 0, 1, 1], [], []>} : vector<128x96xbf16>, vector<96x192xbf16>, vector<128x192xf32> -> vector<128x192xf32>
    %76 = arith.addf %53, %75 : vector<128x192xf32>
    %77 = arith.addf %5, %76 : vector<128x192xf32>
    %c0_31 = arith.constant 0 : index
    %c0_32 = arith.constant 0 : index
    %c0_33 = arith.constant 0 : index
    %78 = vector.load %arg8[%c0_31, %c0_32, %c0_33] : memref<1x1x192xf32, #tpu.memory_space<vmem>>, vector<1x1x192xf32>
    %79 = vector.shape_cast %78 : vector<1x1x192xf32> to vector<1x192xf32>
    %c0_34 = arith.constant 0 : index
    %c0_35 = arith.constant 0 : index
    %c0_36 = arith.constant 0 : index
    %80 = vector.load %arg9[%c0_34, %c0_35, %c0_36] : memref<1x1x192xf32, #tpu.memory_space<vmem>>, vector<1x1x192xf32>
    %81 = vector.shape_cast %80 : vector<1x1x192xf32> to vector<1x192xf32>
    %cst_37 = arith.constant dense<0.000000e+00> : vector<128xf32>
    %82 = vector.multi_reduction <add>, %77, %cst_37 [1] : vector<128x192xf32> to vector<128xf32>
    %83 = vector.shape_cast %82 : vector<128xf32> to vector<128x1xf32>
    %cst_38 = arith.constant 1.920000e+02 : f32
    %84 = vector.broadcast %cst_38 : f32 to vector<128x1xf32>
    %85 = arith.divf %83, %84 : vector<128x1xf32>
    %86 = vector.broadcast %85 : vector<128x1xf32> to vector<128x192xf32>
    %87 = arith.subf %77, %86 : vector<128x192xf32>
    %88 = arith.mulf %87, %87 : vector<128x192xf32>
    %cst_39 = arith.constant dense<0.000000e+00> : vector<128xf32>
    %89 = vector.multi_reduction <add>, %88, %cst_39 [1] : vector<128x192xf32> to vector<128xf32>
    %90 = vector.shape_cast %89 : vector<128xf32> to vector<128x1xf32>
    %cst_40 = arith.constant 1.920000e+02 : f32
    %91 = vector.broadcast %cst_40 : f32 to vector<128x1xf32>
    %92 = arith.divf %90, %91 : vector<128x1xf32>
    %cst_41 = arith.constant 9.99999974E-6 : f32
    %93 = vector.broadcast %cst_41 : f32 to vector<128x1xf32>
    %94 = arith.addf %92, %93 : vector<128x1xf32>
    %95 = math.rsqrt %94 : vector<128x1xf32>
    %96 = vector.broadcast %95 : vector<128x1xf32> to vector<128x192xf32>
    %97 = arith.mulf %87, %96 : vector<128x192xf32>
    %98 = vector.broadcast %79 : vector<1x192xf32> to vector<128x192xf32>
    %99 = arith.mulf %97, %98 : vector<128x192xf32>
    %100 = vector.broadcast %81 : vector<1x192xf32> to vector<128x192xf32>
    %101 = arith.addf %99, %100 : vector<128x192xf32>
    %c-1_i32 = arith.constant -1 : i32
    %102 = vector.broadcast %c-1_i32 : i32 to vector<128x1xi32>
    %103 = arith.addi %6, %102 : vector<128x1xi32>
    %c0_i32_42 = arith.constant 0 : i32
    %104 = vector.broadcast %c0_i32_42 : i32 to vector<128x1xi32>
    %105 = arith.cmpi sge, %103, %104 : vector<128x1xi32>
    %c-1_i32_43 = arith.constant -1 : i32
    %106 = vector.broadcast %c-1_i32_43 : i32 to vector<128x1xi32>
    %107 = arith.addi %6, %106 : vector<128x1xi32>
    %c127_i32 = arith.constant 127 : i32
    %108 = vector.broadcast %c127_i32 : i32 to vector<128x1xi32>
    %109 = arith.cmpi sle, %107, %108 : vector<128x1xi32>
    %110 = arith.andi %105, %109 : vector<128x1xi1>
    %c1_i32 = arith.constant 1 : i32
    %111 = vector.broadcast %c1_i32 : i32 to vector<128x1xi32>
    %112 = arith.addi %6, %111 : vector<128x1xi32>
    %c0_i32_44 = arith.constant 0 : i32
    %113 = vector.broadcast %c0_i32_44 : i32 to vector<128x1xi32>
    %114 = arith.cmpi sge, %112, %113 : vector<128x1xi32>
    %c1_i32_45 = arith.constant 1 : i32
    %115 = vector.broadcast %c1_i32_45 : i32 to vector<128x1xi32>
    %116 = arith.addi %6, %115 : vector<128x1xi32>
    %c127_i32_46 = arith.constant 127 : i32
    %117 = vector.broadcast %c127_i32_46 : i32 to vector<128x1xi32>
    %118 = arith.cmpi sle, %116, %117 : vector<128x1xi32>
    %119 = arith.andi %114, %118 : vector<128x1xi1>
    %120 = vector.broadcast %10 : vector<128x1xf32> to vector<128x192xf32>
    %121 = arith.mulf %101, %120 : vector<128x192xf32>
    %cst_47 = arith.constant 0.000000e+00 : f32
    %122 = vector.broadcast %cst_47 : f32 to vector<128x384xf32>
    %c0_48 = arith.constant 0 : index
    %c0_49 = arith.constant 0 : index
    %c0_50 = arith.constant 0 : index
    %123 = vector.load %arg11[%c0_48, %c0_49, %c0_50] : memref<1x1x384xf32, #tpu.memory_space<vmem>>, vector<1x1x384xf32>
    %124 = vector.shape_cast %123 : vector<1x1x384xf32> to vector<1x384xf32>
    %125 = vector.broadcast %124 : vector<1x384xf32> to vector<128x384xf32>
    %126 = arith.addf %122, %125 : vector<128x384xf32>
    %c1_i32_51 = arith.constant 1 : i32
    %127 = tpu.dynamic_rotate %121 by %c1_i32_51 dim 0 : vector<128x192xf32>, i32 -> vector<128x192xf32>
    %cst_52 = arith.constant 0.000000e+00 : f32
    %128 = vector.shape_cast %110 : vector<128x1xi1> to vector<128x1xi1>
    %129 = vector.broadcast %128 : vector<128x1xi1> to vector<128x192xi1>
    %130 = vector.broadcast %cst_52 : f32 to vector<128x192xf32>
    %131 = arith.select %129, %127, %130 : vector<128x192xi1>, vector<128x192xf32>
    %132 = arith.truncf %131 : vector<128x192xf32> to vector<128x192xbf16>
    %c0_53 = arith.constant 0 : index
    %c0_54 = arith.constant 0 : index
    %c0_55 = arith.constant 0 : index
    %c0_56 = arith.constant 0 : index
    %133 = vector.load %arg10[%c0_53, %c0_54, %c0_55, %c0_56] : memref<1x3x192x384xbf16, #tpu.memory_space<vmem>>, vector<1x1x192x384xbf16>
    %134 = vector.shape_cast %133 : vector<1x1x192x384xbf16> to vector<192x384xbf16>
    %cst_57 = arith.constant dense<0.000000e+00> : vector<128x384xf32>
    %135 = tpu.matmul %132, %134, %cst_57 {dimension_numbers = #tpu.dot_dimension_numbers<[1], [0], [0], [1], [0, 0, 1, 1], [], []>} : vector<128x192xbf16>, vector<192x384xbf16>, vector<128x384xf32> -> vector<128x384xf32>
    %136 = arith.addf %126, %135 : vector<128x384xf32>
    %137 = arith.truncf %121 : vector<128x192xf32> to vector<128x192xbf16>
    %c0_58 = arith.constant 0 : index
    %c1_59 = arith.constant 1 : index
    %c0_60 = arith.constant 0 : index
    %c0_61 = arith.constant 0 : index
    %138 = vector.load %arg10[%c0_58, %c1_59, %c0_60, %c0_61] : memref<1x3x192x384xbf16, #tpu.memory_space<vmem>>, vector<1x1x192x384xbf16>
    %139 = vector.shape_cast %138 : vector<1x1x192x384xbf16> to vector<192x384xbf16>
    %cst_62 = arith.constant dense<0.000000e+00> : vector<128x384xf32>
    %140 = tpu.matmul %137, %139, %cst_62 {dimension_numbers = #tpu.dot_dimension_numbers<[1], [0], [0], [1], [0, 0, 1, 1], [], []>} : vector<128x192xbf16>, vector<192x384xbf16>, vector<128x384xf32> -> vector<128x384xf32>
    %141 = arith.addf %136, %140 : vector<128x384xf32>
    %c127_i32_63 = arith.constant 127 : i32
    %142 = tpu.dynamic_rotate %121 by %c127_i32_63 dim 0 : vector<128x192xf32>, i32 -> vector<128x192xf32>
    %cst_64 = arith.constant 0.000000e+00 : f32
    %143 = vector.shape_cast %119 : vector<128x1xi1> to vector<128x1xi1>
    %144 = vector.broadcast %143 : vector<128x1xi1> to vector<128x192xi1>
    %145 = vector.broadcast %cst_64 : f32 to vector<128x192xf32>
    %146 = arith.select %144, %142, %145 : vector<128x192xi1>, vector<128x192xf32>
    %147 = arith.truncf %146 : vector<128x192xf32> to vector<128x192xbf16>
    %c0_65 = arith.constant 0 : index
    %c2 = arith.constant 2 : index
    %c0_66 = arith.constant 0 : index
    %c0_67 = arith.constant 0 : index
    %148 = vector.load %arg10[%c0_65, %c2, %c0_66, %c0_67] : memref<1x3x192x384xbf16, #tpu.memory_space<vmem>>, vector<1x1x192x384xbf16>
    %149 = vector.shape_cast %148 : vector<1x1x192x384xbf16> to vector<192x384xbf16>
    %cst_68 = arith.constant dense<0.000000e+00> : vector<128x384xf32>
    %150 = tpu.matmul %147, %149, %cst_68 {dimension_numbers = #tpu.dot_dimension_numbers<[1], [0], [0], [1], [0, 0, 1, 1], [], []>} : vector<128x192xbf16>, vector<192x384xbf16>, vector<128x384xf32> -> vector<128x384xf32>
    %151 = arith.addf %141, %150 : vector<128x384xf32>
    %cst_69 = arith.constant 0.000000e+00 : f32
    %152 = vector.broadcast %cst_69 : f32 to vector<128x384xf32>
    %153 = arith.maximumf %151, %152 : vector<128x384xf32>
    %154 = vector.broadcast %10 : vector<128x1xf32> to vector<128x384xf32>
    %155 = arith.mulf %153, %154 : vector<128x384xf32>
    %cst_70 = arith.constant 0.000000e+00 : f32
    %156 = vector.broadcast %cst_70 : f32 to vector<128x192xf32>
    %c0_71 = arith.constant 0 : index
    %c0_72 = arith.constant 0 : index
    %c0_73 = arith.constant 0 : index
    %157 = vector.load %arg13[%c0_71, %c0_72, %c0_73] : memref<1x1x192xf32, #tpu.memory_space<vmem>>, vector<1x1x192xf32>
    %158 = vector.shape_cast %157 : vector<1x1x192xf32> to vector<1x192xf32>
    %159 = vector.broadcast %158 : vector<1x192xf32> to vector<128x192xf32>
    %160 = arith.addf %156, %159 : vector<128x192xf32>
    %c1_i32_74 = arith.constant 1 : i32
    %161 = tpu.dynamic_rotate %155 by %c1_i32_74 dim 0 : vector<128x384xf32>, i32 -> vector<128x384xf32>
    %cst_75 = arith.constant 0.000000e+00 : f32
    %162 = vector.shape_cast %110 : vector<128x1xi1> to vector<128x1xi1>
    %163 = vector.broadcast %162 : vector<128x1xi1> to vector<128x384xi1>
    %164 = vector.broadcast %cst_75 : f32 to vector<128x384xf32>
    %165 = arith.select %163, %161, %164 : vector<128x384xi1>, vector<128x384xf32>
    %166 = arith.truncf %165 : vector<128x384xf32> to vector<128x384xbf16>
    %c0_76 = arith.constant 0 : index
    %c0_77 = arith.constant 0 : index
    %c0_78 = arith.constant 0 : index
    %c0_79 = arith.constant 0 : index
    %167 = vector.load %arg12[%c0_76, %c0_77, %c0_78, %c0_79] : memref<1x3x384x192xbf16, #tpu.memory_space<vmem>>, vector<1x1x384x192xbf16>
    %168 = vector.shape_cast %167 : vector<1x1x384x192xbf16> to vector<384x192xbf16>
    %cst_80 = arith.constant dense<0.000000e+00> : vector<128x192xf32>
    %169 = tpu.matmul %166, %168, %cst_80 {dimension_numbers = #tpu.dot_dimension_numbers<[1], [0], [0], [1], [0, 0, 1, 1], [], []>} : vector<128x384xbf16>, vector<384x192xbf16>, vector<128x192xf32> -> vector<128x192xf32>
    %170 = arith.addf %160, %169 : vector<128x192xf32>
    %171 = arith.truncf %155 : vector<128x384xf32> to vector<128x384xbf16>
    %c0_81 = arith.constant 0 : index
    %c1_82 = arith.constant 1 : index
    %c0_83 = arith.constant 0 : index
    %c0_84 = arith.constant 0 : index
    %172 = vector.load %arg12[%c0_81, %c1_82, %c0_83, %c0_84] : memref<1x3x384x192xbf16, #tpu.memory_space<vmem>>, vector<1x1x384x192xbf16>
    %173 = vector.shape_cast %172 : vector<1x1x384x192xbf16> to vector<384x192xbf16>
    %cst_85 = arith.constant dense<0.000000e+00> : vector<128x192xf32>
    %174 = tpu.matmul %171, %173, %cst_85 {dimension_numbers = #tpu.dot_dimension_numbers<[1], [0], [0], [1], [0, 0, 1, 1], [], []>} : vector<128x384xbf16>, vector<384x192xbf16>, vector<128x192xf32> -> vector<128x192xf32>
    %175 = arith.addf %170, %174 : vector<128x192xf32>
    %c127_i32_86 = arith.constant 127 : i32
    %176 = tpu.dynamic_rotate %155 by %c127_i32_86 dim 0 : vector<128x384xf32>, i32 -> vector<128x384xf32>
    %cst_87 = arith.constant 0.000000e+00 : f32
    %177 = vector.shape_cast %119 : vector<128x1xi1> to vector<128x1xi1>
    %178 = vector.broadcast %177 : vector<128x1xi1> to vector<128x384xi1>
    %179 = vector.broadcast %cst_87 : f32 to vector<128x384xf32>
    %180 = arith.select %178, %176, %179 : vector<128x384xi1>, vector<128x384xf32>
    %181 = arith.truncf %180 : vector<128x384xf32> to vector<128x384xbf16>
    %c0_88 = arith.constant 0 : index
    %c2_89 = arith.constant 2 : index
    %c0_90 = arith.constant 0 : index
    %c0_91 = arith.constant 0 : index
    %182 = vector.load %arg12[%c0_88, %c2_89, %c0_90, %c0_91] : memref<1x3x384x192xbf16, #tpu.memory_space<vmem>>, vector<1x1x384x192xbf16>
    %183 = vector.shape_cast %182 : vector<1x1x384x192xbf16> to vector<384x192xbf16>
    %cst_92 = arith.constant dense<0.000000e+00> : vector<128x192xf32>
    %184 = tpu.matmul %181, %183, %cst_92 {dimension_numbers = #tpu.dot_dimension_numbers<[1], [0], [0], [1], [0, 0, 1, 1], [], []>} : vector<128x384xbf16>, vector<384x192xbf16>, vector<128x192xf32> -> vector<128x192xf32>
    %185 = arith.addf %175, %184 : vector<128x192xf32>
    %186 = vector.broadcast %10 : vector<128x1xf32> to vector<128x192xf32>
    %187 = arith.mulf %185, %186 : vector<128x192xf32>
    %188 = arith.addf %101, %187 : vector<128x192xf32>
    %c0_93 = arith.constant 0 : index
    %c0_94 = arith.constant 0 : index
    %c0_95 = arith.constant 0 : index
    %189 = vector.load %arg14[%c0_93, %c0_94, %c0_95] : memref<1x1x192xf32, #tpu.memory_space<vmem>>, vector<1x1x192xf32>
    %190 = vector.shape_cast %189 : vector<1x1x192xf32> to vector<1x192xf32>
    %c0_96 = arith.constant 0 : index
    %c0_97 = arith.constant 0 : index
    %c0_98 = arith.constant 0 : index
    %191 = vector.load %arg15[%c0_96, %c0_97, %c0_98] : memref<1x1x192xf32, #tpu.memory_space<vmem>>, vector<1x1x192xf32>
    %192 = vector.shape_cast %191 : vector<1x1x192xf32> to vector<1x192xf32>
    %cst_99 = arith.constant dense<0.000000e+00> : vector<128xf32>
    %193 = vector.multi_reduction <add>, %188, %cst_99 [1] : vector<128x192xf32> to vector<128xf32>
    %194 = vector.shape_cast %193 : vector<128xf32> to vector<128x1xf32>
    %cst_100 = arith.constant 1.920000e+02 : f32
    %195 = vector.broadcast %cst_100 : f32 to vector<128x1xf32>
    %196 = arith.divf %194, %195 : vector<128x1xf32>
    %197 = vector.broadcast %196 : vector<128x1xf32> to vector<128x192xf32>
    %198 = arith.subf %188, %197 : vector<128x192xf32>
    %199 = arith.mulf %198, %198 : vector<128x192xf32>
    %cst_101 = arith.constant dense<0.000000e+00> : vector<128xf32>
    %200 = vector.multi_reduction <add>, %199, %cst_101 [1] : vector<128x192xf32> to vector<128xf32>
    %201 = vector.shape_cast %200 : vector<128xf32> to vector<128x1xf32>
    %cst_102 = arith.constant 1.920000e+02 : f32
    %202 = vector.broadcast %cst_102 : f32 to vector<128x1xf32>
    %203 = arith.divf %201, %202 : vector<128x1xf32>
    %cst_103 = arith.constant 9.99999974E-6 : f32
    %204 = vector.broadcast %cst_103 : f32 to vector<128x1xf32>
    %205 = arith.addf %203, %204 : vector<128x1xf32>
    %206 = math.rsqrt %205 : vector<128x1xf32>
    %207 = vector.broadcast %206 : vector<128x1xf32> to vector<128x192xf32>
    %208 = arith.mulf %198, %207 : vector<128x192xf32>
    %209 = vector.broadcast %190 : vector<1x192xf32> to vector<128x192xf32>
    %210 = arith.mulf %208, %209 : vector<128x192xf32>
    %211 = vector.broadcast %192 : vector<1x192xf32> to vector<128x192xf32>
    %212 = arith.addf %210, %211 : vector<128x192xf32>
    %c0_104 = arith.constant 0 : index
    %c0_105 = arith.constant 0 : index
    %213 = vector.load %arg17[%c0_104, %c0_105] : memref<128x192xf32, #tpu.memory_space<vmem>>, vector<128x192xf32>
    tpu.vector_store %arg17[%c0_104, %c0_105], %212 {strides = array<i32>} : memref<128x192xf32, #tpu.memory_space<vmem>>, vector<128x192xf32>,
    %c1_i32_106 = arith.constant 1 : i32
    %214 = arith.cmpi eq, %arg1, %c1_i32_106 : i32
    %215 = arith.extui %214 : i1 to i32
    %c0_i32_107 = arith.constant 0 : i32
    %216 = arith.cmpi ne, %215, %c0_i32_107 : i32
    scf.if %216 {
      %c0_108 = arith.constant 0 : index
      %c0_109 = arith.constant 0 : index
      %c0_110 = arith.constant 0 : index
      %217 = vector.load %arg16[%c0_108, %c0_109, %c0_110] : memref<1x128x192xf32, #tpu.memory_space<vmem>>, vector<1x128x192xf32>
      %218 = vector.shape_cast %217 : vector<1x128x192xf32> to vector<128x192xf32>
      %219 = vector.shape_cast %212 : vector<128x192xf32> to vector<1x128x192xf32>
      tpu.vector_store %arg16[%c0_108, %c0_109, %c0_110], %219 {strides = array<i32>} : memref<1x128x192xf32, #tpu.memory_space<vmem>>, vector<1x128x192xf32>,
    } else {
    }
    return
  }
  func.func @transform_0(%arg0: i32, %arg1: i32, %arg2: memref<2xi32, #tpu.memory_space<smem>>) -> (i32, i32, i32) {
    %c0_i32 = arith.constant 0 : i32
    %c0_i32_0 = arith.constant 0 : i32
    %c0_i32_1 = arith.constant 0 : i32
    return %arg0, %c0_i32, %c0_i32_0 : i32, i32, i32
  }
  func.func @transform_1(%arg0: i32, %arg1: i32, %arg2: memref<2xi32, #tpu.memory_space<smem>>) -> (i32, i32, i32) {
    %c0_i32 = arith.constant 0 : i32
    %c0_i32_0 = arith.constant 0 : i32
    %c0_i32_1 = arith.constant 0 : i32
    return %arg1, %c0_i32, %c0_i32_0 : i32, i32, i32
  }
  func.func @transform_2(%arg0: i32, %arg1: i32, %arg2: memref<2xi32, #tpu.memory_space<smem>>) -> (i32, i32, i32) {
    %c0_i32 = arith.constant 0 : i32
    %c0_i32_0 = arith.constant 0 : i32
    %c0_i32_1 = arith.constant 0 : i32
    return %arg1, %c0_i32, %c0_i32_0 : i32, i32, i32
  }
  func.func @transform_3(%arg0: i32, %arg1: i32, %arg2: memref<2xi32, #tpu.memory_space<smem>>) -> (i32, i32, i32, i32) {
    %c0_i32 = arith.constant 0 : i32
    %c0_i32_0 = arith.constant 0 : i32
    %c0_i32_1 = arith.constant 0 : i32
    %c0_i32_2 = arith.constant 0 : i32
    return %arg1, %c0_i32, %c0_i32_0, %c0_i32_1 : i32, i32, i32, i32
  }
  func.func @transform_4(%arg0: i32, %arg1: i32, %arg2: memref<2xi32, #tpu.memory_space<smem>>) -> (i32, i32, i32) {
    %c0_i32 = arith.constant 0 : i32
    %c0_i32_0 = arith.constant 0 : i32
    %c0_i32_1 = arith.constant 0 : i32
    return %arg1, %c0_i32, %c0_i32_0 : i32, i32, i32
  }
  func.func @transform_5(%arg0: i32, %arg1: i32, %arg2: memref<2xi32, #tpu.memory_space<smem>>) -> (i32, i32, i32) {
    %c0_i32 = arith.constant 0 : i32
    %c0_i32_0 = arith.constant 0 : i32
    %c0_i32_1 = arith.constant 0 : i32
    return %arg1, %c0_i32, %c0_i32_0 : i32, i32, i32
  }
  func.func @transform_6(%arg0: i32, %arg1: i32, %arg2: memref<2xi32, #tpu.memory_space<smem>>) -> (i32, i32, i32) {
    %c0_i32 = arith.constant 0 : i32
    %c0_i32_0 = arith.constant 0 : i32
    %c0_i32_1 = arith.constant 0 : i32
    return %arg1, %c0_i32, %c0_i32_0 : i32, i32, i32
  }
  func.func @transform_7(%arg0: i32, %arg1: i32, %arg2: memref<2xi32, #tpu.memory_space<smem>>) -> (i32, i32, i32, i32) {
    %c0_i32 = arith.constant 0 : i32
    %c0_i32_0 = arith.constant 0 : i32
    %c0_i32_1 = arith.constant 0 : i32
    %c0_i32_2 = arith.constant 0 : i32
    return %arg1, %c0_i32, %c0_i32_0, %c0_i32_1 : i32, i32, i32, i32
  }
  func.func @transform_8(%arg0: i32, %arg1: i32, %arg2: memref<2xi32, #tpu.memory_space<smem>>) -> (i32, i32, i32) {
    %c0_i32 = arith.constant 0 : i32
    %c0_i32_0 = arith.constant 0 : i32
    %c0_i32_1 = arith.constant 0 : i32
    return %arg1, %c0_i32, %c0_i32_0 : i32, i32, i32
  }
  func.func @transform_9(%arg0: i32, %arg1: i32, %arg2: memref<2xi32, #tpu.memory_space<smem>>) -> (i32, i32, i32, i32) {
    %c0_i32 = arith.constant 0 : i32
    %c0_i32_0 = arith.constant 0 : i32
    %c0_i32_1 = arith.constant 0 : i32
    %c0_i32_2 = arith.constant 0 : i32
    return %arg1, %c0_i32, %c0_i32_0, %c0_i32_1 : i32, i32, i32, i32
  }
  func.func @transform_10(%arg0: i32, %arg1: i32, %arg2: memref<2xi32, #tpu.memory_space<smem>>) -> (i32, i32, i32) {
    %c0_i32 = arith.constant 0 : i32
    %c0_i32_0 = arith.constant 0 : i32
    %c0_i32_1 = arith.constant 0 : i32
    return %arg1, %c0_i32, %c0_i32_0 : i32, i32, i32
  }
  func.func @transform_11(%arg0: i32, %arg1: i32, %arg2: memref<2xi32, #tpu.memory_space<smem>>) -> (i32, i32, i32) {
    %c0_i32 = arith.constant 0 : i32
    %c0_i32_0 = arith.constant 0 : i32
    %c0_i32_1 = arith.constant 0 : i32
    return %arg1, %c0_i32, %c0_i32_0 : i32, i32, i32
  }
  func.func @transform_12(%arg0: i32, %arg1: i32, %arg2: memref<2xi32, #tpu.memory_space<smem>>) -> (i32, i32, i32) {
    %c0_i32 = arith.constant 0 : i32
    %c0_i32_0 = arith.constant 0 : i32
    %c0_i32_1 = arith.constant 0 : i32
    return %arg1, %c0_i32, %c0_i32_0 : i32, i32, i32
  }
  func.func @transform_13(%arg0: i32, %arg1: i32, %arg2: memref<2xi32, #tpu.memory_space<smem>>) -> (i32, i32, i32) {
    %c0_i32 = arith.constant 0 : i32
    %c0_i32_0 = arith.constant 0 : i32
    %c0_i32_1 = arith.constant 0 : i32
    return %arg0, %c0_i32, %c0_i32_0 : i32, i32, i32
  }
}

</mosaic_0001>

<llo_original>
// kernel: text_encoder_forward.1
$region0: #{text_encoder_forward.1}
  #allocation0 [shape = 'u32[]', space=smem, size = 0x4, offset = 0x4, fixed_abs, tag = 'smem constant byte address 0x4 - core index']
  #allocation1 [shape = 'u32[72,128]{1,0:T(1,128)}', space=vmem, size = 0x9000, scoped, tag = 'internal scratch']
  #allocation2 [shape = 'f32[128,192]{1,0:T(8,128)}', space=vmem, size = 0x20000, scoped, tag = 'scratch operand']
  #allocation3 [shape = 's32[1]{0}', space=sflag, size = 0x4, scoped, tag = 'scoped memory for text_encoder_forward.1']
  #allocation4 [shape = 'u8[512]{0}', space=smem, size = 0x200, scoped, tag = 'prefetched SMEM operand 0']
  %s0 = inlined_call_operand.vmem [shape: s32[2], index: 0, kind: input, shape index: {}]
  %s1 = inlined_call_operand.vmem [shape: f32[2,128,192], index: 1, kind: input, shape index: {}]
  %s2 = inlined_call_operand.vmem [shape: bf16[2,192,576], index: 2, kind: input, shape index: {}]
  %s3 = inlined_call_operand.vmem [shape: f32[2,1,576], index: 3, kind: input, shape index: {}]
  %s4 = inlined_call_operand.vmem [shape: bf16[2,2,96,192], index: 4, kind: input, shape index: {}]
  %s5 = inlined_call_operand.vmem [shape: f32[2,1,192], index: 5, kind: input, shape index: {}]
  %s6 = inlined_call_operand.vmem [shape: f32[2,1,192], index: 6, kind: input, shape index: {}]
  %s7 = inlined_call_operand.vmem [shape: f32[2,1,192], index: 7, kind: input, shape index: {}]
  %s8 = inlined_call_operand.vmem [shape: bf16[2,3,192,384], index: 8, kind: input, shape index: {}]
  %s9 = inlined_call_operand.vmem [shape: f32[2,1,384], index: 9, kind: input, shape index: {}]
  %s10 = inlined_call_operand.vmem [shape: bf16[2,3,384,192], index: 10, kind: input, shape index: {}]
  %s11 = inlined_call_operand.vmem [shape: f32[2,1,192], index: 11, kind: input, shape index: {}]
  %s12 = inlined_call_operand.vmem [shape: f32[2,1,192], index: 12, kind: input, shape index: {}]
  %s13 = inlined_call_operand.vmem [shape: f32[2,1,192], index: 13, kind: input, shape index: {}]
  %s14 = inlined_call_operand.vmem [shape: f32[2,128,192], index: 14, kind: output, shape index: {}]
  %s15 = sld [smem:[#allocation0]]
  $region93: #{text_encoder_forward.1} parent=0
    _
  %s17 = ssub.s32 1, %s15
  %s18 = scalar_select 0, %s17, %s15
  %s20 = sshll.u32 %s0, 4
  %s21 = int_to_ptr.vmem [resolvable:$true] %s20
  %23 = dma.vmem_to_smem %s21, 16, [#allocation4], [#allocation3]
  %25 = dma.done [#allocation3], 16
  %26 = sfence
  loop: start=0, step=1, limit=6
  $region2: #{text_encoder_forward.1} parent=0 // loop_pre_header
    _
  $region3: #{text_encoder_forward.1} parent=0 // loop_header
    %s28 = sphi 0, %s32
    %p29 = scmp.ge.s32.totalorder %s28, 6
    %s35 = sphi 0, %s47
    %s36 = sphi 0, %s43
    %s37 = sphi 0, %s35
    %s38 = sphi 0, %s36
    %s39 = sphi 0, %s37
    %s40 = sphi 0, %s38
    %s50 = sphi 0, %s52
    %s53 = sphi 0, %s50
    %s54 = sphi 0, %s53
    %s70 = sphi 0, %s54
    %s76 = sphi 0, %s78
    %s79 = sphi 0, %s76
    %s80 = sphi 0, %s79
    %s96 = sphi 0, %s80
    %s102 = sphi 0, %s104
    %s105 = sphi 0, %s102
    %s106 = sphi 0, %s105
    %s122 = sphi 0, %s106
    %s128 = sphi 0, %s130
    %s131 = sphi 0, %s128
    %s132 = sphi 0, %s131
    %s148 = sphi 0, %s132
    %s154 = sphi 0, %s156
    %s157 = sphi 0, %s154
    %s158 = sphi 0, %s157
    %s174 = sphi 0, %s158
    %s180 = sphi 0, %s182
    %s183 = sphi 0, %s180
    %s184 = sphi 0, %s183
    %s200 = sphi 0, %s184
    %s206 = sphi 0, %s208
    %s209 = sphi 0, %s206
    %s210 = sphi 0, %s209
    %s226 = sphi 0, %s210
    %s232 = sphi 0, %s234
    %s235 = sphi 0, %s232
    %s236 = sphi 0, %s235
    %s252 = sphi 0, %s236
    %s258 = sphi 0, %s260
    %s261 = sphi 0, %s258
    %s262 = sphi 0, %s261
    %s278 = sphi 0, %s262
    %s284 = sphi 0, %s286
    %s287 = sphi 0, %s284
    %s288 = sphi 0, %s287
    %s304 = sphi 0, %s288
    %s310 = sphi 0, %s312
    %s313 = sphi 0, %s310
    %s314 = sphi 0, %s313
    %s330 = sphi 0, %s314
    %s336 = sphi 0, %s338
    %s339 = sphi 0, %s336
    %s340 = sphi 0, %s339
    %s356 = sphi 0, %s340
    %s362 = sphi 0, %s364
    %s365 = sphi 0, %s362
    %s366 = sphi 0, %s365
    %s382 = sphi 0, %s366
    %s388 = sphi 0, %s390
    %s391 = sphi 0, %s388
    %s392 = sphi 0, %s391
    %s408 = sphi 0, %s392
  $region4: #{text_encoder_forward.1} parent=0 // loop_header_branch
    %31 = sbr.rel (%p29) target = $region8
  $region5: #{text_encoder_forward.1} parent=0 // loop_body
    %s33 = ssub.s32 %s28, 1
    %s34 = ssub.s32 %s28, 2
    %s41 = sadd.s32 1, %s36
    %p42 = scmp.ge.s32.totalorder %s41, 2
    %s43 = scalar_select %p42, 0, %s41
    %s44 = sadd.s32 1, %s35
    %s45 = scalar_select %p42, %s44, %s35
    %p46 = scmp.ge.s32.totalorder %s45, 2
    %s47 = scalar_select %p46, 0, %s45
    %s48 = ssub.s32 %s35, %s47
    %p49 = scmp.eq.s32.totalorder %s48, 0
    %s51 = sadd.s32 %s50, 1
    %s52 = scalar_select %p49, %s50, %s51
    %p55 = pneg %p49
    %p56 = scmp.eq.s32.totalorder %s28, 3
    %p57 = por %p55, %p56
    %p58 = scmp.ne.s32.totalorder %s50, %s53
    %p59 = scmp.eq.s32.totalorder %s28, 0
    %p60 = por %p58, %p59
    %p61 = scmp.ne.s32.totalorder %s50, %s53
    %p62 = scmp.eq.s32.totalorder %s33, 3
    %p63 = por %p61, %p62
    %p64 = scmp.ne.s32.totalorder %s53, %s54
    %p65 = scmp.eq.s32.totalorder %s33, 0
    %p66 = por %p64, %p65
    %p67 = scmp.ne.s32.totalorder %s53, %s54
    %p68 = scmp.eq.s32.totalorder %s34, 3
    %p69 = por %p67, %p68
    %p71 = scmp.ne.s32.totalorder %s54, %s70
    %p72 = scmp.eq.s32.totalorder %s34, 0
    %p73 = por %p71, %p72
    %s74 = ssub.s32 %s36, %s43
    %p75 = scmp.eq.s32.totalorder %s74, 0
    %s77 = sadd.s32 %s76, 1
    %s78 = scalar_select %p75, %s76, %s77
    %p81 = pneg %p75
    %p82 = scmp.eq.s32.totalorder %s28, 3
    %p83 = por %p81, %p82
    %p84 = scmp.ne.s32.totalorder %s76, %s79
    %p85 = scmp.eq.s32.totalorder %s28, 0
    %p86 = por %p84, %p85
    %p87 = scmp.ne.s32.totalorder %s76, %s79
    %p88 = scmp.eq.s32.totalorder %s33, 3
    %p89 = por %p87, %p88
    %p90 = scmp.ne.s32.totalorder %s79, %s80
    %p91 = scmp.eq.s32.totalorder %s33, 0
    %p92 = por %p90, %p91
    %p93 = scmp.ne.s32.totalorder %s79, %s80
    %p94 = scmp.eq.s32.totalorder %s34, 3
    %p95 = por %p93, %p94
    %p97 = scmp.ne.s32.totalorder %s80, %s96
    %p98 = scmp.eq.s32.totalorder %s34, 0
    %p99 = por %p97, %p98
    %s100 = ssub.s32 %s36, %s43
    %p101 = scmp.eq.s32.totalorder %s100, 0
    %s103 = sadd.s32 %s102, 1
    %s104 = scalar_select %p101, %s102, %s103
    %p107 = pneg %p101
    %p108 = scmp.eq.s32.totalorder %s28, 3
    %p109 = por %p107, %p108
    %p110 = scmp.ne.s32.totalorder %s102, %s105
    %p111 = scmp.eq.s32.totalorder %s28, 0
    %p112 = por %p110, %p111
    %p113 = scmp.ne.s32.totalorder %s102, %s105
    %p114 = scmp.eq.s32.totalorder %s33, 3
    %p115 = por %p113, %p114
    %p116 = scmp.ne.s32.totalorder %s105, %s106
    %p117 = scmp.eq.s32.totalorder %s33, 0
    %p118 = por %p116, %p117
    %p119 = scmp.ne.s32.totalorder %s105, %s106
    %p120 = scmp.eq.s32.totalorder %s34, 3
    %p121 = por %p119, %p120
    %p123 = scmp.ne.s32.totalorder %s106, %s122
    %p124 = scmp.eq.s32.totalorder %s34, 0
    %p125 = por %p123, %p124
    %s126 = ssub.s32 %s36, %s43
    %p127 = scmp.eq.s32.totalorder %s126, 0
    %s129 = sadd.s32 %s128, 1
    %s130 = scalar_select %p127, %s128, %s129
    %p133 = pneg %p127
    %p134 = scmp.eq.s32.totalorder %s28, 3
    %p135 = por %p133, %p134
    %p136 = scmp.ne.s32.totalorder %s128, %s131
    %p137 = scmp.eq.s32.totalorder %s28, 0
    %p138 = por %p136, %p137
    %p139 = scmp.ne.s32.totalorder %s128, %s131
    %p140 = scmp.eq.s32.totalorder %s33, 3
    %p141 = por %p139, %p140
    %p142 = scmp.ne.s32.totalorder %s131, %s132
    %p143 = scmp.eq.s32.totalorder %s33, 0
    %p144 = por %p142, %p143
    %p145 = scmp.ne.s32.totalorder %s131, %s132
    %p146 = scmp.eq.s32.totalorder %s34, 3
    %p147 = por %p145, %p146
    %p149 = scmp.ne.s32.totalorder %s132, %s148
    %p150 = scmp.eq.s32.totalorder %s34, 0
    %p151 = por %p149, %p150
    %s152 = ssub.s32 %s36, %s43
    %p153 = scmp.eq.s32.totalorder %s152, 0
    %s155 = sadd.s32 %s154, 1
    %s156 = scalar_select %p153, %s154, %s155
    %p159 = pneg %p153
    %p160 = scmp.eq.s32.totalorder %s28, 3
    %p161 = por %p159, %p160
    %p162 = scmp.ne.s32.totalorder %s154, %s157
    %p163 = scmp.eq.s32.totalorder %s28, 0
    %p164 = por %p162, %p163
    %p165 = scmp.ne.s32.totalorder %s154, %s157
    %p166 = scmp.eq.s32.totalorder %s33, 3
    %p167 = por %p165, %p166
    %p168 = scmp.ne.s32.totalorder %s157, %s158
    %p169 = scmp.eq.s32.totalorder %s33, 0
    %p170 = por %p168, %p169
    %p171 = scmp.ne.s32.totalorder %s157, %s158
    %p172 = scmp.eq.s32.totalorder %s34, 3
    %p173 = por %p171, %p172
    %p175 = scmp.ne.s32.totalorder %s158, %s174
    %p176 = scmp.eq.s32.totalorder %s34, 0
    %p177 = por %p175, %p176
    %s178 = ssub.s32 %s36, %s43
    %p179 = scmp.eq.s32.totalorder %s178, 0
    %s181 = sadd.s32 %s180, 1
    %s182 = scalar_select %p179, %s180, %s181
    %p185 = pneg %p179
    %p186 = scmp.eq.s32.totalorder %s28, 3
    %p187 = por %p185, %p186
    %p188 = scmp.ne.s32.totalorder %s180, %s183
    %p189 = scmp.eq.s32.totalorder %s28, 0
    %p190 = por %p188, %p189
    %p191 = scmp.ne.s32.totalorder %s180, %s183
    %p192 = scmp.eq.s32.totalorder %s33, 3
    %p193 = por %p191, %p192
    %p194 = scmp.ne.s32.totalorder %s183, %s184
    %p195 = scmp.eq.s32.totalorder %s33, 0
    %p196 = por %p194, %p195
    %p197 = scmp.ne.s32.totalorder %s183, %s184
    %p198 = scmp.eq.s32.totalorder %s34, 3
    %p199 = por %p197, %p198
    %p201 = scmp.ne.s32.totalorder %s184, %s200
    %p202 = scmp.eq.s32.totalorder %s34, 0
    %p203 = por %p201, %p202
    %s204 = ssub.s32 %s36, %s43
    %p205 = scmp.eq.s32.totalorder %s204, 0
    %s207 = sadd.s32 %s206, 1
    %s208 = scalar_select %p205, %s206, %s207
    %p211 = pneg %p205
    %p212 = scmp.eq.s32.totalorder %s28, 3
    %p213 = por %p211, %p212
    %p214 = scmp.ne.s32.totalorder %s206, %s209
    %p215 = scmp.eq.s32.totalorder %s28, 0
    %p216 = por %p214, %p215
    %p217 = scmp.ne.s32.totalorder %s206, %s209
    %p218 = scmp.eq.s32.totalorder %s33, 3
    %p219 = por %p217, %p218
    %p220 = scmp.ne.s32.totalorder %s209, %s210
    %p221 = scmp.eq.s32.totalorder %s33, 0
    %p222 = por %p220, %p221
    %p223 = scmp.ne.s32.totalorder %s209, %s210
    %p224 = scmp.eq.s32.totalorder %s34, 3
    %p225 = por %p223, %p224
    %p227 = scmp.ne.s32.totalorder %s210, %s226
    %p228 = scmp.eq.s32.totalorder %s34, 0
    %p229 = por %p227, %p228
    %s230 = ssub.s32 %s36, %s43
    %p231 = scmp.eq.s32.totalorder %s230, 0
    %s233 = sadd.s32 %s232, 1
    %s234 = scalar_select %p231, %s232, %s233
    %p237 = pneg %p231
    %p238 = scmp.eq.s32.totalorder %s28, 3
    %p239 = por %p237, %p238
    %p240 = scmp.ne.s32.totalorder %s232, %s235
    %p241 = scmp.eq.s32.totalorder %s28, 0
    %p242 = por %p240, %p241
    %p243 = scmp.ne.s32.totalorder %s232, %s235
    %p244 = scmp.eq.s32.totalorder %s33, 3
    %p245 = por %p243, %p244
    %p246 = scmp.ne.s32.totalorder %s235, %s236
    %p247 = scmp.eq.s32.totalorder %s33, 0
    %p248 = por %p246, %p247
    %p249 = scmp.ne.s32.totalorder %s235, %s236
    %p250 = scmp.eq.s32.totalorder %s34, 3
    %p251 = por %p249, %p250
    %p253 = scmp.ne.s32.totalorder %s236, %s252
    %p254 = scmp.eq.s32.totalorder %s34, 0
    %p255 = por %p253, %p254
    %s256 = ssub.s32 %s36, %s43
    %p257 = scmp.eq.s32.totalorder %s256, 0
    %s259 = sadd.s32 %s258, 1
    %s260 = scalar_select %p257, %s258, %s259
    %p263 = pneg %p257
    %p264 = scmp.eq.s32.totalorder %s28, 3
    %p265 = por %p263, %p264
    %p266 = scmp.ne.s32.totalorder %s258, %s261
    %p267 = scmp.eq.s32.totalorder %s28, 0
    %p268 = por %p266, %p267
    %p269 = scmp.ne.s32.totalorder %s258, %s261
    %p270 = scmp.eq.s32.totalorder %s33, 3
    %p271 = por %p269, %p270
    %p272 = scmp.ne.s32.totalorder %s261, %s262
    %p273 = scmp.eq.s32.totalorder %s33, 0
    %p274 = por %p272, %p273
    %p275 = scmp.ne.s32.totalorder %s261, %s262
    %p276 = scmp.eq.s32.totalorder %s34, 3
    %p277 = por %p275, %p276
    %p279 = scmp.ne.s32.totalorder %s262, %s278
    %p280 = scmp.eq.s32.totalorder %s34, 0
    %p281 = por %p279, %p280
    %s282 = ssub.s32 %s36, %s43
    %p283 = scmp.eq.s32.totalorder %s282, 0
    %s285 = sadd.s32 %s284, 1
    %s286 = scalar_select %p283, %s284, %s285
    %p289 = pneg %p283
    %p290 = scmp.eq.s32.totalorder %s28, 3
    %p291 = por %p289, %p290
    %p292 = scmp.ne.s32.totalorder %s284, %s287
    %p293 = scmp.eq.s32.totalorder %s28, 0
    %p294 = por %p292, %p293
    %p295 = scmp.ne.s32.totalorder %s284, %s287
    %p296 = scmp.eq.s32.totalorder %s33, 3
    %p297 = por %p295, %p296
    %p298 = scmp.ne.s32.totalorder %s287, %s288
    %p299 = scmp.eq.s32.totalorder %s33, 0
    %p300 = por %p298, %p299
    %p301 = scmp.ne.s32.totalorder %s287, %s288
    %p302 = scmp.eq.s32.totalorder %s34, 3
    %p303 = por %p301, %p302
    %p305 = scmp.ne.s32.totalorder %s288, %s304
    %p306 = scmp.eq.s32.totalorder %s34, 0
    %p307 = por %p305, %p306
    %s308 = ssub.s32 %s36, %s43
    %p309 = scmp.eq.s32.totalorder %s308, 0
    %s311 = sadd.s32 %s310, 1
    %s312 = scalar_select %p309, %s310, %s311
    %p315 = pneg %p309
    %p316 = scmp.eq.s32.totalorder %s28, 3
    %p317 = por %p315, %p316
    %p318 = scmp.ne.s32.totalorder %s310, %s313
    %p319 = scmp.eq.s32.totalorder %s28, 0
    %p320 = por %p318, %p319
    %p321 = scmp.ne.s32.totalorder %s310, %s313
    %p322 = scmp.eq.s32.totalorder %s33, 3
    %p323 = por %p321, %p322
    %p324 = scmp.ne.s32.totalorder %s313, %s314
    %p325 = scmp.eq.s32.totalorder %s33, 0
    %p326 = por %p324, %p325
    %p327 = scmp.ne.s32.totalorder %s313, %s314
    %p328 = scmp.eq.s32.totalorder %s34, 3
    %p329 = por %p327, %p328
    %p331 = scmp.ne.s32.totalorder %s314, %s330
    %p332 = scmp.eq.s32.totalorder %s34, 0
    %p333 = por %p331, %p332
    %s334 = ssub.s32 %s36, %s43
    %p335 = scmp.eq.s32.totalorder %s334, 0
    %s337 = sadd.s32 %s336, 1
    %s338 = scalar_select %p335, %s336, %s337
    %p341 = pneg %p335
    %p342 = scmp.eq.s32.totalorder %s28, 3
    %p343 = por %p341, %p342
    %p344 = scmp.ne.s32.totalorder %s336, %s339
    %p345 = scmp.eq.s32.totalorder %s28, 0
    %p346 = por %p344, %p345
    %p347 = scmp.ne.s32.totalorder %s336, %s339
    %p348 = scmp.eq.s32.totalorder %s33, 3
    %p349 = por %p347, %p348
    %p350 = scmp.ne.s32.totalorder %s339, %s340
    %p351 = scmp.eq.s32.totalorder %s33, 0
    %p352 = por %p350, %p351
    %p353 = scmp.ne.s32.totalorder %s339, %s340
    %p354 = scmp.eq.s32.totalorder %s34, 3
    %p355 = por %p353, %p354
    %p357 = scmp.ne.s32.totalorder %s340, %s356
    %p358 = scmp.eq.s32.totalorder %s34, 0
    %p359 = por %p357, %p358
    %s360 = ssub.s32 %s36, %s43
    %p361 = scmp.eq.s32.totalorder %s360, 0
    %s363 = sadd.s32 %s362, 1
    %s364 = scalar_select %p361, %s362, %s363
    %p367 = pneg %p361
    %p368 = scmp.eq.s32.totalorder %s28, 3
    %p369 = por %p367, %p368
    %p370 = scmp.ne.s32.totalorder %s362, %s365
    %p371 = scmp.eq.s32.totalorder %s28, 0
    %p372 = por %p370, %p371
    %p373 = scmp.ne.s32.totalorder %s362, %s365
    %p374 = scmp.eq.s32.totalorder %s33, 3
    %p375 = por %p373, %p374
    %p376 = scmp.ne.s32.totalorder %s365, %s366
    %p377 = scmp.eq.s32.totalorder %s33, 0
    %p378 = por %p376, %p377
    %p379 = scmp.ne.s32.totalorder %s365, %s366
    %p380 = scmp.eq.s32.totalorder %s34, 3
    %p381 = por %p379, %p380
    %p383 = scmp.ne.s32.totalorder %s366, %s382
    %p384 = scmp.eq.s32.totalorder %s34, 0
    %p385 = por %p383, %p384
    %s386 = ssub.s32 %s35, %s47
    %p387 = scmp.eq.s32.totalorder %s386, 0
    %s389 = sadd.s32 %s388, 1
    %s390 = scalar_select %p387, %s388, %s389
    %p393 = pneg %p387
    %p394 = scmp.eq.s32.totalorder %s28, 3
    %p395 = por %p393, %p394
    %p396 = scmp.ne.s32.totalorder %s388, %s391
    %p397 = scmp.eq.s32.totalorder %s28, 0
    %p398 = por %p396, %p397
    %p399 = scmp.ne.s32.totalorder %s388, %s391
    %p400 = scmp.eq.s32.totalorder %s33, 3
    %p401 = por %p399, %p400
    %p402 = scmp.ne.s32.totalorder %s391, %s392
    %p403 = scmp.eq.s32.totalorder %s33, 0
    %p404 = por %p402, %p403
    %p405 = scmp.ne.s32.totalorder %s391, %s392
    %p406 = scmp.eq.s32.totalorder %s34, 3
    %p407 = por %p405, %p406
    %p409 = scmp.ne.s32.totalorder %s392, %s408
    %p410 = scmp.eq.s32.totalorder %s34, 0
    %p411 = por %p409, %p410
    %p412 = scmp.le.s32.totalorder 1, %s28
    %p413 = scmp.lt.s32.totalorder %s28, 5
    %p414 = pnand %p412, %p413
    %p415 = pneg %p414
    // Predicated region
    $region9: #{text_encoder_forward.1} parent=5 // pred_check
      _
    $region10: #{text_encoder_forward.1} parent=5 // pred_check_branch
      %417 = sbr.rel (%p414) target = $region12
    $region11: #{text_encoder_forward.1} parent=5 // pred_region
      %s418 = ssub.s32 %s28, 1
    $region12: #{text_encoder_forward.1} parent=5 // pred_fallthru
      _
    %p419 = scmp.lt.s32.totalorder %s28, 4
    // Predicated region
    $region13: #{text_encoder_forward.1} parent=5 // pred_check
      %p420 = pneg %p419
    $region14: #{text_encoder_forward.1} parent=5 // pred_check_branch
      %422 = sbr.rel (%p420) target = $region16
    $region15: #{text_encoder_forward.1} parent=5 // pred_region
      // Predicated region
      $region17: #{text_encoder_forward.1} parent=15 // pred_check
        %p423 = pneg %p60
      $region18: #{text_encoder_forward.1} parent=15 // pred_check_branch
        %425 = sbr.rel (%p423) target = $region20
      $region19: #{text_encoder_forward.1} parent=15 // pred_region
        %p426 = scmp.lt.s32.totalorder %s35, 1
        %s427 = scalar_select %p426, %s35, 1
        %s428 = smul.addr %s427, 32
        %s429 = smul.addr %s428, 8
        %s430 = scalar_lea.vmem %s1, %s429
      $region20: #{text_encoder_forward.1} parent=15 // pred_fallthru
        _
      // Predicated region
      $region21: #{text_encoder_forward.1} parent=15 // pred_check
        %p431 = pneg %p86
      $region22: #{text_encoder_forward.1} parent=15 // pred_check_branch
        %433 = sbr.rel (%p431) target = $region24
      $region23: #{text_encoder_forward.1} parent=15 // pred_region
        %p434 = scmp.lt.s32.totalorder %s36, 1
        %s435 = scalar_select %p434, %s36, 1
        %s436 = smul.addr %s435, 120
        %s437 = smul.addr %s436, 4
        %s438 = scalar_lea.vmem %s2, %s437
      $region24: #{text_encoder_forward.1} parent=15 // pred_fallthru
        _
      // Predicated region
      $region25: #{text_encoder_forward.1} parent=15 // pred_check
        %p439 = pneg %p112
      $region26: #{text_encoder_forward.1} parent=15 // pred_check_branch
        %441 = sbr.rel (%p439) target = $region28
      $region27: #{text_encoder_forward.1} parent=15 // pred_region
        %p442 = scmp.lt.s32.totalorder %s36, 1
        %s443 = scalar_select %p442, %s36, 1
        %s444 = smul.addr %s443, 5
        %s445 = scalar_lea.vmem %s3, %s444
      $region28: #{text_encoder_forward.1} parent=15 // pred_fallthru
        _
      // Predicated region
      $region29: #{text_encoder_forward.1} parent=15 // pred_check
        %p446 = pneg %p138
      $region30: #{text_encoder_forward.1} parent=15 // pred_check_branch
        %448 = sbr.rel (%p446) target = $region32
      $region31: #{text_encoder_forward.1} parent=15 // pred_region
        %p449 = scmp.lt.s32.totalorder %s36, 1
        %s450 = scalar_select %p449, %s36, 1
        %s451 = smul.addr %s450, 48
        %s452 = smul.addr %s451, 4
        %s453 = scalar_lea.vmem %s4, %s452
      $region32: #{text_encoder_forward.1} parent=15 // pred_fallthru
        _
      // Predicated region
      $region33: #{text_encoder_forward.1} parent=15 // pred_check
        %p454 = pneg %p164
      $region34: #{text_encoder_forward.1} parent=15 // pred_check_branch
        %456 = sbr.rel (%p454) target = $region36
      $region35: #{text_encoder_forward.1} parent=15 // pred_region
        %p457 = scmp.lt.s32.totalorder %s36, 1
        %s458 = scalar_select %p457, %s36, 1
        %s459 = smul.addr %s458, 2
        %s460 = scalar_lea.vmem %s5, %s459
      $region36: #{text_encoder_forward.1} parent=15 // pred_fallthru
        _
      // Predicated region
      $region37: #{text_encoder_forward.1} parent=15 // pred_check
        %p461 = pneg %p190
      $region38: #{text_encoder_forward.1} parent=15 // pred_check_branch
        %463 = sbr.rel (%p461) target = $region40
      $region39: #{text_encoder_forward.1} parent=15 // pred_region
        %p464 = scmp.lt.s32.totalorder %s36, 1
        %s465 = scalar_select %p464, %s36, 1
        %s466 = smul.addr %s465, 2
        %s467 = scalar_lea.vmem %s6, %s466
      $region40: #{text_encoder_forward.1} parent=15 // pred_fallthru
        _
      // Predicated region
      $region41: #{text_encoder_forward.1} parent=15 // pred_check
        %p468 = pneg %p216
      $region42: #{text_encoder_forward.1} parent=15 // pred_check_branch
        %470 = sbr.rel (%p468) target = $region44
      $region43: #{text_encoder_forward.1} parent=15 // pred_region
        %p471 = scmp.lt.s32.totalorder %s36, 1
        %s472 = scalar_select %p471, %s36, 1
        %s473 = smul.addr %s472, 2
        %s474 = scalar_lea.vmem %s7, %s473
      $region44: #{text_encoder_forward.1} parent=15 // pred_fallthru
        _
      // Predicated region
      $region45: #{text_encoder_forward.1} parent=15 // pred_check
        %p475 = pneg %p242
      $region46: #{text_encoder_forward.1} parent=15 // pred_check_branch
        %477 = sbr.rel (%p475) target = $region48
      $region47: #{text_encoder_forward.1} parent=15 // pred_region
        %p478 = scmp.lt.s32.totalorder %s36, 1
        %s479 = scalar_select %p478, %s36, 1
        %s480 = smul.addr %s479, 216
        %s481 = smul.addr %s480, 4
        %s482 = scalar_lea.vmem %s8, %s481
      $region48: #{text_encoder_forward.1} parent=15 // pred_fallthru
        _
      // Predicated region
      $region49: #{text_encoder_forward.1} parent=15 // pred_check
        %p483 = pneg %p268
      $region50: #{text_encoder_forward.1} parent=15 // pred_check_branch
        %485 = sbr.rel (%p483) target = $region52
      $region51: #{text_encoder_forward.1} parent=15 // pred_region
        %p486 = scmp.lt.s32.totalorder %s36, 1
        %s487 = scalar_select %p486, %s36, 1
        %s488 = smul.addr %s487, 3
        %s489 = scalar_lea.vmem %s9, %s488
      $region52: #{text_encoder_forward.1} parent=15 // pred_fallthru
        _
      // Predicated region
      $region53: #{text_encoder_forward.1} parent=15 // pred_check
        %p490 = pneg %p294
      $region54: #{text_encoder_forward.1} parent=15 // pred_check_branch
        %492 = sbr.rel (%p490) target = $region56
      $region55: #{text_encoder_forward.1} parent=15 // pred_region
        %p493 = scmp.lt.s32.totalorder %s36, 1
        %s494 = scalar_select %p493, %s36, 1
        %s495 = smul.addr %s494, 288
        %s496 = smul.addr %s495, 4
        %s497 = scalar_lea.vmem %s10, %s496
      $region56: #{text_encoder_forward.1} parent=15 // pred_fallthru
        _
      // Predicated region
      $region57: #{text_encoder_forward.1} parent=15 // pred_check
        %p498 = pneg %p320
      $region58: #{text_encoder_forward.1} parent=15 // pred_check_branch
        %500 = sbr.rel (%p498) target = $region60
      $region59: #{text_encoder_forward.1} parent=15 // pred_region
        %p501 = scmp.lt.s32.totalorder %s36, 1
        %s502 = scalar_select %p501, %s36, 1
        %s503 = smul.addr %s502, 2
        %s504 = scalar_lea.vmem %s11, %s503
      $region60: #{text_encoder_forward.1} parent=15 // pred_fallthru
        _
      // Predicated region
      $region61: #{text_encoder_forward.1} parent=15 // pred_check
        %p505 = pneg %p346
      $region62: #{text_encoder_forward.1} parent=15 // pred_check_branch
        %507 = sbr.rel (%p505) target = $region64
      $region63: #{text_encoder_forward.1} parent=15 // pred_region
        %p508 = scmp.lt.s32.totalorder %s36, 1
        %s509 = scalar_select %p508, %s36, 1
        %s510 = smul.addr %s509, 2
        %s511 = scalar_lea.vmem %s12, %s510
      $region64: #{text_encoder_forward.1} parent=15 // pred_fallthru
        _
      // Predicated region
      $region65: #{text_encoder_forward.1} parent=15 // pred_check
        %p512 = pneg %p372
      $region66: #{text_encoder_forward.1} parent=15 // pred_check_branch
        %514 = sbr.rel (%p512) target = $region68
      $region67: #{text_encoder_forward.1} parent=15 // pred_region
        %p515 = scmp.lt.s32.totalorder %s36, 1
        %s516 = scalar_select %p515, %s36, 1
        %s517 = smul.addr %s516, 2
        %s518 = scalar_lea.vmem %s13, %s517
      $region68: #{text_encoder_forward.1} parent=15 // pred_fallthru
        _
    $region16: #{text_encoder_forward.1} parent=5 // pred_fallthru
      _
    %p519 = scmp.le.s32.totalorder 1, %s28
    %p520 = scmp.lt.s32.totalorder %s28, 5
    %p521 = pnand %p519, %p520
    %p522 = pneg %p521
    // Predicated region
    $region69: #{text_encoder_forward.1} parent=5 // pred_check
      _
    $region70: #{text_encoder_forward.1} parent=5 // pred_check_branch
      %524 = sbr.rel (%p521) target = $region72
    $region71: #{text_encoder_forward.1} parent=5 // pred_region
      %s525 = ssub.s32 %s28, 1
      %p526 = scmp.lt.s32.totalorder %s37, 1
      %s527 = scalar_select %p526, %s37, 1
      %s528 = smul.addr %s527, 32
      %s529 = smul.addr %s528, 8
      %s530 = scalar_lea.vmem %s1, %s529
      %p531 = pneg %p66
      %p532 = pneg %p63
      %p533 = scmp.lt.s32.totalorder %s38, 1
      %s534 = scalar_select %p533, %s38, 1
      %s535 = smul.addr %s534, 120
      %s536 = smul.addr %s535, 4
      %s537 = scalar_lea.vmem %s2, %s536
      %p538 = pneg %p92
      %p539 = pneg %p89
      %p540 = scmp.lt.s32.totalorder %s38, 1
      %s541 = scalar_select %p540, %s38, 1
      %s542 = smul.addr %s541, 5
      %s543 = scalar_lea.vmem %s3, %s542
      %p544 = pneg %p118
      %p545 = pneg %p115
      %p546 = scmp.lt.s32.totalorder %s38, 1
      %s547 = scalar_select %p546, %s38, 1
      %s548 = smul.addr %s547, 48
      %s549 = smul.addr %s548, 4
      %s550 = scalar_lea.vmem %s4, %s549
      %p551 = pneg %p144
      %p552 = pneg %p141
      %p553 = scmp.lt.s32.totalorder %s38, 1
      %s554 = scalar_select %p553, %s38, 1
      %s555 = smul.addr %s554, 2
      %s556 = scalar_lea.vmem %s5, %s555
      %p557 = pneg %p170
      %p558 = pneg %p167
      %p559 = scmp.lt.s32.totalorder %s38, 1
      %s560 = scalar_select %p559, %s38, 1
      %s561 = smul.addr %s560, 2
      %s562 = scalar_lea.vmem %s6, %s561
      %p563 = pneg %p196
      %p564 = pneg %p193
      %p565 = scmp.lt.s32.totalorder %s38, 1
      %s566 = scalar_select %p565, %s38, 1
      %s567 = smul.addr %s566, 2
      %s568 = scalar_lea.vmem %s7, %s567
      %p569 = pneg %p222
      %p570 = pneg %p219
      %p571 = scmp.lt.s32.totalorder %s38, 1
      %s572 = scalar_select %p571, %s38, 1
      %s573 = smul.addr %s572, 216
      %s574 = smul.addr %s573, 4
      %s575 = scalar_lea.vmem %s8, %s574
      %p576 = pneg %p248
      %p577 = pneg %p245
      %p578 = scmp.lt.s32.totalorder %s38, 1
      %s579 = scalar_select %p578, %s38, 1
      %s580 = smul.addr %s579, 3
      %s581 = scalar_lea.vmem %s9, %s580
      %p582 = pneg %p274
      %p583 = pneg %p271
      %p584 = scmp.lt.s32.totalorder %s38, 1
      %s585 = scalar_select %p584, %s38, 1
      %s586 = smul.addr %s585, 288
      %s587 = smul.addr %s586, 4
      %s588 = scalar_lea.vmem %s10, %s587
      %p589 = pneg %p300
      %p590 = pneg %p297
      %p591 = scmp.lt.s32.totalorder %s38, 1
      %s592 = scalar_select %p591, %s38, 1
      %s593 = smul.addr %s592, 2
      %s594 = scalar_lea.vmem %s11, %s593
      %p595 = pneg %p326
      %p596 = pneg %p323
      %p597 = scmp.lt.s32.totalorder %s38, 1
      %s598 = scalar_select %p597, %s38, 1
      %s599 = smul.addr %s598, 2
      %s600 = scalar_lea.vmem %s12, %s599
      %p601 = pneg %p352
      %p602 = pneg %p349
      %p603 = scmp.lt.s32.totalorder %s38, 1
      %s604 = scalar_select %p603, %s38, 1
      %s605 = smul.addr %s604, 2
      %s606 = scalar_lea.vmem %s13, %s605
      %p607 = pneg %p378
      %p608 = pneg %p375
      %p609 = pneg %p404
      %p610 = pneg %p401
      %p611 = scmp.lt.s32.totalorder %s37, 1
      %s612 = scalar_select %p611, %s37, 1
      %s613 = smul.addr %s612, 32
      %s614 = smul.addr %s613, 8
      %s615 = scalar_lea.vmem %s14, %s614
      %p616 = scmp.lt.s32.totalorder %s37, 1
      %s617 = scalar_select %p616, %s37, 1
      %s618 = smul.addr %s617, 32
      %s619 = smul.addr %s618, 8
      %s620 = scalar_lea.vmem %s1, %s619
      %p621 = scmp.lt.s32.totalorder %s38, 1
      %s622 = scalar_select %p621, %s38, 1
      %s623 = smul.addr %s622, 120
      %s624 = smul.addr %s623, 4
      %s625 = scalar_lea.vmem %s2, %s624
      %p626 = scmp.lt.s32.totalorder %s38, 1
      %s627 = scalar_select %p626, %s38, 1
      %s628 = smul.addr %s627, 5
      %s629 = scalar_lea.vmem %s3, %s628
      %p630 = scmp.lt.s32.totalorder %s38, 1
      %s631 = scalar_select %p630, %s38, 1
      %s632 = smul.addr %s631, 48
      %s633 = smul.addr %s632, 4
      %s634 = scalar_lea.vmem %s4, %s633
      %p635 = scmp.lt.s32.totalorder %s38, 1
      %s636 = scalar_select %p635, %s38, 1
      %s637 = smul.addr %s636, 2
      %s638 = scalar_lea.vmem %s5, %s637
      %p639 = scmp.lt.s32.totalorder %s38, 1
      %s640 = scalar_select %p639, %s38, 1
      %s641 = smul.addr %s640, 2
      %s642 = scalar_lea.vmem %s6, %s641
      %p643 = scmp.lt.s32.totalorder %s38, 1
      %s644 = scalar_select %p643, %s38, 1
      %s645 = smul.addr %s644, 2
      %s646 = scalar_lea.vmem %s7, %s645
      %p647 = scmp.lt.s32.totalorder %s38, 1
      %s648 = scalar_select %p647, %s38, 1
      %s649 = smul.addr %s648, 216
      %s650 = smul.addr %s649, 4
      %s651 = scalar_lea.vmem %s8, %s650
      %p652 = scmp.lt.s32.totalorder %s38, 1
      %s653 = scalar_select %p652, %s38, 1
      %s654 = smul.addr %s653, 3
      %s655 = scalar_lea.vmem %s9, %s654
      %p656 = scmp.lt.s32.totalorder %s38, 1
      %s657 = scalar_select %p656, %s38, 1
      %s658 = smul.addr %s657, 288
      %s659 = smul.addr %s658, 4
      %s660 = scalar_lea.vmem %s10, %s659
      %p661 = scmp.lt.s32.totalorder %s38, 1
      %s662 = scalar_select %p661, %s38, 1
      %s663 = smul.addr %s662, 2
      %s664 = scalar_lea.vmem %s11, %s663
      %p665 = scmp.lt.s32.totalorder %s38, 1
      %s666 = scalar_select %p665, %s38, 1
      %s667 = smul.addr %s666, 2
      %s668 = scalar_lea.vmem %s12, %s667
      %p669 = scmp.lt.s32.totalorder %s38, 1
      %s670 = scalar_select %p669, %s38, 1
      %s671 = smul.addr %s670, 2
      %s672 = scalar_lea.vmem %s13, %s671
      %p673 = scmp.lt.s32.totalorder %s37, 1
      %s674 = scalar_select %p673, %s37, 1
      %s675 = smul.addr %s674, 32
      %s676 = smul.addr %s675, 8
      %s677 = scalar_lea.vmem %s14, %s676
      %s679 = sld [smem:[#allocation4 + %s37]]
      %p680 = scmp.eq.s32.totalorder %s38, 0
      // Predicated region
      $region73: #{text_encoder_forward.1} parent=71 // pred_check
        %p681 = pneg %p680
      $region74: #{text_encoder_forward.1} parent=71 // pred_check_branch
        %683 = sbr.rel (%p681) target = $region76
      $region75: #{text_encoder_forward.1} parent=71 // pred_region
        %v684 = vld [vmem:[%s620] sm:$0xff]
        %v685 = vld [vmem:[%s620 + $0x8] sm:$0xff]
        %v686 = vld [vmem:[%s620 + $0x10] sm:$0xff]
        %v687 = vld [vmem:[%s620 + $0x18] sm:$0xff]
        %v688 = vld [vmem:[%s620 + $0x20] sm:$0xff]
        %v689 = vld [vmem:[%s620 + $0x28] sm:$0xff]
        %v690 = vld [vmem:[%s620 + $0x30] sm:$0xff]
        %v691 = vld [vmem:[%s620 + $0x38] sm:$0xff]
        %v692 = vld [vmem:[%s620 + $0x40] sm:$0xff]
        %v693 = vld [vmem:[%s620 + $0x48] sm:$0xff]
        %v694 = vld [vmem:[%s620 + $0x50] sm:$0xff]
        %v695 = vld [vmem:[%s620 + $0x58] sm:$0xff]
        %v696 = vld [vmem:[%s620 + $0x60] sm:$0xff]
        %v697 = vld [vmem:[%s620 + $0x68] sm:$0xff]
        %v698 = vld [vmem:[%s620 + $0x70] sm:$0xff]
        %v699 = vld [vmem:[%s620 + $0x78] sm:$0xff]
        %v700 = vld [vmem:[%s620 + $0x80] sm:$0xff]
        %v701 = vld [vmem:[%s620 + $0x88] sm:$0xff]
        %v702 = vld [vmem:[%s620 + $0x90] sm:$0xff]
        %v703 = vld [vmem:[%s620 + $0x98] sm:$0xff]
        %v704 = vld [vmem:[%s620 + $0xa0] sm:$0xff]
        %v705 = vld [vmem:[%s620 + $0xa8] sm:$0xff]
        %v706 = vld [vmem:[%s620 + $0xb0] sm:$0xff]
        %v707 = vld [vmem:[%s620 + $0xb8] sm:$0xff]
        %v708 = vld [vmem:[%s620 + $0xc0] sm:$0xff]
        %v709 = vld [vmem:[%s620 + $0xc8] sm:$0xff]
        %v710 = vld [vmem:[%s620 + $0xd0] sm:$0xff]
        %v711 = vld [vmem:[%s620 + $0xd8] sm:$0xff]
        %v712 = vld [vmem:[%s620 + $0xe0] sm:$0xff]
        %v713 = vld [vmem:[%s620 + $0xe8] sm:$0xff]
        %v714 = vld [vmem:[%s620 + $0xf0] sm:$0xff]
        %v715 = vld [vmem:[%s620 + $0xf8] sm:$0xff]
        %716 = vst [vmem:[#allocation2] sm:$0xff] %v684
        %vm717 = vcmask 523264
        %718 = vst.msk [vmem:[#allocation2 + $0x8] sm:$0xff] %vm717, %v685
        %719 = vst [vmem:[#allocation2 + $0x10] sm:$0xff] %v686
        %720 = vst.msk [vmem:[#allocation2 + $0x18] sm:$0xff] %vm717, %v687
        %721 = vst [vmem:[#allocation2 + $0x20] sm:$0xff] %v688
        %722 = vst.msk [vmem:[#allocation2 + $0x28] sm:$0xff] %vm717, %v689
        %723 = vst [vmem:[#allocation2 + $0x30] sm:$0xff] %v690
        %724 = vst.msk [vmem:[#allocation2 + $0x38] sm:$0xff] %vm717, %v691
        %725 = vst [vmem:[#allocation2 + $0x40] sm:$0xff] %v692
        %726 = vst.msk [vmem:[#allocation2 + $0x48] sm:$0xff] %vm717, %v693
        %727 = vst [vmem:[#allocation2 + $0x50] sm:$0xff] %v694
        %728 = vst.msk [vmem:[#allocation2 + $0x58] sm:$0xff] %vm717, %v695
        %729 = vst [vmem:[#allocation2 + $0x60] sm:$0xff] %v696
        %730 = vst.msk [vmem:[#allocation2 + $0x68] sm:$0xff] %vm717, %v697
        %731 = vst [vmem:[#allocation2 + $0x70] sm:$0xff] %v698
        %732 = vst.msk [vmem:[#allocation2 + $0x78] sm:$0xff] %vm717, %v699
        %733 = vst [vmem:[#allocation2 + $0x80] sm:$0xff] %v700
        %734 = vst.msk [vmem:[#allocation2 + $0x88] sm:$0xff] %vm717, %v701
        %735 = vst [vmem:[#allocation2 + $0x90] sm:$0xff] %v702
        %736 = vst.msk [vmem:[#allocation2 + $0x98] sm:$0xff] %vm717, %v703
        %737 = vst [vmem:[#allocation2 + $0xa0] sm:$0xff] %v704
        %738 = vst.msk [vmem:[#allocation2 + $0xa8] sm:$0xff] %vm717, %v705
        %739 = vst [vmem:[#allocation2 + $0xb0] sm:$0xff] %v706
        %740 = vst.msk [vmem:[#allocation2 + $0xb8] sm:$0xff] %vm717, %v707
        %741 = vst [vmem:[#allocation2 + $0xc0] sm:$0xff] %v708
        %742 = vst.msk [vmem:[#allocation2 + $0xc8] sm:$0xff] %vm717, %v709
        %743 = vst [vmem:[#allocation2 + $0xd0] sm:$0xff] %v710
        %744 = vst.msk [vmem:[#allocation2 + $0xd8] sm:$0xff] %vm717, %v711
        %745 = vst [vmem:[#allocation2 + $0xe0] sm:$0xff] %v712
        %746 = vst.msk [vmem:[#allocation2 + $0xe8] sm:$0xff] %vm717, %v713
        %747 = vst [vmem:[#allocation2 + $0xf0] sm:$0xff] %v714
        %748 = vst.msk [vmem:[#allocation2 + $0xf8] sm:$0xff] %vm717, %v715
      $region76: #{text_encoder_forward.1} parent=71 // pred_fallthru
        _
      %v749 = vld [vmem:[#allocation2] sm:$0xff]
      %v750 = vld [vmem:[#allocation2 + $0x8] sm:$0xff]
      %v751 = vld [vmem:[#allocation2 + $0x10] sm:$0xff]
      %v752 = vld [vmem:[#allocation2 + $0x18] sm:$0xff]
      %v753 = vld [vmem:[#allocation2 + $0x20] sm:$0xff]
      %v754 = vld [vmem:[#allocation2 + $0x28] sm:$0xff]
      %v755 = vld [vmem:[#allocation2 + $0x30] sm:$0xff]
      %v756 = vld [vmem:[#allocation2 + $0x38] sm:$0xff]
      %v757 = vld [vmem:[#allocation2 + $0x40] sm:$0xff]
      %v758 = vld [vmem:[#allocation2 + $0x48] sm:$0xff]
      %v759 = vld [vmem:[#allocation2 + $0x50] sm:$0xff]
      %v760 = vld [vmem:[#allocation2 + $0x58] sm:$0xff]
      %v761 = vld [vmem:[#allocation2 + $0x60] sm:$0xff]
      %v762 = vld [vmem:[#allocation2 + $0x68] sm:$0xff]
      %v763 = vld [vmem:[#allocation2 + $0x70] sm:$0xff]
      %v764 = vld [vmem:[#allocation2 + $0x78] sm:$0xff]
      %v765 = vld [vmem:[#allocation2 + $0x80] sm:$0xff]
      %v766 = vld [vmem:[#allocation2 + $0x88] sm:$0xff]
      %v767 = vld [vmem:[#allocation2 + $0x90] sm:$0xff]
      %v768 = vld [vmem:[#allocation2 + $0x98] sm:$0xff]
      %v769 = vld [vmem:[#allocation2 + $0xa0] sm:$0xff]
      %v770 = vld [vmem:[#allocation2 + $0xa8] sm:$0xff]
      %v771 = vld [vmem:[#allocation2 + $0xb0] sm:$0xff]
      %v772 = vld [vmem:[#allocation2 + $0xb8] sm:$0xff]
      %v773 = vld [vmem:[#allocation2 + $0xc0] sm:$0xff]
      %v774 = vld [vmem:[#allocation2 + $0xc8] sm:$0xff]
      %v775 = vld [vmem:[#allocation2 + $0xd0] sm:$0xff]
      %v776 = vld [vmem:[#allocation2 + $0xd8] sm:$0xff]
      %v777 = vld [vmem:[#allocation2 + $0xe0] sm:$0xff]
      %v778 = vld [vmem:[#allocation2 + $0xe8] sm:$0xff]
      %v779 = vld [vmem:[#allocation2 + $0xf0] sm:$0xff]
      %v780 = vld [vmem:[#allocation2 + $0xf8] sm:$0xff]
      %v781 = vlaneseq
      %v782 = vshrl.u32 %v781, 7
      %v783 = vadd.s32 %v782, 8
      %v784 = vadd.s32 %v782, 16
      %v785 = vadd.s32 %v782, 24
      %v786 = vadd.s32 %v782, 32
      %v787 = vadd.s32 %v782, 40
      %v788 = vadd.s32 %v782, 48
      %v789 = vadd.s32 %v782, 56
      %v790 = vadd.s32 %v782, 64
      %v791 = vadd.s32 %v782, 72
      %v792 = vadd.s32 %v782, 80
      %v793 = vadd.s32 %v782, 88
      %v794 = vadd.s32 %v782, 96
      %v795 = vadd.s32 %v782, 104
      %v796 = vadd.s32 %v782, 112
      %v797 = vadd.s32 %v782, 120
      %v798 = vstv %s679
      %vm799 = vcmp.lt.s32.totalorder %v782, %v798
      %vm800 = vcmp.lt.s32.totalorder %v783, %v798
      %vm801 = vcmp.lt.s32.totalorder %v784, %v798
      %vm802 = vcmp.lt.s32.totalorder %v785, %v798
      %vm803 = vcmp.lt.s32.totalorder %v786, %v798
      %vm804 = vcmp.lt.s32.totalorder %v787, %v798
      %vm805 = vcmp.lt.s32.totalorder %v788, %v798
      %vm806 = vcmp.lt.s32.totalorder %v789, %v798
      %vm807 = vcmp.lt.s32.totalorder %v790, %v798
      %vm808 = vcmp.lt.s32.totalorder %v791, %v798
      %vm809 = vcmp.lt.s32.totalorder %v792, %v798
      %vm810 = vcmp.lt.s32.totalorder %v793, %v798
      %vm811 = vcmp.lt.s32.totalorder %v794, %v798
      %vm812 = vcmp.lt.s32.totalorder %v795, %v798
      %vm813 = vcmp.lt.s32.totalorder %v796, %v798
      %vm814 = vcmp.lt.s32.totalorder %v797, %v798
      %v815 = vsel %vm799, 1, 0
      %v816 = vsel %vm800, 1, 0
      %v817 = vsel %vm801, 1, 0
      %v818 = vsel %vm802, 1, 0
      %v819 = vsel %vm803, 1, 0
      %v820 = vsel %vm804, 1, 0
      %v821 = vsel %vm805, 1, 0
      %v822 = vsel %vm806, 1, 0
      %v823 = vsel %vm807, 1, 0
      %v824 = vsel %vm808, 1, 0
      %v825 = vsel %vm809, 1, 0
      %v826 = vsel %vm810, 1, 0
      %v827 = vsel %vm811, 1, 0
      %v828 = vsel %vm812, 1, 0
      %v829 = vsel %vm813, 1, 0
      %v830 = vsel %vm814, 1, 0
      %v831 = vcvt.s32.f32 %v815
      %v832 = vcvt.s32.f32 %v816
      %v833 = vcvt.s32.f32 %v817
      %v834 = vcvt.s32.f32 %v818
      %v835 = vcvt.s32.f32 %v819
      %v836 = vcvt.s32.f32 %v820
      %v837 = vcvt.s32.f32 %v821
      %v838 = vcvt.s32.f32 %v822
      %v839 = vcvt.s32.f32 %v823
      %v840 = vcvt.s32.f32 %v824
      %v841 = vcvt.s32.f32 %v825
      %v842 = vcvt.s32.f32 %v826
      %v843 = vcvt.s32.f32 %v827
      %v844 = vcvt.s32.f32 %v828
      %v845 = vcvt.s32.f32 %v829
      %v846 = vcvt.s32.f32 %v830
      %v847 = vlaneseq
      %v848 = vand.u32 %v847, 127
      %vm849 = vcmp.lt.s32.totalorder %v848, %v798
      %v850 = vsel %vm849, 0.0, -10000.0
      %v851 = vpack.c.bf16 %v751, %v749
      %v852 = vpack.c.bf16 %v752, %v750
      %v853 = vpack.c.bf16 %v755, %v753
      %v854 = vpack.c.bf16 %v756, %v754
      %v855 = vpack.c.bf16 %v759, %v757
      %v856 = vpack.c.bf16 %v760, %v758
      %v857 = vpack.c.bf16 %v763, %v761
      %v858 = vpack.c.bf16 %v764, %v762
      %v859 = vpack.c.bf16 %v767, %v765
      %v860 = vpack.c.bf16 %v768, %v766
      %v861 = vpack.c.bf16 %v771, %v769
      %v862 = vpack.c.bf16 %v772, %v770
      %v863 = vpack.c.bf16 %v775, %v773
      %v864 = vpack.c.bf16 %v776, %v774
      %v865 = vpack.c.bf16 %v779, %v777
      %v866 = vpack.c.bf16 %v780, %v778
      %v867 = vld [vmem:[%s625] sm:$0xff]
      %v868 = vld [vmem:[%s625 + $0x8] sm:$0xff]
      %v869 = vld [vmem:[%s625 + $0x10] sm:$0xf]
      %v870 = vld [vmem:[%s625 + $0x14] sm:$0xff]
      %v871 = vld [vmem:[%s625 + $0x1c] sm:$0xff]
      %v872 = vld [vmem:[%s625 + $0x24] sm:$0xf]
      %v873 = vld [vmem:[%s625 + $0x28] sm:$0xff]
      %v874 = vld [vmem:[%s625 + $0x30] sm:$0xff]
      %v875 = vld [vmem:[%s625 + $0x38] sm:$0xf]
      %v876 = vld [vmem:[%s625 + $0x3c] sm:$0xff]
      %v877 = vld [vmem:[%s625 + $0x44] sm:$0xff]
      %v878 = vld [vmem:[%s625 + $0x4c] sm:$0xf]
      %v879 = vld [vmem:[%s625 + $0x50] sm:$0xff]
      %v880 = vld [vmem:[%s625 + $0x58] sm:$0xff]
      %v881 = vld [vmem:[%s625 + $0x60] sm:$0xf]
      %v882 = vld [vmem:[%s625 + $0x64] sm:$0xff]
      %v883 = vld [vmem:[%s625 + $0x6c] sm:$0xff]
      %v884 = vld [vmem:[%s625 + $0x74] sm:$0xf]
      %v885 = vld [vmem:[%s625 + $0x78] sm:$0xff]
      %v886 = vld [vmem:[%s625 + $0x80] sm:$0xff]
      %v887 = vld [vmem:[%s625 + $0x88] sm:$0xf]
      %v888 = vld [vmem:[%s625 + $0x8c] sm:$0xff]
      %v889 = vld [vmem:[%s625 + $0x94] sm:$0xff]
      %v890 = vld [vmem:[%s625 + $0x9c] sm:$0xf]
      %v891 = vld [vmem:[%s625 + $0xa0] sm:$0xff]
      %v892 = vld [vmem:[%s625 + $0xa8] sm:$0xff]
      %v893 = vld [vmem:[%s625 + $0xb0] sm:$0xf]
      %v894 = vld [vmem:[%s625 + $0xb4] sm:$0xff]
      %v895 = vld [vmem:[%s625 + $0xbc] sm:$0xff]
      %v896 = vld [vmem:[%s625 + $0xc4] sm:$0xf]
      %v897 = vld [vmem:[%s625 + $0xc8] sm:$0xff]
      %v898 = vld [vmem:[%s625 + $0xd0] sm:$0xff]
      %v899 = vld [vmem:[%s625 + $0xd8] sm:$0xf]
      %v900 = vld [vmem:[%s625 + $0xdc] sm:$0xff]
      %v901 = vld [vmem:[%s625 + $0xe4] sm:$0xff]
      %v902 = vld [vmem:[%s625 + $0xec] sm:$0xf]
      %v903 = vld [vmem:[%s625 + $0xf0] sm:$0xff]
      %v904 = vld [vmem:[%s625 + $0xf8] sm:$0xff]
      %v905 = vld [vmem:[%s625 + $0x100] sm:$0xf]
      %v906 = vld [vmem:[%s625 + $0x104] sm:$0xff]
      %v907 = vld [vmem:[%s625 + $0x10c] sm:$0xff]
      %v908 = vld [vmem:[%s625 + $0x114] sm:$0xf]
      %v909 = vld [vmem:[%s625 + $0x118] sm:$0xff]
      %v910 = vld [vmem:[%s625 + $0x120] sm:$0xff]
      %v911 = vld [vmem:[%s625 + $0x128] sm:$0xf]
      %v912 = vld [vmem:[%s625 + $0x12c] sm:$0xff]
      %v913 = vld [vmem:[%s625 + $0x134] sm:$0xff]
      %v914 = vld [vmem:[%s625 + $0x13c] sm:$0xf]
      %v915 = vld [vmem:[%s625 + $0x140] sm:$0xff]
      %v916 = vld [vmem:[%s625 + $0x148] sm:$0xff]
      %v917 = vld [vmem:[%s625 + $0x150] sm:$0xf]
      %v918 = vld [vmem:[%s625 + $0x154] sm:$0xff]
      %v919 = vld [vmem:[%s625 + $0x15c] sm:$0xff]
      %v920 = vld [vmem:[%s625 + $0x164] sm:$0xf]
      %v921 = vld [vmem:[%s625 + $0x168] sm:$0xff]
      %v922 = vld [vmem:[%s625 + $0x170] sm:$0xff]
      %v923 = vld [vmem:[%s625 + $0x178] sm:$0xf]
      %v924 = vld [vmem:[%s625 + $0x17c] sm:$0xff]
      %v925 = vld [vmem:[%s625 + $0x184] sm:$0xff]
      %v926 = vld [vmem:[%s625 + $0x18c] sm:$0xf]
      %v927 = vld [vmem:[%s625 + $0x190] sm:$0xff]
      %v928 = vld [vmem:[%s625 + $0x198] sm:$0xff]
      %v929 = vld [vmem:[%s625 + $0x1a0] sm:$0xf]
      %v930 = vld [vmem:[%s625 + $0x1a4] sm:$0xff]
      %v931 = vld [vmem:[%s625 + $0x1ac] sm:$0xff]
      %v932 = vld [vmem:[%s625 + $0x1b4] sm:$0xf]
      %v933 = vld [vmem:[%s625 + $0x1b8] sm:$0xff]
      %v934 = vld [vmem:[%s625 + $0x1c0] sm:$0xff]
      %v935 = vld [vmem:[%s625 + $0x1c8] sm:$0xf]
      %v936 = vld [vmem:[%s625 + $0x1cc] sm:$0xff]
      %v937 = vld [vmem:[%s625 + $0x1d4] sm:$0xff]
      %v938 = vld [vmem:[%s625 + $0x1dc] sm:$0xf]
      %v939 = vld [vmem:[%s629] sm:$0x1f]
      %v941 = vperm.slane %v939, 0
      %v942 = vperm.slane %v939, 1
      %v943 = vperm.slane %v939, 2
      %v944 = vperm.slane %v939, 3
      %v945 = vperm.slane %v939, 4
      %v1023 = vunpack.c.l.b16 %v867
      %v1024 = vunpack.c.h.b16 %v867
      %v1025 = vunpack.c.l.b16 %v868
      %v1026 = vunpack.c.h.b16 %v868
      %v1027 = vunpack.c.l.b16 %v869
      %v1028 = vunpack.c.l.b16 %v870
      %v1029 = vunpack.c.h.b16 %v870
      %v1030 = vunpack.c.l.b16 %v871
      %v1031 = vunpack.c.h.b16 %v871
      %v1032 = vunpack.c.l.b16 %v872
      %v1033 = vunpack.c.l.b16 %v873
      %v1034 = vunpack.c.h.b16 %v873
      %v1035 = vunpack.c.l.b16 %v874
      %v1036 = vunpack.c.h.b16 %v874
      %v1037 = vunpack.c.l.b16 %v875
      %v1038 = vunpack.c.l.b16 %v876
      %v1039 = vunpack.c.h.b16 %v876
      %v1040 = vunpack.c.l.b16 %v877
      %v1041 = vunpack.c.h.b16 %v877
      %v1042 = vunpack.c.l.b16 %v878
      %v1043 = vunpack.c.l.b16 %v879
      %v1044 = vunpack.c.h.b16 %v879
      %v1045 = vunpack.c.l.b16 %v880
      %v1046 = vunpack.c.h.b16 %v880
      %v1047 = vunpack.c.l.b16 %v881
      %v1048 = vunpack.c.l.b16 %v882
      %v1049 = vunpack.c.h.b16 %v882
      %v1050 = vunpack.c.l.b16 %v883
      %v1051 = vunpack.c.h.b16 %v883
      %v1052 = vunpack.c.l.b16 %v884
      %v1053 = vunpack.c.l.b16 %v885
      %v1054 = vunpack.c.h.b16 %v885
      %v1055 = vunpack.c.l.b16 %v886
      %v1056 = vunpack.c.h.b16 %v886
      %v1057 = vunpack.c.l.b16 %v887
      %v1058 = vunpack.c.l.b16 %v888
      %v1059 = vunpack.c.h.b16 %v888
      %v1060 = vunpack.c.l.b16 %v889
      %v1061 = vunpack.c.h.b16 %v889
      %v1062 = vunpack.c.l.b16 %v890
      %v1063 = vunpack.c.l.b16 %v891
      %v1064 = vunpack.c.h.b16 %v891
      %v1065 = vunpack.c.l.b16 %v892
      %v1066 = vunpack.c.h.b16 %v892
      %v1067 = vunpack.c.l.b16 %v893
      %v1068 = vunpack.c.l.b16 %v894
      %v1069 = vunpack.c.h.b16 %v894
      %v1070 = vunpack.c.l.b16 %v895
      %v1071 = vunpack.c.h.b16 %v895
      %v1072 = vunpack.c.l.b16 %v896
      %v1073 = vunpack.c.l.b16 %v897
      %v1074 = vunpack.c.h.b16 %v897
      %v1075 = vunpack.c.l.b16 %v898
      %v1076 = vunpack.c.h.b16 %v898
      %v1077 = vunpack.c.l.b16 %v899
      %v1078 = vunpack.c.l.b16 %v900
      %v1079 = vunpack.c.h.b16 %v900
      %v1080 = vunpack.c.l.b16 %v901
      %v1081 = vunpack.c.h.b16 %v901
      %v1082 = vunpack.c.l.b16 %v902
      %v1083 = vunpack.c.l.b16 %v903
      %v1084 = vunpack.c.h.b16 %v903
      %v1085 = vunpack.c.l.b16 %v904
      %v1086 = vunpack.c.h.b16 %v904
      %v1087 = vunpack.c.l.b16 %v905
      %v1088 = vunpack.c.l.b16 %v906
      %v1089 = vunpack.c.h.b16 %v906
      %v1090 = vunpack.c.l.b16 %v907
      %v1091 = vunpack.c.h.b16 %v907
      %v1092 = vunpack.c.l.b16 %v908
      %v1093 = vunpack.c.l.b16 %v909
      %v1094 = vunpack.c.h.b16 %v909
      %v1095 = vunpack.c.l.b16 %v910
      %v1096 = vunpack.c.h.b16 %v910
      %v1097 = vunpack.c.l.b16 %v911
      %v1098 = vunpack.c.l.b16 %v912
      %v1099 = vunpack.c.h.b16 %v912
      %v1100 = vunpack.c.l.b16 %v913
      %v1101 = vunpack.c.h.b16 %v913
      %v1102 = vunpack.c.l.b16 %v914
      %v1103 = vunpack.c.l.b16 %v915
      %v1104 = vunpack.c.h.b16 %v915
      %v1105 = vunpack.c.l.b16 %v916
      %v1106 = vunpack.c.h.b16 %v916
      %v1107 = vunpack.c.l.b16 %v917
      %v1108 = vunpack.c.l.b16 %v918
      %v1109 = vunpack.c.h.b16 %v918
      %v1110 = vunpack.c.l.b16 %v919
      %v1111 = vunpack.c.h.b16 %v919
      %v1112 = vunpack.c.l.b16 %v920
      %v1113 = vunpack.c.l.b16 %v921
      %v1114 = vunpack.c.h.b16 %v921
      %v1115 = vunpack.c.l.b16 %v922
      %v1116 = vunpack.c.h.b16 %v922
      %v1117 = vunpack.c.l.b16 %v923
      %v1118 = vunpack.c.l.b16 %v924
      %v1119 = vunpack.c.h.b16 %v924
      %v1120 = vunpack.c.l.b16 %v925
      %v1121 = vunpack.c.h.b16 %v925
      %v1122 = vunpack.c.l.b16 %v926
      %v1123 = vunpack.c.l.b16 %v927
      %v1124 = vunpack.c.h.b16 %v927
      %v1125 = vunpack.c.l.b16 %v928
      %v1126 = vunpack.c.h.b16 %v928
      %v1127 = vunpack.c.l.b16 %v929
      %v1128 = vunpack.c.l.b16 %v930
      %v1129 = vunpack.c.h.b16 %v930
      %v1130 = vunpack.c.l.b16 %v931
      %v1131 = vunpack.c.h.b16 %v931
      %v1132 = vunpack.c.l.b16 %v932
      %v1133 = vunpack.c.l.b16 %v933
      %v1134 = vunpack.c.h.b16 %v933
      %v1135 = vunpack.c.l.b16 %v934
      %v1136 = vunpack.c.h.b16 %v934
      %v1137 = vunpack.c.l.b16 %v935
      %v1138 = vunpack.c.l.b16 %v936
      %v1139 = vunpack.c.h.b16 %v936
      %v1140 = vunpack.c.l.b16 %v937
      %v1141 = vunpack.c.h.b16 %v937
      %v1142 = vunpack.c.l.b16 %v938
      %v1143 = vpack.c.b16 %v1028, %v1023
      %v1144 = vpack.c.b16 %v1029, %v1024
      %v1145 = vpack.c.b16 %v1030, %v1025
      %v1146 = vpack.c.b16 %v1031, %v1026
      %v1147 = vpack.c.b16 %v1032, %v1027
      %v1148 = vpack.c.b16 %v1038, %v1033
      %v1149 = vpack.c.b16 %v1039, %v1034
      %v1150 = vpack.c.b16 %v1040, %v1035
      %v1151 = vpack.c.b16 %v1041, %v1036
      %v1152 = vpack.c.b16 %v1042, %v1037
      %v1153 = vpack.c.b16 %v1048, %v1043
      %v1154 = vpack.c.b16 %v1049, %v1044
      %v1155 = vpack.c.b16 %v1050, %v1045
      %v1156 = vpack.c.b16 %v1051, %v1046
      %v1157 = vpack.c.b16 %v1052, %v1047
      %v1158 = vpack.c.b16 %v1058, %v1053
      %v1159 = vpack.c.b16 %v1059, %v1054
      %v1160 = vpack.c.b16 %v1060, %v1055
      %v1161 = vpack.c.b16 %v1061, %v1056
      %v1162 = vpack.c.b16 %v1062, %v1057
      %v1163 = vpack.c.b16 %v1068, %v1063
      %v1164 = vpack.c.b16 %v1069, %v1064
      %v1165 = vpack.c.b16 %v1070, %v1065
      %v1166 = vpack.c.b16 %v1071, %v1066
      %v1167 = vpack.c.b16 %v1072, %v1067
      %v1168 = vpack.c.b16 %v1078, %v1073
      %v1169 = vpack.c.b16 %v1079, %v1074
      %v1170 = vpack.c.b16 %v1080, %v1075
      %v1171 = vpack.c.b16 %v1081, %v1076
      %v1172 = vpack.c.b16 %v1082, %v1077
      %v1173 = vpack.c.b16 %v1088, %v1083
      %v1174 = vpack.c.b16 %v1089, %v1084
      %v1175 = vpack.c.b16 %v1090, %v1085
      %v1176 = vpack.c.b16 %v1091, %v1086
      %v1177 = vpack.c.b16 %v1092, %v1087
      %v1178 = vpack.c.b16 %v1098, %v1093
      %v1179 = vpack.c.b16 %v1099, %v1094
      %v1180 = vpack.c.b16 %v1100, %v1095
      %v1181 = vpack.c.b16 %v1101, %v1096
      %v1182 = vpack.c.b16 %v1102, %v1097
      %v1183 = vpack.c.b16 %v1108, %v1103
      %v1184 = vpack.c.b16 %v1109, %v1104
      %v1185 = vpack.c.b16 %v1110, %v1105
      %v1186 = vpack.c.b16 %v1111, %v1106
      %v1187 = vpack.c.b16 %v1112, %v1107
      %v1188 = vpack.c.b16 %v1118, %v1113
      %v1189 = vpack.c.b16 %v1119, %v1114
      %v1190 = vpack.c.b16 %v1120, %v1115
      %v1191 = vpack.c.b16 %v1121, %v1116
      %v1192 = vpack.c.b16 %v1122, %v1117
      %v1193 = vpack.c.b16 %v1128, %v1123
      %v1194 = vpack.c.b16 %v1129, %v1124
      %v1195 = vpack.c.b16 %v1130, %v1125
      %v1196 = vpack.c.b16 %v1131, %v1126
      %v1197 = vpack.c.b16 %v1132, %v1127
      %v1198 = vpack.c.b16 %v1138, %v1133
      %v1199 = vpack.c.b16 %v1139, %v1134
      %v1200 = vpack.c.b16 %v1140, %v1135
      %v1201 = vpack.c.b16 %v1141, %v1136
      %v1202 = vpack.c.b16 %v1142, %v1137
      %vm1263 = vcmask 523264
      %v1265 = vsel %vm1263, %v852, 0
      %v1268 = vsel %vm1263, %v854, 0
      %v1271 = vsel %vm1263, %v856, 0
      %v1274 = vsel %vm1263, %v858, 0
      %v1277 = vsel %vm1263, %v860, 0
      %v1280 = vsel %vm1263, %v862, 0
      %v1283 = vsel %vm1263, %v864, 0
      %v1286 = vsel %vm1263, %v866, 0
      %1288 = vmatpush.bf16.msra.mxu0 %v1178
      %1289 = vmatpush.bf16.msra.mxu0 %v1173
      %1290 = vmatpush.bf16.msra.mxu0 %v1168
      %1291 = vmatpush.bf16.msra.mxu0 %v1163
      %1292 = vmatpush.bf16.msra.mxu0 %v1158
      %1293 = vmatpush.bf16.msra.mxu0 %v1153
      %1294 = vmatpush.bf16.msra.mxu0 %v1148
      %1295 = vmatpush.bf16.msra.mxu0 %v1143
      %1296 = vmatmul.bf16.gmra.mxu0 %v851
      %v1297 = vpop.f32.mrf.mxu0
      %v1298 = vadd.f32 %v941, %v1297
      %v1299 = vpop.f32.mrf.mxu0
      %v1300 = vadd.f32 %v941, %v1299
      %1301 = vmatmul.bf16.gmra.mxu0 %v853
      %v1302 = vpop.f32.mrf.mxu0
      %v1303 = vadd.f32 %v941, %v1302
      %v1304 = vpop.f32.mrf.mxu0
      %v1305 = vadd.f32 %v941, %v1304
      %1306 = vmatmul.bf16.gmra.mxu0 %v855
      %v1307 = vpop.f32.mrf.mxu0
      %v1308 = vadd.f32 %v941, %v1307
      %v1309 = vpop.f32.mrf.mxu0
      %v1310 = vadd.f32 %v941, %v1309
      %1311 = vmatmul.bf16.gmra.mxu0 %v857
      %v1312 = vpop.f32.mrf.mxu0
      %v1313 = vadd.f32 %v941, %v1312
      %v1314 = vpop.f32.mrf.mxu0
      %v1315 = vadd.f32 %v941, %v1314
      %1316 = vmatmul.bf16.gmra.mxu0 %v859
      %v1317 = vpop.f32.mrf.mxu0
      %v1318 = vadd.f32 %v941, %v1317
      %v1319 = vpop.f32.mrf.mxu0
      %v1320 = vadd.f32 %v941, %v1319
      %1321 = vmatmul.bf16.gmra.mxu0 %v861
      %v1322 = vpop.f32.mrf.mxu0
      %v1323 = vadd.f32 %v941, %v1322
      %v1324 = vpop.f32.mrf.mxu0
      %v1325 = vadd.f32 %v941, %v1324
      %1326 = vmatmul.bf16.gmra.mxu0 %v863
      %v1327 = vpop.f32.mrf.mxu0
      %v1328 = vadd.f32 %v941, %v1327
      %v1329 = vpop.f32.mrf.mxu0
      %v1330 = vadd.f32 %v941, %v1329
      %1331 = vmatmul.bf16.gmra.mxu0 %v865
      %v1332 = vpop.f32.mrf.mxu0
      %v1333 = vadd.f32 %v941, %v1332
      %v1334 = vpop.f32.mrf.mxu0
      %v1335 = vadd.f32 %v941, %v1334
      %1336 = vdwg.mxu0
      %1337 = vmatpush.bf16.msra.mxu0 0
      %1338 = vmatpush.bf16.msra.mxu0 0
      %1339 = vmatpush.bf16.msra.mxu0 0
      %1340 = vmatpush.bf16.msra.mxu0 0
      %1341 = vmatpush.bf16.msra.mxu0 %v1198
      %1342 = vmatpush.bf16.msra.mxu0 %v1193
      %1343 = vmatpush.bf16.msra.mxu0 %v1188
      %1344 = vmatpush.bf16.msra.mxu0 %v1183
      %1345 = vmatmul.bf16.gmra.mxu0 %v1265
      %v1346 = vpop.f32.mrf.mxu0
      %v1347 = vadd.f32 %v1298, %v1346
      %v1348 = vpop.f32.mrf.mxu0
      %v1349 = vadd.f32 %v1300, %v1348
      %1350 = vmatmul.bf16.gmra.mxu0 %v1268
      %v1351 = vpop.f32.mrf.mxu0
      %v1352 = vadd.f32 %v1303, %v1351
      %v1353 = vpop.f32.mrf.mxu0
      %v1354 = vadd.f32 %v1305, %v1353
      %1355 = vmatmul.bf16.gmra.mxu0 %v1271
      %v1356 = vpop.f32.mrf.mxu0
      %v1357 = vadd.f32 %v1308, %v1356
      %v1358 = vpop.f32.mrf.mxu0
      %v1359 = vadd.f32 %v1310, %v1358
      %1360 = vmatmul.bf16.gmra.mxu0 %v1274
      %v1361 = vpop.f32.mrf.mxu0
      %v1362 = vadd.f32 %v1313, %v1361
      %v1363 = vpop.f32.mrf.mxu0
      %v1364 = vadd.f32 %v1315, %v1363
      %1365 = vmatmul.bf16.gmra.mxu0 %v1277
      %v1366 = vpop.f32.mrf.mxu0
      %v1367 = vadd.f32 %v1318, %v1366
      %v1368 = vpop.f32.mrf.mxu0
      %v1369 = vadd.f32 %v1320, %v1368
      %1370 = vmatmul.bf16.gmra.mxu0 %v1280
      %v1371 = vpop.f32.mrf.mxu0
      %v1372 = vadd.f32 %v1323, %v1371
      %v1373 = vpop.f32.mrf.mxu0
      %v1374 = vadd.f32 %v1325, %v1373
      %1375 = vmatmul.bf16.gmra.mxu0 %v1283
      %v1376 = vpop.f32.mrf.mxu0
      %v1377 = vadd.f32 %v1328, %v1376
      %v1378 = vpop.f32.mrf.mxu0
      %v1379 = vadd.f32 %v1330, %v1378
      %1380 = vmatmul.bf16.gmra.mxu0 %v1286
      %v1381 = vpop.f32.mrf.mxu0
      %v1382 = vadd.f32 %v1333, %v1381
      %v1383 = vpop.f32.mrf.mxu0
      %v1384 = vadd.f32 %v1335, %v1383
      %1385 = vdwg.mxu0
      %1386 = vmatpush.bf16.msra.mxu0 %v1179
      %1387 = vmatpush.bf16.msra.mxu0 %v1174
      %1388 = vmatpush.bf16.msra.mxu0 %v1169
      %1389 = vmatpush.bf16.msra.mxu0 %v1164
      %1390 = vmatpush.bf16.msra.mxu0 %v1159
      %1391 = vmatpush.bf16.msra.mxu0 %v1154
      %1392 = vmatpush.bf16.msra.mxu0 %v1149
      %1393 = vmatpush.bf16.msra.mxu0 %v1144
      %1394 = vmatmul.bf16.gmra.mxu0 %v851
      %v1395 = vpop.f32.mrf.mxu0
      %v1396 = vadd.f32 %v942, %v1395
      %v1397 = vpop.f32.mrf.mxu0
      %v1398 = vadd.f32 %v942, %v1397
      %1399 = vmatmul.bf16.gmra.mxu0 %v853
      %v1400 = vpop.f32.mrf.mxu0
      %v1401 = vadd.f32 %v942, %v1400
      %v1402 = vpop.f32.mrf.mxu0
      %v1403 = vadd.f32 %v942, %v1402
      %1404 = vmatmul.bf16.gmra.mxu0 %v855
      %v1405 = vpop.f32.mrf.mxu0
      %v1406 = vadd.f32 %v942, %v1405
      %v1407 = vpop.f32.mrf.mxu0
      %v1408 = vadd.f32 %v942, %v1407
      %1409 = vmatmul.bf16.gmra.mxu0 %v857
      %v1410 = vpop.f32.mrf.mxu0
      %v1411 = vadd.f32 %v942, %v1410
      %v1412 = vpop.f32.mrf.mxu0
      %v1413 = vadd.f32 %v942, %v1412
      %1414 = vmatmul.bf16.gmra.mxu0 %v859
      %v1415 = vpop.f32.mrf.mxu0
      %v1416 = vadd.f32 %v942, %v1415
      %v1417 = vpop.f32.mrf.mxu0
      %v1418 = vadd.f32 %v942, %v1417
      %1419 = vmatmul.bf16.gmra.mxu0 %v861
      %v1420 = vpop.f32.mrf.mxu0
      %v1421 = vadd.f32 %v942, %v1420
      %v1422 = vpop.f32.mrf.mxu0
      %v1423 = vadd.f32 %v942, %v1422
      %1424 = vmatmul.bf16.gmra.mxu0 %v863
      %v1425 = vpop.f32.mrf.mxu0
      %v1426 = vadd.f32 %v942, %v1425
      %v1427 = vpop.f32.mrf.mxu0
      %v1428 = vadd.f32 %v942, %v1427
      %1429 = vmatmul.bf16.gmra.mxu0 %v865
      %v1430 = vpop.f32.mrf.mxu0
      %v1431 = vadd.f32 %v942, %v1430
      %v1432 = vpop.f32.mrf.mxu0
      %v1433 = vadd.f32 %v942, %v1432
      %1434 = vdwg.mxu0
      %1435 = vmatpush.bf16.msra.mxu0 0
      %1436 = vmatpush.bf16.msra.mxu0 0
      %1437 = vmatpush.bf16.msra.mxu0 0
      %1438 = vmatpush.bf16.msra.mxu0 0
      %1439 = vmatpush.bf16.msra.mxu0 %v1199
      %1440 = vmatpush.bf16.msra.mxu0 %v1194
      %1441 = vmatpush.bf16.msra.mxu0 %v1189
      %1442 = vmatpush.bf16.msra.mxu0 %v1184
      %1443 = vmatmul.bf16.gmra.mxu0 %v1265
      %v1444 = vpop.f32.mrf.mxu0
      %v1445 = vadd.f32 %v1396, %v1444
      %v1446 = vpop.f32.mrf.mxu0
      %v1447 = vadd.f32 %v1398, %v1446
      %1448 = vmatmul.bf16.gmra.mxu0 %v1268
      %v1449 = vpop.f32.mrf.mxu0
      %v1450 = vadd.f32 %v1401, %v1449
      %v1451 = vpop.f32.mrf.mxu0
      %v1452 = vadd.f32 %v1403, %v1451
      %1453 = vmatmul.bf16.gmra.mxu0 %v1271
      %v1454 = vpop.f32.mrf.mxu0
      %v1455 = vadd.f32 %v1406, %v1454
      %v1456 = vpop.f32.mrf.mxu0
      %v1457 = vadd.f32 %v1408, %v1456
      %1458 = vmatmul.bf16.gmra.mxu0 %v1274
      %v1459 = vpop.f32.mrf.mxu0
      %v1460 = vadd.f32 %v1411, %v1459
      %v1461 = vpop.f32.mrf.mxu0
      %v1462 = vadd.f32 %v1413, %v1461
      %1463 = vmatmul.bf16.gmra.mxu0 %v1277
      %v1464 = vpop.f32.mrf.mxu0
      %v1465 = vadd.f32 %v1416, %v1464
      %v1466 = vpop.f32.mrf.mxu0
      %v1467 = vadd.f32 %v1418, %v1466
      %1468 = vmatmul.bf16.gmra.mxu0 %v1280
      %v1469 = vpop.f32.mrf.mxu0
      %v1470 = vadd.f32 %v1421, %v1469
      %v1471 = vpop.f32.mrf.mxu0
      %v1472 = vadd.f32 %v1423, %v1471
      %1473 = vmatmul.bf16.gmra.mxu0 %v1283
      %v1474 = vpop.f32.mrf.mxu0
      %v1475 = vadd.f32 %v1426, %v1474
      %v1476 = vpop.f32.mrf.mxu0
      %v1477 = vadd.f32 %v1428, %v1476
      %1478 = vmatmul.bf16.gmra.mxu0 %v1286
      %v1479 = vpop.f32.mrf.mxu0
      %v1480 = vadd.f32 %v1431, %v1479
      %v1481 = vpop.f32.mrf.mxu0
      %v1482 = vadd.f32 %v1433, %v1481
      %1483 = vdwg.mxu0
      %1484 = vmatpush.bf16.msra.mxu0 %v1180
      %1485 = vmatpush.bf16.msra.mxu0 %v1175
      %1486 = vmatpush.bf16.msra.mxu0 %v1170
      %1487 = vmatpush.bf16.msra.mxu0 %v1165
      %1488 = vmatpush.bf16.msra.mxu0 %v1160
      %1489 = vmatpush.bf16.msra.mxu0 %v1155
      %1490 = vmatpush.bf16.msra.mxu0 %v1150
      %1491 = vmatpush.bf16.msra.mxu0 %v1145
      %1492 = vmatmul.bf16.gmra.mxu0 %v851
      %v1493 = vpop.f32.mrf.mxu0
      %v1494 = vadd.f32 %v943, %v1493
      %v1495 = vpop.f32.mrf.mxu0
      %v1496 = vadd.f32 %v943, %v1495
      %1497 = vmatmul.bf16.gmra.mxu0 %v853
      %v1498 = vpop.f32.mrf.mxu0
      %v1499 = vadd.f32 %v943, %v1498
      %v1500 = vpop.f32.mrf.mxu0
      %v1501 = vadd.f32 %v943, %v1500
      %1502 = vmatmul.bf16.gmra.mxu0 %v855
      %v1503 = vpop.f32.mrf.mxu0
      %v1504 = vadd.f32 %v943, %v1503
      %v1505 = vpop.f32.mrf.mxu0
      %v1506 = vadd.f32 %v943, %v1505
      %1507 = vmatmul.bf16.gmra.mxu0 %v857
      %v1508 = vpop.f32.mrf.mxu0
      %v1509 = vadd.f32 %v943, %v1508
      %v1510 = vpop.f32.mrf.mxu0
      %v1511 = vadd.f32 %v943, %v1510
      %1512 = vmatmul.bf16.gmra.mxu0 %v859
      %v1513 = vpop.f32.mrf.mxu0
      %v1514 = vadd.f32 %v943, %v1513
      %v1515 = vpop.f32.mrf.mxu0
      %v1516 = vadd.f32 %v943, %v1515
      %1517 = vmatmul.bf16.gmra.mxu0 %v861
      %v1518 = vpop.f32.mrf.mxu0
      %v1519 = vadd.f32 %v943, %v1518
      %v1520 = vpop.f32.mrf.mxu0
      %v1521 = vadd.f32 %v943, %v1520
      %1522 = vmatmul.bf16.gmra.mxu0 %v863
      %v1523 = vpop.f32.mrf.mxu0
      %v1524 = vadd.f32 %v943, %v1523
      %v1525 = vpop.f32.mrf.mxu0
      %v1526 = vadd.f32 %v943, %v1525
      %1527 = vmatmul.bf16.gmra.mxu0 %v865
      %v1528 = vpop.f32.mrf.mxu0
      %v1529 = vadd.f32 %v943, %v1528
      %v1530 = vpop.f32.mrf.mxu0
      %v1531 = vadd.f32 %v943, %v1530
      %1532 = vdwg.mxu0
      %1533 = vmatpush.bf16.msra.mxu0 0
      %1534 = vmatpush.bf16.msra.mxu0 0
      %1535 = vmatpush.bf16.msra.mxu0 0
      %1536 = vmatpush.bf16.msra.mxu0 0
      %1537 = vmatpush.bf16.msra.mxu0 %v1200
      %1538 = vmatpush.bf16.msra.mxu0 %v1195
      %1539 = vmatpush.bf16.msra.mxu0 %v1190
      %1540 = vmatpush.bf16.msra.mxu0 %v1185
      %1541 = vmatmul.bf16.gmra.mxu0 %v1265
      %v1542 = vpop.f32.mrf.mxu0
      %v1543 = vadd.f32 %v1494, %v1542
      %v1544 = vpop.f32.mrf.mxu0
      %v1545 = vadd.f32 %v1496, %v1544
      %1546 = vmatmul.bf16.gmra.mxu0 %v1268
      %v1547 = vpop.f32.mrf.mxu0
      %v1548 = vadd.f32 %v1499, %v1547
      %v1549 = vpop.f32.mrf.mxu0
      %v1550 = vadd.f32 %v1501, %v1549
      %1551 = vmatmul.bf16.gmra.mxu0 %v1271
      %v1552 = vpop.f32.mrf.mxu0
      %v1553 = vadd.f32 %v1504, %v1552
      %v1554 = vpop.f32.mrf.mxu0
      %v1555 = vadd.f32 %v1506, %v1554
      %1556 = vmatmul.bf16.gmra.mxu0 %v1274
      %v1557 = vpop.f32.mrf.mxu0
      %v1558 = vadd.f32 %v1509, %v1557
      %v1559 = vpop.f32.mrf.mxu0
      %v1560 = vadd.f32 %v1511, %v1559
      %1561 = vmatmul.bf16.gmra.mxu0 %v1277
      %v1562 = vpop.f32.mrf.mxu0
      %v1563 = vadd.f32 %v1514, %v1562
      %v1564 = vpop.f32.mrf.mxu0
      %v1565 = vadd.f32 %v1516, %v1564
      %1566 = vmatmul.bf16.gmra.mxu0 %v1280
      %v1567 = vpop.f32.mrf.mxu0
      %v1568 = vadd.f32 %v1519, %v1567
      %v1569 = vpop.f32.mrf.mxu0
      %v1570 = vadd.f32 %v1521, %v1569
      %1571 = vmatmul.bf16.gmra.mxu0 %v1283
      %v1572 = vpop.f32.mrf.mxu0
      %v1573 = vadd.f32 %v1524, %v1572
      %v1574 = vpop.f32.mrf.mxu0
      %v1575 = vadd.f32 %v1526, %v1574
      %1576 = vmatmul.bf16.gmra.mxu0 %v1286
      %v1577 = vpop.f32.mrf.mxu0
      %v1578 = vadd.f32 %v1529, %v1577
      %v1579 = vpop.f32.mrf.mxu0
      %v1580 = vadd.f32 %v1531, %v1579
      %1581 = vdwg.mxu0
      %1582 = vmatpush.bf16.msra.mxu0 %v1181
      %1583 = vmatpush.bf16.msra.mxu0 %v1176
      %1584 = vmatpush.bf16.msra.mxu0 %v1171
      %1585 = vmatpush.bf16.msra.mxu0 %v1166
      %1586 = vmatpush.bf16.msra.mxu0 %v1161
      %1587 = vmatpush.bf16.msra.mxu0 %v1156
      %1588 = vmatpush.bf16.msra.mxu0 %v1151
      %1589 = vmatpush.bf16.msra.mxu0 %v1146
      %1590 = vmatmul.bf16.gmra.mxu0 %v851
      %v1591 = vpop.f32.mrf.mxu0
      %v1592 = vadd.f32 %v944, %v1591
      %v1593 = vpop.f32.mrf.mxu0
      %v1594 = vadd.f32 %v944, %v1593
      %1595 = vmatmul.bf16.gmra.mxu0 %v853
      %v1596 = vpop.f32.mrf.mxu0
      %v1597 = vadd.f32 %v944, %v1596
      %v1598 = vpop.f32.mrf.mxu0
      %v1599 = vadd.f32 %v944, %v1598
      %1600 = vmatmul.bf16.gmra.mxu0 %v855
      %v1601 = vpop.f32.mrf.mxu0
      %v1602 = vadd.f32 %v944, %v1601
      %v1603 = vpop.f32.mrf.mxu0
      %v1604 = vadd.f32 %v944, %v1603
      %1605 = vmatmul.bf16.gmra.mxu0 %v857
      %v1606 = vpop.f32.mrf.mxu0
      %v1607 = vadd.f32 %v944, %v1606
      %v1608 = vpop.f32.mrf.mxu0
      %v1609 = vadd.f32 %v944, %v1608
      %1610 = vmatmul.bf16.gmra.mxu0 %v859
      %v1611 = vpop.f32.mrf.mxu0
      %v1612 = vadd.f32 %v944, %v1611
      %v1613 = vpop.f32.mrf.mxu0
      %v1614 = vadd.f32 %v944, %v1613
      %1615 = vmatmul.bf16.gmra.mxu0 %v861
      %v1616 = vpop.f32.mrf.mxu0
      %v1617 = vadd.f32 %v944, %v1616
      %v1618 = vpop.f32.mrf.mxu0
      %v1619 = vadd.f32 %v944, %v1618
      %1620 = vmatmul.bf16.gmra.mxu0 %v863
      %v1621 = vpop.f32.mrf.mxu0
      %v1622 = vadd.f32 %v944, %v1621
      %v1623 = vpop.f32.mrf.mxu0
      %v1624 = vadd.f32 %v944, %v1623
      %1625 = vmatmul.bf16.gmra.mxu0 %v865
      %v1626 = vpop.f32.mrf.mxu0
      %v1627 = vadd.f32 %v944, %v1626
      %v1628 = vpop.f32.mrf.mxu0
      %v1629 = vadd.f32 %v944, %v1628
      %1630 = vdwg.mxu0
      %1631 = vmatpush.bf16.msra.mxu0 0
      %1632 = vmatpush.bf16.msra.mxu0 0
      %1633 = vmatpush.bf16.msra.mxu0 0
      %1634 = vmatpush.bf16.msra.mxu0 0
      %1635 = vmatpush.bf16.msra.mxu0 %v1201
      %1636 = vmatpush.bf16.msra.mxu0 %v1196
      %1637 = vmatpush.bf16.msra.mxu0 %v1191
      %1638 = vmatpush.bf16.msra.mxu0 %v1186
      %1639 = vmatmul.bf16.gmra.mxu0 %v1265
      %v1640 = vpop.f32.mrf.mxu0
      %v1641 = vadd.f32 %v1592, %v1640
      %v1642 = vpop.f32.mrf.mxu0
      %v1643 = vadd.f32 %v1594, %v1642
      %1644 = vmatmul.bf16.gmra.mxu0 %v1268
      %v1645 = vpop.f32.mrf.mxu0
      %v1646 = vadd.f32 %v1597, %v1645
      %v1647 = vpop.f32.mrf.mxu0
      %v1648 = vadd.f32 %v1599, %v1647
      %1649 = vmatmul.bf16.gmra.mxu0 %v1271
      %v1650 = vpop.f32.mrf.mxu0
      %v1651 = vadd.f32 %v1602, %v1650
      %v1652 = vpop.f32.mrf.mxu0
      %v1653 = vadd.f32 %v1604, %v1652
      %1654 = vmatmul.bf16.gmra.mxu0 %v1274
      %v1655 = vpop.f32.mrf.mxu0
      %v1656 = vadd.f32 %v1607, %v1655
      %v1657 = vpop.f32.mrf.mxu0
      %v1658 = vadd.f32 %v1609, %v1657
      %1659 = vmatmul.bf16.gmra.mxu0 %v1277
      %v1660 = vpop.f32.mrf.mxu0
      %v1661 = vadd.f32 %v1612, %v1660
      %v1662 = vpop.f32.mrf.mxu0
      %v1663 = vadd.f32 %v1614, %v1662
      %1664 = vmatmul.bf16.gmra.mxu0 %v1280
      %v1665 = vpop.f32.mrf.mxu0
      %v1666 = vadd.f32 %v1617, %v1665
      %v1667 = vpop.f32.mrf.mxu0
      %v1668 = vadd.f32 %v1619, %v1667
      %1669 = vmatmul.bf16.gmra.mxu0 %v1283
      %v1670 = vpop.f32.mrf.mxu0
      %v1671 = vadd.f32 %v1622, %v1670
      %v1672 = vpop.f32.mrf.mxu0
      %v1673 = vadd.f32 %v1624, %v1672
      %1674 = vmatmul.bf16.gmra.mxu0 %v1286
      %v1675 = vpop.f32.mrf.mxu0
      %v1676 = vadd.f32 %v1627, %v1675
      %v1677 = vpop.f32.mrf.mxu0
      %v1678 = vadd.f32 %v1629, %v1677
      %1679 = vdwg.mxu0
      %1680 = vmatpush.bf16.msra.mxu0 %v1182
      %1681 = vmatpush.bf16.msra.mxu0 %v1177
      %1682 = vmatpush.bf16.msra.mxu0 %v1172
      %1683 = vmatpush.bf16.msra.mxu0 %v1167
      %1684 = vmatpush.bf16.msra.mxu0 %v1162
      %1685 = vmatpush.bf16.msra.mxu0 %v1157
      %1686 = vmatpush.bf16.msra.mxu0 %v1152
      %1687 = vmatpush.bf16.msra.mxu0 %v1147
      %1688 = vmatmul.bf16.gmra.mxu0 %v851
      %v1689 = vpop.f32.mrf.mxu0
      %v1690 = vadd.f32 %v945, %v1689
      %v1691 = vpop.f32.mrf.mxu0
      %v1692 = vadd.f32 %v945, %v1691
      %1693 = vmatmul.bf16.gmra.mxu0 %v853
      %v1694 = vpop.f32.mrf.mxu0
      %v1695 = vadd.f32 %v945, %v1694
      %v1696 = vpop.f32.mrf.mxu0
      %v1697 = vadd.f32 %v945, %v1696
      %1698 = vmatmul.bf16.gmra.mxu0 %v855
      %v1699 = vpop.f32.mrf.mxu0
      %v1700 = vadd.f32 %v945, %v1699
      %v1701 = vpop.f32.mrf.mxu0
      %v1702 = vadd.f32 %v945, %v1701
      %1703 = vmatmul.bf16.gmra.mxu0 %v857
      %v1704 = vpop.f32.mrf.mxu0
      %v1705 = vadd.f32 %v945, %v1704
      %v1706 = vpop.f32.mrf.mxu0
      %v1707 = vadd.f32 %v945, %v1706
      %1708 = vmatmul.bf16.gmra.mxu0 %v859
      %v1709 = vpop.f32.mrf.mxu0
      %v1710 = vadd.f32 %v945, %v1709
      %v1711 = vpop.f32.mrf.mxu0
      %v1712 = vadd.f32 %v945, %v1711
      %1713 = vmatmul.bf16.gmra.mxu0 %v861
      %v1714 = vpop.f32.mrf.mxu0
      %v1715 = vadd.f32 %v945, %v1714
      %v1716 = vpop.f32.mrf.mxu0
      %v1717 = vadd.f32 %v945, %v1716
      %1718 = vmatmul.bf16.gmra.mxu0 %v863
      %v1719 = vpop.f32.mrf.mxu0
      %v1720 = vadd.f32 %v945, %v1719
      %v1721 = vpop.f32.mrf.mxu0
      %v1722 = vadd.f32 %v945, %v1721
      %1723 = vmatmul.bf16.gmra.mxu0 %v865
      %v1724 = vpop.f32.mrf.mxu0
      %v1725 = vadd.f32 %v945, %v1724
      %v1726 = vpop.f32.mrf.mxu0
      %v1727 = vadd.f32 %v945, %v1726
      %1728 = vdwg.mxu0
      %1729 = vmatpush.bf16.msra.mxu0 0
      %1730 = vmatpush.bf16.msra.mxu0 0
      %1731 = vmatpush.bf16.msra.mxu0 0
      %1732 = vmatpush.bf16.msra.mxu0 0
      %1733 = vmatpush.bf16.msra.mxu0 %v1202
      %1734 = vmatpush.bf16.msra.mxu0 %v1197
      %1735 = vmatpush.bf16.msra.mxu0 %v1192
      %1736 = vmatpush.bf16.msra.mxu0 %v1187
      %1737 = vmatmul.bf16.gmra.mxu0 %v1265
      %v1738 = vpop.f32.mrf.mxu0
      %v1739 = vadd.f32 %v1690, %v1738
      %v1740 = vpop.f32.mrf.mxu0
      %v1741 = vadd.f32 %v1692, %v1740
      %1742 = vmatmul.bf16.gmra.mxu0 %v1268
      %v1743 = vpop.f32.mrf.mxu0
      %v1744 = vadd.f32 %v1695, %v1743
      %v1745 = vpop.f32.mrf.mxu0
      %v1746 = vadd.f32 %v1697, %v1745
      %1747 = vmatmul.bf16.gmra.mxu0 %v1271
      %v1748 = vpop.f32.mrf.mxu0
      %v1749 = vadd.f32 %v1700, %v1748
      %v1750 = vpop.f32.mrf.mxu0
      %v1751 = vadd.f32 %v1702, %v1750
      %1752 = vmatmul.bf16.gmra.mxu0 %v1274
      %v1753 = vpop.f32.mrf.mxu0
      %v1754 = vadd.f32 %v1705, %v1753
      %v1755 = vpop.f32.mrf.mxu0
      %v1756 = vadd.f32 %v1707, %v1755
      %1757 = vmatmul.bf16.gmra.mxu0 %v1277
      %v1758 = vpop.f32.mrf.mxu0
      %v1759 = vadd.f32 %v1710, %v1758
      %v1760 = vpop.f32.mrf.mxu0
      %v1761 = vadd.f32 %v1712, %v1760
      %1762 = vmatmul.bf16.gmra.mxu0 %v1280
      %v1763 = vpop.f32.mrf.mxu0
      %v1764 = vadd.f32 %v1715, %v1763
      %v1765 = vpop.f32.mrf.mxu0
      %v1766 = vadd.f32 %v1717, %v1765
      %1767 = vmatmul.bf16.gmra.mxu0 %v1283
      %v1768 = vpop.f32.mrf.mxu0
      %v1769 = vadd.f32 %v1720, %v1768
      %v1770 = vpop.f32.mrf.mxu0
      %v1771 = vadd.f32 %v1722, %v1770
      %1772 = vmatmul.bf16.gmra.mxu0 %v1286
      %v1773 = vpop.f32.mrf.mxu0
      %v1774 = vadd.f32 %v1725, %v1773
      %v1775 = vpop.f32.mrf.mxu0
      %v1776 = vadd.f32 %v1727, %v1775
      %1777 = vdwg.mxu0
      %v1778 = vpack.c.bf16 %v1445, %v1347
      %v1779 = vpack.c.bf16 %v1641, %v1543
      %v1780 = vpack.c.bf16 %v1739, %v1739
      %v1781 = vpack.c.bf16 %v1447, %v1349
      %v1782 = vpack.c.bf16 %v1643, %v1545
      %v1783 = vpack.c.bf16 %v1741, %v1741
      %v1784 = vpack.c.bf16 %v1450, %v1352
      %v1785 = vpack.c.bf16 %v1646, %v1548
      %v1786 = vpack.c.bf16 %v1744, %v1744
      %v1787 = vpack.c.bf16 %v1452, %v1354
      %v1788 = vpack.c.bf16 %v1648, %v1550
      %v1789 = vpack.c.bf16 %v1746, %v1746
      %v1790 = vpack.c.bf16 %v1455, %v1357
      %v1791 = vpack.c.bf16 %v1651, %v1553
      %v1792 = vpack.c.bf16 %v1749, %v1749
      %v1793 = vpack.c.bf16 %v1457, %v1359
      %v1794 = vpack.c.bf16 %v1653, %v1555
      %v1795 = vpack.c.bf16 %v1751, %v1751
      %v1796 = vpack.c.bf16 %v1460, %v1362
      %v1797 = vpack.c.bf16 %v1656, %v1558
      %v1798 = vpack.c.bf16 %v1754, %v1754
      %v1799 = vpack.c.bf16 %v1462, %v1364
      %v1800 = vpack.c.bf16 %v1658, %v1560
      %v1801 = vpack.c.bf16 %v1756, %v1756
      %v1802 = vpack.c.bf16 %v1465, %v1367
      %v1803 = vpack.c.bf16 %v1661, %v1563
      %v1804 = vpack.c.bf16 %v1759, %v1759
      %v1805 = vpack.c.bf16 %v1467, %v1369
      %v1806 = vpack.c.bf16 %v1663, %v1565
      %v1807 = vpack.c.bf16 %v1761, %v1761
      %v1808 = vpack.c.bf16 %v1470, %v1372
      %v1809 = vpack.c.bf16 %v1666, %v1568
      %v1810 = vpack.c.bf16 %v1764, %v1764
      %v1811 = vpack.c.bf16 %v1472, %v1374
      %v1812 = vpack.c.bf16 %v1668, %v1570
      %v1813 = vpack.c.bf16 %v1766, %v1766
      %v1814 = vpack.c.bf16 %v1475, %v1377
      %v1815 = vpack.c.bf16 %v1671, %v1573
      %v1816 = vpack.c.bf16 %v1769, %v1769
      %v1817 = vpack.c.bf16 %v1477, %v1379
      %v1818 = vpack.c.bf16 %v1673, %v1575
      %v1819 = vpack.c.bf16 %v1771, %v1771
      %v1820 = vpack.c.bf16 %v1480, %v1382
      %v1821 = vpack.c.bf16 %v1676, %v1578
      %v1822 = vpack.c.bf16 %v1774, %v1774
      %v1823 = vpack.c.bf16 %v1482, %v1384
      %v1824 = vpack.c.bf16 %v1678, %v1580
      %v1825 = vpack.c.bf16 %v1776, %v1776
      %v1826 = vld [vmem:[%s638] sm:$0x3]
      %v1828 = vperm.slane %v1826, 0
      %v1829 = vperm.slane %v1826, 1
      %v1832 = vadd.f32 %v1828, 0.0
      %v1833 = vadd.f32 %v1829, 0.0
      %v1850 = vunpack.c.l.b16 %v1778
      %v1851 = vunpack.c.l.b16 %v1781
      %v1852 = vunpack.c.l.b16 %v1784
      %v1853 = vunpack.c.l.b16 %v1787
      %v1854 = vunpack.c.l.b16 %v1790
      %v1855 = vunpack.c.l.b16 %v1793
      %v1856 = vunpack.c.l.b16 %v1796
      %v1857 = vunpack.c.l.b16 %v1799
      %v1858 = vunpack.c.l.b16 %v1802
      %v1859 = vunpack.c.l.b16 %v1805
      %v1860 = vunpack.c.l.b16 %v1808
      %v1861 = vunpack.c.l.b16 %v1811
      %v1862 = vunpack.c.l.b16 %v1814
      %v1863 = vunpack.c.l.b16 %v1817
      %v1864 = vunpack.c.l.b16 %v1820
      %v1865 = vunpack.c.l.b16 %v1823
      %v1866 = vpack.c.b16 %v1851, %v1850
      %v1867 = vpack.c.b16 %v1853, %v1852
      %v1868 = vpack.c.b16 %v1855, %v1854
      %v1869 = vpack.c.b16 %v1857, %v1856
      %v1870 = vpack.c.b16 %v1859, %v1858
      %v1871 = vpack.c.b16 %v1861, %v1860
      %v1872 = vpack.c.b16 %v1863, %v1862
      %v1873 = vpack.c.b16 %v1865, %v1864
      %v1890 = vunpack.c.h.b16 %v1778
      %v1891 = vunpack.c.l.b16 %v1779
      %v1892 = vunpack.c.h.b16 %v1781
      %v1893 = vunpack.c.l.b16 %v1782
      %v1894 = vunpack.c.h.b16 %v1784
      %v1895 = vunpack.c.l.b16 %v1785
      %v1896 = vunpack.c.h.b16 %v1787
      %v1897 = vunpack.c.l.b16 %v1788
      %v1898 = vunpack.c.h.b16 %v1790
      %v1899 = vunpack.c.l.b16 %v1791
      %v1900 = vunpack.c.h.b16 %v1793
      %v1901 = vunpack.c.l.b16 %v1794
      %v1902 = vunpack.c.h.b16 %v1796
      %v1903 = vunpack.c.l.b16 %v1797
      %v1904 = vunpack.c.h.b16 %v1799
      %v1905 = vunpack.c.l.b16 %v1800
      %v1906 = vunpack.c.h.b16 %v1802
      %v1907 = vunpack.c.l.b16 %v1803
      %v1908 = vunpack.c.h.b16 %v1805
      %v1909 = vunpack.c.l.b16 %v1806
      %v1910 = vunpack.c.h.b16 %v1808
      %v1911 = vunpack.c.l.b16 %v1809
      %v1912 = vunpack.c.h.b16 %v1811
      %v1913 = vunpack.c.l.b16 %v1812
      %v1914 = vunpack.c.h.b16 %v1814
      %v1915 = vunpack.c.l.b16 %v1815
      %v1916 = vunpack.c.h.b16 %v1817
      %v1917 = vunpack.c.l.b16 %v1818
      %v1918 = vunpack.c.h.b16 %v1820
      %v1919 = vunpack.c.l.b16 %v1821
      %v1920 = vunpack.c.h.b16 %v1823
      %v1921 = vunpack.c.l.b16 %v1824
      %v1922 = vpack.c.b16 %v1892, %v1890
      %v1923 = vpack.c.b16 %v1893, %v1891
      %v1924 = vpack.c.b16 %v1896, %v1894
      %v1925 = vpack.c.b16 %v1897, %v1895
      %v1926 = vpack.c.b16 %v1900, %v1898
      %v1927 = vpack.c.b16 %v1901, %v1899
      %v1928 = vpack.c.b16 %v1904, %v1902
      %v1929 = vpack.c.b16 %v1905, %v1903
      %v1930 = vpack.c.b16 %v1908, %v1906
      %v1931 = vpack.c.b16 %v1909, %v1907
      %v1932 = vpack.c.b16 %v1912, %v1910
      %v1933 = vpack.c.b16 %v1913, %v1911
      %v1934 = vpack.c.b16 %v1916, %v1914
      %v1935 = vpack.c.b16 %v1917, %v1915
      %v1936 = vpack.c.b16 %v1920, %v1918
      %v1937 = vpack.c.b16 %v1921, %v1919
      %1938 = vrot.lane.b32.xlu0 %v1922, 64
      %v1939 = vpop.permute.xlu0 %1938
      %1940 = vrot.lane.b32.xlu0 %v1923, 64
      %v1941 = vpop.permute.xlu0 %1940
      %1942 = vrot.lane.b32.xlu0 %v1924, 64
      %v1943 = vpop.permute.xlu0 %1942
      %1944 = vrot.lane.b32.xlu0 %v1925, 64
      %v1945 = vpop.permute.xlu0 %1944
      %1946 = vrot.lane.b32.xlu0 %v1926, 64
      %v1947 = vpop.permute.xlu0 %1946
      %1948 = vrot.lane.b32.xlu0 %v1927, 64
      %v1949 = vpop.permute.xlu0 %1948
      %1950 = vrot.lane.b32.xlu0 %v1928, 64
      %v1951 = vpop.permute.xlu0 %1950
      %1952 = vrot.lane.b32.xlu0 %v1929, 64
      %v1953 = vpop.permute.xlu0 %1952
      %1954 = vrot.lane.b32.xlu0 %v1930, 64
      %v1955 = vpop.permute.xlu0 %1954
      %1956 = vrot.lane.b32.xlu0 %v1931, 64
      %v1957 = vpop.permute.xlu0 %1956
      %1958 = vrot.lane.b32.xlu0 %v1932, 64
      %v1959 = vpop.permute.xlu0 %1958
      %1960 = vrot.lane.b32.xlu0 %v1933, 64
      %v1961 = vpop.permute.xlu0 %1960
      %1962 = vrot.lane.b32.xlu0 %v1934, 64
      %v1963 = vpop.permute.xlu0 %1962
      %1964 = vrot.lane.b32.xlu0 %v1935, 64
      %v1965 = vpop.permute.xlu0 %1964
      %1966 = vrot.lane.b32.xlu0 %v1936, 64
      %v1967 = vpop.permute.xlu0 %1966
      %1968 = vrot.lane.b32.xlu0 %v1937, 64
      %v1969 = vpop.permute.xlu0 %1968
      %vm1970 = vcmask 523264
      %v1971 = vsel %vm1970, %v1939, %v1941
      %v1972 = vsel %vm1970, %v1943, %v1945
      %v1973 = vsel %vm1970, %v1947, %v1949
      %v1974 = vsel %vm1970, %v1951, %v1953
      %v1975 = vsel %vm1970, %v1955, %v1957
      %v1976 = vsel %vm1970, %v1959, %v1961
      %v1977 = vsel %vm1970, %v1963, %v1965
      %v1978 = vsel %vm1970, %v1967, %v1969
      %vm1979 = vcmask 785408
      %v1981 = vsel %vm1979, %v1866, 0
      %v1984 = vsel %vm1979, %v1867, 0
      %v1987 = vsel %vm1979, %v1868, 0
      %v1990 = vsel %vm1979, %v1869, 0
      %v1993 = vsel %vm1979, %v1870, 0
      %v1996 = vsel %vm1979, %v1871, 0
      %v1999 = vsel %vm1979, %v1872, 0
      %v2002 = vsel %vm1979, %v1873, 0
      %v2005 = vsel %vm1979, %v1971, 0
      %v2008 = vsel %vm1979, %v1972, 0
      %v2011 = vsel %vm1979, %v1973, 0
      %v2014 = vsel %vm1979, %v1974, 0
      %v2017 = vsel %vm1979, %v1975, 0
      %v2020 = vsel %vm1979, %v1976, 0
      %v2023 = vsel %vm1979, %v1977, 0
      %v2026 = vsel %vm1979, %v1978, 0
      %2028 = vmatpush.bf16.xpose.msra.mxu0 %v2026
      %2029 = vmatpush.bf16.xpose.msra.mxu0 %v2023
      %2030 = vmatpush.bf16.xpose.msra.mxu0 %v2020
      %2031 = vmatpush.bf16.xpose.msra.mxu0 %v2017
      %2032 = vmatpush.bf16.xpose.msra.mxu0 %v2014
      %2033 = vmatpush.bf16.xpose.msra.mxu0 %v2011
      %2034 = vmatpush.bf16.xpose.msra.mxu0 %v2008
      %2035 = vmatpush.bf16.xpose.msra.mxu0 %v2005
      %2036 = vmatmul.bf16.gmra.mxu0 %v1981
      %v2037 = vpop.f32.mrf.mxu0
      %v2038 = vadd.f32 %v850, %v2037
      %v2039 = vpop.f32.mrf.mxu0
      %v2040 = vadd.f32 %v850, %v2039
      %2041 = vmatmul.bf16.gmra.mxu0 %v1984
      %v2042 = vpop.f32.mrf.mxu0
      %v2043 = vadd.f32 %v850, %v2042
      %v2044 = vpop.f32.mrf.mxu0
      %v2045 = vadd.f32 %v850, %v2044
      %2046 = vmatmul.bf16.gmra.mxu0 %v1987
      %v2047 = vpop.f32.mrf.mxu0
      %v2048 = vadd.f32 %v850, %v2047
      %v2049 = vpop.f32.mrf.mxu0
      %v2050 = vadd.f32 %v850, %v2049
      %2051 = vmatmul.bf16.gmra.mxu0 %v1990
      %v2052 = vpop.f32.mrf.mxu0
      %v2053 = vadd.f32 %v850, %v2052
      %v2054 = vpop.f32.mrf.mxu0
      %v2055 = vadd.f32 %v850, %v2054
      %2056 = vmatmul.bf16.gmra.mxu0 %v1993
      %v2057 = vpop.f32.mrf.mxu0
      %v2058 = vadd.f32 %v850, %v2057
      %v2059 = vpop.f32.mrf.mxu0
      %v2060 = vadd.f32 %v850, %v2059
      %2061 = vmatmul.bf16.gmra.mxu0 %v1996
      %v2062 = vpop.f32.mrf.mxu0
      %v2063 = vadd.f32 %v850, %v2062
      %v2064 = vpop.f32.mrf.mxu0
      %v2065 = vadd.f32 %v850, %v2064
      %2066 = vmatmul.bf16.gmra.mxu0 %v1999
      %v2067 = vpop.f32.mrf.mxu0
      %v2068 = vadd.f32 %v850, %v2067
      %v2069 = vpop.f32.mrf.mxu0
      %v2070 = vadd.f32 %v850, %v2069
      %2071 = vmatmul.bf16.gmra.mxu0 %v2002
      %v2072 = vpop.f32.mrf.mxu0
      %v2073 = vadd.f32 %v850, %v2072
      %v2074 = vpop.f32.mrf.mxu0
      %v2075 = vadd.f32 %v850, %v2074
      %2076 = vdwg.mxu0
      %2077 = vmax.xlane.f32.xlu0 %v2038
      %v2078 = vpop.xlane.xlu0 %2077
      %2079 = vmax.xlane.f32.xlu0 %v2040
      %v2080 = vpop.xlane.xlu0 %2079
      %2081 = vmax.xlane.f32.xlu0 %v2043
      %v2082 = vpop.xlane.xlu0 %2081
      %2083 = vmax.xlane.f32.xlu0 %v2045
      %v2084 = vpop.xlane.xlu0 %2083
      %2085 = vmax.xlane.f32.xlu0 %v2048
      %v2086 = vpop.xlane.xlu0 %2085
      %2087 = vmax.xlane.f32.xlu0 %v2050
      %v2088 = vpop.xlane.xlu0 %2087
      %2089 = vmax.xlane.f32.xlu0 %v2053
      %v2090 = vpop.xlane.xlu0 %2089
      %2091 = vmax.xlane.f32.xlu0 %v2055
      %v2092 = vpop.xlane.xlu0 %2091
      %2093 = vmax.xlane.f32.xlu0 %v2058
      %v2094 = vpop.xlane.xlu0 %2093
      %2095 = vmax.xlane.f32.xlu0 %v2060
      %v2096 = vpop.xlane.xlu0 %2095
      %2097 = vmax.xlane.f32.xlu0 %v2063
      %v2098 = vpop.xlane.xlu0 %2097
      %2099 = vmax.xlane.f32.xlu0 %v2065
      %v2100 = vpop.xlane.xlu0 %2099
      %2101 = vmax.xlane.f32.xlu0 %v2068
      %v2102 = vpop.xlane.xlu0 %2101
      %2103 = vmax.xlane.f32.xlu0 %v2070
      %v2104 = vpop.xlane.xlu0 %2103
      %2105 = vmax.xlane.f32.xlu0 %v2073
      %v2106 = vpop.xlane.xlu0 %2105
      %2107 = vmax.xlane.f32.xlu0 %v2075
      %v2108 = vpop.xlane.xlu0 %2107
      %v2109 = vsub.f32 %v2038, %v2078
      %v2110 = vsub.f32 %v2040, %v2080
      %v2111 = vsub.f32 %v2043, %v2082
      %v2112 = vsub.f32 %v2045, %v2084
      %v2113 = vsub.f32 %v2048, %v2086
      %v2114 = vsub.f32 %v2050, %v2088
      %v2115 = vsub.f32 %v2053, %v2090
      %v2116 = vsub.f32 %v2055, %v2092
      %v2117 = vsub.f32 %v2058, %v2094
      %v2118 = vsub.f32 %v2060, %v2096
      %v2119 = vsub.f32 %v2063, %v2098
      %v2120 = vsub.f32 %v2065, %v2100
      %v2121 = vsub.f32 %v2068, %v2102
      %v2122 = vsub.f32 %v2070, %v2104
      %v2123 = vsub.f32 %v2073, %v2106
      %v2124 = vsub.f32 %v2075, %v2108
      %v2125 = vmul.f32 %v2109, 1.442695
      %v2126 = vpow.pop %v2125
      %v2127 = vmul.f32 %v2110, 1.442695
      %v2128 = vpow.pop %v2127
      %v2129 = vmul.f32 %v2111, 1.442695
      %v2130 = vpow.pop %v2129
      %v2131 = vmul.f32 %v2112, 1.442695
      %v2132 = vpow.pop %v2131
      %v2133 = vmul.f32 %v2113, 1.442695
      %v2134 = vpow.pop %v2133
      %v2135 = vmul.f32 %v2114, 1.442695
      %v2136 = vpow.pop %v2135
      %v2137 = vmul.f32 %v2115, 1.442695
      %v2138 = vpow.pop %v2137
      %v2139 = vmul.f32 %v2116, 1.442695
      %v2140 = vpow.pop %v2139
      %v2141 = vmul.f32 %v2117, 1.442695
      %v2142 = vpow.pop %v2141
      %v2143 = vmul.f32 %v2118, 1.442695
      %v2144 = vpow.pop %v2143
      %v2145 = vmul.f32 %v2119, 1.442695
      %v2146 = vpow.pop %v2145
      %v2147 = vmul.f32 %v2120, 1.442695
      %v2148 = vpow.pop %v2147
      %v2149 = vmul.f32 %v2121, 1.442695
      %v2150 = vpow.pop %v2149
      %v2151 = vmul.f32 %v2122, 1.442695
      %v2152 = vpow.pop %v2151
      %v2153 = vmul.f32 %v2123, 1.442695
      %v2154 = vpow.pop %v2153
      %v2155 = vmul.f32 %v2124, 1.442695
      %v2156 = vpow.pop %v2155
      %2157 = vadd.xlane.f32.xlu0 %v2126
      %v2158 = vpop.xlane.xlu0 %2157
      %2159 = vadd.xlane.f32.xlu0 %v2128
      %v2160 = vpop.xlane.xlu0 %2159
      %2161 = vadd.xlane.f32.xlu0 %v2130
      %v2162 = vpop.xlane.xlu0 %2161
      %2163 = vadd.xlane.f32.xlu0 %v2132
      %v2164 = vpop.xlane.xlu0 %2163
      %2165 = vadd.xlane.f32.xlu0 %v2134
      %v2166 = vpop.xlane.xlu0 %2165
      %2167 = vadd.xlane.f32.xlu0 %v2136
      %v2168 = vpop.xlane.xlu0 %2167
      %2169 = vadd.xlane.f32.xlu0 %v2138
      %v2170 = vpop.xlane.xlu0 %2169
      %2171 = vadd.xlane.f32.xlu0 %v2140
      %v2172 = vpop.xlane.xlu0 %2171
      %2173 = vadd.xlane.f32.xlu0 %v2142
      %v2174 = vpop.xlane.xlu0 %2173
      %2175 = vadd.xlane.f32.xlu0 %v2144
      %v2176 = vpop.xlane.xlu0 %2175
      %2177 = vadd.xlane.f32.xlu0 %v2146
      %v2178 = vpop.xlane.xlu0 %2177
      %2179 = vadd.xlane.f32.xlu0 %v2148
      %v2180 = vpop.xlane.xlu0 %2179
      %2181 = vadd.xlane.f32.xlu0 %v2150
      %v2182 = vpop.xlane.xlu0 %2181
      %2183 = vadd.xlane.f32.xlu0 %v2152
      %v2184 = vpop.xlane.xlu0 %2183
      %2185 = vadd.xlane.f32.xlu0 %v2154
      %v2186 = vpop.xlane.xlu0 %2185
      %2187 = vadd.xlane.f32.xlu0 %v2156
      %v2188 = vpop.xlane.xlu0 %2187
      %v2189 = vrcp.pop %v2158
      %v2190 = vrcp.pop %v2160
      %v2191 = vrcp.pop %v2162
      %v2192 = vrcp.pop %v2164
      %v2193 = vrcp.pop %v2166
      %v2194 = vrcp.pop %v2168
      %v2195 = vrcp.pop %v2170
      %v2196 = vrcp.pop %v2172
      %v2197 = vrcp.pop %v2174
      %v2198 = vrcp.pop %v2176
      %v2199 = vrcp.pop %v2178
      %v2200 = vrcp.pop %v2180
      %v2201 = vrcp.pop %v2182
      %v2202 = vrcp.pop %v2184
      %v2203 = vrcp.pop %v2186
      %v2204 = vrcp.pop %v2188
      %v2205 = vmul.f32 %v2126, %v2189
      %v2206 = vmul.f32 %v2128, %v2190
      %v2207 = vmul.f32 %v2130, %v2191
      %v2208 = vmul.f32 %v2132, %v2192
      %v2209 = vmul.f32 %v2134, %v2193
      %v2210 = vmul.f32 %v2136, %v2194
      %v2211 = vmul.f32 %v2138, %v2195
      %v2212 = vmul.f32 %v2140, %v2196
      %v2213 = vmul.f32 %v2142, %v2197
      %v2214 = vmul.f32 %v2144, %v2198
      %v2215 = vmul.f32 %v2146, %v2199
      %v2216 = vmul.f32 %v2148, %v2200
      %v2217 = vmul.f32 %v2150, %v2201
      %v2218 = vmul.f32 %v2152, %v2202
      %v2219 = vmul.f32 %v2154, %v2203
      %v2220 = vmul.f32 %v2156, %v2204
      %v2221 = vpack.c.bf16 %v2206, %v2205
      %v2222 = vpack.c.bf16 %v2208, %v2207
      %v2223 = vpack.c.bf16 %v2210, %v2209
      %v2224 = vpack.c.bf16 %v2212, %v2211
      %v2225 = vpack.c.bf16 %v2214, %v2213
      %v2226 = vpack.c.bf16 %v2216, %v2215
      %v2227 = vpack.c.bf16 %v2218, %v2217
      %v2228 = vpack.c.bf16 %v2220, %v2219
      %v2229 = vunpack.c.h.b16 %v1779
      %v2230 = vunpack.c.h.b16 %v1782
      %v2231 = vunpack.c.h.b16 %v1785
      %v2232 = vunpack.c.h.b16 %v1788
      %v2233 = vunpack.c.h.b16 %v1791
      %v2234 = vunpack.c.h.b16 %v1794
      %v2235 = vunpack.c.h.b16 %v1797
      %v2236 = vunpack.c.h.b16 %v1800
      %v2237 = vunpack.c.h.b16 %v1803
      %v2238 = vunpack.c.h.b16 %v1806
      %v2239 = vunpack.c.h.b16 %v1809
      %v2240 = vunpack.c.h.b16 %v1812
      %v2241 = vunpack.c.h.b16 %v1815
      %v2242 = vunpack.c.h.b16 %v1818
      %v2243 = vunpack.c.h.b16 %v1821
      %v2244 = vunpack.c.h.b16 %v1824
      %v2245 = vpack.c.b16 %v2230, %v2229
      %v2246 = vpack.c.b16 %v2232, %v2231
      %v2247 = vpack.c.b16 %v2234, %v2233
      %v2248 = vpack.c.b16 %v2236, %v2235
      %v2249 = vpack.c.b16 %v2238, %v2237
      %v2250 = vpack.c.b16 %v2240, %v2239
      %v2251 = vpack.c.b16 %v2242, %v2241
      %v2252 = vpack.c.b16 %v2244, %v2243
      %2261 = vmatpush.bf16.msra.mxu0 %v2252
      %2262 = vmatpush.bf16.msra.mxu0 %v2251
      %2263 = vmatpush.bf16.msra.mxu0 %v2250
      %2264 = vmatpush.bf16.msra.mxu0 %v2249
      %2265 = vmatpush.bf16.msra.mxu0 %v2248
      %2266 = vmatpush.bf16.msra.mxu0 %v2247
      %2267 = vmatpush.bf16.msra.mxu0 %v2246
      %2268 = vmatpush.bf16.msra.mxu0 %v2245
      %2269 = vmatmul.bf16.gmra.mxu0 %v2221
      %v2270 = vpop.f32.mrf.mxu0
      %v2271 = vadd.f32 0.0, %v2270
      %v2272 = vpop.f32.mrf.mxu0
      %v2273 = vadd.f32 0.0, %v2272
      %2274 = vmatmul.bf16.gmra.mxu0 %v2222
      %v2275 = vpop.f32.mrf.mxu0
      %v2276 = vadd.f32 0.0, %v2275
      %v2277 = vpop.f32.mrf.mxu0
      %v2278 = vadd.f32 0.0, %v2277
      %2279 = vmatmul.bf16.gmra.mxu0 %v2223
      %v2280 = vpop.f32.mrf.mxu0
      %v2281 = vadd.f32 0.0, %v2280
      %v2282 = vpop.f32.mrf.mxu0
      %v2283 = vadd.f32 0.0, %v2282
      %2284 = vmatmul.bf16.gmra.mxu0 %v2224
      %v2285 = vpop.f32.mrf.mxu0
      %v2286 = vadd.f32 0.0, %v2285
      %v2287 = vpop.f32.mrf.mxu0
      %v2288 = vadd.f32 0.0, %v2287
      %2289 = vmatmul.bf16.gmra.mxu0 %v2225
      %v2290 = vpop.f32.mrf.mxu0
      %v2291 = vadd.f32 0.0, %v2290
      %v2292 = vpop.f32.mrf.mxu0
      %v2293 = vadd.f32 0.0, %v2292
      %2294 = vmatmul.bf16.gmra.mxu0 %v2226
      %v2295 = vpop.f32.mrf.mxu0
      %v2296 = vadd.f32 0.0, %v2295
      %v2297 = vpop.f32.mrf.mxu0
      %v2298 = vadd.f32 0.0, %v2297
      %2299 = vmatmul.bf16.gmra.mxu0 %v2227
      %v2300 = vpop.f32.mrf.mxu0
      %v2301 = vadd.f32 0.0, %v2300
      %v2302 = vpop.f32.mrf.mxu0
      %v2303 = vadd.f32 0.0, %v2302
      %2304 = vmatmul.bf16.gmra.mxu0 %v2228
      %v2305 = vpop.f32.mrf.mxu0
      %v2306 = vadd.f32 0.0, %v2305
      %v2307 = vpop.f32.mrf.mxu0
      %v2308 = vadd.f32 0.0, %v2307
      %2309 = vdwg.mxu0
      %v2310 = vpack.c.bf16 %v2273, %v2271
      %v2311 = vpack.c.bf16 %v2278, %v2276
      %v2312 = vpack.c.bf16 %v2283, %v2281
      %v2313 = vpack.c.bf16 %v2288, %v2286
      %v2314 = vpack.c.bf16 %v2293, %v2291
      %v2315 = vpack.c.bf16 %v2298, %v2296
      %v2316 = vpack.c.bf16 %v2303, %v2301
      %v2317 = vpack.c.bf16 %v2308, %v2306
      %v2318 = vld [vmem:[%s634] sm:$0xff]
      %v2319 = vld [vmem:[%s634 + $0x8] sm:$0xff]
      %v2320 = vld [vmem:[%s634 + $0x10] sm:$0xff]
      %v2321 = vld [vmem:[%s634 + $0x18] sm:$0xff]
      %v2322 = vld [vmem:[%s634 + $0x20] sm:$0xff]
      %v2323 = vld [vmem:[%s634 + $0x28] sm:$0xff]
      %v2324 = vld [vmem:[%s634 + $0x30] sm:$0xff]
      %v2325 = vld [vmem:[%s634 + $0x38] sm:$0xff]
      %v2326 = vld [vmem:[%s634 + $0x40] sm:$0xff]
      %v2327 = vld [vmem:[%s634 + $0x48] sm:$0xff]
      %v2328 = vld [vmem:[%s634 + $0x50] sm:$0xff]
      %v2329 = vld [vmem:[%s634 + $0x58] sm:$0xff]
      %v2342 = vunpack.c.l.b16 %v2318
      %v2343 = vunpack.c.h.b16 %v2318
      %v2344 = vunpack.c.l.b16 %v2319
      %v2345 = vunpack.c.h.b16 %v2319
      %v2346 = vunpack.c.l.b16 %v2320
      %v2347 = vunpack.c.h.b16 %v2320
      %v2348 = vunpack.c.l.b16 %v2321
      %v2349 = vunpack.c.h.b16 %v2321
      %v2350 = vunpack.c.l.b16 %v2322
      %v2351 = vunpack.c.h.b16 %v2322
      %v2352 = vunpack.c.l.b16 %v2323
      %v2353 = vunpack.c.h.b16 %v2323
      %v2354 = vunpack.c.l.b16 %v2324
      %v2355 = vunpack.c.h.b16 %v2324
      %v2356 = vunpack.c.l.b16 %v2325
      %v2357 = vunpack.c.h.b16 %v2325
      %v2358 = vunpack.c.l.b16 %v2326
      %v2359 = vunpack.c.h.b16 %v2326
      %v2360 = vunpack.c.l.b16 %v2327
      %v2361 = vunpack.c.h.b16 %v2327
      %v2362 = vunpack.c.l.b16 %v2328
      %v2363 = vunpack.c.h.b16 %v2328
      %v2364 = vunpack.c.l.b16 %v2329
      %v2365 = vunpack.c.h.b16 %v2329
      %v2366 = vpack.c.b16 %v2344, %v2342
      %v2367 = vpack.c.b16 %v2345, %v2343
      %v2368 = vpack.c.b16 %v2348, %v2346
      %v2369 = vpack.c.b16 %v2349, %v2347
      %v2370 = vpack.c.b16 %v2352, %v2350
      %v2371 = vpack.c.b16 %v2353, %v2351
      %v2372 = vpack.c.b16 %v2356, %v2354
      %v2373 = vpack.c.b16 %v2357, %v2355
      %v2374 = vpack.c.b16 %v2360, %v2358
      %v2375 = vpack.c.b16 %v2361, %v2359
      %v2376 = vpack.c.b16 %v2364, %v2362
      %v2377 = vpack.c.b16 %v2365, %v2363
      %v2391 = vsel %vm1979, %v2310, 0
      %v2394 = vsel %vm1979, %v2311, 0
      %v2397 = vsel %vm1979, %v2312, 0
      %v2400 = vsel %vm1979, %v2313, 0
      %v2403 = vsel %vm1979, %v2314, 0
      %v2406 = vsel %vm1979, %v2315, 0
      %v2409 = vsel %vm1979, %v2316, 0
      %v2412 = vsel %vm1979, %v2317, 0
      %2414 = vmatpush.bf16.msra.mxu0 0
      %2415 = vmatpush.bf16.msra.mxu0 0
      %2416 = vmatpush.bf16.msra.mxu0 %v2376
      %2417 = vmatpush.bf16.msra.mxu0 %v2374
      %2418 = vmatpush.bf16.msra.mxu0 %v2372
      %2419 = vmatpush.bf16.msra.mxu0 %v2370
      %2420 = vmatpush.bf16.msra.mxu0 %v2368
      %2421 = vmatpush.bf16.msra.mxu0 %v2366
      %2422 = vmatmul.bf16.gmra.mxu0 %v2391
      %v2423 = vpop.f32.mrf.mxu0
      %v2424 = vadd.f32 0.0, %v2423
      %v2425 = vpop.f32.mrf.mxu0
      %v2426 = vadd.f32 0.0, %v2425
      %2427 = vmatmul.bf16.gmra.mxu0 %v2394
      %v2428 = vpop.f32.mrf.mxu0
      %v2429 = vadd.f32 0.0, %v2428
      %v2430 = vpop.f32.mrf.mxu0
      %v2431 = vadd.f32 0.0, %v2430
      %2432 = vmatmul.bf16.gmra.mxu0 %v2397
      %v2433 = vpop.f32.mrf.mxu0
      %v2434 = vadd.f32 0.0, %v2433
      %v2435 = vpop.f32.mrf.mxu0
      %v2436 = vadd.f32 0.0, %v2435
      %2437 = vmatmul.bf16.gmra.mxu0 %v2400
      %v2438 = vpop.f32.mrf.mxu0
      %v2439 = vadd.f32 0.0, %v2438
      %v2440 = vpop.f32.mrf.mxu0
      %v2441 = vadd.f32 0.0, %v2440
      %2442 = vmatmul.bf16.gmra.mxu0 %v2403
      %v2443 = vpop.f32.mrf.mxu0
      %v2444 = vadd.f32 0.0, %v2443
      %v2445 = vpop.f32.mrf.mxu0
      %v2446 = vadd.f32 0.0, %v2445
      %2447 = vmatmul.bf16.gmra.mxu0 %v2406
      %v2448 = vpop.f32.mrf.mxu0
      %v2449 = vadd.f32 0.0, %v2448
      %v2450 = vpop.f32.mrf.mxu0
      %v2451 = vadd.f32 0.0, %v2450
      %2452 = vmatmul.bf16.gmra.mxu0 %v2409
      %v2453 = vpop.f32.mrf.mxu0
      %v2454 = vadd.f32 0.0, %v2453
      %v2455 = vpop.f32.mrf.mxu0
      %v2456 = vadd.f32 0.0, %v2455
      %2457 = vmatmul.bf16.gmra.mxu0 %v2412
      %v2458 = vpop.f32.mrf.mxu0
      %v2459 = vadd.f32 0.0, %v2458
      %v2460 = vpop.f32.mrf.mxu0
      %v2461 = vadd.f32 0.0, %v2460
      %2462 = vdwg.mxu0
      %2463 = vmatpush.bf16.msra.mxu0 0
      %2464 = vmatpush.bf16.msra.mxu0 0
      %2465 = vmatpush.bf16.msra.mxu0 %v2377
      %2466 = vmatpush.bf16.msra.mxu0 %v2375
      %2467 = vmatpush.bf16.msra.mxu0 %v2373
      %2468 = vmatpush.bf16.msra.mxu0 %v2371
      %2469 = vmatpush.bf16.msra.mxu0 %v2369
      %2470 = vmatpush.bf16.msra.mxu0 %v2367
      %2471 = vmatmul.bf16.gmra.mxu0 %v2391
      %v2472 = vpop.f32.mrf.mxu0
      %v2473 = vadd.f32 0.0, %v2472
      %v2474 = vpop.f32.mrf.mxu0
      %v2475 = vadd.f32 0.0, %v2474
      %2476 = vmatmul.bf16.gmra.mxu0 %v2394
      %v2477 = vpop.f32.mrf.mxu0
      %v2478 = vadd.f32 0.0, %v2477
      %v2479 = vpop.f32.mrf.mxu0
      %v2480 = vadd.f32 0.0, %v2479
      %2481 = vmatmul.bf16.gmra.mxu0 %v2397
      %v2482 = vpop.f32.mrf.mxu0
      %v2483 = vadd.f32 0.0, %v2482
      %v2484 = vpop.f32.mrf.mxu0
      %v2485 = vadd.f32 0.0, %v2484
      %2486 = vmatmul.bf16.gmra.mxu0 %v2400
      %v2487 = vpop.f32.mrf.mxu0
      %v2488 = vadd.f32 0.0, %v2487
      %v2489 = vpop.f32.mrf.mxu0
      %v2490 = vadd.f32 0.0, %v2489
      %2491 = vmatmul.bf16.gmra.mxu0 %v2403
      %v2492 = vpop.f32.mrf.mxu0
      %v2493 = vadd.f32 0.0, %v2492
      %v2494 = vpop.f32.mrf.mxu0
      %v2495 = vadd.f32 0.0, %v2494
      %2496 = vmatmul.bf16.gmra.mxu0 %v2406
      %v2497 = vpop.f32.mrf.mxu0
      %v2498 = vadd.f32 0.0, %v2497
      %v2499 = vpop.f32.mrf.mxu0
      %v2500 = vadd.f32 0.0, %v2499
      %2501 = vmatmul.bf16.gmra.mxu0 %v2409
      %v2502 = vpop.f32.mrf.mxu0
      %v2503 = vadd.f32 0.0, %v2502
      %v2504 = vpop.f32.mrf.mxu0
      %v2505 = vadd.f32 0.0, %v2504
      %2506 = vmatmul.bf16.gmra.mxu0 %v2412
      %v2507 = vpop.f32.mrf.mxu0
      %v2508 = vadd.f32 0.0, %v2507
      %v2509 = vpop.f32.mrf.mxu0
      %v2510 = vadd.f32 0.0, %v2509
      %2511 = vdwg.mxu0
      %v2512 = vadd.f32 %v1832, %v2424
      %v2513 = vadd.f32 %v1833, %v2473
      %v2514 = vadd.f32 %v1832, %v2426
      %v2515 = vadd.f32 %v1833, %v2475
      %v2516 = vadd.f32 %v1832, %v2429
      %v2517 = vadd.f32 %v1833, %v2478
      %v2518 = vadd.f32 %v1832, %v2431
      %v2519 = vadd.f32 %v1833, %v2480
      %v2520 = vadd.f32 %v1832, %v2434
      %v2521 = vadd.f32 %v1833, %v2483
      %v2522 = vadd.f32 %v1832, %v2436
      %v2523 = vadd.f32 %v1833, %v2485
      %v2524 = vadd.f32 %v1832, %v2439
      %v2525 = vadd.f32 %v1833, %v2488
      %v2526 = vadd.f32 %v1832, %v2441
      %v2527 = vadd.f32 %v1833, %v2490
      %v2528 = vadd.f32 %v1832, %v2444
      %v2529 = vadd.f32 %v1833, %v2493
      %v2530 = vadd.f32 %v1832, %v2446
      %v2531 = vadd.f32 %v1833, %v2495
      %v2532 = vadd.f32 %v1832, %v2449
      %v2533 = vadd.f32 %v1833, %v2498
      %v2534 = vadd.f32 %v1832, %v2451
      %v2535 = vadd.f32 %v1833, %v2500
      %v2536 = vadd.f32 %v1832, %v2454
      %v2537 = vadd.f32 %v1833, %v2503
      %v2538 = vadd.f32 %v1832, %v2456
      %v2539 = vadd.f32 %v1833, %v2505
      %v2540 = vadd.f32 %v1832, %v2459
      %v2541 = vadd.f32 %v1833, %v2508
      %v2542 = vadd.f32 %v1832, %v2461
      %v2543 = vadd.f32 %v1833, %v2510
      %2544 = vrot.lane.b32.xlu0 %v1866, 32
      %v2545 = vpop.permute.xlu0 %2544
      %2546 = vrot.lane.b32.xlu0 %v1922, 32
      %v2547 = vpop.permute.xlu0 %2546
      %2548 = vrot.lane.b32.xlu0 %v1867, 32
      %v2549 = vpop.permute.xlu0 %2548
      %2550 = vrot.lane.b32.xlu0 %v1924, 32
      %v2551 = vpop.permute.xlu0 %2550
      %2552 = vrot.lane.b32.xlu0 %v1868, 32
      %v2553 = vpop.permute.xlu0 %2552
      %2554 = vrot.lane.b32.xlu0 %v1926, 32
      %v2555 = vpop.permute.xlu0 %2554
      %2556 = vrot.lane.b32.xlu0 %v1869, 32
      %v2557 = vpop.permute.xlu0 %2556
      %2558 = vrot.lane.b32.xlu0 %v1928, 32
      %v2559 = vpop.permute.xlu0 %2558
      %2560 = vrot.lane.b32.xlu0 %v1870, 32
      %v2561 = vpop.permute.xlu0 %2560
      %2562 = vrot.lane.b32.xlu0 %v1930, 32
      %v2563 = vpop.permute.xlu0 %2562
      %2564 = vrot.lane.b32.xlu0 %v1871, 32
      %v2565 = vpop.permute.xlu0 %2564
      %2566 = vrot.lane.b32.xlu0 %v1932, 32
      %v2567 = vpop.permute.xlu0 %2566
      %2568 = vrot.lane.b32.xlu0 %v1872, 32
      %v2569 = vpop.permute.xlu0 %2568
      %2570 = vrot.lane.b32.xlu0 %v1934, 32
      %v2571 = vpop.permute.xlu0 %2570
      %2572 = vrot.lane.b32.xlu0 %v1873, 32
      %v2573 = vpop.permute.xlu0 %2572
      %2574 = vrot.lane.b32.xlu0 %v1936, 32
      %v2575 = vpop.permute.xlu0 %2574
      %vm2576 = vcmask 261120
      %v2577 = vsel %vm2576, %v2545, %v2547
      %v2578 = vsel %vm2576, %v2549, %v2551
      %v2579 = vsel %vm2576, %v2553, %v2555
      %v2580 = vsel %vm2576, %v2557, %v2559
      %v2581 = vsel %vm2576, %v2561, %v2563
      %v2582 = vsel %vm2576, %v2565, %v2567
      %v2583 = vsel %vm2576, %v2569, %v2571
      %v2584 = vsel %vm2576, %v2573, %v2575
      %2585 = vrot.lane.b32.xlu0 %v1923, 96
      %v2586 = vpop.permute.xlu0 %2585
      %2587 = vrot.lane.b32.xlu0 %v1925, 96
      %v2588 = vpop.permute.xlu0 %2587
      %2589 = vrot.lane.b32.xlu0 %v1927, 96
      %v2590 = vpop.permute.xlu0 %2589
      %2591 = vrot.lane.b32.xlu0 %v1929, 96
      %v2592 = vpop.permute.xlu0 %2591
      %2593 = vrot.lane.b32.xlu0 %v1931, 96
      %v2594 = vpop.permute.xlu0 %2593
      %2595 = vrot.lane.b32.xlu0 %v1933, 96
      %v2596 = vpop.permute.xlu0 %2595
      %2597 = vrot.lane.b32.xlu0 %v1935, 96
      %v2598 = vpop.permute.xlu0 %2597
      %2599 = vrot.lane.b32.xlu0 %v1937, 96
      %v2600 = vpop.permute.xlu0 %2599
      %v2602 = vsel %vm1979, %v2577, 0
      %v2605 = vsel %vm1979, %v2578, 0
      %v2608 = vsel %vm1979, %v2579, 0
      %v2611 = vsel %vm1979, %v2580, 0
      %v2614 = vsel %vm1979, %v2581, 0
      %v2617 = vsel %vm1979, %v2582, 0
      %v2620 = vsel %vm1979, %v2583, 0
      %v2623 = vsel %vm1979, %v2584, 0
      %v2626 = vsel %vm1979, %v2586, 0
      %v2629 = vsel %vm1979, %v2588, 0
      %v2632 = vsel %vm1979, %v2590, 0
      %v2635 = vsel %vm1979, %v2592, 0
      %v2638 = vsel %vm1979, %v2594, 0
      %v2641 = vsel %vm1979, %v2596, 0
      %v2644 = vsel %vm1979, %v2598, 0
      %v2647 = vsel %vm1979, %v2600, 0
      %2649 = vmatpush.bf16.xpose.msra.mxu0 %v2647
      %2650 = vmatpush.bf16.xpose.msra.mxu0 %v2644
      %2651 = vmatpush.bf16.xpose.msra.mxu0 %v2641
      %2652 = vmatpush.bf16.xpose.msra.mxu0 %v2638
      %2653 = vmatpush.bf16.xpose.msra.mxu0 %v2635
      %2654 = vmatpush.bf16.xpose.msra.mxu0 %v2632
      %2655 = vmatpush.bf16.xpose.msra.mxu0 %v2629
      %2656 = vmatpush.bf16.xpose.msra.mxu0 %v2626
      %2657 = vmatmul.bf16.gmra.mxu0 %v2602
      %v2658 = vpop.f32.mrf.mxu0
      %v2659 = vadd.f32 %v850, %v2658
      %v2660 = vpop.f32.mrf.mxu0
      %v2661 = vadd.f32 %v850, %v2660
      %2662 = vmatmul.bf16.gmra.mxu0 %v2605
      %v2663 = vpop.f32.mrf.mxu0
      %v2664 = vadd.f32 %v850, %v2663
      %v2665 = vpop.f32.mrf.mxu0
      %v2666 = vadd.f32 %v850, %v2665
      %2667 = vmatmul.bf16.gmra.mxu0 %v2608
      %v2668 = vpop.f32.mrf.mxu0
      %v2669 = vadd.f32 %v850, %v2668
      %v2670 = vpop.f32.mrf.mxu0
      %v2671 = vadd.f32 %v850, %v2670
      %2672 = vmatmul.bf16.gmra.mxu0 %v2611
      %v2673 = vpop.f32.mrf.mxu0
      %v2674 = vadd.f32 %v850, %v2673
      %v2675 = vpop.f32.mrf.mxu0
      %v2676 = vadd.f32 %v850, %v2675
      %2677 = vmatmul.bf16.gmra.mxu0 %v2614
      %v2678 = vpop.f32.mrf.mxu0
      %v2679 = vadd.f32 %v850, %v2678
      %v2680 = vpop.f32.mrf.mxu0
      %v2681 = vadd.f32 %v850, %v2680
      %2682 = vmatmul.bf16.gmra.mxu0 %v2617
      %v2683 = vpop.f32.mrf.mxu0
      %v2684 = vadd.f32 %v850, %v2683
      %v2685 = vpop.f32.mrf.mxu0
      %v2686 = vadd.f32 %v850, %v2685
      %2687 = vmatmul.bf16.gmra.mxu0 %v2620
      %v2688 = vpop.f32.mrf.mxu0
      %v2689 = vadd.f32 %v850, %v2688
      %v2690 = vpop.f32.mrf.mxu0
      %v2691 = vadd.f32 %v850, %v2690
      %2692 = vmatmul.bf16.gmra.mxu0 %v2623
      %v2693 = vpop.f32.mrf.mxu0
      %v2694 = vadd.f32 %v850, %v2693
      %v2695 = vpop.f32.mrf.mxu0
      %v2696 = vadd.f32 %v850, %v2695
      %2697 = vdwg.mxu0
      %2698 = vmax.xlane.f32.xlu0 %v2659
      %v2699 = vpop.xlane.xlu0 %2698
      %2700 = vmax.xlane.f32.xlu0 %v2661
      %v2701 = vpop.xlane.xlu0 %2700
      %2702 = vmax.xlane.f32.xlu0 %v2664
      %v2703 = vpop.xlane.xlu0 %2702
      %2704 = vmax.xlane.f32.xlu0 %v2666
      %v2705 = vpop.xlane.xlu0 %2704
      %2706 = vmax.xlane.f32.xlu0 %v2669
      %v2707 = vpop.xlane.xlu0 %2706
      %2708 = vmax.xlane.f32.xlu0 %v2671
      %v2709 = vpop.xlane.xlu0 %2708
      %2710 = vmax.xlane.f32.xlu0 %v2674
      %v2711 = vpop.xlane.xlu0 %2710
      %2712 = vmax.xlane.f32.xlu0 %v2676
      %v2713 = vpop.xlane.xlu0 %2712
      %2714 = vmax.xlane.f32.xlu0 %v2679
      %v2715 = vpop.xlane.xlu0 %2714
      %2716 = vmax.xlane.f32.xlu0 %v2681
      %v2717 = vpop.xlane.xlu0 %2716
      %2718 = vmax.xlane.f32.xlu0 %v2684
      %v2719 = vpop.xlane.xlu0 %2718
      %2720 = vmax.xlane.f32.xlu0 %v2686
      %v2721 = vpop.xlane.xlu0 %2720
      %2722 = vmax.xlane.f32.xlu0 %v2689
      %v2723 = vpop.xlane.xlu0 %2722
      %2724 = vmax.xlane.f32.xlu0 %v2691
      %v2725 = vpop.xlane.xlu0 %2724
      %2726 = vmax.xlane.f32.xlu0 %v2694
      %v2727 = vpop.xlane.xlu0 %2726
      %2728 = vmax.xlane.f32.xlu0 %v2696
      %v2729 = vpop.xlane.xlu0 %2728
      %v2730 = vsub.f32 %v2659, %v2699
      %v2731 = vsub.f32 %v2661, %v2701
      %v2732 = vsub.f32 %v2664, %v2703
      %v2733 = vsub.f32 %v2666, %v2705
      %v2734 = vsub.f32 %v2669, %v2707
      %v2735 = vsub.f32 %v2671, %v2709
      %v2736 = vsub.f32 %v2674, %v2711
      %v2737 = vsub.f32 %v2676, %v2713
      %v2738 = vsub.f32 %v2679, %v2715
      %v2739 = vsub.f32 %v2681, %v2717
      %v2740 = vsub.f32 %v2684, %v2719
      %v2741 = vsub.f32 %v2686, %v2721
      %v2742 = vsub.f32 %v2689, %v2723
      %v2743 = vsub.f32 %v2691, %v2725
      %v2744 = vsub.f32 %v2694, %v2727
      %v2745 = vsub.f32 %v2696, %v2729
      %v2746 = vmul.f32 %v2730, 1.442695
      %v2747 = vpow.pop %v2746
      %v2748 = vmul.f32 %v2731, 1.442695
      %v2749 = vpow.pop %v2748
      %v2750 = vmul.f32 %v2732, 1.442695
      %v2751 = vpow.pop %v2750
      %v2752 = vmul.f32 %v2733, 1.442695
      %v2753 = vpow.pop %v2752
      %v2754 = vmul.f32 %v2734, 1.442695
      %v2755 = vpow.pop %v2754
      %v2756 = vmul.f32 %v2735, 1.442695
      %v2757 = vpow.pop %v2756
      %v2758 = vmul.f32 %v2736, 1.442695
      %v2759 = vpow.pop %v2758
      %v2760 = vmul.f32 %v2737, 1.442695
      %v2761 = vpow.pop %v2760
      %v2762 = vmul.f32 %v2738, 1.442695
      %v2763 = vpow.pop %v2762
      %v2764 = vmul.f32 %v2739, 1.442695
      %v2765 = vpow.pop %v2764
      %v2766 = vmul.f32 %v2740, 1.442695
      %v2767 = vpow.pop %v2766
      %v2768 = vmul.f32 %v2741, 1.442695
      %v2769 = vpow.pop %v2768
      %v2770 = vmul.f32 %v2742, 1.442695
      %v2771 = vpow.pop %v2770
      %v2772 = vmul.f32 %v2743, 1.442695
      %v2773 = vpow.pop %v2772
      %v2774 = vmul.f32 %v2744, 1.442695
      %v2775 = vpow.pop %v2774
      %v2776 = vmul.f32 %v2745, 1.442695
      %v2777 = vpow.pop %v2776
      %2778 = vadd.xlane.f32.xlu0 %v2747
      %v2779 = vpop.xlane.xlu0 %2778
      %2780 = vadd.xlane.f32.xlu0 %v2749
      %v2781 = vpop.xlane.xlu0 %2780
      %2782 = vadd.xlane.f32.xlu0 %v2751
      %v2783 = vpop.xlane.xlu0 %2782
      %2784 = vadd.xlane.f32.xlu0 %v2753
      %v2785 = vpop.xlane.xlu0 %2784
      %2786 = vadd.xlane.f32.xlu0 %v2755
      %v2787 = vpop.xlane.xlu0 %2786
      %2788 = vadd.xlane.f32.xlu0 %v2757
      %v2789 = vpop.xlane.xlu0 %2788
      %2790 = vadd.xlane.f32.xlu0 %v2759
      %v2791 = vpop.xlane.xlu0 %2790
      %2792 = vadd.xlane.f32.xlu0 %v2761
      %v2793 = vpop.xlane.xlu0 %2792
      %2794 = vadd.xlane.f32.xlu0 %v2763
      %v2795 = vpop.xlane.xlu0 %2794
      %2796 = vadd.xlane.f32.xlu0 %v2765
      %v2797 = vpop.xlane.xlu0 %2796
      %2798 = vadd.xlane.f32.xlu0 %v2767
      %v2799 = vpop.xlane.xlu0 %2798
      %2800 = vadd.xlane.f32.xlu0 %v2769
      %v2801 = vpop.xlane.xlu0 %2800
      %2802 = vadd.xlane.f32.xlu0 %v2771
      %v2803 = vpop.xlane.xlu0 %2802
      %2804 = vadd.xlane.f32.xlu0 %v2773
      %v2805 = vpop.xlane.xlu0 %2804
      %2806 = vadd.xlane.f32.xlu0 %v2775
      %v2807 = vpop.xlane.xlu0 %2806
      %2808 = vadd.xlane.f32.xlu0 %v2777
      %v2809 = vpop.xlane.xlu0 %2808
      %v2810 = vrcp.pop %v2779
      %v2811 = vrcp.pop %v2781
      %v2812 = vrcp.pop %v2783
      %v2813 = vrcp.pop %v2785
      %v2814 = vrcp.pop %v2787
      %v2815 = vrcp.pop %v2789
      %v2816 = vrcp.pop %v2791
      %v2817 = vrcp.pop %v2793
      %v2818 = vrcp.pop %v2795
      %v2819 = vrcp.pop %v2797
      %v2820 = vrcp.pop %v2799
      %v2821 = vrcp.pop %v2801
      %v2822 = vrcp.pop %v2803
      %v2823 = vrcp.pop %v2805
      %v2824 = vrcp.pop %v2807
      %v2825 = vrcp.pop %v2809
      %v2826 = vmul.f32 %v2747, %v2810
      %v2827 = vmul.f32 %v2749, %v2811
      %v2828 = vmul.f32 %v2751, %v2812
      %v2829 = vmul.f32 %v2753, %v2813
      %v2830 = vmul.f32 %v2755, %v2814
      %v2831 = vmul.f32 %v2757, %v2815
      %v2832 = vmul.f32 %v2759, %v2816
      %v2833 = vmul.f32 %v2761, %v2817
      %v2834 = vmul.f32 %v2763, %v2818
      %v2835 = vmul.f32 %v2765, %v2819
      %v2836 = vmul.f32 %v2767, %v2820
      %v2837 = vmul.f32 %v2769, %v2821
      %v2838 = vmul.f32 %v2771, %v2822
      %v2839 = vmul.f32 %v2773, %v2823
      %v2840 = vmul.f32 %v2775, %v2824
      %v2841 = vmul.f32 %v2777, %v2825
      %v2842 = vpack.c.bf16 %v2827, %v2826
      %v2843 = vpack.c.bf16 %v2829, %v2828
      %v2844 = vpack.c.bf16 %v2831, %v2830
      %v2845 = vpack.c.bf16 %v2833, %v2832
      %v2846 = vpack.c.bf16 %v2835, %v2834
      %v2847 = vpack.c.bf16 %v2837, %v2836
      %v2848 = vpack.c.bf16 %v2839, %v2838
      %v2849 = vpack.c.bf16 %v2841, %v2840
      %v2866 = vunpack.c.l.b16 %v1780
      %v2867 = vunpack.c.l.b16 %v1783
      %v2868 = vunpack.c.l.b16 %v1786
      %v2869 = vunpack.c.l.b16 %v1789
      %v2870 = vunpack.c.l.b16 %v1792
      %v2871 = vunpack.c.l.b16 %v1795
      %v2872 = vunpack.c.l.b16 %v1798
      %v2873 = vunpack.c.l.b16 %v1801
      %v2874 = vunpack.c.l.b16 %v1804
      %v2875 = vunpack.c.l.b16 %v1807
      %v2876 = vunpack.c.l.b16 %v1810
      %v2877 = vunpack.c.l.b16 %v1813
      %v2878 = vunpack.c.l.b16 %v1816
      %v2879 = vunpack.c.l.b16 %v1819
      %v2880 = vunpack.c.l.b16 %v1822
      %v2881 = vunpack.c.l.b16 %v1825
      %v2882 = vpack.c.b16 %v2867, %v2866
      %v2883 = vpack.c.b16 %v2869, %v2868
      %v2884 = vpack.c.b16 %v2871, %v2870
      %v2885 = vpack.c.b16 %v2873, %v2872
      %v2886 = vpack.c.b16 %v2875, %v2874
      %v2887 = vpack.c.b16 %v2877, %v2876
      %v2888 = vpack.c.b16 %v2879, %v2878
      %v2889 = vpack.c.b16 %v2881, %v2880
      %2890 = vrot.lane.b32.xlu0 %v2245, 32
      %v2891 = vpop.permute.xlu0 %2890
      %2892 = vrot.lane.b32.xlu0 %v2882, 32
      %v2893 = vpop.permute.xlu0 %2892
      %2894 = vrot.lane.b32.xlu0 %v2246, 32
      %v2895 = vpop.permute.xlu0 %2894
      %2896 = vrot.lane.b32.xlu0 %v2883, 32
      %v2897 = vpop.permute.xlu0 %2896
      %2898 = vrot.lane.b32.xlu0 %v2247, 32
      %v2899 = vpop.permute.xlu0 %2898
      %2900 = vrot.lane.b32.xlu0 %v2884, 32
      %v2901 = vpop.permute.xlu0 %2900
      %2902 = vrot.lane.b32.xlu0 %v2248, 32
      %v2903 = vpop.permute.xlu0 %2902
      %2904 = vrot.lane.b32.xlu0 %v2885, 32
      %v2905 = vpop.permute.xlu0 %2904
      %2906 = vrot.lane.b32.xlu0 %v2249, 32
      %v2907 = vpop.permute.xlu0 %2906
      %2908 = vrot.lane.b32.xlu0 %v2886, 32
      %v2909 = vpop.permute.xlu0 %2908
      %2910 = vrot.lane.b32.xlu0 %v2250, 32
      %v2911 = vpop.permute.xlu0 %2910
      %2912 = vrot.lane.b32.xlu0 %v2887, 32
      %v2913 = vpop.permute.xlu0 %2912
      %2914 = vrot.lane.b32.xlu0 %v2251, 32
      %v2915 = vpop.permute.xlu0 %2914
      %2916 = vrot.lane.b32.xlu0 %v2888, 32
      %v2917 = vpop.permute.xlu0 %2916
      %2918 = vrot.lane.b32.xlu0 %v2252, 32
      %v2919 = vpop.permute.xlu0 %2918
      %2920 = vrot.lane.b32.xlu0 %v2889, 32
      %v2921 = vpop.permute.xlu0 %2920
      %v2922 = vsel %vm2576, %v2891, %v2893
      %v2923 = vsel %vm2576, %v2895, %v2897
      %v2924 = vsel %vm2576, %v2899, %v2901
      %v2925 = vsel %vm2576, %v2903, %v2905
      %v2926 = vsel %vm2576, %v2907, %v2909
      %v2927 = vsel %vm2576, %v2911, %v2913
      %v2928 = vsel %vm2576, %v2915, %v2917
      %v2929 = vsel %vm2576, %v2919, %v2921
      %2938 = vmatpush.bf16.msra.mxu0 %v2929
      %2939 = vmatpush.bf16.msra.mxu0 %v2928
      %2940 = vmatpush.bf16.msra.mxu0 %v2927
      %2941 = vmatpush.bf16.msra.mxu0 %v2926
      %2942 = vmatpush.bf16.msra.mxu0 %v2925
      %2943 = vmatpush.bf16.msra.mxu0 %v2924
      %2944 = vmatpush.bf16.msra.mxu0 %v2923
      %2945 = vmatpush.bf16.msra.mxu0 %v2922
      %2946 = vmatmul.bf16.gmra.mxu0 %v2842
      %v2947 = vpop.f32.mrf.mxu0
      %v2948 = vadd.f32 0.0, %v2947
      %v2949 = vpop.f32.mrf.mxu0
      %v2950 = vadd.f32 0.0, %v2949
      %2951 = vmatmul.bf16.gmra.mxu0 %v2843
      %v2952 = vpop.f32.mrf.mxu0
      %v2953 = vadd.f32 0.0, %v2952
      %v2954 = vpop.f32.mrf.mxu0
      %v2955 = vadd.f32 0.0, %v2954
      %2956 = vmatmul.bf16.gmra.mxu0 %v2844
      %v2957 = vpop.f32.mrf.mxu0
      %v2958 = vadd.f32 0.0, %v2957
      %v2959 = vpop.f32.mrf.mxu0
      %v2960 = vadd.f32 0.0, %v2959
      %2961 = vmatmul.bf16.gmra.mxu0 %v2845
      %v2962 = vpop.f32.mrf.mxu0
      %v2963 = vadd.f32 0.0, %v2962
      %v2964 = vpop.f32.mrf.mxu0
      %v2965 = vadd.f32 0.0, %v2964
      %2966 = vmatmul.bf16.gmra.mxu0 %v2846
      %v2967 = vpop.f32.mrf.mxu0
      %v2968 = vadd.f32 0.0, %v2967
      %v2969 = vpop.f32.mrf.mxu0
      %v2970 = vadd.f32 0.0, %v2969
      %2971 = vmatmul.bf16.gmra.mxu0 %v2847
      %v2972 = vpop.f32.mrf.mxu0
      %v2973 = vadd.f32 0.0, %v2972
      %v2974 = vpop.f32.mrf.mxu0
      %v2975 = vadd.f32 0.0, %v2974
      %2976 = vmatmul.bf16.gmra.mxu0 %v2848
      %v2977 = vpop.f32.mrf.mxu0
      %v2978 = vadd.f32 0.0, %v2977
      %v2979 = vpop.f32.mrf.mxu0
      %v2980 = vadd.f32 0.0, %v2979
      %2981 = vmatmul.bf16.gmra.mxu0 %v2849
      %v2982 = vpop.f32.mrf.mxu0
      %v2983 = vadd.f32 0.0, %v2982
      %v2984 = vpop.f32.mrf.mxu0
      %v2985 = vadd.f32 0.0, %v2984
      %2986 = vdwg.mxu0
      %v2987 = vpack.c.bf16 %v2950, %v2948
      %v2988 = vpack.c.bf16 %v2955, %v2953
      %v2989 = vpack.c.bf16 %v2960, %v2958
      %v2990 = vpack.c.bf16 %v2965, %v2963
      %v2991 = vpack.c.bf16 %v2970, %v2968
      %v2992 = vpack.c.bf16 %v2975, %v2973
      %v2993 = vpack.c.bf16 %v2980, %v2978
      %v2994 = vpack.c.bf16 %v2985, %v2983
      %s2995 = scalar_lea.vmem %s634, 96
      %v2996 = vld [vmem:[%s2995] sm:$0xff]
      %v2997 = vld [vmem:[%s2995 + $0x8] sm:$0xff]
      %v2998 = vld [vmem:[%s2995 + $0x10] sm:$0xff]
      %v2999 = vld [vmem:[%s2995 + $0x18] sm:$0xff]
      %v3000 = vld [vmem:[%s2995 + $0x20] sm:$0xff]
      %v3001 = vld [vmem:[%s2995 + $0x28] sm:$0xff]
      %v3002 = vld [vmem:[%s2995 + $0x30] sm:$0xff]
      %v3003 = vld [vmem:[%s2995 + $0x38] sm:$0xff]
      %v3004 = vld [vmem:[%s2995 + $0x40] sm:$0xff]
      %v3005 = vld [vmem:[%s2995 + $0x48] sm:$0xff]
      %v3006 = vld [vmem:[%s2995 + $0x50] sm:$0xff]
      %v3007 = vld [vmem:[%s2995 + $0x58] sm:$0xff]
      %v3020 = vunpack.c.l.b16 %v2996
      %v3021 = vunpack.c.h.b16 %v2996
      %v3022 = vunpack.c.l.b16 %v2997
      %v3023 = vunpack.c.h.b16 %v2997
      %v3024 = vunpack.c.l.b16 %v2998
      %v3025 = vunpack.c.h.b16 %v2998
      %v3026 = vunpack.c.l.b16 %v2999
      %v3027 = vunpack.c.h.b16 %v2999
      %v3028 = vunpack.c.l.b16 %v3000
      %v3029 = vunpack.c.h.b16 %v3000
      %v3030 = vunpack.c.l.b16 %v3001
      %v3031 = vunpack.c.h.b16 %v3001
      %v3032 = vunpack.c.l.b16 %v3002
      %v3033 = vunpack.c.h.b16 %v3002
      %v3034 = vunpack.c.l.b16 %v3003
      %v3035 = vunpack.c.h.b16 %v3003
      %v3036 = vunpack.c.l.b16 %v3004
      %v3037 = vunpack.c.h.b16 %v3004
      %v3038 = vunpack.c.l.b16 %v3005
      %v3039 = vunpack.c.h.b16 %v3005
      %v3040 = vunpack.c.l.b16 %v3006
      %v3041 = vunpack.c.h.b16 %v3006
      %v3042 = vunpack.c.l.b16 %v3007
      %v3043 = vunpack.c.h.b16 %v3007
      %v3044 = vpack.c.b16 %v3022, %v3020
      %v3045 = vpack.c.b16 %v3023, %v3021
      %v3046 = vpack.c.b16 %v3026, %v3024
      %v3047 = vpack.c.b16 %v3027, %v3025
      %v3048 = vpack.c.b16 %v3030, %v3028
      %v3049 = vpack.c.b16 %v3031, %v3029
      %v3050 = vpack.c.b16 %v3034, %v3032
      %v3051 = vpack.c.b16 %v3035, %v3033
      %v3052 = vpack.c.b16 %v3038, %v3036
      %v3053 = vpack.c.b16 %v3039, %v3037
      %v3054 = vpack.c.b16 %v3042, %v3040
      %v3055 = vpack.c.b16 %v3043, %v3041
      %v3069 = vsel %vm1979, %v2987, 0
      %v3072 = vsel %vm1979, %v2988, 0
      %v3075 = vsel %vm1979, %v2989, 0
      %v3078 = vsel %vm1979, %v2990, 0
      %v3081 = vsel %vm1979, %v2991, 0
      %v3084 = vsel %vm1979, %v2992, 0
      %v3087 = vsel %vm1979, %v2993, 0
      %v3090 = vsel %vm1979, %v2994, 0
      %3092 = vmatpush.bf16.msra.mxu0 0
      %3093 = vmatpush.bf16.msra.mxu0 0
      %3094 = vmatpush.bf16.msra.mxu0 %v3054
      %3095 = vmatpush.bf16.msra.mxu0 %v3052
      %3096 = vmatpush.bf16.msra.mxu0 %v3050
      %3097 = vmatpush.bf16.msra.mxu0 %v3048
      %3098 = vmatpush.bf16.msra.mxu0 %v3046
      %3099 = vmatpush.bf16.msra.mxu0 %v3044
      %3100 = vmatmul.bf16.gmra.mxu0 %v3069
      %v3101 = vpop.f32.mrf.mxu0
      %v3102 = vadd.f32 0.0, %v3101
      %v3103 = vpop.f32.mrf.mxu0
      %v3104 = vadd.f32 0.0, %v3103
      %3105 = vmatmul.bf16.gmra.mxu0 %v3072
      %v3106 = vpop.f32.mrf.mxu0
      %v3107 = vadd.f32 0.0, %v3106
      %v3108 = vpop.f32.mrf.mxu0
      %v3109 = vadd.f32 0.0, %v3108
      %3110 = vmatmul.bf16.gmra.mxu0 %v3075
      %v3111 = vpop.f32.mrf.mxu0
      %v3112 = vadd.f32 0.0, %v3111
      %v3113 = vpop.f32.mrf.mxu0
      %v3114 = vadd.f32 0.0, %v3113
      %3115 = vmatmul.bf16.gmra.mxu0 %v3078
      %v3116 = vpop.f32.mrf.mxu0
      %v3117 = vadd.f32 0.0, %v3116
      %v3118 = vpop.f32.mrf.mxu0
      %v3119 = vadd.f32 0.0, %v3118
      %3120 = vmatmul.bf16.gmra.mxu0 %v3081
      %v3121 = vpop.f32.mrf.mxu0
      %v3122 = vadd.f32 0.0, %v3121
      %v3123 = vpop.f32.mrf.mxu0
      %v3124 = vadd.f32 0.0, %v3123
      %3125 = vmatmul.bf16.gmra.mxu0 %v3084
      %v3126 = vpop.f32.mrf.mxu0
      %v3127 = vadd.f32 0.0, %v3126
      %v3128 = vpop.f32.mrf.mxu0
      %v3129 = vadd.f32 0.0, %v3128
      %3130 = vmatmul.bf16.gmra.mxu0 %v3087
      %v3131 = vpop.f32.mrf.mxu0
      %v3132 = vadd.f32 0.0, %v3131
      %v3133 = vpop.f32.mrf.mxu0
      %v3134 = vadd.f32 0.0, %v3133
      %3135 = vmatmul.bf16.gmra.mxu0 %v3090
      %v3136 = vpop.f32.mrf.mxu0
      %v3137 = vadd.f32 0.0, %v3136
      %v3138 = vpop.f32.mrf.mxu0
      %v3139 = vadd.f32 0.0, %v3138
      %3140 = vdwg.mxu0
      %3141 = vmatpush.bf16.msra.mxu0 0
      %3142 = vmatpush.bf16.msra.mxu0 0
      %3143 = vmatpush.bf16.msra.mxu0 %v3055
      %3144 = vmatpush.bf16.msra.mxu0 %v3053
      %3145 = vmatpush.bf16.msra.mxu0 %v3051
      %3146 = vmatpush.bf16.msra.mxu0 %v3049
      %3147 = vmatpush.bf16.msra.mxu0 %v3047
      %3148 = vmatpush.bf16.msra.mxu0 %v3045
      %3149 = vmatmul.bf16.gmra.mxu0 %v3069
      %v3150 = vpop.f32.mrf.mxu0
      %v3151 = vadd.f32 0.0, %v3150
      %v3152 = vpop.f32.mrf.mxu0
      %v3153 = vadd.f32 0.0, %v3152
      %3154 = vmatmul.bf16.gmra.mxu0 %v3072
      %v3155 = vpop.f32.mrf.mxu0
      %v3156 = vadd.f32 0.0, %v3155
      %v3157 = vpop.f32.mrf.mxu0
      %v3158 = vadd.f32 0.0, %v3157
      %3159 = vmatmul.bf16.gmra.mxu0 %v3075
      %v3160 = vpop.f32.mrf.mxu0
      %v3161 = vadd.f32 0.0, %v3160
      %v3162 = vpop.f32.mrf.mxu0
      %v3163 = vadd.f32 0.0, %v3162
      %3164 = vmatmul.bf16.gmra.mxu0 %v3078
      %v3165 = vpop.f32.mrf.mxu0
      %v3166 = vadd.f32 0.0, %v3165
      %v3167 = vpop.f32.mrf.mxu0
      %v3168 = vadd.f32 0.0, %v3167
      %3169 = vmatmul.bf16.gmra.mxu0 %v3081
      %v3170 = vpop.f32.mrf.mxu0
      %v3171 = vadd.f32 0.0, %v3170
      %v3172 = vpop.f32.mrf.mxu0
      %v3173 = vadd.f32 0.0, %v3172
      %3174 = vmatmul.bf16.gmra.mxu0 %v3084
      %v3175 = vpop.f32.mrf.mxu0
      %v3176 = vadd.f32 0.0, %v3175
      %v3177 = vpop.f32.mrf.mxu0
      %v3178 = vadd.f32 0.0, %v3177
      %3179 = vmatmul.bf16.gmra.mxu0 %v3087
      %v3180 = vpop.f32.mrf.mxu0
      %v3181 = vadd.f32 0.0, %v3180
      %v3182 = vpop.f32.mrf.mxu0
      %v3183 = vadd.f32 0.0, %v3182
      %3184 = vmatmul.bf16.gmra.mxu0 %v3090
      %v3185 = vpop.f32.mrf.mxu0
      %v3186 = vadd.f32 0.0, %v3185
      %v3187 = vpop.f32.mrf.mxu0
      %v3188 = vadd.f32 0.0, %v3187
      %3189 = vdwg.mxu0
      %v3190 = vadd.f32 %v2512, %v3102
      %v3191 = vadd.f32 %v2513, %v3151
      %v3192 = vadd.f32 %v2514, %v3104
      %v3193 = vadd.f32 %v2515, %v3153
      %v3194 = vadd.f32 %v2516, %v3107
      %v3195 = vadd.f32 %v2517, %v3156
      %v3196 = vadd.f32 %v2518, %v3109
      %v3197 = vadd.f32 %v2519, %v3158
      %v3198 = vadd.f32 %v2520, %v3112
      %v3199 = vadd.f32 %v2521, %v3161
      %v3200 = vadd.f32 %v2522, %v3114
      %v3201 = vadd.f32 %v2523, %v3163
      %v3202 = vadd.f32 %v2524, %v3117
      %v3203 = vadd.f32 %v2525, %v3166
      %v3204 = vadd.f32 %v2526, %v3119
      %v3205 = vadd.f32 %v2527, %v3168
      %v3206 = vadd.f32 %v2528, %v3122
      %v3207 = vadd.f32 %v2529, %v3171
      %v3208 = vadd.f32 %v2530, %v3124
      %v3209 = vadd.f32 %v2531, %v3173
      %v3210 = vadd.f32 %v2532, %v3127
      %v3211 = vadd.f32 %v2533, %v3176
      %v3212 = vadd.f32 %v2534, %v3129
      %v3213 = vadd.f32 %v2535, %v3178
      %v3214 = vadd.f32 %v2536, %v3132
      %v3215 = vadd.f32 %v2537, %v3181
      %v3216 = vadd.f32 %v2538, %v3134
      %v3217 = vadd.f32 %v2539, %v3183
      %v3218 = vadd.f32 %v2540, %v3137
      %v3219 = vadd.f32 %v2541, %v3186
      %v3220 = vadd.f32 %v2542, %v3139
      %v3221 = vadd.f32 %v2543, %v3188
      %v3222 = vadd.f32 %v749, %v3190
      %v3223 = vadd.f32 %v750, %v3191
      %v3224 = vadd.f32 %v751, %v3192
      %v3225 = vadd.f32 %v752, %v3193
      %v3226 = vadd.f32 %v753, %v3194
      %v3227 = vadd.f32 %v754, %v3195
      %v3228 = vadd.f32 %v755, %v3196
      %v3229 = vadd.f32 %v756, %v3197
      %v3230 = vadd.f32 %v757, %v3198
      %v3231 = vadd.f32 %v758, %v3199
      %v3232 = vadd.f32 %v759, %v3200
      %v3233 = vadd.f32 %v760, %v3201
      %v3234 = vadd.f32 %v761, %v3202
      %v3235 = vadd.f32 %v762, %v3203
      %v3236 = vadd.f32 %v763, %v3204
      %v3237 = vadd.f32 %v764, %v3205
      %v3238 = vadd.f32 %v765, %v3206
      %v3239 = vadd.f32 %v766, %v3207
      %v3240 = vadd.f32 %v767, %v3208
      %v3241 = vadd.f32 %v768, %v3209
      %v3242 = vadd.f32 %v769, %v3210
      %v3243 = vadd.f32 %v770, %v3211
      %v3244 = vadd.f32 %v771, %v3212
      %v3245 = vadd.f32 %v772, %v3213
      %v3246 = vadd.f32 %v773, %v3214
      %v3247 = vadd.f32 %v774, %v3215
      %v3248 = vadd.f32 %v775, %v3216
      %v3249 = vadd.f32 %v776, %v3217
      %v3250 = vadd.f32 %v777, %v3218
      %v3251 = vadd.f32 %v778, %v3219
      %v3252 = vadd.f32 %v779, %v3220
      %v3253 = vadd.f32 %v780, %v3221
      %v3254 = vld [vmem:[%s642] sm:$0x3]
      %v3255 = vld [vmem:[%s646] sm:$0x3]
      %v3256 = vsel %vm1263, %v3223, 0.0
      %v3257 = vadd.f32 %v3222, %v3256
      %3258 = vadd.xlane.f32.xlu0 %v3257
      %v3259 = vpop.xlane.xlu0 %3258
      %v3260 = vsel %vm1263, %v3225, 0.0
      %v3261 = vadd.f32 %v3224, %v3260
      %3262 = vadd.xlane.f32.xlu0 %v3261
      %v3263 = vpop.xlane.xlu0 %3262
      %v3264 = vsel %vm1263, %v3227, 0.0
      %v3265 = vadd.f32 %v3226, %v3264
      %3266 = vadd.xlane.f32.xlu0 %v3265
      %v3267 = vpop.xlane.xlu0 %3266
      %v3268 = vsel %vm1263, %v3229, 0.0
      %v3269 = vadd.f32 %v3228, %v3268
      %3270 = vadd.xlane.f32.xlu0 %v3269
      %v3271 = vpop.xlane.xlu0 %3270
      %v3272 = vsel %vm1263, %v3231, 0.0
      %v3273 = vadd.f32 %v3230, %v3272
      %3274 = vadd.xlane.f32.xlu0 %v3273
      %v3275 = vpop.xlane.xlu0 %3274
      %v3276 = vsel %vm1263, %v3233, 0.0
      %v3277 = vadd.f32 %v3232, %v3276
      %3278 = vadd.xlane.f32.xlu0 %v3277
      %v3279 = vpop.xlane.xlu0 %3278
      %v3280 = vsel %vm1263, %v3235, 0.0
      %v3281 = vadd.f32 %v3234, %v3280
      %3282 = vadd.xlane.f32.xlu0 %v3281
      %v3283 = vpop.xlane.xlu0 %3282
      %v3284 = vsel %vm1263, %v3237, 0.0
      %v3285 = vadd.f32 %v3236, %v3284
      %3286 = vadd.xlane.f32.xlu0 %v3285
      %v3287 = vpop.xlane.xlu0 %3286
      %v3288 = vsel %vm1263, %v3239, 0.0
      %v3289 = vadd.f32 %v3238, %v3288
      %3290 = vadd.xlane.f32.xlu0 %v3289
      %v3291 = vpop.xlane.xlu0 %3290
      %v3292 = vsel %vm1263, %v3241, 0.0
      %v3293 = vadd.f32 %v3240, %v3292
      %3294 = vadd.xlane.f32.xlu0 %v3293
      %v3295 = vpop.xlane.xlu0 %3294
      %v3296 = vsel %vm1263, %v3243, 0.0
      %v3297 = vadd.f32 %v3242, %v3296
      %3298 = vadd.xlane.f32.xlu0 %v3297
      %v3299 = vpop.xlane.xlu0 %3298
      %v3300 = vsel %vm1263, %v3245, 0.0
      %v3301 = vadd.f32 %v3244, %v3300
      %3302 = vadd.xlane.f32.xlu0 %v3301
      %v3303 = vpop.xlane.xlu0 %3302
      %v3304 = vsel %vm1263, %v3247, 0.0
      %v3305 = vadd.f32 %v3246, %v3304
      %3306 = vadd.xlane.f32.xlu0 %v3305
      %v3307 = vpop.xlane.xlu0 %3306
      %v3308 = vsel %vm1263, %v3249, 0.0
      %v3309 = vadd.f32 %v3248, %v3308
      %3310 = vadd.xlane.f32.xlu0 %v3309
      %v3311 = vpop.xlane.xlu0 %3310
      %v3312 = vsel %vm1263, %v3251, 0.0
      %v3313 = vadd.f32 %v3250, %v3312
      %3314 = vadd.xlane.f32.xlu0 %v3313
      %v3315 = vpop.xlane.xlu0 %3314
      %v3316 = vsel %vm1263, %v3253, 0.0
      %v3317 = vadd.f32 %v3252, %v3316
      %3318 = vadd.xlane.f32.xlu0 %v3317
      %v3319 = vpop.xlane.xlu0 %3318
      %v3320 = vrcp.pop 192.0
      %v3321 = vmul.f32 192.0, %v3320
      %v3322 = vsub.f32 1.0, %v3321
      %v3323 = vmul.f32 %v3320, %v3322
      %v3324 = vadd.f32 %v3320, %v3323
      %vm3325 = vweird.f32 %v3320
      %v3326 = vsel %vm3325, %v3320, %v3324
      %v3327 = vmul.f32 %v3259, %v3326
      %v3328 = vmul.f32 %v3263, %v3326
      %v3329 = vmul.f32 %v3267, %v3326
      %v3330 = vmul.f32 %v3271, %v3326
      %v3331 = vmul.f32 %v3275, %v3326
      %v3332 = vmul.f32 %v3279, %v3326
      %v3333 = vmul.f32 %v3283, %v3326
      %v3334 = vmul.f32 %v3287, %v3326
      %v3335 = vmul.f32 %v3291, %v3326
      %v3336 = vmul.f32 %v3295, %v3326
      %v3337 = vmul.f32 %v3299, %v3326
      %v3338 = vmul.f32 %v3303, %v3326
      %v3339 = vmul.f32 %v3307, %v3326
      %v3340 = vmul.f32 %v3311, %v3326
      %v3341 = vmul.f32 %v3315, %v3326
      %v3342 = vmul.f32 %v3319, %v3326
      %v3343 = vsub.f32 %v3222, %v3327
      %v3344 = vsub.f32 %v3223, %v3327
      %v3345 = vsub.f32 %v3224, %v3328
      %v3346 = vsub.f32 %v3225, %v3328
      %v3347 = vsub.f32 %v3226, %v3329
      %v3348 = vsub.f32 %v3227, %v3329
      %v3349 = vsub.f32 %v3228, %v3330
      %v3350 = vsub.f32 %v3229, %v3330
      %v3351 = vsub.f32 %v3230, %v3331
      %v3352 = vsub.f32 %v3231, %v3331
      %v3353 = vsub.f32 %v3232, %v3332
      %v3354 = vsub.f32 %v3233, %v3332
      %v3355 = vsub.f32 %v3234, %v3333
      %v3356 = vsub.f32 %v3235, %v3333
      %v3357 = vsub.f32 %v3236, %v3334
      %v3358 = vsub.f32 %v3237, %v3334
      %v3359 = vsub.f32 %v3238, %v3335
      %v3360 = vsub.f32 %v3239, %v3335
      %v3361 = vsub.f32 %v3240, %v3336
      %v3362 = vsub.f32 %v3241, %v3336
      %v3363 = vsub.f32 %v3242, %v3337
      %v3364 = vsub.f32 %v3243, %v3337
      %v3365 = vsub.f32 %v3244, %v3338
      %v3366 = vsub.f32 %v3245, %v3338
      %v3367 = vsub.f32 %v3246, %v3339
      %v3368 = vsub.f32 %v3247, %v3339
      %v3369 = vsub.f32 %v3248, %v3340
      %v3370 = vsub.f32 %v3249, %v3340
      %v3371 = vsub.f32 %v3250, %v3341
      %v3372 = vsub.f32 %v3251, %v3341
      %v3373 = vsub.f32 %v3252, %v3342
      %v3374 = vsub.f32 %v3253, %v3342
      %v3375 = vmul.f32 %v3343, %v3343
      %v3376 = vmul.f32 %v3344, %v3344
      %v3377 = vmul.f32 %v3345, %v3345
      %v3378 = vmul.f32 %v3346, %v3346
      %v3379 = vmul.f32 %v3347, %v3347
      %v3380 = vmul.f32 %v3348, %v3348
      %v3381 = vmul.f32 %v3349, %v3349
      %v3382 = vmul.f32 %v3350, %v3350
      %v3383 = vmul.f32 %v3351, %v3351
      %v3384 = vmul.f32 %v3352, %v3352
      %v3385 = vmul.f32 %v3353, %v3353
      %v3386 = vmul.f32 %v3354, %v3354
      %v3387 = vmul.f32 %v3355, %v3355
      %v3388 = vmul.f32 %v3356, %v3356
      %v3389 = vmul.f32 %v3357, %v3357
      %v3390 = vmul.f32 %v3358, %v3358
      %v3391 = vmul.f32 %v3359, %v3359
      %v3392 = vmul.f32 %v3360, %v3360
      %v3393 = vmul.f32 %v3361, %v3361
      %v3394 = vmul.f32 %v3362, %v3362
      %v3395 = vmul.f32 %v3363, %v3363
      %v3396 = vmul.f32 %v3364, %v3364
      %v3397 = vmul.f32 %v3365, %v3365
      %v3398 = vmul.f32 %v3366, %v3366
      %v3399 = vmul.f32 %v3367, %v3367
      %v3400 = vmul.f32 %v3368, %v3368
      %v3401 = vmul.f32 %v3369, %v3369
      %v3402 = vmul.f32 %v3370, %v3370
      %v3403 = vmul.f32 %v3371, %v3371
      %v3404 = vmul.f32 %v3372, %v3372
      %v3405 = vmul.f32 %v3373, %v3373
      %v3406 = vmul.f32 %v3374, %v3374
      %v3407 = vsel %vm1263, %v3376, 0.0
      %v3408 = vadd.f32 %v3375, %v3407
      %3409 = vadd.xlane.f32.xlu0 %v3408
      %v3410 = vpop.xlane.xlu0 %3409
      %v3411 = vsel %vm1263, %v3378, 0.0
      %v3412 = vadd.f32 %v3377, %v3411
      %3413 = vadd.xlane.f32.xlu0 %v3412
      %v3414 = vpop.xlane.xlu0 %3413
      %v3415 = vsel %vm1263, %v3380, 0.0
      %v3416 = vadd.f32 %v3379, %v3415
      %3417 = vadd.xlane.f32.xlu0 %v3416
      %v3418 = vpop.xlane.xlu0 %3417
      %v3419 = vsel %vm1263, %v3382, 0.0
      %v3420 = vadd.f32 %v3381, %v3419
      %3421 = vadd.xlane.f32.xlu0 %v3420
      %v3422 = vpop.xlane.xlu0 %3421
      %v3423 = vsel %vm1263, %v3384, 0.0
      %v3424 = vadd.f32 %v3383, %v3423
      %3425 = vadd.xlane.f32.xlu0 %v3424
      %v3426 = vpop.xlane.xlu0 %3425
      %v3427 = vsel %vm1263, %v3386, 0.0
      %v3428 = vadd.f32 %v3385, %v3427
      %3429 = vadd.xlane.f32.xlu0 %v3428
      %v3430 = vpop.xlane.xlu0 %3429
      %v3431 = vsel %vm1263, %v3388, 0.0
      %v3432 = vadd.f32 %v3387, %v3431
      %3433 = vadd.xlane.f32.xlu0 %v3432
      %v3434 = vpop.xlane.xlu0 %3433
      %v3435 = vsel %vm1263, %v3390, 0.0
      %v3436 = vadd.f32 %v3389, %v3435
      %3437 = vadd.xlane.f32.xlu0 %v3436
      %v3438 = vpop.xlane.xlu0 %3437
      %v3439 = vsel %vm1263, %v3392, 0.0
      %v3440 = vadd.f32 %v3391, %v3439
      %3441 = vadd.xlane.f32.xlu0 %v3440
      %v3442 = vpop.xlane.xlu0 %3441
      %v3443 = vsel %vm1263, %v3394, 0.0
      %v3444 = vadd.f32 %v3393, %v3443
      %3445 = vadd.xlane.f32.xlu0 %v3444
      %v3446 = vpop.xlane.xlu0 %3445
      %v3447 = vsel %vm1263, %v3396, 0.0
      %v3448 = vadd.f32 %v3395, %v3447
      %3449 = vadd.xlane.f32.xlu0 %v3448
      %v3450 = vpop.xlane.xlu0 %3449
      %v3451 = vsel %vm1263, %v3398, 0.0
      %v3452 = vadd.f32 %v3397, %v3451
      %3453 = vadd.xlane.f32.xlu0 %v3452
      %v3454 = vpop.xlane.xlu0 %3453
      %v3455 = vsel %vm1263, %v3400, 0.0
      %v3456 = vadd.f32 %v3399, %v3455
      %3457 = vadd.xlane.f32.xlu0 %v3456
      %v3458 = vpop.xlane.xlu0 %3457
      %v3459 = vsel %vm1263, %v3402, 0.0
      %v3460 = vadd.f32 %v3401, %v3459
      %3461 = vadd.xlane.f32.xlu0 %v3460
      %v3462 = vpop.xlane.xlu0 %3461
      %v3463 = vsel %vm1263, %v3404, 0.0
      %v3464 = vadd.f32 %v3403, %v3463
      %3465 = vadd.xlane.f32.xlu0 %v3464
      %v3466 = vpop.xlane.xlu0 %3465
      %v3467 = vsel %vm1263, %v3406, 0.0
      %v3468 = vadd.f32 %v3405, %v3467
      %3469 = vadd.xlane.f32.xlu0 %v3468
      %v3470 = vpop.xlane.xlu0 %3469
      %v3471 = vmul.f32 %v3410, %v3326
      %v3472 = vmul.f32 %v3414, %v3326
      %v3473 = vmul.f32 %v3418, %v3326
      %v3474 = vmul.f32 %v3422, %v3326
      %v3475 = vmul.f32 %v3426, %v3326
      %v3476 = vmul.f32 %v3430, %v3326
      %v3477 = vmul.f32 %v3434, %v3326
      %v3478 = vmul.f32 %v3438, %v3326
      %v3479 = vmul.f32 %v3442, %v3326
      %v3480 = vmul.f32 %v3446, %v3326
      %v3481 = vmul.f32 %v3450, %v3326
      %v3482 = vmul.f32 %v3454, %v3326
      %v3483 = vmul.f32 %v3458, %v3326
      %v3484 = vmul.f32 %v3462, %v3326
      %v3485 = vmul.f32 %v3466, %v3326
      %v3486 = vmul.f32 %v3470, %v3326
      %v3487 = vadd.f32 %v3471, 1e-05
      %v3488 = vadd.f32 %v3472, 1e-05
      %v3489 = vadd.f32 %v3473, 1e-05
      %v3490 = vadd.f32 %v3474, 1e-05
      %v3491 = vadd.f32 %v3475, 1e-05
      %v3492 = vadd.f32 %v3476, 1e-05
      %v3493 = vadd.f32 %v3477, 1e-05
      %v3494 = vadd.f32 %v3478, 1e-05
      %v3495 = vadd.f32 %v3479, 1e-05
      %v3496 = vadd.f32 %v3480, 1e-05
      %v3497 = vadd.f32 %v3481, 1e-05
      %v3498 = vadd.f32 %v3482, 1e-05
      %v3499 = vadd.f32 %v3483, 1e-05
      %v3500 = vadd.f32 %v3484, 1e-05
      %v3501 = vadd.f32 %v3485, 1e-05
      %v3502 = vadd.f32 %v3486, 1e-05
      %v3503 = vrsqrt.pop %v3487
      %v3504 = vmul.f32 %v3503, %v3487
      %v3505 = vmul.f32 %v3504, %v3503
      %v3506 = vmul.f32 0.5, %v3505
      %v3507 = vsub.f32 1.5, %v3506
      %v3508 = vmul.f32 %v3503, %v3507
      %vm3509 = vweird.f32 %v3487
      %vm3510 = vweird.f32 %v3503
      %vm3511 = vmor %vm3509, %vm3510
      %v3512 = vsel %vm3511, %v3503, %v3508
      %v3513 = vrsqrt.pop %v3488
      %v3514 = vmul.f32 %v3513, %v3488
      %v3515 = vmul.f32 %v3514, %v3513
      %v3516 = vmul.f32 0.5, %v3515
      %v3517 = vsub.f32 1.5, %v3516
      %v3518 = vmul.f32 %v3513, %v3517
      %vm3519 = vweird.f32 %v3488
      %vm3520 = vweird.f32 %v3513
      %vm3521 = vmor %vm3519, %vm3520
      %v3522 = vsel %vm3521, %v3513, %v3518
      %v3523 = vrsqrt.pop %v3489
      %v3524 = vmul.f32 %v3523, %v3489
      %v3525 = vmul.f32 %v3524, %v3523
      %v3526 = vmul.f32 0.5, %v3525
      %v3527 = vsub.f32 1.5, %v3526
      %v3528 = vmul.f32 %v3523, %v3527
      %vm3529 = vweird.f32 %v3489
      %vm3530 = vweird.f32 %v3523
      %vm3531 = vmor %vm3529, %vm3530
      %v3532 = vsel %vm3531, %v3523, %v3528
      %v3533 = vrsqrt.pop %v3490
      %v3534 = vmul.f32 %v3533, %v3490
      %v3535 = vmul.f32 %v3534, %v3533
      %v3536 = vmul.f32 0.5, %v3535
      %v3537 = vsub.f32 1.5, %v3536
      %v3538 = vmul.f32 %v3533, %v3537
      %vm3539 = vweird.f32 %v3490
      %vm3540 = vweird.f32 %v3533
      %vm3541 = vmor %vm3539, %vm3540
      %v3542 = vsel %vm3541, %v3533, %v3538
      %v3543 = vrsqrt.pop %v3491
      %v3544 = vmul.f32 %v3543, %v3491
      %v3545 = vmul.f32 %v3544, %v3543
      %v3546 = vmul.f32 0.5, %v3545
      %v3547 = vsub.f32 1.5, %v3546
      %v3548 = vmul.f32 %v3543, %v3547
      %vm3549 = vweird.f32 %v3491
      %vm3550 = vweird.f32 %v3543
      %vm3551 = vmor %vm3549, %vm3550
      %v3552 = vsel %vm3551, %v3543, %v3548
      %v3553 = vrsqrt.pop %v3492
      %v3554 = vmul.f32 %v3553, %v3492
      %v3555 = vmul.f32 %v3554, %v3553
      %v3556 = vmul.f32 0.5, %v3555
      %v3557 = vsub.f32 1.5, %v3556
      %v3558 = vmul.f32 %v3553, %v3557
      %vm3559 = vweird.f32 %v3492
      %vm3560 = vweird.f32 %v3553
      %vm3561 = vmor %vm3559, %vm3560
      %v3562 = vsel %vm3561, %v3553, %v3558
      %v3563 = vrsqrt.pop %v3493
      %v3564 = vmul.f32 %v3563, %v3493
      %v3565 = vmul.f32 %v3564, %v3563
      %v3566 = vmul.f32 0.5, %v3565
      %v3567 = vsub.f32 1.5, %v3566
      %v3568 = vmul.f32 %v3563, %v3567
      %vm3569 = vweird.f32 %v3493
      %vm3570 = vweird.f32 %v3563
      %vm3571 = vmor %vm3569, %vm3570
      %v3572 = vsel %vm3571, %v3563, %v3568
      %v3573 = vrsqrt.pop %v3494
      %v3574 = vmul.f32 %v3573, %v3494
      %v3575 = vmul.f32 %v3574, %v3573
      %v3576 = vmul.f32 0.5, %v3575
      %v3577 = vsub.f32 1.5, %v3576
      %v3578 = vmul.f32 %v3573, %v3577
      %vm3579 = vweird.f32 %v3494
      %vm3580 = vweird.f32 %v3573
      %vm3581 = vmor %vm3579, %vm3580
      %v3582 = vsel %vm3581, %v3573, %v3578
      %v3583 = vrsqrt.pop %v3495
      %v3584 = vmul.f32 %v3583, %v3495
      %v3585 = vmul.f32 %v3584, %v3583
      %v3586 = vmul.f32 0.5, %v3585
      %v3587 = vsub.f32 1.5, %v3586
      %v3588 = vmul.f32 %v3583, %v3587
      %vm3589 = vweird.f32 %v3495
      %vm3590 = vweird.f32 %v3583
      %vm3591 = vmor %vm3589, %vm3590
      %v3592 = vsel %vm3591, %v3583, %v3588
      %v3593 = vrsqrt.pop %v3496
      %v3594 = vmul.f32 %v3593, %v3496
      %v3595 = vmul.f32 %v3594, %v3593
      %v3596 = vmul.f32 0.5, %v3595
      %v3597 = vsub.f32 1.5, %v3596
      %v3598 = vmul.f32 %v3593, %v3597
      %vm3599 = vweird.f32 %v3496
      %vm3600 = vweird.f32 %v3593
      %vm3601 = vmor %vm3599, %vm3600
      %v3602 = vsel %vm3601, %v3593, %v3598
      %v3603 = vrsqrt.pop %v3497
      %v3604 = vmul.f32 %v3603, %v3497
      %v3605 = vmul.f32 %v3604, %v3603
      %v3606 = vmul.f32 0.5, %v3605
      %v3607 = vsub.f32 1.5, %v3606
      %v3608 = vmul.f32 %v3603, %v3607
      %vm3609 = vweird.f32 %v3497
      %vm3610 = vweird.f32 %v3603
      %vm3611 = vmor %vm3609, %vm3610
      %v3612 = vsel %vm3611, %v3603, %v3608
      %v3613 = vrsqrt.pop %v3498
      %v3614 = vmul.f32 %v3613, %v3498
      %v3615 = vmul.f32 %v3614, %v3613
      %v3616 = vmul.f32 0.5, %v3615
      %v3617 = vsub.f32 1.5, %v3616
      %v3618 = vmul.f32 %v3613, %v3617
      %vm3619 = vweird.f32 %v3498
      %vm3620 = vweird.f32 %v3613
      %vm3621 = vmor %vm3619, %vm3620
      %v3622 = vsel %vm3621, %v3613, %v3618
      %v3623 = vrsqrt.pop %v3499
      %v3624 = vmul.f32 %v3623, %v3499
      %v3625 = vmul.f32 %v3624, %v3623
      %v3626 = vmul.f32 0.5, %v3625
      %v3627 = vsub.f32 1.5, %v3626
      %v3628 = vmul.f32 %v3623, %v3627
      %vm3629 = vweird.f32 %v3499
      %vm3630 = vweird.f32 %v3623
      %vm3631 = vmor %vm3629, %vm3630
      %v3632 = vsel %vm3631, %v3623, %v3628
      %v3633 = vrsqrt.pop %v3500
      %v3634 = vmul.f32 %v3633, %v3500
      %v3635 = vmul.f32 %v3634, %v3633
      %v3636 = vmul.f32 0.5, %v3635
      %v3637 = vsub.f32 1.5, %v3636
      %v3638 = vmul.f32 %v3633, %v3637
      %vm3639 = vweird.f32 %v3500
      %vm3640 = vweird.f32 %v3633
      %vm3641 = vmor %vm3639, %vm3640
      %v3642 = vsel %vm3641, %v3633, %v3638
      %v3643 = vrsqrt.pop %v3501
      %v3644 = vmul.f32 %v3643, %v3501
      %v3645 = vmul.f32 %v3644, %v3643
      %v3646 = vmul.f32 0.5, %v3645
      %v3647 = vsub.f32 1.5, %v3646
      %v3648 = vmul.f32 %v3643, %v3647
      %vm3649 = vweird.f32 %v3501
      %vm3650 = vweird.f32 %v3643
      %vm3651 = vmor %vm3649, %vm3650
      %v3652 = vsel %vm3651, %v3643, %v3648
      %v3653 = vrsqrt.pop %v3502
      %v3654 = vmul.f32 %v3653, %v3502
      %v3655 = vmul.f32 %v3654, %v3653
      %v3656 = vmul.f32 0.5, %v3655
      %v3657 = vsub.f32 1.5, %v3656
      %v3658 = vmul.f32 %v3653, %v3657
      %vm3659 = vweird.f32 %v3502
      %vm3660 = vweird.f32 %v3653
      %vm3661 = vmor %vm3659, %vm3660
      %v3662 = vsel %vm3661, %v3653, %v3658
      %v3663 = vmul.f32 %v3343, %v3512
      %v3664 = vmul.f32 %v3344, %v3512
      %v3665 = vmul.f32 %v3345, %v3522
      %v3666 = vmul.f32 %v3346, %v3522
      %v3667 = vmul.f32 %v3347, %v3532
      %v3668 = vmul.f32 %v3348, %v3532
      %v3669 = vmul.f32 %v3349, %v3542
      %v3670 = vmul.f32 %v3350, %v3542
      %v3671 = vmul.f32 %v3351, %v3552
      %v3672 = vmul.f32 %v3352, %v3552
      %v3673 = vmul.f32 %v3353, %v3562
      %v3674 = vmul.f32 %v3354, %v3562
      %v3675 = vmul.f32 %v3355, %v3572
      %v3676 = vmul.f32 %v3356, %v3572
      %v3677 = vmul.f32 %v3357, %v3582
      %v3678 = vmul.f32 %v3358, %v3582
      %v3679 = vmul.f32 %v3359, %v3592
      %v3680 = vmul.f32 %v3360, %v3592
      %v3681 = vmul.f32 %v3361, %v3602
      %v3682 = vmul.f32 %v3362, %v3602
      %v3683 = vmul.f32 %v3363, %v3612
      %v3684 = vmul.f32 %v3364, %v3612
      %v3685 = vmul.f32 %v3365, %v3622
      %v3686 = vmul.f32 %v3366, %v3622
      %v3687 = vmul.f32 %v3367, %v3632
      %v3688 = vmul.f32 %v3368, %v3632
      %v3689 = vmul.f32 %v3369, %v3642
      %v3690 = vmul.f32 %v3370, %v3642
      %v3691 = vmul.f32 %v3371, %v3652
      %v3692 = vmul.f32 %v3372, %v3652
      %v3693 = vmul.f32 %v3373, %v3662
      %v3694 = vmul.f32 %v3374, %v3662
      %v3696 = vperm.slane %v3254, 0
      %v3697 = vperm.slane %v3254, 1
      %v3700 = vmul.f32 %v3663, %v3696
      %v3701 = vmul.f32 %v3664, %v3697
      %v3702 = vmul.f32 %v3665, %v3696
      %v3703 = vmul.f32 %v3666, %v3697
      %v3704 = vmul.f32 %v3667, %v3696
      %v3705 = vmul.f32 %v3668, %v3697
      %v3706 = vmul.f32 %v3669, %v3696
      %v3707 = vmul.f32 %v3670, %v3697
      %v3708 = vmul.f32 %v3671, %v3696
      %v3709 = vmul.f32 %v3672, %v3697
      %v3710 = vmul.f32 %v3673, %v3696
      %v3711 = vmul.f32 %v3674, %v3697
      %v3712 = vmul.f32 %v3675, %v3696
      %v3713 = vmul.f32 %v3676, %v3697
      %v3714 = vmul.f32 %v3677, %v3696
      %v3715 = vmul.f32 %v3678, %v3697
      %v3716 = vmul.f32 %v3679, %v3696
      %v3717 = vmul.f32 %v3680, %v3697
      %v3718 = vmul.f32 %v3681, %v3696
      %v3719 = vmul.f32 %v3682, %v3697
      %v3720 = vmul.f32 %v3683, %v3696
      %v3721 = vmul.f32 %v3684, %v3697
      %v3722 = vmul.f32 %v3685, %v3696
      %v3723 = vmul.f32 %v3686, %v3697
      %v3724 = vmul.f32 %v3687, %v3696
      %v3725 = vmul.f32 %v3688, %v3697
      %v3726 = vmul.f32 %v3689, %v3696
      %v3727 = vmul.f32 %v3690, %v3697
      %v3728 = vmul.f32 %v3691, %v3696
      %v3729 = vmul.f32 %v3692, %v3697
      %v3730 = vmul.f32 %v3693, %v3696
      %v3731 = vmul.f32 %v3694, %v3697
      %v3733 = vperm.slane %v3255, 0
      %v3734 = vperm.slane %v3255, 1
      %v3737 = vadd.f32 %v3700, %v3733
      %v3738 = vadd.f32 %v3701, %v3734
      %v3739 = vadd.f32 %v3702, %v3733
      %v3740 = vadd.f32 %v3703, %v3734
      %v3741 = vadd.f32 %v3704, %v3733
      %v3742 = vadd.f32 %v3705, %v3734
      %v3743 = vadd.f32 %v3706, %v3733
      %v3744 = vadd.f32 %v3707, %v3734
      %v3745 = vadd.f32 %v3708, %v3733
      %v3746 = vadd.f32 %v3709, %v3734
      %v3747 = vadd.f32 %v3710, %v3733
      %v3748 = vadd.f32 %v3711, %v3734
      %v3749 = vadd.f32 %v3712, %v3733
      %v3750 = vadd.f32 %v3713, %v3734
      %v3751 = vadd.f32 %v3714, %v3733
      %v3752 = vadd.f32 %v3715, %v3734
      %v3753 = vadd.f32 %v3716, %v3733
      %v3754 = vadd.f32 %v3717, %v3734
      %v3755 = vadd.f32 %v3718, %v3733
      %v3756 = vadd.f32 %v3719, %v3734
      %v3757 = vadd.f32 %v3720, %v3733
      %v3758 = vadd.f32 %v3721, %v3734
      %v3759 = vadd.f32 %v3722, %v3733
      %v3760 = vadd.f32 %v3723, %v3734
      %v3761 = vadd.f32 %v3724, %v3733
      %v3762 = vadd.f32 %v3725, %v3734
      %v3763 = vadd.f32 %v3726, %v3733
      %v3764 = vadd.f32 %v3727, %v3734
      %v3765 = vadd.f32 %v3728, %v3733
      %v3766 = vadd.f32 %v3729, %v3734
      %v3767 = vadd.f32 %v3730, %v3733
      %v3768 = vadd.f32 %v3731, %v3734
      %v3769 = vadd.s32 %v782, 4294967295
      %v3770 = vadd.s32 %v783, 4294967295
      %v3771 = vadd.s32 %v784, 4294967295
      %v3772 = vadd.s32 %v785, 4294967295
      %v3773 = vadd.s32 %v786, 4294967295
      %v3774 = vadd.s32 %v787, 4294967295
      %v3775 = vadd.s32 %v788, 4294967295
      %v3776 = vadd.s32 %v789, 4294967295
      %v3777 = vadd.s32 %v790, 4294967295
      %v3778 = vadd.s32 %v791, 4294967295
      %v3779 = vadd.s32 %v792, 4294967295
      %v3780 = vadd.s32 %v793, 4294967295
      %v3781 = vadd.s32 %v794, 4294967295
      %v3782 = vadd.s32 %v795, 4294967295
      %v3783 = vadd.s32 %v796, 4294967295
      %v3784 = vadd.s32 %v797, 4294967295
      %vm3785 = vcmp.ge.s32.totalorder %v3769, 0
      %vm3786 = vcmp.ge.s32.totalorder %v3770, 0
      %vm3787 = vcmp.ge.s32.totalorder %v3771, 0
      %vm3788 = vcmp.ge.s32.totalorder %v3772, 0
      %vm3789 = vcmp.ge.s32.totalorder %v3773, 0
      %vm3790 = vcmp.ge.s32.totalorder %v3774, 0
      %vm3791 = vcmp.ge.s32.totalorder %v3775, 0
      %vm3792 = vcmp.ge.s32.totalorder %v3776, 0
      %vm3793 = vcmp.ge.s32.totalorder %v3777, 0
      %vm3794 = vcmp.ge.s32.totalorder %v3778, 0
      %vm3795 = vcmp.ge.s32.totalorder %v3779, 0
      %vm3796 = vcmp.ge.s32.totalorder %v3780, 0
      %vm3797 = vcmp.ge.s32.totalorder %v3781, 0
      %vm3798 = vcmp.ge.s32.totalorder %v3782, 0
      %vm3799 = vcmp.ge.s32.totalorder %v3783, 0
      %vm3800 = vcmp.ge.s32.totalorder %v3784, 0
      %vm3801 = vcmp.le.s32.totalorder %v3769, 127
      %vm3802 = vcmp.le.s32.totalorder %v3770, 127
      %vm3803 = vcmp.le.s32.totalorder %v3771, 127
      %vm3804 = vcmp.le.s32.totalorder %v3772, 127
      %vm3805 = vcmp.le.s32.totalorder %v3773, 127
      %vm3806 = vcmp.le.s32.totalorder %v3774, 127
      %vm3807 = vcmp.le.s32.totalorder %v3775, 127
      %vm3808 = vcmp.le.s32.totalorder %v3776, 127
      %vm3809 = vcmp.le.s32.totalorder %v3777, 127
      %vm3810 = vcmp.le.s32.totalorder %v3778, 127
      %vm3811 = vcmp.le.s32.totalorder %v3779, 127
      %vm3812 = vcmp.le.s32.totalorder %v3780, 127
      %vm3813 = vcmp.le.s32.totalorder %v3781, 127
      %vm3814 = vcmp.le.s32.totalorder %v3782, 127
      %vm3815 = vcmp.le.s32.totalorder %v3783, 127
      %vm3816 = vcmp.le.s32.totalorder %v3784, 127
      %vm3817 = vmand %vm3785, %vm3801
      %vm3818 = vmand %vm3786, %vm3802
      %vm3819 = vmand %vm3787, %vm3803
      %vm3820 = vmand %vm3788, %vm3804
      %vm3821 = vmand %vm3789, %vm3805
      %vm3822 = vmand %vm3790, %vm3806
      %vm3823 = vmand %vm3791, %vm3807
      %vm3824 = vmand %vm3792, %vm3808
      %vm3825 = vmand %vm3793, %vm3809
      %vm3826 = vmand %vm3794, %vm3810
      %vm3827 = vmand %vm3795, %vm3811
      %vm3828 = vmand %vm3796, %vm3812
      %vm3829 = vmand %vm3797, %vm3813
      %vm3830 = vmand %vm3798, %vm3814
      %vm3831 = vmand %vm3799, %vm3815
      %vm3832 = vmand %vm3800, %vm3816
      %v3833 = vadd.s32 %v782, 1
      %v3834 = vadd.s32 %v783, 1
      %v3835 = vadd.s32 %v784, 1
      %v3836 = vadd.s32 %v785, 1
      %v3837 = vadd.s32 %v786, 1
      %v3838 = vadd.s32 %v787, 1
      %v3839 = vadd.s32 %v788, 1
      %v3840 = vadd.s32 %v789, 1
      %v3841 = vadd.s32 %v790, 1
      %v3842 = vadd.s32 %v791, 1
      %v3843 = vadd.s32 %v792, 1
      %v3844 = vadd.s32 %v793, 1
      %v3845 = vadd.s32 %v794, 1
      %v3846 = vadd.s32 %v795, 1
      %v3847 = vadd.s32 %v796, 1
      %v3848 = vadd.s32 %v797, 1
      %vm3849 = vcmp.ge.s32.totalorder %v3833, 0
      %vm3850 = vcmp.ge.s32.totalorder %v3834, 0
      %vm3851 = vcmp.ge.s32.totalorder %v3835, 0
      %vm3852 = vcmp.ge.s32.totalorder %v3836, 0
      %vm3853 = vcmp.ge.s32.totalorder %v3837, 0
      %vm3854 = vcmp.ge.s32.totalorder %v3838, 0
      %vm3855 = vcmp.ge.s32.totalorder %v3839, 0
      %vm3856 = vcmp.ge.s32.totalorder %v3840, 0
      %vm3857 = vcmp.ge.s32.totalorder %v3841, 0
      %vm3858 = vcmp.ge.s32.totalorder %v3842, 0
      %vm3859 = vcmp.ge.s32.totalorder %v3843, 0
      %vm3860 = vcmp.ge.s32.totalorder %v3844, 0
      %vm3861 = vcmp.ge.s32.totalorder %v3845, 0
      %vm3862 = vcmp.ge.s32.totalorder %v3846, 0
      %vm3863 = vcmp.ge.s32.totalorder %v3847, 0
      %vm3864 = vcmp.ge.s32.totalorder %v3848, 0
      %vm3865 = vcmp.le.s32.totalorder %v3833, 127
      %vm3866 = vcmp.le.s32.totalorder %v3834, 127
      %vm3867 = vcmp.le.s32.totalorder %v3835, 127
      %vm3868 = vcmp.le.s32.totalorder %v3836, 127
      %vm3869 = vcmp.le.s32.totalorder %v3837, 127
      %vm3870 = vcmp.le.s32.totalorder %v3838, 127
      %vm3871 = vcmp.le.s32.totalorder %v3839, 127
      %vm3872 = vcmp.le.s32.totalorder %v3840, 127
      %vm3873 = vcmp.le.s32.totalorder %v3841, 127
      %vm3874 = vcmp.le.s32.totalorder %v3842, 127
      %vm3875 = vcmp.le.s32.totalorder %v3843, 127
      %vm3876 = vcmp.le.s32.totalorder %v3844, 127
      %vm3877 = vcmp.le.s32.totalorder %v3845, 127
      %vm3878 = vcmp.le.s32.totalorder %v3846, 127
      %vm3879 = vcmp.le.s32.totalorder %v3847, 127
      %vm3880 = vcmp.le.s32.totalorder %v3848, 127
      %vm3881 = vmand %vm3849, %vm3865
      %vm3882 = vmand %vm3850, %vm3866
      %vm3883 = vmand %vm3851, %vm3867
      %vm3884 = vmand %vm3852, %vm3868
      %vm3885 = vmand %vm3853, %vm3869
      %vm3886 = vmand %vm3854, %vm3870
      %vm3887 = vmand %vm3855, %vm3871
      %vm3888 = vmand %vm3856, %vm3872
      %vm3889 = vmand %vm3857, %vm3873
      %vm3890 = vmand %vm3858, %vm3874
      %vm3891 = vmand %vm3859, %vm3875
      %vm3892 = vmand %vm3860, %vm3876
      %vm3893 = vmand %vm3861, %vm3877
      %vm3894 = vmand %vm3862, %vm3878
      %vm3895 = vmand %vm3863, %vm3879
      %vm3896 = vmand %vm3864, %vm3880
      %v3897 = vmul.f32 %v3737, %v831
      %v3898 = vmul.f32 %v3738, %v831
      %v3899 = vmul.f32 %v3739, %v832
      %v3900 = vmul.f32 %v3740, %v832
      %v3901 = vmul.f32 %v3741, %v833
      %v3902 = vmul.f32 %v3742, %v833
      %v3903 = vmul.f32 %v3743, %v834
      %v3904 = vmul.f32 %v3744, %v834
      %v3905 = vmul.f32 %v3745, %v835
      %v3906 = vmul.f32 %v3746, %v835
      %v3907 = vmul.f32 %v3747, %v836
      %v3908 = vmul.f32 %v3748, %v836
      %v3909 = vmul.f32 %v3749, %v837
      %v3910 = vmul.f32 %v3750, %v837
      %v3911 = vmul.f32 %v3751, %v838
      %v3912 = vmul.f32 %v3752, %v838
      %v3913 = vmul.f32 %v3753, %v839
      %v3914 = vmul.f32 %v3754, %v839
      %v3915 = vmul.f32 %v3755, %v840
      %v3916 = vmul.f32 %v3756, %v840
      %v3917 = vmul.f32 %v3757, %v841
      %v3918 = vmul.f32 %v3758, %v841
      %v3919 = vmul.f32 %v3759, %v842
      %v3920 = vmul.f32 %v3760, %v842
      %v3921 = vmul.f32 %v3761, %v843
      %v3922 = vmul.f32 %v3762, %v843
      %v3923 = vmul.f32 %v3763, %v844
      %v3924 = vmul.f32 %v3764, %v844
      %v3925 = vmul.f32 %v3765, %v845
      %v3926 = vmul.f32 %v3766, %v845
      %v3927 = vmul.f32 %v3767, %v846
      %v3928 = vmul.f32 %v3768, %v846
      %v3929 = vld [vmem:[%s655] sm:$0x7]
      %v3931 = vperm.slane %v3929, 0
      %v3932 = vperm.slane %v3929, 1
      %v3933 = vperm.slane %v3929, 2
      %v3937 = vadd.f32 %v3931, 0.0
      %v3938 = vadd.f32 %v3932, 0.0
      %v3939 = vadd.f32 %v3933, 0.0
      %v3940 = vrot.slane %v3897, 7
      %v3941 = vrot.slane %v3898, 7
      %v3942 = vrot.slane %v3899, 7
      %v3943 = vrot.slane %v3900, 7
      %v3944 = vrot.slane %v3901, 7
      %v3945 = vrot.slane %v3902, 7
      %v3946 = vrot.slane %v3903, 7
      %v3947 = vrot.slane %v3904, 7
      %v3948 = vrot.slane %v3905, 7
      %v3949 = vrot.slane %v3906, 7
      %v3950 = vrot.slane %v3907, 7
      %v3951 = vrot.slane %v3908, 7
      %v3952 = vrot.slane %v3909, 7
      %v3953 = vrot.slane %v3910, 7
      %v3954 = vrot.slane %v3911, 7
      %v3955 = vrot.slane %v3912, 7
      %v3956 = vrot.slane %v3913, 7
      %v3957 = vrot.slane %v3914, 7
      %v3958 = vrot.slane %v3915, 7
      %v3959 = vrot.slane %v3916, 7
      %v3960 = vrot.slane %v3917, 7
      %v3961 = vrot.slane %v3918, 7
      %v3962 = vrot.slane %v3919, 7
      %v3963 = vrot.slane %v3920, 7
      %v3964 = vrot.slane %v3921, 7
      %v3965 = vrot.slane %v3922, 7
      %v3966 = vrot.slane %v3923, 7
      %v3967 = vrot.slane %v3924, 7
      %v3968 = vrot.slane %v3925, 7
      %v3969 = vrot.slane %v3926, 7
      %v3970 = vrot.slane %v3927, 7
      %v3971 = vrot.slane %v3928, 7
      %vm3972 = vcmp.lt.s32.totalorder %v782, 1
      %v3973 = vsel %vm3972, %v3968, %v3970
      %v3974 = vsel %vm3972, %v3969, %v3971
      %v3975 = vsel %vm3972, %v3966, %v3968
      %v3976 = vsel %vm3972, %v3967, %v3969
      %v3977 = vsel %vm3972, %v3964, %v3966
      %v3978 = vsel %vm3972, %v3965, %v3967
      %v3979 = vsel %vm3972, %v3962, %v3964
      %v3980 = vsel %vm3972, %v3963, %v3965
      %v3981 = vsel %vm3972, %v3960, %v3962
      %v3982 = vsel %vm3972, %v3961, %v3963
      %v3983 = vsel %vm3972, %v3958, %v3960
      %v3984 = vsel %vm3972, %v3959, %v3961
      %v3985 = vsel %vm3972, %v3956, %v3958
      %v3986 = vsel %vm3972, %v3957, %v3959
      %v3987 = vsel %vm3972, %v3954, %v3956
      %v3988 = vsel %vm3972, %v3955, %v3957
      %v3989 = vsel %vm3972, %v3952, %v3954
      %v3990 = vsel %vm3972, %v3953, %v3955
      %v3991 = vsel %vm3972, %v3950, %v3952
      %v3992 = vsel %vm3972, %v3951, %v3953
      %v3993 = vsel %vm3972, %v3948, %v3950
      %v3994 = vsel %vm3972, %v3949, %v3951
      %v3995 = vsel %vm3972, %v3946, %v3948
      %v3996 = vsel %vm3972, %v3947, %v3949
      %v3997 = vsel %vm3972, %v3944, %v3946
      %v3998 = vsel %vm3972, %v3945, %v3947
      %v3999 = vsel %vm3972, %v3942, %v3944
      %v4000 = vsel %vm3972, %v3943, %v3945
      %v4001 = vsel %vm3972, %v3940, %v3942
      %v4002 = vsel %vm3972, %v3941, %v3943
      %v4003 = vsel %vm3972, %v3970, %v3940
      %v4004 = vsel %vm3972, %v3971, %v3941
      %v4005 = vsel %vm3817, 1, 0
      %v4006 = vsel %vm3818, 1, 0
      %v4007 = vsel %vm3819, 1, 0
      %v4008 = vsel %vm3820, 1, 0
      %v4009 = vsel %vm3821, 1, 0
      %v4010 = vsel %vm3822, 1, 0
      %v4011 = vsel %vm3823, 1, 0
      %v4012 = vsel %vm3824, 1, 0
      %v4013 = vsel %vm3825, 1, 0
      %v4014 = vsel %vm3826, 1, 0
      %v4015 = vsel %vm3827, 1, 0
      %v4016 = vsel %vm3828, 1, 0
      %v4017 = vsel %vm3829, 1, 0
      %v4018 = vsel %vm3830, 1, 0
      %v4019 = vsel %vm3831, 1, 0
      %v4020 = vsel %vm3832, 1, 0
      %vm4021 = vcmp.eq.s32.totalorder %v4005, 1
      %vm4022 = vcmp.eq.s32.totalorder %v4006, 1
      %vm4023 = vcmp.eq.s32.totalorder %v4007, 1
      %vm4024 = vcmp.eq.s32.totalorder %v4008, 1
      %vm4025 = vcmp.eq.s32.totalorder %v4009, 1
      %vm4026 = vcmp.eq.s32.totalorder %v4010, 1
      %vm4027 = vcmp.eq.s32.totalorder %v4011, 1
      %vm4028 = vcmp.eq.s32.totalorder %v4012, 1
      %vm4029 = vcmp.eq.s32.totalorder %v4013, 1
      %vm4030 = vcmp.eq.s32.totalorder %v4014, 1
      %vm4031 = vcmp.eq.s32.totalorder %v4015, 1
      %vm4032 = vcmp.eq.s32.totalorder %v4016, 1
      %vm4033 = vcmp.eq.s32.totalorder %v4017, 1
      %vm4034 = vcmp.eq.s32.totalorder %v4018, 1
      %vm4035 = vcmp.eq.s32.totalorder %v4019, 1
      %vm4036 = vcmp.eq.s32.totalorder %v4020, 1
      %v4037 = vsel %vm4021, %v4003, 0.0
      %v4038 = vsel %vm4021, %v4004, 0.0
      %v4039 = vsel %vm4022, %v4001, 0.0
      %v4040 = vsel %vm4022, %v4002, 0.0
      %v4041 = vsel %vm4023, %v3999, 0.0
      %v4042 = vsel %vm4023, %v4000, 0.0
      %v4043 = vsel %vm4024, %v3997, 0.0
      %v4044 = vsel %vm4024, %v3998, 0.0
      %v4045 = vsel %vm4025, %v3995, 0.0
      %v4046 = vsel %vm4025, %v3996, 0.0
      %v4047 = vsel %vm4026, %v3993, 0.0
      %v4048 = vsel %vm4026, %v3994, 0.0
      %v4049 = vsel %vm4027, %v3991, 0.0
      %v4050 = vsel %vm4027, %v3992, 0.0
      %v4051 = vsel %vm4028, %v3989, 0.0
      %v4052 = vsel %vm4028, %v3990, 0.0
      %v4053 = vsel %vm4029, %v3987, 0.0
      %v4054 = vsel %vm4029, %v3988, 0.0
      %v4055 = vsel %vm4030, %v3985, 0.0
      %v4056 = vsel %vm4030, %v3986, 0.0
      %v4057 = vsel %vm4031, %v3983, 0.0
      %v4058 = vsel %vm4031, %v3984, 0.0
      %v4059 = vsel %vm4032, %v3981, 0.0
      %v4060 = vsel %vm4032, %v3982, 0.0
      %v4061 = vsel %vm4033, %v3979, 0.0
      %v4062 = vsel %vm4033, %v3980, 0.0
      %v4063 = vsel %vm4034, %v3977, 0.0
      %v4064 = vsel %vm4034, %v3978, 0.0
      %v4065 = vsel %vm4035, %v3975, 0.0
      %v4066 = vsel %vm4035, %v3976, 0.0
      %v4067 = vsel %vm4036, %v3973, 0.0
      %v4068 = vsel %vm4036, %v3974, 0.0
      %v4069 = vpack.c.bf16 %v4039, %v4037
      %v4070 = vpack.c.bf16 %v4040, %v4038
      %v4071 = vpack.c.bf16 %v4043, %v4041
      %v4072 = vpack.c.bf16 %v4044, %v4042
      %v4073 = vpack.c.bf16 %v4047, %v4045
      %v4074 = vpack.c.bf16 %v4048, %v4046
      %v4075 = vpack.c.bf16 %v4051, %v4049
      %v4076 = vpack.c.bf16 %v4052, %v4050
      %v4077 = vpack.c.bf16 %v4055, %v4053
      %v4078 = vpack.c.bf16 %v4056, %v4054
      %v4079 = vpack.c.bf16 %v4059, %v4057
      %v4080 = vpack.c.bf16 %v4060, %v4058
      %v4081 = vpack.c.bf16 %v4063, %v4061
      %v4082 = vpack.c.bf16 %v4064, %v4062
      %v4083 = vpack.c.bf16 %v4067, %v4065
      %v4084 = vpack.c.bf16 %v4068, %v4066
      %v4085 = vld [vmem:[%s651] sm:$0xff]
      %v4086 = vld [vmem:[%s651 + $0x8] sm:$0xf]
      %v4087 = vld [vmem:[%s651 + $0xc] sm:$0xff]
      %v4088 = vld [vmem:[%s651 + $0x14] sm:$0xf]
      %v4089 = vld [vmem:[%s651 + $0x18] sm:$0xff]
      %v4090 = vld [vmem:[%s651 + $0x20] sm:$0xf]
      %v4091 = vld [vmem:[%s651 + $0x24] sm:$0xff]
      %v4092 = vld [vmem:[%s651 + $0x2c] sm:$0xf]
      %v4093 = vld [vmem:[%s651 + $0x30] sm:$0xff]
      %v4094 = vld [vmem:[%s651 + $0x38] sm:$0xf]
      %v4095 = vld [vmem:[%s651 + $0x3c] sm:$0xff]
      %v4096 = vld [vmem:[%s651 + $0x44] sm:$0xf]
      %v4097 = vld [vmem:[%s651 + $0x48] sm:$0xff]
      %v4098 = vld [vmem:[%s651 + $0x50] sm:$0xf]
      %v4099 = vld [vmem:[%s651 + $0x54] sm:$0xff]
      %v4100 = vld [vmem:[%s651 + $0x5c] sm:$0xf]
      %v4101 = vld [vmem:[%s651 + $0x60] sm:$0xff]
      %v4102 = vld [vmem:[%s651 + $0x68] sm:$0xf]
      %v4103 = vld [vmem:[%s651 + $0x6c] sm:$0xff]
      %v4104 = vld [vmem:[%s651 + $0x74] sm:$0xf]
      %v4105 = vld [vmem:[%s651 + $0x78] sm:$0xff]
      %v4106 = vld [vmem:[%s651 + $0x80] sm:$0xf]
      %v4107 = vld [vmem:[%s651 + $0x84] sm:$0xff]
      %v4108 = vld [vmem:[%s651 + $0x8c] sm:$0xf]
      %v4109 = vld [vmem:[%s651 + $0x90] sm:$0xff]
      %v4110 = vld [vmem:[%s651 + $0x98] sm:$0xf]
      %v4111 = vld [vmem:[%s651 + $0x9c] sm:$0xff]
      %v4112 = vld [vmem:[%s651 + $0xa4] sm:$0xf]
      %v4113 = vld [vmem:[%s651 + $0xa8] sm:$0xff]
      %v4114 = vld [vmem:[%s651 + $0xb0] sm:$0xf]
      %v4115 = vld [vmem:[%s651 + $0xb4] sm:$0xff]
      %v4116 = vld [vmem:[%s651 + $0xbc] sm:$0xf]
      %v4117 = vld [vmem:[%s651 + $0xc0] sm:$0xff]
      %v4118 = vld [vmem:[%s651 + $0xc8] sm:$0xf]
      %v4119 = vld [vmem:[%s651 + $0xcc] sm:$0xff]
      %v4120 = vld [vmem:[%s651 + $0xd4] sm:$0xf]
      %v4121 = vld [vmem:[%s651 + $0xd8] sm:$0xff]
      %v4122 = vld [vmem:[%s651 + $0xe0] sm:$0xf]
      %v4123 = vld [vmem:[%s651 + $0xe4] sm:$0xff]
      %v4124 = vld [vmem:[%s651 + $0xec] sm:$0xf]
      %v4125 = vld [vmem:[%s651 + $0xf0] sm:$0xff]
      %v4126 = vld [vmem:[%s651 + $0xf8] sm:$0xf]
      %v4127 = vld [vmem:[%s651 + $0xfc] sm:$0xff]
      %v4128 = vld [vmem:[%s651 + $0x104] sm:$0xf]
      %v4129 = vld [vmem:[%s651 + $0x108] sm:$0xff]
      %v4130 = vld [vmem:[%s651 + $0x110] sm:$0xf]
      %v4131 = vld [vmem:[%s651 + $0x114] sm:$0xff]
      %v4132 = vld [vmem:[%s651 + $0x11c] sm:$0xf]
      %v4181 = vunpack.c.l.b16 %v4085
      %v4182 = vunpack.c.h.b16 %v4085
      %v4183 = vunpack.c.l.b16 %v4086
      %v4184 = vunpack.c.l.b16 %v4087
      %v4185 = vunpack.c.h.b16 %v4087
      %v4186 = vunpack.c.l.b16 %v4088
      %v4187 = vunpack.c.l.b16 %v4089
      %v4188 = vunpack.c.h.b16 %v4089
      %v4189 = vunpack.c.l.b16 %v4090
      %v4190 = vunpack.c.l.b16 %v4091
      %v4191 = vunpack.c.h.b16 %v4091
      %v4192 = vunpack.c.l.b16 %v4092
      %v4193 = vunpack.c.l.b16 %v4093
      %v4194 = vunpack.c.h.b16 %v4093
      %v4195 = vunpack.c.l.b16 %v4094
      %v4196 = vunpack.c.l.b16 %v4095
      %v4197 = vunpack.c.h.b16 %v4095
      %v4198 = vunpack.c.l.b16 %v4096
      %v4199 = vunpack.c.l.b16 %v4097
      %v4200 = vunpack.c.h.b16 %v4097
      %v4201 = vunpack.c.l.b16 %v4098
      %v4202 = vunpack.c.l.b16 %v4099
      %v4203 = vunpack.c.h.b16 %v4099
      %v4204 = vunpack.c.l.b16 %v4100
      %v4205 = vunpack.c.l.b16 %v4101
      %v4206 = vunpack.c.h.b16 %v4101
      %v4207 = vunpack.c.l.b16 %v4102
      %v4208 = vunpack.c.l.b16 %v4103
      %v4209 = vunpack.c.h.b16 %v4103
      %v4210 = vunpack.c.l.b16 %v4104
      %v4211 = vunpack.c.l.b16 %v4105
      %v4212 = vunpack.c.h.b16 %v4105
      %v4213 = vunpack.c.l.b16 %v4106
      %v4214 = vunpack.c.l.b16 %v4107
      %v4215 = vunpack.c.h.b16 %v4107
      %v4216 = vunpack.c.l.b16 %v4108
      %v4217 = vunpack.c.l.b16 %v4109
      %v4218 = vunpack.c.h.b16 %v4109
      %v4219 = vunpack.c.l.b16 %v4110
      %v4220 = vunpack.c.l.b16 %v4111
      %v4221 = vunpack.c.h.b16 %v4111
      %v4222 = vunpack.c.l.b16 %v4112
      %v4223 = vunpack.c.l.b16 %v4113
      %v4224 = vunpack.c.h.b16 %v4113
      %v4225 = vunpack.c.l.b16 %v4114
      %v4226 = vunpack.c.l.b16 %v4115
      %v4227 = vunpack.c.h.b16 %v4115
      %v4228 = vunpack.c.l.b16 %v4116
      %v4229 = vunpack.c.l.b16 %v4117
      %v4230 = vunpack.c.h.b16 %v4117
      %v4231 = vunpack.c.l.b16 %v4118
      %v4232 = vunpack.c.l.b16 %v4119
      %v4233 = vunpack.c.h.b16 %v4119
      %v4234 = vunpack.c.l.b16 %v4120
      %v4235 = vunpack.c.l.b16 %v4121
      %v4236 = vunpack.c.h.b16 %v4121
      %v4237 = vunpack.c.l.b16 %v4122
      %v4238 = vunpack.c.l.b16 %v4123
      %v4239 = vunpack.c.h.b16 %v4123
      %v4240 = vunpack.c.l.b16 %v4124
      %v4241 = vunpack.c.l.b16 %v4125
      %v4242 = vunpack.c.h.b16 %v4125
      %v4243 = vunpack.c.l.b16 %v4126
      %v4244 = vunpack.c.l.b16 %v4127
      %v4245 = vunpack.c.h.b16 %v4127
      %v4246 = vunpack.c.l.b16 %v4128
      %v4247 = vunpack.c.l.b16 %v4129
      %v4248 = vunpack.c.h.b16 %v4129
      %v4249 = vunpack.c.l.b16 %v4130
      %v4250 = vunpack.c.l.b16 %v4131
      %v4251 = vunpack.c.h.b16 %v4131
      %v4252 = vunpack.c.l.b16 %v4132
      %v4253 = vpack.c.b16 %v4184, %v4181
      %v4254 = vpack.c.b16 %v4185, %v4182
      %v4255 = vpack.c.b16 %v4186, %v4183
      %v4256 = vpack.c.b16 %v4190, %v4187
      %v4257 = vpack.c.b16 %v4191, %v4188
      %v4258 = vpack.c.b16 %v4192, %v4189
      %v4259 = vpack.c.b16 %v4196, %v4193
      %v4260 = vpack.c.b16 %v4197, %v4194
      %v4261 = vpack.c.b16 %v4198, %v4195
      %v4262 = vpack.c.b16 %v4202, %v4199
      %v4263 = vpack.c.b16 %v4203, %v4200
      %v4264 = vpack.c.b16 %v4204, %v4201
      %v4265 = vpack.c.b16 %v4208, %v4205
      %v4266 = vpack.c.b16 %v4209, %v4206
      %v4267 = vpack.c.b16 %v4210, %v4207
      %v4268 = vpack.c.b16 %v4214, %v4211
      %v4269 = vpack.c.b16 %v4215, %v4212
      %v4270 = vpack.c.b16 %v4216, %v4213
      %v4271 = vpack.c.b16 %v4220, %v4217
      %v4272 = vpack.c.b16 %v4221, %v4218
      %v4273 = vpack.c.b16 %v4222, %v4219
      %v4274 = vpack.c.b16 %v4226, %v4223
      %v4275 = vpack.c.b16 %v4227, %v4224
      %v4276 = vpack.c.b16 %v4228, %v4225
      %v4277 = vpack.c.b16 %v4232, %v4229
      %v4278 = vpack.c.b16 %v4233, %v4230
      %v4279 = vpack.c.b16 %v4234, %v4231
      %v4280 = vpack.c.b16 %v4238, %v4235
      %v4281 = vpack.c.b16 %v4239, %v4236
      %v4282 = vpack.c.b16 %v4240, %v4237
      %v4283 = vpack.c.b16 %v4244, %v4241
      %v4284 = vpack.c.b16 %v4245, %v4242
      %v4285 = vpack.c.b16 %v4246, %v4243
      %v4286 = vpack.c.b16 %v4250, %v4247
      %v4287 = vpack.c.b16 %v4251, %v4248
      %v4288 = vpack.c.b16 %v4252, %v4249
      %v4326 = vsel %vm1263, %v4070, 0
      %v4329 = vsel %vm1263, %v4072, 0
      %v4332 = vsel %vm1263, %v4074, 0
      %v4335 = vsel %vm1263, %v4076, 0
      %v4338 = vsel %vm1263, %v4078, 0
      %v4341 = vsel %vm1263, %v4080, 0
      %v4344 = vsel %vm1263, %v4082, 0
      %v4347 = vsel %vm1263, %v4084, 0
      %4349 = vmatpush.bf16.msra.mxu0 %v4274
      %4350 = vmatpush.bf16.msra.mxu0 %v4271
      %4351 = vmatpush.bf16.msra.mxu0 %v4268
      %4352 = vmatpush.bf16.msra.mxu0 %v4265
      %4353 = vmatpush.bf16.msra.mxu0 %v4262
      %4354 = vmatpush.bf16.msra.mxu0 %v4259
      %4355 = vmatpush.bf16.msra.mxu0 %v4256
      %4356 = vmatpush.bf16.msra.mxu0 %v4253
      %4357 = vmatmul.bf16.gmra.mxu0 %v4069
      %v4358 = vpop.f32.mrf.mxu0
      %v4359 = vadd.f32 0.0, %v4358
      %v4360 = vpop.f32.mrf.mxu0
      %v4361 = vadd.f32 0.0, %v4360
      %4362 = vmatmul.bf16.gmra.mxu0 %v4071
      %v4363 = vpop.f32.mrf.mxu0
      %v4364 = vadd.f32 0.0, %v4363
      %v4365 = vpop.f32.mrf.mxu0
      %v4366 = vadd.f32 0.0, %v4365
      %4367 = vmatmul.bf16.gmra.mxu0 %v4073
      %v4368 = vpop.f32.mrf.mxu0
      %v4369 = vadd.f32 0.0, %v4368
      %v4370 = vpop.f32.mrf.mxu0
      %v4371 = vadd.f32 0.0, %v4370
      %4372 = vmatmul.bf16.gmra.mxu0 %v4075
      %v4373 = vpop.f32.mrf.mxu0
      %v4374 = vadd.f32 0.0, %v4373
      %v4375 = vpop.f32.mrf.mxu0
      %v4376 = vadd.f32 0.0, %v4375
      %4377 = vmatmul.bf16.gmra.mxu0 %v4077
      %v4378 = vpop.f32.mrf.mxu0
      %v4379 = vadd.f32 0.0, %v4378
      %v4380 = vpop.f32.mrf.mxu0
      %v4381 = vadd.f32 0.0, %v4380
      %4382 = vmatmul.bf16.gmra.mxu0 %v4079
      %v4383 = vpop.f32.mrf.mxu0
      %v4384 = vadd.f32 0.0, %v4383
      %v4385 = vpop.f32.mrf.mxu0
      %v4386 = vadd.f32 0.0, %v4385
      %4387 = vmatmul.bf16.gmra.mxu0 %v4081
      %v4388 = vpop.f32.mrf.mxu0
      %v4389 = vadd.f32 0.0, %v4388
      %v4390 = vpop.f32.mrf.mxu0
      %v4391 = vadd.f32 0.0, %v4390
      %4392 = vmatmul.bf16.gmra.mxu0 %v4083
      %v4393 = vpop.f32.mrf.mxu0
      %v4394 = vadd.f32 0.0, %v4393
      %v4395 = vpop.f32.mrf.mxu0
      %v4396 = vadd.f32 0.0, %v4395
      %4397 = vdwg.mxu0
      %4398 = vmatpush.bf16.msra.mxu0 0
      %4399 = vmatpush.bf16.msra.mxu0 0
      %4400 = vmatpush.bf16.msra.mxu0 0
      %4401 = vmatpush.bf16.msra.mxu0 0
      %4402 = vmatpush.bf16.msra.mxu0 %v4286
      %4403 = vmatpush.bf16.msra.mxu0 %v4283
      %4404 = vmatpush.bf16.msra.mxu0 %v4280
      %4405 = vmatpush.bf16.msra.mxu0 %v4277
      %4406 = vmatmul.bf16.gmra.mxu0 %v4326
      %v4407 = vpop.f32.mrf.mxu0
      %v4408 = vadd.f32 %v4359, %v4407
      %v4409 = vpop.f32.mrf.mxu0
      %v4410 = vadd.f32 %v4361, %v4409
      %4411 = vmatmul.bf16.gmra.mxu0 %v4329
      %v4412 = vpop.f32.mrf.mxu0
      %v4413 = vadd.f32 %v4364, %v4412
      %v4414 = vpop.f32.mrf.mxu0
      %v4415 = vadd.f32 %v4366, %v4414
      %4416 = vmatmul.bf16.gmra.mxu0 %v4332
      %v4417 = vpop.f32.mrf.mxu0
      %v4418 = vadd.f32 %v4369, %v4417
      %v4419 = vpop.f32.mrf.mxu0
      %v4420 = vadd.f32 %v4371, %v4419
      %4421 = vmatmul.bf16.gmra.mxu0 %v4335
      %v4422 = vpop.f32.mrf.mxu0
      %v4423 = vadd.f32 %v4374, %v4422
      %v4424 = vpop.f32.mrf.mxu0
      %v4425 = vadd.f32 %v4376, %v4424
      %4426 = vmatmul.bf16.gmra.mxu0 %v4338
      %v4427 = vpop.f32.mrf.mxu0
      %v4428 = vadd.f32 %v4379, %v4427
      %v4429 = vpop.f32.mrf.mxu0
      %v4430 = vadd.f32 %v4381, %v4429
      %4431 = vmatmul.bf16.gmra.mxu0 %v4341
      %v4432 = vpop.f32.mrf.mxu0
      %v4433 = vadd.f32 %v4384, %v4432
      %v4434 = vpop.f32.mrf.mxu0
      %v4435 = vadd.f32 %v4386, %v4434
      %4436 = vmatmul.bf16.gmra.mxu0 %v4344
      %v4437 = vpop.f32.mrf.mxu0
      %v4438 = vadd.f32 %v4389, %v4437
      %v4439 = vpop.f32.mrf.mxu0
      %v4440 = vadd.f32 %v4391, %v4439
      %4441 = vmatmul.bf16.gmra.mxu0 %v4347
      %v4442 = vpop.f32.mrf.mxu0
      %v4443 = vadd.f32 %v4394, %v4442
      %v4444 = vpop.f32.mrf.mxu0
      %v4445 = vadd.f32 %v4396, %v4444
      %4446 = vdwg.mxu0
      %4447 = vmatpush.bf16.msra.mxu0 %v4275
      %4448 = vmatpush.bf16.msra.mxu0 %v4272
      %4449 = vmatpush.bf16.msra.mxu0 %v4269
      %4450 = vmatpush.bf16.msra.mxu0 %v4266
      %4451 = vmatpush.bf16.msra.mxu0 %v4263
      %4452 = vmatpush.bf16.msra.mxu0 %v4260
      %4453 = vmatpush.bf16.msra.mxu0 %v4257
      %4454 = vmatpush.bf16.msra.mxu0 %v4254
      %4455 = vmatmul.bf16.gmra.mxu0 %v4069
      %v4456 = vpop.f32.mrf.mxu0
      %v4457 = vadd.f32 0.0, %v4456
      %v4458 = vpop.f32.mrf.mxu0
      %v4459 = vadd.f32 0.0, %v4458
      %4460 = vmatmul.bf16.gmra.mxu0 %v4071
      %v4461 = vpop.f32.mrf.mxu0
      %v4462 = vadd.f32 0.0, %v4461
      %v4463 = vpop.f32.mrf.mxu0
      %v4464 = vadd.f32 0.0, %v4463
      %4465 = vmatmul.bf16.gmra.mxu0 %v4073
      %v4466 = vpop.f32.mrf.mxu0
      %v4467 = vadd.f32 0.0, %v4466
      %v4468 = vpop.f32.mrf.mxu0
      %v4469 = vadd.f32 0.0, %v4468
      %4470 = vmatmul.bf16.gmra.mxu0 %v4075
      %v4471 = vpop.f32.mrf.mxu0
      %v4472 = vadd.f32 0.0, %v4471
      %v4473 = vpop.f32.mrf.mxu0
      %v4474 = vadd.f32 0.0, %v4473
      %4475 = vmatmul.bf16.gmra.mxu0 %v4077
      %v4476 = vpop.f32.mrf.mxu0
      %v4477 = vadd.f32 0.0, %v4476
      %v4478 = vpop.f32.mrf.mxu0
      %v4479 = vadd.f32 0.0, %v4478
      %4480 = vmatmul.bf16.gmra.mxu0 %v4079
      %v4481 = vpop.f32.mrf.mxu0
      %v4482 = vadd.f32 0.0, %v4481
      %v4483 = vpop.f32.mrf.mxu0
      %v4484 = vadd.f32 0.0, %v4483
      %4485 = vmatmul.bf16.gmra.mxu0 %v4081
      %v4486 = vpop.f32.mrf.mxu0
      %v4487 = vadd.f32 0.0, %v4486
      %v4488 = vpop.f32.mrf.mxu0
      %v4489 = vadd.f32 0.0, %v4488
      %4490 = vmatmul.bf16.gmra.mxu0 %v4083
      %v4491 = vpop.f32.mrf.mxu0
      %v4492 = vadd.f32 0.0, %v4491
      %v4493 = vpop.f32.mrf.mxu0
      %v4494 = vadd.f32 0.0, %v4493
      %4495 = vdwg.mxu0
      %4496 = vmatpush.bf16.msra.mxu0 0
      %4497 = vmatpush.bf16.msra.mxu0 0
      %4498 = vmatpush.bf16.msra.mxu0 0
      %4499 = vmatpush.bf16.msra.mxu0 0
      %4500 = vmatpush.bf16.msra.mxu0 %v4287
      %4501 = vmatpush.bf16.msra.mxu0 %v4284
      %4502 = vmatpush.bf16.msra.mxu0 %v4281
      %4503 = vmatpush.bf16.msra.mxu0 %v4278
      %4504 = vmatmul.bf16.gmra.mxu0 %v4326
      %v4505 = vpop.f32.mrf.mxu0
      %v4506 = vadd.f32 %v4457, %v4505
      %v4507 = vpop.f32.mrf.mxu0
      %v4508 = vadd.f32 %v4459, %v4507
      %4509 = vmatmul.bf16.gmra.mxu0 %v4329
      %v4510 = vpop.f32.mrf.mxu0
      %v4511 = vadd.f32 %v4462, %v4510
      %v4512 = vpop.f32.mrf.mxu0
      %v4513 = vadd.f32 %v4464, %v4512
      %4514 = vmatmul.bf16.gmra.mxu0 %v4332
      %v4515 = vpop.f32.mrf.mxu0
      %v4516 = vadd.f32 %v4467, %v4515
      %v4517 = vpop.f32.mrf.mxu0
      %v4518 = vadd.f32 %v4469, %v4517
      %4519 = vmatmul.bf16.gmra.mxu0 %v4335
      %v4520 = vpop.f32.mrf.mxu0
      %v4521 = vadd.f32 %v4472, %v4520
      %v4522 = vpop.f32.mrf.mxu0
      %v4523 = vadd.f32 %v4474, %v4522
      %4524 = vmatmul.bf16.gmra.mxu0 %v4338
      %v4525 = vpop.f32.mrf.mxu0
      %v4526 = vadd.f32 %v4477, %v4525
      %v4527 = vpop.f32.mrf.mxu0
      %v4528 = vadd.f32 %v4479, %v4527
      %4529 = vmatmul.bf16.gmra.mxu0 %v4341
      %v4530 = vpop.f32.mrf.mxu0
      %v4531 = vadd.f32 %v4482, %v4530
      %v4532 = vpop.f32.mrf.mxu0
      %v4533 = vadd.f32 %v4484, %v4532
      %4534 = vmatmul.bf16.gmra.mxu0 %v4344
      %v4535 = vpop.f32.mrf.mxu0
      %v4536 = vadd.f32 %v4487, %v4535
      %v4537 = vpop.f32.mrf.mxu0
      %v4538 = vadd.f32 %v4489, %v4537
      %4539 = vmatmul.bf16.gmra.mxu0 %v4347
      %v4540 = vpop.f32.mrf.mxu0
      %v4541 = vadd.f32 %v4492, %v4540
      %v4542 = vpop.f32.mrf.mxu0
      %v4543 = vadd.f32 %v4494, %v4542
      %4544 = vdwg.mxu0
      %4545 = vmatpush.bf16.msra.mxu0 %v4276
      %4546 = vmatpush.bf16.msra.mxu0 %v4273
      %4547 = vmatpush.bf16.msra.mxu0 %v4270
      %4548 = vmatpush.bf16.msra.mxu0 %v4267
      %4549 = vmatpush.bf16.msra.mxu0 %v4264
      %4550 = vmatpush.bf16.msra.mxu0 %v4261
      %4551 = vmatpush.bf16.msra.mxu0 %v4258
      %4552 = vmatpush.bf16.msra.mxu0 %v4255
      %4553 = vmatmul.bf16.gmra.mxu0 %v4069
      %v4554 = vpop.f32.mrf.mxu0
      %v4555 = vadd.f32 0.0, %v4554
      %v4556 = vpop.f32.mrf.mxu0
      %v4557 = vadd.f32 0.0, %v4556
      %4558 = vmatmul.bf16.gmra.mxu0 %v4071
      %v4559 = vpop.f32.mrf.mxu0
      %v4560 = vadd.f32 0.0, %v4559
      %v4561 = vpop.f32.mrf.mxu0
      %v4562 = vadd.f32 0.0, %v4561
      %4563 = vmatmul.bf16.gmra.mxu0 %v4073
      %v4564 = vpop.f32.mrf.mxu0
      %v4565 = vadd.f32 0.0, %v4564
      %v4566 = vpop.f32.mrf.mxu0
      %v4567 = vadd.f32 0.0, %v4566
      %4568 = vmatmul.bf16.gmra.mxu0 %v4075
      %v4569 = vpop.f32.mrf.mxu0
      %v4570 = vadd.f32 0.0, %v4569
      %v4571 = vpop.f32.mrf.mxu0
      %v4572 = vadd.f32 0.0, %v4571
      %4573 = vmatmul.bf16.gmra.mxu0 %v4077
      %v4574 = vpop.f32.mrf.mxu0
      %v4575 = vadd.f32 0.0, %v4574
      %v4576 = vpop.f32.mrf.mxu0
      %v4577 = vadd.f32 0.0, %v4576
      %4578 = vmatmul.bf16.gmra.mxu0 %v4079
      %v4579 = vpop.f32.mrf.mxu0
      %v4580 = vadd.f32 0.0, %v4579
      %v4581 = vpop.f32.mrf.mxu0
      %v4582 = vadd.f32 0.0, %v4581
      %4583 = vmatmul.bf16.gmra.mxu0 %v4081
      %v4584 = vpop.f32.mrf.mxu0
      %v4585 = vadd.f32 0.0, %v4584
      %v4586 = vpop.f32.mrf.mxu0
      %v4587 = vadd.f32 0.0, %v4586
      %4588 = vmatmul.bf16.gmra.mxu0 %v4083
      %v4589 = vpop.f32.mrf.mxu0
      %v4590 = vadd.f32 0.0, %v4589
      %v4591 = vpop.f32.mrf.mxu0
      %v4592 = vadd.f32 0.0, %v4591
      %4593 = vdwg.mxu0
      %4594 = vmatpush.bf16.msra.mxu0 0
      %4595 = vmatpush.bf16.msra.mxu0 0
      %4596 = vmatpush.bf16.msra.mxu0 0
      %4597 = vmatpush.bf16.msra.mxu0 0
      %4598 = vmatpush.bf16.msra.mxu0 %v4288
      %4599 = vmatpush.bf16.msra.mxu0 %v4285
      %4600 = vmatpush.bf16.msra.mxu0 %v4282
      %4601 = vmatpush.bf16.msra.mxu0 %v4279
      %4602 = vmatmul.bf16.gmra.mxu0 %v4326
      %v4603 = vpop.f32.mrf.mxu0
      %v4604 = vadd.f32 %v4555, %v4603
      %v4605 = vpop.f32.mrf.mxu0
      %v4606 = vadd.f32 %v4557, %v4605
      %4607 = vmatmul.bf16.gmra.mxu0 %v4329
      %v4608 = vpop.f32.mrf.mxu0
      %v4609 = vadd.f32 %v4560, %v4608
      %v4610 = vpop.f32.mrf.mxu0
      %v4611 = vadd.f32 %v4562, %v4610
      %4612 = vmatmul.bf16.gmra.mxu0 %v4332
      %v4613 = vpop.f32.mrf.mxu0
      %v4614 = vadd.f32 %v4565, %v4613
      %v4615 = vpop.f32.mrf.mxu0
      %v4616 = vadd.f32 %v4567, %v4615
      %4617 = vmatmul.bf16.gmra.mxu0 %v4335
      %v4618 = vpop.f32.mrf.mxu0
      %v4619 = vadd.f32 %v4570, %v4618
      %v4620 = vpop.f32.mrf.mxu0
      %v4621 = vadd.f32 %v4572, %v4620
      %4622 = vmatmul.bf16.gmra.mxu0 %v4338
      %v4623 = vpop.f32.mrf.mxu0
      %v4624 = vadd.f32 %v4575, %v4623
      %v4625 = vpop.f32.mrf.mxu0
      %v4626 = vadd.f32 %v4577, %v4625
      %4627 = vmatmul.bf16.gmra.mxu0 %v4341
      %v4628 = vpop.f32.mrf.mxu0
      %v4629 = vadd.f32 %v4580, %v4628
      %v4630 = vpop.f32.mrf.mxu0
      %v4631 = vadd.f32 %v4582, %v4630
      %4632 = vmatmul.bf16.gmra.mxu0 %v4344
      %v4633 = vpop.f32.mrf.mxu0
      %v4634 = vadd.f32 %v4585, %v4633
      %v4635 = vpop.f32.mrf.mxu0
      %v4636 = vadd.f32 %v4587, %v4635
      %4637 = vmatmul.bf16.gmra.mxu0 %v4347
      %v4638 = vpop.f32.mrf.mxu0
      %v4639 = vadd.f32 %v4590, %v4638
      %v4640 = vpop.f32.mrf.mxu0
      %v4641 = vadd.f32 %v4592, %v4640
      %4642 = vdwg.mxu0
      %v4643 = vadd.f32 %v3937, %v4408
      %v4644 = vadd.f32 %v3938, %v4506
      %v4645 = vadd.f32 %v3939, %v4604
      %v4646 = vadd.f32 %v3937, %v4410
      %v4647 = vadd.f32 %v3938, %v4508
      %v4648 = vadd.f32 %v3939, %v4606
      %v4649 = vadd.f32 %v3937, %v4413
      %v4650 = vadd.f32 %v3938, %v4511
      %v4651 = vadd.f32 %v3939, %v4609
      %v4652 = vadd.f32 %v3937, %v4415
      %v4653 = vadd.f32 %v3938, %v4513
      %v4654 = vadd.f32 %v3939, %v4611
      %v4655 = vadd.f32 %v3937, %v4418
      %v4656 = vadd.f32 %v3938, %v4516
      %v4657 = vadd.f32 %v3939, %v4614
      %v4658 = vadd.f32 %v3937, %v4420
      %v4659 = vadd.f32 %v3938, %v4518
      %v4660 = vadd.f32 %v3939, %v4616
      %v4661 = vadd.f32 %v3937, %v4423
      %v4662 = vadd.f32 %v3938, %v4521
      %v4663 = vadd.f32 %v3939, %v4619
      %v4664 = vadd.f32 %v3937, %v4425
      %v4665 = vadd.f32 %v3938, %v4523
      %v4666 = vadd.f32 %v3939, %v4621
      %v4667 = vadd.f32 %v3937, %v4428
      %v4668 = vadd.f32 %v3938, %v4526
      %v4669 = vadd.f32 %v3939, %v4624
      %v4670 = vadd.f32 %v3937, %v4430
      %v4671 = vadd.f32 %v3938, %v4528
      %v4672 = vadd.f32 %v3939, %v4626
      %v4673 = vadd.f32 %v3937, %v4433
      %v4674 = vadd.f32 %v3938, %v4531
      %v4675 = vadd.f32 %v3939, %v4629
      %v4676 = vadd.f32 %v3937, %v4435
      %v4677 = vadd.f32 %v3938, %v4533
      %v4678 = vadd.f32 %v3939, %v4631
      %v4679 = vadd.f32 %v3937, %v4438
      %v4680 = vadd.f32 %v3938, %v4536
      %v4681 = vadd.f32 %v3939, %v4634
      %v4682 = vadd.f32 %v3937, %v4440
      %v4683 = vadd.f32 %v3938, %v4538
      %v4684 = vadd.f32 %v3939, %v4636
      %v4685 = vadd.f32 %v3937, %v4443
      %v4686 = vadd.f32 %v3938, %v4541
      %v4687 = vadd.f32 %v3939, %v4639
      %v4688 = vadd.f32 %v3937, %v4445
      %v4689 = vadd.f32 %v3938, %v4543
      %v4690 = vadd.f32 %v3939, %v4641
      %v4691 = vpack.c.bf16 %v3899, %v3897
      %v4692 = vpack.c.bf16 %v3900, %v3898
      %v4693 = vpack.c.bf16 %v3903, %v3901
      %v4694 = vpack.c.bf16 %v3904, %v3902
      %v4695 = vpack.c.bf16 %v3907, %v3905
      %v4696 = vpack.c.bf16 %v3908, %v3906
      %v4697 = vpack.c.bf16 %v3911, %v3909
      %v4698 = vpack.c.bf16 %v3912, %v3910
      %v4699 = vpack.c.bf16 %v3915, %v3913
      %v4700 = vpack.c.bf16 %v3916, %v3914
      %v4701 = vpack.c.bf16 %v3919, %v3917
      %v4702 = vpack.c.bf16 %v3920, %v3918
      %v4703 = vpack.c.bf16 %v3923, %v3921
      %v4704 = vpack.c.bf16 %v3924, %v3922
      %v4705 = vpack.c.bf16 %v3927, %v3925
      %v4706 = vpack.c.bf16 %v3928, %v3926
      %s4707 = scalar_lea.vmem %s651, 288
      %v4708 = vld [vmem:[%s4707] sm:$0xff]
      %v4709 = vld [vmem:[%s4707 + $0x8] sm:$0xf]
      %v4710 = vld [vmem:[%s4707 + $0xc] sm:$0xff]
      %v4711 = vld [vmem:[%s4707 + $0x14] sm:$0xf]
      %v4712 = vld [vmem:[%s4707 + $0x18] sm:$0xff]
      %v4713 = vld [vmem:[%s4707 + $0x20] sm:$0xf]
      %v4714 = vld [vmem:[%s4707 + $0x24] sm:$0xff]
      %v4715 = vld [vmem:[%s4707 + $0x2c] sm:$0xf]
      %v4716 = vld [vmem:[%s4707 + $0x30] sm:$0xff]
      %v4717 = vld [vmem:[%s4707 + $0x38] sm:$0xf]
      %v4718 = vld [vmem:[%s4707 + $0x3c] sm:$0xff]
      %v4719 = vld [vmem:[%s4707 + $0x44] sm:$0xf]
      %v4720 = vld [vmem:[%s4707 + $0x48] sm:$0xff]
      %v4721 = vld [vmem:[%s4707 + $0x50] sm:$0xf]
      %v4722 = vld [vmem:[%s4707 + $0x54] sm:$0xff]
      %v4723 = vld [vmem:[%s4707 + $0x5c] sm:$0xf]
      %v4724 = vld [vmem:[%s4707 + $0x60] sm:$0xff]
      %v4725 = vld [vmem:[%s4707 + $0x68] sm:$0xf]
      %v4726 = vld [vmem:[%s4707 + $0x6c] sm:$0xff]
      %v4727 = vld [vmem:[%s4707 + $0x74] sm:$0xf]
      %v4728 = vld [vmem:[%s4707 + $0x78] sm:$0xff]
      %v4729 = vld [vmem:[%s4707 + $0x80] sm:$0xf]
      %v4730 = vld [vmem:[%s4707 + $0x84] sm:$0xff]
      %v4731 = vld [vmem:[%s4707 + $0x8c] sm:$0xf]
      %v4732 = vld [vmem:[%s4707 + $0x90] sm:$0xff]
      %v4733 = vld [vmem:[%s4707 + $0x98] sm:$0xf]
      %v4734 = vld [vmem:[%s4707 + $0x9c] sm:$0xff]
      %v4735 = vld [vmem:[%s4707 + $0xa4] sm:$0xf]
      %v4736 = vld [vmem:[%s4707 + $0xa8] sm:$0xff]
      %v4737 = vld [vmem:[%s4707 + $0xb0] sm:$0xf]
      %v4738 = vld [vmem:[%s4707 + $0xb4] sm:$0xff]
      %v4739 = vld [vmem:[%s4707 + $0xbc] sm:$0xf]
      %v4740 = vld [vmem:[%s4707 + $0xc0] sm:$0xff]
      %v4741 = vld [vmem:[%s4707 + $0xc8] sm:$0xf]
      %v4742 = vld [vmem:[%s4707 + $0xcc] sm:$0xff]
      %v4743 = vld [vmem:[%s4707 + $0xd4] sm:$0xf]
      %v4744 = vld [vmem:[%s4707 + $0xd8] sm:$0xff]
      %v4745 = vld [vmem:[%s4707 + $0xe0] sm:$0xf]
      %v4746 = vld [vmem:[%s4707 + $0xe4] sm:$0xff]
      %v4747 = vld [vmem:[%s4707 + $0xec] sm:$0xf]
      %v4748 = vld [vmem:[%s4707 + $0xf0] sm:$0xff]
      %v4749 = vld [vmem:[%s4707 + $0xf8] sm:$0xf]
      %v4750 = vld [vmem:[%s4707 + $0xfc] sm:$0xff]
      %v4751 = vld [vmem:[%s4707 + $0x104] sm:$0xf]
      %v4752 = vld [vmem:[%s4707 + $0x108] sm:$0xff]
      %v4753 = vld [vmem:[%s4707 + $0x110] sm:$0xf]
      %v4754 = vld [vmem:[%s4707 + $0x114] sm:$0xff]
      %v4755 = vld [vmem:[%s4707 + $0x11c] sm:$0xf]
      %v4804 = vunpack.c.l.b16 %v4708
      %v4805 = vunpack.c.h.b16 %v4708
      %v4806 = vunpack.c.l.b16 %v4709
      %v4807 = vunpack.c.l.b16 %v4710
      %v4808 = vunpack.c.h.b16 %v4710
      %v4809 = vunpack.c.l.b16 %v4711
      %v4810 = vunpack.c.l.b16 %v4712
      %v4811 = vunpack.c.h.b16 %v4712
      %v4812 = vunpack.c.l.b16 %v4713
      %v4813 = vunpack.c.l.b16 %v4714
      %v4814 = vunpack.c.h.b16 %v4714
      %v4815 = vunpack.c.l.b16 %v4715
      %v4816 = vunpack.c.l.b16 %v4716
      %v4817 = vunpack.c.h.b16 %v4716
      %v4818 = vunpack.c.l.b16 %v4717
      %v4819 = vunpack.c.l.b16 %v4718
      %v4820 = vunpack.c.h.b16 %v4718
      %v4821 = vunpack.c.l.b16 %v4719
      %v4822 = vunpack.c.l.b16 %v4720
      %v4823 = vunpack.c.h.b16 %v4720
      %v4824 = vunpack.c.l.b16 %v4721
      %v4825 = vunpack.c.l.b16 %v4722
      %v4826 = vunpack.c.h.b16 %v4722
      %v4827 = vunpack.c.l.b16 %v4723
      %v4828 = vunpack.c.l.b16 %v4724
      %v4829 = vunpack.c.h.b16 %v4724
      %v4830 = vunpack.c.l.b16 %v4725
      %v4831 = vunpack.c.l.b16 %v4726
      %v4832 = vunpack.c.h.b16 %v4726
      %v4833 = vunpack.c.l.b16 %v4727
      %v4834 = vunpack.c.l.b16 %v4728
      %v4835 = vunpack.c.h.b16 %v4728
      %v4836 = vunpack.c.l.b16 %v4729
      %v4837 = vunpack.c.l.b16 %v4730
      %v4838 = vunpack.c.h.b16 %v4730
      %v4839 = vunpack.c.l.b16 %v4731
      %v4840 = vunpack.c.l.b16 %v4732
      %v4841 = vunpack.c.h.b16 %v4732
      %v4842 = vunpack.c.l.b16 %v4733
      %v4843 = vunpack.c.l.b16 %v4734
      %v4844 = vunpack.c.h.b16 %v4734
      %v4845 = vunpack.c.l.b16 %v4735
      %v4846 = vunpack.c.l.b16 %v4736
      %v4847 = vunpack.c.h.b16 %v4736
      %v4848 = vunpack.c.l.b16 %v4737
      %v4849 = vunpack.c.l.b16 %v4738
      %v4850 = vunpack.c.h.b16 %v4738
      %v4851 = vunpack.c.l.b16 %v4739
      %v4852 = vunpack.c.l.b16 %v4740
      %v4853 = vunpack.c.h.b16 %v4740
      %v4854 = vunpack.c.l.b16 %v4741
      %v4855 = vunpack.c.l.b16 %v4742
      %v4856 = vunpack.c.h.b16 %v4742
      %v4857 = vunpack.c.l.b16 %v4743
      %v4858 = vunpack.c.l.b16 %v4744
      %v4859 = vunpack.c.h.b16 %v4744
      %v4860 = vunpack.c.l.b16 %v4745
      %v4861 = vunpack.c.l.b16 %v4746
      %v4862 = vunpack.c.h.b16 %v4746
      %v4863 = vunpack.c.l.b16 %v4747
      %v4864 = vunpack.c.l.b16 %v4748
      %v4865 = vunpack.c.h.b16 %v4748
      %v4866 = vunpack.c.l.b16 %v4749
      %v4867 = vunpack.c.l.b16 %v4750
      %v4868 = vunpack.c.h.b16 %v4750
      %v4869 = vunpack.c.l.b16 %v4751
      %v4870 = vunpack.c.l.b16 %v4752
      %v4871 = vunpack.c.h.b16 %v4752
      %v4872 = vunpack.c.l.b16 %v4753
      %v4873 = vunpack.c.l.b16 %v4754
      %v4874 = vunpack.c.h.b16 %v4754
      %v4875 = vunpack.c.l.b16 %v4755
      %v4876 = vpack.c.b16 %v4807, %v4804
      %v4877 = vpack.c.b16 %v4808, %v4805
      %v4878 = vpack.c.b16 %v4809, %v4806
      %v4879 = vpack.c.b16 %v4813, %v4810
      %v4880 = vpack.c.b16 %v4814, %v4811
      %v4881 = vpack.c.b16 %v4815, %v4812
      %v4882 = vpack.c.b16 %v4819, %v4816
      %v4883 = vpack.c.b16 %v4820, %v4817
      %v4884 = vpack.c.b16 %v4821, %v4818
      %v4885 = vpack.c.b16 %v4825, %v4822
      %v4886 = vpack.c.b16 %v4826, %v4823
      %v4887 = vpack.c.b16 %v4827, %v4824
      %v4888 = vpack.c.b16 %v4831, %v4828
      %v4889 = vpack.c.b16 %v4832, %v4829
      %v4890 = vpack.c.b16 %v4833, %v4830
      %v4891 = vpack.c.b16 %v4837, %v4834
      %v4892 = vpack.c.b16 %v4838, %v4835
      %v4893 = vpack.c.b16 %v4839, %v4836
      %v4894 = vpack.c.b16 %v4843, %v4840
      %v4895 = vpack.c.b16 %v4844, %v4841
      %v4896 = vpack.c.b16 %v4845, %v4842
      %v4897 = vpack.c.b16 %v4849, %v4846
      %v4898 = vpack.c.b16 %v4850, %v4847
      %v4899 = vpack.c.b16 %v4851, %v4848
      %v4900 = vpack.c.b16 %v4855, %v4852
      %v4901 = vpack.c.b16 %v4856, %v4853
      %v4902 = vpack.c.b16 %v4857, %v4854
      %v4903 = vpack.c.b16 %v4861, %v4858
      %v4904 = vpack.c.b16 %v4862, %v4859
      %v4905 = vpack.c.b16 %v4863, %v4860
      %v4906 = vpack.c.b16 %v4867, %v4864
      %v4907 = vpack.c.b16 %v4868, %v4865
      %v4908 = vpack.c.b16 %v4869, %v4866
      %v4909 = vpack.c.b16 %v4873, %v4870
      %v4910 = vpack.c.b16 %v4874, %v4871
      %v4911 = vpack.c.b16 %v4875, %v4872
      %v4949 = vsel %vm1263, %v4692, 0
      %v4952 = vsel %vm1263, %v4694, 0
      %v4955 = vsel %vm1263, %v4696, 0
      %v4958 = vsel %vm1263, %v4698, 0
      %v4961 = vsel %vm1263, %v4700, 0
      %v4964 = vsel %vm1263, %v4702, 0
      %v4967 = vsel %vm1263, %v4704, 0
      %v4970 = vsel %vm1263, %v4706, 0
      %4972 = vmatpush.bf16.msra.mxu0 %v4897
      %4973 = vmatpush.bf16.msra.mxu0 %v4894
      %4974 = vmatpush.bf16.msra.mxu0 %v4891
      %4975 = vmatpush.bf16.msra.mxu0 %v4888
      %4976 = vmatpush.bf16.msra.mxu0 %v4885
      %4977 = vmatpush.bf16.msra.mxu0 %v4882
      %4978 = vmatpush.bf16.msra.mxu0 %v4879
      %4979 = vmatpush.bf16.msra.mxu0 %v4876
      %4980 = vmatmul.bf16.gmra.mxu0 %v4691
      %v4981 = vpop.f32.mrf.mxu0
      %v4982 = vadd.f32 0.0, %v4981
      %v4983 = vpop.f32.mrf.mxu0
      %v4984 = vadd.f32 0.0, %v4983
      %4985 = vmatmul.bf16.gmra.mxu0 %v4693
      %v4986 = vpop.f32.mrf.mxu0
      %v4987 = vadd.f32 0.0, %v4986
      %v4988 = vpop.f32.mrf.mxu0
      %v4989 = vadd.f32 0.0, %v4988
      %4990 = vmatmul.bf16.gmra.mxu0 %v4695
      %v4991 = vpop.f32.mrf.mxu0
      %v4992 = vadd.f32 0.0, %v4991
      %v4993 = vpop.f32.mrf.mxu0
      %v4994 = vadd.f32 0.0, %v4993
      %4995 = vmatmul.bf16.gmra.mxu0 %v4697
      %v4996 = vpop.f32.mrf.mxu0
      %v4997 = vadd.f32 0.0, %v4996
      %v4998 = vpop.f32.mrf.mxu0
      %v4999 = vadd.f32 0.0, %v4998
      %5000 = vmatmul.bf16.gmra.mxu0 %v4699
      %v5001 = vpop.f32.mrf.mxu0
      %v5002 = vadd.f32 0.0, %v5001
      %v5003 = vpop.f32.mrf.mxu0
      %v5004 = vadd.f32 0.0, %v5003
      %5005 = vmatmul.bf16.gmra.mxu0 %v4701
      %v5006 = vpop.f32.mrf.mxu0
      %v5007 = vadd.f32 0.0, %v5006
      %v5008 = vpop.f32.mrf.mxu0
      %v5009 = vadd.f32 0.0, %v5008
      %5010 = vmatmul.bf16.gmra.mxu0 %v4703
      %v5011 = vpop.f32.mrf.mxu0
      %v5012 = vadd.f32 0.0, %v5011
      %v5013 = vpop.f32.mrf.mxu0
      %v5014 = vadd.f32 0.0, %v5013
      %5015 = vmatmul.bf16.gmra.mxu0 %v4705
      %v5016 = vpop.f32.mrf.mxu0
      %v5017 = vadd.f32 0.0, %v5016
      %v5018 = vpop.f32.mrf.mxu0
      %v5019 = vadd.f32 0.0, %v5018
      %5020 = vdwg.mxu0
      %5021 = vmatpush.bf16.msra.mxu0 0
      %5022 = vmatpush.bf16.msra.mxu0 0
      %5023 = vmatpush.bf16.msra.mxu0 0
      %5024 = vmatpush.bf16.msra.mxu0 0
      %5025 = vmatpush.bf16.msra.mxu0 %v4909
      %5026 = vmatpush.bf16.msra.mxu0 %v4906
      %5027 = vmatpush.bf16.msra.mxu0 %v4903
      %5028 = vmatpush.bf16.msra.mxu0 %v4900
      %5029 = vmatmul.bf16.gmra.mxu0 %v4949
      %v5030 = vpop.f32.mrf.mxu0
      %v5031 = vadd.f32 %v4982, %v5030
      %v5032 = vpop.f32.mrf.mxu0
      %v5033 = vadd.f32 %v4984, %v5032
      %5034 = vmatmul.bf16.gmra.mxu0 %v4952
      %v5035 = vpop.f32.mrf.mxu0
      %v5036 = vadd.f32 %v4987, %v5035
      %v5037 = vpop.f32.mrf.mxu0
      %v5038 = vadd.f32 %v4989, %v5037
      %5039 = vmatmul.bf16.gmra.mxu0 %v4955
      %v5040 = vpop.f32.mrf.mxu0
      %v5041 = vadd.f32 %v4992, %v5040
      %v5042 = vpop.f32.mrf.mxu0
      %v5043 = vadd.f32 %v4994, %v5042
      %5044 = vmatmul.bf16.gmra.mxu0 %v4958
      %v5045 = vpop.f32.mrf.mxu0
      %v5046 = vadd.f32 %v4997, %v5045
      %v5047 = vpop.f32.mrf.mxu0
      %v5048 = vadd.f32 %v4999, %v5047
      %5049 = vmatmul.bf16.gmra.mxu0 %v4961
      %v5050 = vpop.f32.mrf.mxu0
      %v5051 = vadd.f32 %v5002, %v5050
      %v5052 = vpop.f32.mrf.mxu0
      %v5053 = vadd.f32 %v5004, %v5052
      %5054 = vmatmul.bf16.gmra.mxu0 %v4964
      %v5055 = vpop.f32.mrf.mxu0
      %v5056 = vadd.f32 %v5007, %v5055
      %v5057 = vpop.f32.mrf.mxu0
      %v5058 = vadd.f32 %v5009, %v5057
      %5059 = vmatmul.bf16.gmra.mxu0 %v4967
      %v5060 = vpop.f32.mrf.mxu0
      %v5061 = vadd.f32 %v5012, %v5060
      %v5062 = vpop.f32.mrf.mxu0
      %v5063 = vadd.f32 %v5014, %v5062
      %5064 = vmatmul.bf16.gmra.mxu0 %v4970
      %v5065 = vpop.f32.mrf.mxu0
      %v5066 = vadd.f32 %v5017, %v5065
      %v5067 = vpop.f32.mrf.mxu0
      %v5068 = vadd.f32 %v5019, %v5067
      %5069 = vdwg.mxu0
      %5070 = vmatpush.bf16.msra.mxu0 %v4898
      %5071 = vmatpush.bf16.msra.mxu0 %v4895
      %5072 = vmatpush.bf16.msra.mxu0 %v4892
      %5073 = vmatpush.bf16.msra.mxu0 %v4889
      %5074 = vmatpush.bf16.msra.mxu0 %v4886
      %5075 = vmatpush.bf16.msra.mxu0 %v4883
      %5076 = vmatpush.bf16.msra.mxu0 %v4880
      %5077 = vmatpush.bf16.msra.mxu0 %v4877
      %5078 = vmatmul.bf16.gmra.mxu0 %v4691
      %v5079 = vpop.f32.mrf.mxu0
      %v5080 = vadd.f32 0.0, %v5079
      %v5081 = vpop.f32.mrf.mxu0
      %v5082 = vadd.f32 0.0, %v5081
      %5083 = vmatmul.bf16.gmra.mxu0 %v4693
      %v5084 = vpop.f32.mrf.mxu0
      %v5085 = vadd.f32 0.0, %v5084
      %v5086 = vpop.f32.mrf.mxu0
      %v5087 = vadd.f32 0.0, %v5086
      %5088 = vmatmul.bf16.gmra.mxu0 %v4695
      %v5089 = vpop.f32.mrf.mxu0
      %v5090 = vadd.f32 0.0, %v5089
      %v5091 = vpop.f32.mrf.mxu0
      %v5092 = vadd.f32 0.0, %v5091
      %5093 = vmatmul.bf16.gmra.mxu0 %v4697
      %v5094 = vpop.f32.mrf.mxu0
      %v5095 = vadd.f32 0.0, %v5094
      %v5096 = vpop.f32.mrf.mxu0
      %v5097 = vadd.f32 0.0, %v5096
      %5098 = vmatmul.bf16.gmra.mxu0 %v4699
      %v5099 = vpop.f32.mrf.mxu0
      %v5100 = vadd.f32 0.0, %v5099
      %v5101 = vpop.f32.mrf.mxu0
      %v5102 = vadd.f32 0.0, %v5101
      %5103 = vmatmul.bf16.gmra.mxu0 %v4701
      %v5104 = vpop.f32.mrf.mxu0
      %v5105 = vadd.f32 0.0, %v5104
      %v5106 = vpop.f32.mrf.mxu0
      %v5107 = vadd.f32 0.0, %v5106
      %5108 = vmatmul.bf16.gmra.mxu0 %v4703
      %v5109 = vpop.f32.mrf.mxu0
      %v5110 = vadd.f32 0.0, %v5109
      %v5111 = vpop.f32.mrf.mxu0
      %v5112 = vadd.f32 0.0, %v5111
      %5113 = vmatmul.bf16.gmra.mxu0 %v4705
      %v5114 = vpop.f32.mrf.mxu0
      %v5115 = vadd.f32 0.0, %v5114
      %v5116 = vpop.f32.mrf.mxu0
      %v5117 = vadd.f32 0.0, %v5116
      %5118 = vdwg.mxu0
      %5119 = vmatpush.bf16.msra.mxu0 0
      %5120 = vmatpush.bf16.msra.mxu0 0
      %5121 = vmatpush.bf16.msra.mxu0 0
      %5122 = vmatpush.bf16.msra.mxu0 0
      %5123 = vmatpush.bf16.msra.mxu0 %v4910
      %5124 = vmatpush.bf16.msra.mxu0 %v4907
      %5125 = vmatpush.bf16.msra.mxu0 %v4904
      %5126 = vmatpush.bf16.msra.mxu0 %v4901
      %5127 = vmatmul.bf16.gmra.mxu0 %v4949
      %v5128 = vpop.f32.mrf.mxu0
      %v5129 = vadd.f32 %v5080, %v5128
      %v5130 = vpop.f32.mrf.mxu0
      %v5131 = vadd.f32 %v5082, %v5130
      %5132 = vmatmul.bf16.gmra.mxu0 %v4952
      %v5133 = vpop.f32.mrf.mxu0
      %v5134 = vadd.f32 %v5085, %v5133
      %v5135 = vpop.f32.mrf.mxu0
      %v5136 = vadd.f32 %v5087, %v5135
      %5137 = vmatmul.bf16.gmra.mxu0 %v4955
      %v5138 = vpop.f32.mrf.mxu0
      %v5139 = vadd.f32 %v5090, %v5138
      %v5140 = vpop.f32.mrf.mxu0
      %v5141 = vadd.f32 %v5092, %v5140
      %5142 = vmatmul.bf16.gmra.mxu0 %v4958
      %v5143 = vpop.f32.mrf.mxu0
      %v5144 = vadd.f32 %v5095, %v5143
      %v5145 = vpop.f32.mrf.mxu0
      %v5146 = vadd.f32 %v5097, %v5145
      %5147 = vmatmul.bf16.gmra.mxu0 %v4961
      %v5148 = vpop.f32.mrf.mxu0
      %v5149 = vadd.f32 %v5100, %v5148
      %v5150 = vpop.f32.mrf.mxu0
      %v5151 = vadd.f32 %v5102, %v5150
      %5152 = vmatmul.bf16.gmra.mxu0 %v4964
      %v5153 = vpop.f32.mrf.mxu0
      %v5154 = vadd.f32 %v5105, %v5153
      %v5155 = vpop.f32.mrf.mxu0
      %v5156 = vadd.f32 %v5107, %v5155
      %5157 = vmatmul.bf16.gmra.mxu0 %v4967
      %v5158 = vpop.f32.mrf.mxu0
      %v5159 = vadd.f32 %v5110, %v5158
      %v5160 = vpop.f32.mrf.mxu0
      %v5161 = vadd.f32 %v5112, %v5160
      %5162 = vmatmul.bf16.gmra.mxu0 %v4970
      %v5163 = vpop.f32.mrf.mxu0
      %v5164 = vadd.f32 %v5115, %v5163
      %v5165 = vpop.f32.mrf.mxu0
      %v5166 = vadd.f32 %v5117, %v5165
      %5167 = vdwg.mxu0
      %5168 = vmatpush.bf16.msra.mxu0 %v4899
      %5169 = vmatpush.bf16.msra.mxu0 %v4896
      %5170 = vmatpush.bf16.msra.mxu0 %v4893
      %5171 = vmatpush.bf16.msra.mxu0 %v4890
      %5172 = vmatpush.bf16.msra.mxu0 %v4887
      %5173 = vmatpush.bf16.msra.mxu0 %v4884
      %5174 = vmatpush.bf16.msra.mxu0 %v4881
      %5175 = vmatpush.bf16.msra.mxu0 %v4878
      %5176 = vmatmul.bf16.gmra.mxu0 %v4691
      %v5177 = vpop.f32.mrf.mxu0
      %v5178 = vadd.f32 0.0, %v5177
      %v5179 = vpop.f32.mrf.mxu0
      %v5180 = vadd.f32 0.0, %v5179
      %5181 = vmatmul.bf16.gmra.mxu0 %v4693
      %v5182 = vpop.f32.mrf.mxu0
      %v5183 = vadd.f32 0.0, %v5182
      %v5184 = vpop.f32.mrf.mxu0
      %v5185 = vadd.f32 0.0, %v5184
      %5186 = vmatmul.bf16.gmra.mxu0 %v4695
      %v5187 = vpop.f32.mrf.mxu0
      %v5188 = vadd.f32 0.0, %v5187
      %v5189 = vpop.f32.mrf.mxu0
      %v5190 = vadd.f32 0.0, %v5189
      %5191 = vmatmul.bf16.gmra.mxu0 %v4697
      %v5192 = vpop.f32.mrf.mxu0
      %v5193 = vadd.f32 0.0, %v5192
      %v5194 = vpop.f32.mrf.mxu0
      %v5195 = vadd.f32 0.0, %v5194
      %5196 = vmatmul.bf16.gmra.mxu0 %v4699
      %v5197 = vpop.f32.mrf.mxu0
      %v5198 = vadd.f32 0.0, %v5197
      %v5199 = vpop.f32.mrf.mxu0
      %v5200 = vadd.f32 0.0, %v5199
      %5201 = vmatmul.bf16.gmra.mxu0 %v4701
      %v5202 = vpop.f32.mrf.mxu0
      %v5203 = vadd.f32 0.0, %v5202
      %v5204 = vpop.f32.mrf.mxu0
      %v5205 = vadd.f32 0.0, %v5204
      %5206 = vmatmul.bf16.gmra.mxu0 %v4703
      %v5207 = vpop.f32.mrf.mxu0
      %v5208 = vadd.f32 0.0, %v5207
      %v5209 = vpop.f32.mrf.mxu0
      %v5210 = vadd.f32 0.0, %v5209
      %5211 = vmatmul.bf16.gmra.mxu0 %v4705
      %v5212 = vpop.f32.mrf.mxu0
      %v5213 = vadd.f32 0.0, %v5212
      %v5214 = vpop.f32.mrf.mxu0
      %v5215 = vadd.f32 0.0, %v5214
      %5216 = vdwg.mxu0
      %5217 = vmatpush.bf16.msra.mxu0 0
      %5218 = vmatpush.bf16.msra.mxu0 0
      %5219 = vmatpush.bf16.msra.mxu0 0
      %5220 = vmatpush.bf16.msra.mxu0 0
      %5221 = vmatpush.bf16.msra.mxu0 %v4911
      %5222 = vmatpush.bf16.msra.mxu0 %v4908
      %5223 = vmatpush.bf16.msra.mxu0 %v4905
      %5224 = vmatpush.bf16.msra.mxu0 %v4902
      %5225 = vmatmul.bf16.gmra.mxu0 %v4949
      %v5226 = vpop.f32.mrf.mxu0
      %v5227 = vadd.f32 %v5178, %v5226
      %v5228 = vpop.f32.mrf.mxu0
      %v5229 = vadd.f32 %v5180, %v5228
      %5230 = vmatmul.bf16.gmra.mxu0 %v4952
      %v5231 = vpop.f32.mrf.mxu0
      %v5232 = vadd.f32 %v5183, %v5231
      %v5233 = vpop.f32.mrf.mxu0
      %v5234 = vadd.f32 %v5185, %v5233
      %5235 = vmatmul.bf16.gmra.mxu0 %v4955
      %v5236 = vpop.f32.mrf.mxu0
      %v5237 = vadd.f32 %v5188, %v5236
      %v5238 = vpop.f32.mrf.mxu0
      %v5239 = vadd.f32 %v5190, %v5238
      %5240 = vmatmul.bf16.gmra.mxu0 %v4958
      %v5241 = vpop.f32.mrf.mxu0
      %v5242 = vadd.f32 %v5193, %v5241
      %v5243 = vpop.f32.mrf.mxu0
      %v5244 = vadd.f32 %v5195, %v5243
      %5245 = vmatmul.bf16.gmra.mxu0 %v4961
      %v5246 = vpop.f32.mrf.mxu0
      %v5247 = vadd.f32 %v5198, %v5246
      %v5248 = vpop.f32.mrf.mxu0
      %v5249 = vadd.f32 %v5200, %v5248
      %5250 = vmatmul.bf16.gmra.mxu0 %v4964
      %v5251 = vpop.f32.mrf.mxu0
      %v5252 = vadd.f32 %v5203, %v5251
      %v5253 = vpop.f32.mrf.mxu0
      %v5254 = vadd.f32 %v5205, %v5253
      %5255 = vmatmul.bf16.gmra.mxu0 %v4967
      %v5256 = vpop.f32.mrf.mxu0
      %v5257 = vadd.f32 %v5208, %v5256
      %v5258 = vpop.f32.mrf.mxu0
      %v5259 = vadd.f32 %v5210, %v5258
      %5260 = vmatmul.bf16.gmra.mxu0 %v4970
      %v5261 = vpop.f32.mrf.mxu0
      %v5262 = vadd.f32 %v5213, %v5261
      %v5263 = vpop.f32.mrf.mxu0
      %v5264 = vadd.f32 %v5215, %v5263
      %5265 = vdwg.mxu0
      %v5266 = vadd.f32 %v4643, %v5031
      %v5267 = vadd.f32 %v4644, %v5129
      %v5268 = vadd.f32 %v4645, %v5227
      %v5269 = vadd.f32 %v4646, %v5033
      %v5270 = vadd.f32 %v4647, %v5131
      %v5271 = vadd.f32 %v4648, %v5229
      %v5272 = vadd.f32 %v4649, %v5036
      %v5273 = vadd.f32 %v4650, %v5134
      %v5274 = vadd.f32 %v4651, %v5232
      %v5275 = vadd.f32 %v4652, %v5038
      %v5276 = vadd.f32 %v4653, %v5136
      %v5277 = vadd.f32 %v4654, %v5234
      %v5278 = vadd.f32 %v4655, %v5041
      %v5279 = vadd.f32 %v4656, %v5139
      %v5280 = vadd.f32 %v4657, %v5237
      %v5281 = vadd.f32 %v4658, %v5043
      %v5282 = vadd.f32 %v4659, %v5141
      %v5283 = vadd.f32 %v4660, %v5239
      %v5284 = vadd.f32 %v4661, %v5046
      %v5285 = vadd.f32 %v4662, %v5144
      %v5286 = vadd.f32 %v4663, %v5242
      %v5287 = vadd.f32 %v4664, %v5048
      %v5288 = vadd.f32 %v4665, %v5146
      %v5289 = vadd.f32 %v4666, %v5244
      %v5290 = vadd.f32 %v4667, %v5051
      %v5291 = vadd.f32 %v4668, %v5149
      %v5292 = vadd.f32 %v4669, %v5247
      %v5293 = vadd.f32 %v4670, %v5053
      %v5294 = vadd.f32 %v4671, %v5151
      %v5295 = vadd.f32 %v4672, %v5249
      %v5296 = vadd.f32 %v4673, %v5056
      %v5297 = vadd.f32 %v4674, %v5154
      %v5298 = vadd.f32 %v4675, %v5252
      %v5299 = vadd.f32 %v4676, %v5058
      %v5300 = vadd.f32 %v4677, %v5156
      %v5301 = vadd.f32 %v4678, %v5254
      %v5302 = vadd.f32 %v4679, %v5061
      %v5303 = vadd.f32 %v4680, %v5159
      %v5304 = vadd.f32 %v4681, %v5257
      %v5305 = vadd.f32 %v4682, %v5063
      %v5306 = vadd.f32 %v4683, %v5161
      %v5307 = vadd.f32 %v4684, %v5259
      %v5308 = vadd.f32 %v4685, %v5066
      %v5309 = vadd.f32 %v4686, %v5164
      %v5310 = vadd.f32 %v4687, %v5262
      %v5311 = vadd.f32 %v4688, %v5068
      %v5312 = vadd.f32 %v4689, %v5166
      %v5313 = vadd.f32 %v4690, %v5264
      %v5314 = vrot.slane %v3897, 1
      %v5315 = vrot.slane %v3898, 1
      %v5316 = vrot.slane %v3899, 1
      %v5317 = vrot.slane %v3900, 1
      %v5318 = vrot.slane %v3901, 1
      %v5319 = vrot.slane %v3902, 1
      %v5320 = vrot.slane %v3903, 1
      %v5321 = vrot.slane %v3904, 1
      %v5322 = vrot.slane %v3905, 1
      %v5323 = vrot.slane %v3906, 1
      %v5324 = vrot.slane %v3907, 1
      %v5325 = vrot.slane %v3908, 1
      %v5326 = vrot.slane %v3909, 1
      %v5327 = vrot.slane %v3910, 1
      %v5328 = vrot.slane %v3911, 1
      %v5329 = vrot.slane %v3912, 1
      %v5330 = vrot.slane %v3913, 1
      %v5331 = vrot.slane %v3914, 1
      %v5332 = vrot.slane %v3915, 1
      %v5333 = vrot.slane %v3916, 1
      %v5334 = vrot.slane %v3917, 1
      %v5335 = vrot.slane %v3918, 1
      %v5336 = vrot.slane %v3919, 1
      %v5337 = vrot.slane %v3920, 1
      %v5338 = vrot.slane %v3921, 1
      %v5339 = vrot.slane %v3922, 1
      %v5340 = vrot.slane %v3923, 1
      %v5341 = vrot.slane %v3924, 1
      %v5342 = vrot.slane %v3925, 1
      %v5343 = vrot.slane %v3926, 1
      %v5344 = vrot.slane %v3927, 1
      %v5345 = vrot.slane %v3928, 1
      %vm5346 = vcmp.lt.s32.totalorder %v782, 7
      %v5347 = vsel %vm5346, %v5342, %v5344
      %v5348 = vsel %vm5346, %v5343, %v5345
      %v5349 = vsel %vm5346, %v5340, %v5342
      %v5350 = vsel %vm5346, %v5341, %v5343
      %v5351 = vsel %vm5346, %v5338, %v5340
      %v5352 = vsel %vm5346, %v5339, %v5341
      %v5353 = vsel %vm5346, %v5336, %v5338
      %v5354 = vsel %vm5346, %v5337, %v5339
      %v5355 = vsel %vm5346, %v5334, %v5336
      %v5356 = vsel %vm5346, %v5335, %v5337
      %v5357 = vsel %vm5346, %v5332, %v5334
      %v5358 = vsel %vm5346, %v5333, %v5335
      %v5359 = vsel %vm5346, %v5330, %v5332
      %v5360 = vsel %vm5346, %v5331, %v5333
      %v5361 = vsel %vm5346, %v5328, %v5330
      %v5362 = vsel %vm5346, %v5329, %v5331
      %v5363 = vsel %vm5346, %v5326, %v5328
      %v5364 = vsel %vm5346, %v5327, %v5329
      %v5365 = vsel %vm5346, %v5324, %v5326
      %v5366 = vsel %vm5346, %v5325, %v5327
      %v5367 = vsel %vm5346, %v5322, %v5324
      %v5368 = vsel %vm5346, %v5323, %v5325
      %v5369 = vsel %vm5346, %v5320, %v5322
      %v5370 = vsel %vm5346, %v5321, %v5323
      %v5371 = vsel %vm5346, %v5318, %v5320
      %v5372 = vsel %vm5346, %v5319, %v5321
      %v5373 = vsel %vm5346, %v5316, %v5318
      %v5374 = vsel %vm5346, %v5317, %v5319
      %v5375 = vsel %vm5346, %v5314, %v5316
      %v5376 = vsel %vm5346, %v5315, %v5317
      %v5377 = vsel %vm5346, %v5344, %v5314
      %v5378 = vsel %vm5346, %v5345, %v5315
      %v5379 = vsel %vm3881, 1, 0
      %v5380 = vsel %vm3882, 1, 0
      %v5381 = vsel %vm3883, 1, 0
      %v5382 = vsel %vm3884, 1, 0
      %v5383 = vsel %vm3885, 1, 0
      %v5384 = vsel %vm3886, 1, 0
      %v5385 = vsel %vm3887, 1, 0
      %v5386 = vsel %vm3888, 1, 0
      %v5387 = vsel %vm3889, 1, 0
      %v5388 = vsel %vm3890, 1, 0
      %v5389 = vsel %vm3891, 1, 0
      %v5390 = vsel %vm3892, 1, 0
      %v5391 = vsel %vm3893, 1, 0
      %v5392 = vsel %vm3894, 1, 0
      %v5393 = vsel %vm3895, 1, 0
      %v5394 = vsel %vm3896, 1, 0
      %vm5395 = vcmp.eq.s32.totalorder %v5379, 1
      %vm5396 = vcmp.eq.s32.totalorder %v5380, 1
      %vm5397 = vcmp.eq.s32.totalorder %v5381, 1
      %vm5398 = vcmp.eq.s32.totalorder %v5382, 1
      %vm5399 = vcmp.eq.s32.totalorder %v5383, 1
      %vm5400 = vcmp.eq.s32.totalorder %v5384, 1
      %vm5401 = vcmp.eq.s32.totalorder %v5385, 1
      %vm5402 = vcmp.eq.s32.totalorder %v5386, 1
      %vm5403 = vcmp.eq.s32.totalorder %v5387, 1
      %vm5404 = vcmp.eq.s32.totalorder %v5388, 1
      %vm5405 = vcmp.eq.s32.totalorder %v5389, 1
      %vm5406 = vcmp.eq.s32.totalorder %v5390, 1
      %vm5407 = vcmp.eq.s32.totalorder %v5391, 1
      %vm5408 = vcmp.eq.s32.totalorder %v5392, 1
      %vm5409 = vcmp.eq.s32.totalorder %v5393, 1
      %vm5410 = vcmp.eq.s32.totalorder %v5394, 1
      %v5411 = vsel %vm5395, %v5375, 0.0
      %v5412 = vsel %vm5395, %v5376, 0.0
      %v5413 = vsel %vm5396, %v5373, 0.0
      %v5414 = vsel %vm5396, %v5374, 0.0
      %v5415 = vsel %vm5397, %v5371, 0.0
      %v5416 = vsel %vm5397, %v5372, 0.0
      %v5417 = vsel %vm5398, %v5369, 0.0
      %v5418 = vsel %vm5398, %v5370, 0.0
      %v5419 = vsel %vm5399, %v5367, 0.0
      %v5420 = vsel %vm5399, %v5368, 0.0
      %v5421 = vsel %vm5400, %v5365, 0.0
      %v5422 = vsel %vm5400, %v5366, 0.0
      %v5423 = vsel %vm5401, %v5363, 0.0
      %v5424 = vsel %vm5401, %v5364, 0.0
      %v5425 = vsel %vm5402, %v5361, 0.0
      %v5426 = vsel %vm5402, %v5362, 0.0
      %v5427 = vsel %vm5403, %v5359, 0.0
      %v5428 = vsel %vm5403, %v5360, 0.0
      %v5429 = vsel %vm5404, %v5357, 0.0
      %v5430 = vsel %vm5404, %v5358, 0.0
      %v5431 = vsel %vm5405, %v5355, 0.0
      %v5432 = vsel %vm5405, %v5356, 0.0
      %v5433 = vsel %vm5406, %v5353, 0.0
      %v5434 = vsel %vm5406, %v5354, 0.0
      %v5435 = vsel %vm5407, %v5351, 0.0
      %v5436 = vsel %vm5407, %v5352, 0.0
      %v5437 = vsel %vm5408, %v5349, 0.0
      %v5438 = vsel %vm5408, %v5350, 0.0
      %v5439 = vsel %vm5409, %v5347, 0.0
      %v5440 = vsel %vm5409, %v5348, 0.0
      %v5441 = vsel %vm5410, %v5377, 0.0
      %v5442 = vsel %vm5410, %v5378, 0.0
      %v5443 = vpack.c.bf16 %v5413, %v5411
      %v5444 = vpack.c.bf16 %v5414, %v5412
      %v5445 = vpack.c.bf16 %v5417, %v5415
      %v5446 = vpack.c.bf16 %v5418, %v5416
      %v5447 = vpack.c.bf16 %v5421, %v5419
      %v5448 = vpack.c.bf16 %v5422, %v5420
      %v5449 = vpack.c.bf16 %v5425, %v5423
      %v5450 = vpack.c.bf16 %v5426, %v5424
      %v5451 = vpack.c.bf16 %v5429, %v5427
      %v5452 = vpack.c.bf16 %v5430, %v5428
      %v5453 = vpack.c.bf16 %v5433, %v5431
      %v5454 = vpack.c.bf16 %v5434, %v5432
      %v5455 = vpack.c.bf16 %v5437, %v5435
      %v5456 = vpack.c.bf16 %v5438, %v5436
      %v5457 = vpack.c.bf16 %v5441, %v5439
      %v5458 = vpack.c.bf16 %v5442, %v5440
      %s5459 = scalar_lea.vmem %s651, 576
      %v5460 = vld [vmem:[%s5459] sm:$0xff]
      %v5461 = vld [vmem:[%s5459 + $0x8] sm:$0xf]
      %v5462 = vld [vmem:[%s5459 + $0xc] sm:$0xff]
      %v5463 = vld [vmem:[%s5459 + $0x14] sm:$0xf]
      %v5464 = vld [vmem:[%s5459 + $0x18] sm:$0xff]
      %v5465 = vld [vmem:[%s5459 + $0x20] sm:$0xf]
      %v5466 = vld [vmem:[%s5459 + $0x24] sm:$0xff]
      %v5467 = vld [vmem:[%s5459 + $0x2c] sm:$0xf]
      %v5468 = vld [vmem:[%s5459 + $0x30] sm:$0xff]
      %v5469 = vld [vmem:[%s5459 + $0x38] sm:$0xf]
      %v5470 = vld [vmem:[%s5459 + $0x3c] sm:$0xff]
      %v5471 = vld [vmem:[%s5459 + $0x44] sm:$0xf]
      %v5472 = vld [vmem:[%s5459 + $0x48] sm:$0xff]
      %v5473 = vld [vmem:[%s5459 + $0x50] sm:$0xf]
      %v5474 = vld [vmem:[%s5459 + $0x54] sm:$0xff]
      %v5475 = vld [vmem:[%s5459 + $0x5c] sm:$0xf]
      %v5476 = vld [vmem:[%s5459 + $0x60] sm:$0xff]
      %v5477 = vld [vmem:[%s5459 + $0x68] sm:$0xf]
      %v5478 = vld [vmem:[%s5459 + $0x6c] sm:$0xff]
      %v5479 = vld [vmem:[%s5459 + $0x74] sm:$0xf]
      %v5480 = vld [vmem:[%s5459 + $0x78] sm:$0xff]
      %v5481 = vld [vmem:[%s5459 + $0x80] sm:$0xf]
      %v5482 = vld [vmem:[%s5459 + $0x84] sm:$0xff]
      %v5483 = vld [vmem:[%s5459 + $0x8c] sm:$0xf]
      %v5484 = vld [vmem:[%s5459 + $0x90] sm:$0xff]
      %v5485 = vld [vmem:[%s5459 + $0x98] sm:$0xf]
      %v5486 = vld [vmem:[%s5459 + $0x9c] sm:$0xff]
      %v5487 = vld [vmem:[%s5459 + $0xa4] sm:$0xf]
      %v5488 = vld [vmem:[%s5459 + $0xa8] sm:$0xff]
      %v5489 = vld [vmem:[%s5459 + $0xb0] sm:$0xf]
      %v5490 = vld [vmem:[%s5459 + $0xb4] sm:$0xff]
      %v5491 = vld [vmem:[%s5459 + $0xbc] sm:$0xf]
      %v5492 = vld [vmem:[%s5459 + $0xc0] sm:$0xff]
      %v5493 = vld [vmem:[%s5459 + $0xc8] sm:$0xf]
      %v5494 = vld [vmem:[%s5459 + $0xcc] sm:$0xff]
      %v5495 = vld [vmem:[%s5459 + $0xd4] sm:$0xf]
      %v5496 = vld [vmem:[%s5459 + $0xd8] sm:$0xff]
      %v5497 = vld [vmem:[%s5459 + $0xe0] sm:$0xf]
      %v5498 = vld [vmem:[%s5459 + $0xe4] sm:$0xff]
      %v5499 = vld [vmem:[%s5459 + $0xec] sm:$0xf]
      %v5500 = vld [vmem:[%s5459 + $0xf0] sm:$0xff]
      %v5501 = vld [vmem:[%s5459 + $0xf8] sm:$0xf]
      %v5502 = vld [vmem:[%s5459 + $0xfc] sm:$0xff]
      %v5503 = vld [vmem:[%s5459 + $0x104] sm:$0xf]
      %v5504 = vld [vmem:[%s5459 + $0x108] sm:$0xff]
      %v5505 = vld [vmem:[%s5459 + $0x110] sm:$0xf]
      %v5506 = vld [vmem:[%s5459 + $0x114] sm:$0xff]
      %v5507 = vld [vmem:[%s5459 + $0x11c] sm:$0xf]
      %v5556 = vunpack.c.l.b16 %v5460
      %v5557 = vunpack.c.h.b16 %v5460
      %v5558 = vunpack.c.l.b16 %v5461
      %v5559 = vunpack.c.l.b16 %v5462
      %v5560 = vunpack.c.h.b16 %v5462
      %v5561 = vunpack.c.l.b16 %v5463
      %v5562 = vunpack.c.l.b16 %v5464
      %v5563 = vunpack.c.h.b16 %v5464
      %v5564 = vunpack.c.l.b16 %v5465
      %v5565 = vunpack.c.l.b16 %v5466
      %v5566 = vunpack.c.h.b16 %v5466
      %v5567 = vunpack.c.l.b16 %v5467
      %v5568 = vunpack.c.l.b16 %v5468
      %v5569 = vunpack.c.h.b16 %v5468
      %v5570 = vunpack.c.l.b16 %v5469
      %v5571 = vunpack.c.l.b16 %v5470
      %v5572 = vunpack.c.h.b16 %v5470
      %v5573 = vunpack.c.l.b16 %v5471
      %v5574 = vunpack.c.l.b16 %v5472
      %v5575 = vunpack.c.h.b16 %v5472
      %v5576 = vunpack.c.l.b16 %v5473
      %v5577 = vunpack.c.l.b16 %v5474
      %v5578 = vunpack.c.h.b16 %v5474
      %v5579 = vunpack.c.l.b16 %v5475
      %v5580 = vunpack.c.l.b16 %v5476
      %v5581 = vunpack.c.h.b16 %v5476
      %v5582 = vunpack.c.l.b16 %v5477
      %v5583 = vunpack.c.l.b16 %v5478
      %v5584 = vunpack.c.h.b16 %v5478
      %v5585 = vunpack.c.l.b16 %v5479
      %v5586 = vunpack.c.l.b16 %v5480
      %v5587 = vunpack.c.h.b16 %v5480
      %v5588 = vunpack.c.l.b16 %v5481
      %v5589 = vunpack.c.l.b16 %v5482
      %v5590 = vunpack.c.h.b16 %v5482
      %v5591 = vunpack.c.l.b16 %v5483
      %v5592 = vunpack.c.l.b16 %v5484
      %v5593 = vunpack.c.h.b16 %v5484
      %v5594 = vunpack.c.l.b16 %v5485
      %v5595 = vunpack.c.l.b16 %v5486
      %v5596 = vunpack.c.h.b16 %v5486
      %v5597 = vunpack.c.l.b16 %v5487
      %v5598 = vunpack.c.l.b16 %v5488
      %v5599 = vunpack.c.h.b16 %v5488
      %v5600 = vunpack.c.l.b16 %v5489
      %v5601 = vunpack.c.l.b16 %v5490
      %v5602 = vunpack.c.h.b16 %v5490
      %v5603 = vunpack.c.l.b16 %v5491
      %v5604 = vunpack.c.l.b16 %v5492
      %v5605 = vunpack.c.h.b16 %v5492
      %v5606 = vunpack.c.l.b16 %v5493
      %v5607 = vunpack.c.l.b16 %v5494
      %v5608 = vunpack.c.h.b16 %v5494
      %v5609 = vunpack.c.l.b16 %v5495
      %v5610 = vunpack.c.l.b16 %v5496
      %v5611 = vunpack.c.h.b16 %v5496
      %v5612 = vunpack.c.l.b16 %v5497
      %v5613 = vunpack.c.l.b16 %v5498
      %v5614 = vunpack.c.h.b16 %v5498
      %v5615 = vunpack.c.l.b16 %v5499
      %v5616 = vunpack.c.l.b16 %v5500
      %v5617 = vunpack.c.h.b16 %v5500
      %v5618 = vunpack.c.l.b16 %v5501
      %v5619 = vunpack.c.l.b16 %v5502
      %v5620 = vunpack.c.h.b16 %v5502
      %v5621 = vunpack.c.l.b16 %v5503
      %v5622 = vunpack.c.l.b16 %v5504
      %v5623 = vunpack.c.h.b16 %v5504
      %v5624 = vunpack.c.l.b16 %v5505
      %v5625 = vunpack.c.l.b16 %v5506
      %v5626 = vunpack.c.h.b16 %v5506
      %v5627 = vunpack.c.l.b16 %v5507
      %v5628 = vpack.c.b16 %v5559, %v5556
      %v5629 = vpack.c.b16 %v5560, %v5557
      %v5630 = vpack.c.b16 %v5561, %v5558
      %v5631 = vpack.c.b16 %v5565, %v5562
      %v5632 = vpack.c.b16 %v5566, %v5563
      %v5633 = vpack.c.b16 %v5567, %v5564
      %v5634 = vpack.c.b16 %v5571, %v5568
      %v5635 = vpack.c.b16 %v5572, %v5569
      %v5636 = vpack.c.b16 %v5573, %v5570
      %v5637 = vpack.c.b16 %v5577, %v5574
      %v5638 = vpack.c.b16 %v5578, %v5575
      %v5639 = vpack.c.b16 %v5579, %v5576
      %v5640 = vpack.c.b16 %v5583, %v5580
      %v5641 = vpack.c.b16 %v5584, %v5581
      %v5642 = vpack.c.b16 %v5585, %v5582
      %v5643 = vpack.c.b16 %v5589, %v5586
      %v5644 = vpack.c.b16 %v5590, %v5587
      %v5645 = vpack.c.b16 %v5591, %v5588
      %v5646 = vpack.c.b16 %v5595, %v5592
      %v5647 = vpack.c.b16 %v5596, %v5593
      %v5648 = vpack.c.b16 %v5597, %v5594
      %v5649 = vpack.c.b16 %v5601, %v5598
      %v5650 = vpack.c.b16 %v5602, %v5599
      %v5651 = vpack.c.b16 %v5603, %v5600
      %v5652 = vpack.c.b16 %v5607, %v5604
      %v5653 = vpack.c.b16 %v5608, %v5605
      %v5654 = vpack.c.b16 %v5609, %v5606
      %v5655 = vpack.c.b16 %v5613, %v5610
      %v5656 = vpack.c.b16 %v5614, %v5611
      %v5657 = vpack.c.b16 %v5615, %v5612
      %v5658 = vpack.c.b16 %v5619, %v5616
      %v5659 = vpack.c.b16 %v5620, %v5617
      %v5660 = vpack.c.b16 %v5621, %v5618
      %v5661 = vpack.c.b16 %v5625, %v5622
      %v5662 = vpack.c.b16 %v5626, %v5623
      %v5663 = vpack.c.b16 %v5627, %v5624
      %v5701 = vsel %vm1263, %v5444, 0
      %v5704 = vsel %vm1263, %v5446, 0
      %v5707 = vsel %vm1263, %v5448, 0
      %v5710 = vsel %vm1263, %v5450, 0
      %v5713 = vsel %vm1263, %v5452, 0
      %v5716 = vsel %vm1263, %v5454, 0
      %v5719 = vsel %vm1263, %v5456, 0
      %v5722 = vsel %vm1263, %v5458, 0
      %5724 = vmatpush.bf16.msra.mxu0 %v5649
      %5725 = vmatpush.bf16.msra.mxu0 %v5646
      %5726 = vmatpush.bf16.msra.mxu0 %v5643
      %5727 = vmatpush.bf16.msra.mxu0 %v5640
      %5728 = vmatpush.bf16.msra.mxu0 %v5637
      %5729 = vmatpush.bf16.msra.mxu0 %v5634
      %5730 = vmatpush.bf16.msra.mxu0 %v5631
      %5731 = vmatpush.bf16.msra.mxu0 %v5628
      %5732 = vmatmul.bf16.gmra.mxu0 %v5443
      %v5733 = vpop.f32.mrf.mxu0
      %v5734 = vadd.f32 0.0, %v5733
      %v5735 = vpop.f32.mrf.mxu0
      %v5736 = vadd.f32 0.0, %v5735
      %5737 = vmatmul.bf16.gmra.mxu0 %v5445
      %v5738 = vpop.f32.mrf.mxu0
      %v5739 = vadd.f32 0.0, %v5738
      %v5740 = vpop.f32.mrf.mxu0
      %v5741 = vadd.f32 0.0, %v5740
      %5742 = vmatmul.bf16.gmra.mxu0 %v5447
      %v5743 = vpop.f32.mrf.mxu0
      %v5744 = vadd.f32 0.0, %v5743
      %v5745 = vpop.f32.mrf.mxu0
      %v5746 = vadd.f32 0.0, %v5745
      %5747 = vmatmul.bf16.gmra.mxu0 %v5449
      %v5748 = vpop.f32.mrf.mxu0
      %v5749 = vadd.f32 0.0, %v5748
      %v5750 = vpop.f32.mrf.mxu0
      %v5751 = vadd.f32 0.0, %v5750
      %5752 = vmatmul.bf16.gmra.mxu0 %v5451
      %v5753 = vpop.f32.mrf.mxu0
      %v5754 = vadd.f32 0.0, %v5753
      %v5755 = vpop.f32.mrf.mxu0
      %v5756 = vadd.f32 0.0, %v5755
      %5757 = vmatmul.bf16.gmra.mxu0 %v5453
      %v5758 = vpop.f32.mrf.mxu0
      %v5759 = vadd.f32 0.0, %v5758
      %v5760 = vpop.f32.mrf.mxu0
      %v5761 = vadd.f32 0.0, %v5760
      %5762 = vmatmul.bf16.gmra.mxu0 %v5455
      %v5763 = vpop.f32.mrf.mxu0
      %v5764 = vadd.f32 0.0, %v5763
      %v5765 = vpop.f32.mrf.mxu0
      %v5766 = vadd.f32 0.0, %v5765
      %5767 = vmatmul.bf16.gmra.mxu0 %v5457
      %v5768 = vpop.f32.mrf.mxu0
      %v5769 = vadd.f32 0.0, %v5768
      %v5770 = vpop.f32.mrf.mxu0
      %v5771 = vadd.f32 0.0, %v5770
      %5772 = vdwg.mxu0
      %5773 = vmatpush.bf16.msra.mxu0 0
      %5774 = vmatpush.bf16.msra.mxu0 0
      %5775 = vmatpush.bf16.msra.mxu0 0
      %5776 = vmatpush.bf16.msra.mxu0 0
      %5777 = vmatpush.bf16.msra.mxu0 %v5661
      %5778 = vmatpush.bf16.msra.mxu0 %v5658
      %5779 = vmatpush.bf16.msra.mxu0 %v5655
      %5780 = vmatpush.bf16.msra.mxu0 %v5652
      %5781 = vmatmul.bf16.gmra.mxu0 %v5701
      %v5782 = vpop.f32.mrf.mxu0
      %v5783 = vadd.f32 %v5734, %v5782
      %v5784 = vpop.f32.mrf.mxu0
      %v5785 = vadd.f32 %v5736, %v5784
      %5786 = vmatmul.bf16.gmra.mxu0 %v5704
      %v5787 = vpop.f32.mrf.mxu0
      %v5788 = vadd.f32 %v5739, %v5787
      %v5789 = vpop.f32.mrf.mxu0
      %v5790 = vadd.f32 %v5741, %v5789
      %5791 = vmatmul.bf16.gmra.mxu0 %v5707
      %v5792 = vpop.f32.mrf.mxu0
      %v5793 = vadd.f32 %v5744, %v5792
      %v5794 = vpop.f32.mrf.mxu0
      %v5795 = vadd.f32 %v5746, %v5794
      %5796 = vmatmul.bf16.gmra.mxu0 %v5710
      %v5797 = vpop.f32.mrf.mxu0
      %v5798 = vadd.f32 %v5749, %v5797
      %v5799 = vpop.f32.mrf.mxu0
      %v5800 = vadd.f32 %v5751, %v5799
      %5801 = vmatmul.bf16.gmra.mxu0 %v5713
      %v5802 = vpop.f32.mrf.mxu0
      %v5803 = vadd.f32 %v5754, %v5802
      %v5804 = vpop.f32.mrf.mxu0
      %v5805 = vadd.f32 %v5756, %v5804
      %5806 = vmatmul.bf16.gmra.mxu0 %v5716
      %v5807 = vpop.f32.mrf.mxu0
      %v5808 = vadd.f32 %v5759, %v5807
      %v5809 = vpop.f32.mrf.mxu0
      %v5810 = vadd.f32 %v5761, %v5809
      %5811 = vmatmul.bf16.gmra.mxu0 %v5719
      %v5812 = vpop.f32.mrf.mxu0
      %v5813 = vadd.f32 %v5764, %v5812
      %v5814 = vpop.f32.mrf.mxu0
      %v5815 = vadd.f32 %v5766, %v5814
      %5816 = vmatmul.bf16.gmra.mxu0 %v5722
      %v5817 = vpop.f32.mrf.mxu0
      %v5818 = vadd.f32 %v5769, %v5817
      %v5819 = vpop.f32.mrf.mxu0
      %v5820 = vadd.f32 %v5771, %v5819
      %5821 = vdwg.mxu0
      %5822 = vmatpush.bf16.msra.mxu0 %v5650
      %5823 = vmatpush.bf16.msra.mxu0 %v5647
      %5824 = vmatpush.bf16.msra.mxu0 %v5644
      %5825 = vmatpush.bf16.msra.mxu0 %v5641
      %5826 = vmatpush.bf16.msra.mxu0 %v5638
      %5827 = vmatpush.bf16.msra.mxu0 %v5635
      %5828 = vmatpush.bf16.msra.mxu0 %v5632
      %5829 = vmatpush.bf16.msra.mxu0 %v5629
      %5830 = vmatmul.bf16.gmra.mxu0 %v5443
      %v5831 = vpop.f32.mrf.mxu0
      %v5832 = vadd.f32 0.0, %v5831
      %v5833 = vpop.f32.mrf.mxu0
      %v5834 = vadd.f32 0.0, %v5833
      %5835 = vmatmul.bf16.gmra.mxu0 %v5445
      %v5836 = vpop.f32.mrf.mxu0
      %v5837 = vadd.f32 0.0, %v5836
      %v5838 = vpop.f32.mrf.mxu0
      %v5839 = vadd.f32 0.0, %v5838
      %5840 = vmatmul.bf16.gmra.mxu0 %v5447
      %v5841 = vpop.f32.mrf.mxu0
      %v5842 = vadd.f32 0.0, %v5841
      %v5843 = vpop.f32.mrf.mxu0
      %v5844 = vadd.f32 0.0, %v5843
      %5845 = vmatmul.bf16.gmra.mxu0 %v5449
      %v5846 = vpop.f32.mrf.mxu0
      %v5847 = vadd.f32 0.0, %v5846
      %v5848 = vpop.f32.mrf.mxu0
      %v5849 = vadd.f32 0.0, %v5848
      %5850 = vmatmul.bf16.gmra.mxu0 %v5451
      %v5851 = vpop.f32.mrf.mxu0
      %v5852 = vadd.f32 0.0, %v5851
      %v5853 = vpop.f32.mrf.mxu0
      %v5854 = vadd.f32 0.0, %v5853
      %5855 = vmatmul.bf16.gmra.mxu0 %v5453
      %v5856 = vpop.f32.mrf.mxu0
      %v5857 = vadd.f32 0.0, %v5856
      %v5858 = vpop.f32.mrf.mxu0
      %v5859 = vadd.f32 0.0, %v5858
      %5860 = vmatmul.bf16.gmra.mxu0 %v5455
      %v5861 = vpop.f32.mrf.mxu0
      %v5862 = vadd.f32 0.0, %v5861
      %v5863 = vpop.f32.mrf.mxu0
      %v5864 = vadd.f32 0.0, %v5863
      %5865 = vmatmul.bf16.gmra.mxu0 %v5457
      %v5866 = vpop.f32.mrf.mxu0
      %v5867 = vadd.f32 0.0, %v5866
      %v5868 = vpop.f32.mrf.mxu0
      %v5869 = vadd.f32 0.0, %v5868
      %5870 = vdwg.mxu0
      %5871 = vmatpush.bf16.msra.mxu0 0
      %5872 = vmatpush.bf16.msra.mxu0 0
      %5873 = vmatpush.bf16.msra.mxu0 0
      %5874 = vmatpush.bf16.msra.mxu0 0
      %5875 = vmatpush.bf16.msra.mxu0 %v5662
      %5876 = vmatpush.bf16.msra.mxu0 %v5659
      %5877 = vmatpush.bf16.msra.mxu0 %v5656
      %5878 = vmatpush.bf16.msra.mxu0 %v5653
      %5879 = vmatmul.bf16.gmra.mxu0 %v5701
      %v5880 = vpop.f32.mrf.mxu0
      %v5881 = vadd.f32 %v5832, %v5880
      %v5882 = vpop.f32.mrf.mxu0
      %v5883 = vadd.f32 %v5834, %v5882
      %5884 = vmatmul.bf16.gmra.mxu0 %v5704
      %v5885 = vpop.f32.mrf.mxu0
      %v5886 = vadd.f32 %v5837, %v5885
      %v5887 = vpop.f32.mrf.mxu0
      %v5888 = vadd.f32 %v5839, %v5887
      %5889 = vmatmul.bf16.gmra.mxu0 %v5707
      %v5890 = vpop.f32.mrf.mxu0
      %v5891 = vadd.f32 %v5842, %v5890
      %v5892 = vpop.f32.mrf.mxu0
      %v5893 = vadd.f32 %v5844, %v5892
      %5894 = vmatmul.bf16.gmra.mxu0 %v5710
      %v5895 = vpop.f32.mrf.mxu0
      %v5896 = vadd.f32 %v5847, %v5895
      %v5897 = vpop.f32.mrf.mxu0
      %v5898 = vadd.f32 %v5849, %v5897
      %5899 = vmatmul.bf16.gmra.mxu0 %v5713
      %v5900 = vpop.f32.mrf.mxu0
      %v5901 = vadd.f32 %v5852, %v5900
      %v5902 = vpop.f32.mrf.mxu0
      %v5903 = vadd.f32 %v5854, %v5902
      %5904 = vmatmul.bf16.gmra.mxu0 %v5716
      %v5905 = vpop.f32.mrf.mxu0
      %v5906 = vadd.f32 %v5857, %v5905
      %v5907 = vpop.f32.mrf.mxu0
      %v5908 = vadd.f32 %v5859, %v5907
      %5909 = vmatmul.bf16.gmra.mxu0 %v5719
      %v5910 = vpop.f32.mrf.mxu0
      %v5911 = vadd.f32 %v5862, %v5910
      %v5912 = vpop.f32.mrf.mxu0
      %v5913 = vadd.f32 %v5864, %v5912
      %5914 = vmatmul.bf16.gmra.mxu0 %v5722
      %v5915 = vpop.f32.mrf.mxu0
      %v5916 = vadd.f32 %v5867, %v5915
      %v5917 = vpop.f32.mrf.mxu0
      %v5918 = vadd.f32 %v5869, %v5917
      %5919 = vdwg.mxu0
      %5920 = vmatpush.bf16.msra.mxu0 %v5651
      %5921 = vmatpush.bf16.msra.mxu0 %v5648
      %5922 = vmatpush.bf16.msra.mxu0 %v5645
      %5923 = vmatpush.bf16.msra.mxu0 %v5642
      %5924 = vmatpush.bf16.msra.mxu0 %v5639
      %5925 = vmatpush.bf16.msra.mxu0 %v5636
      %5926 = vmatpush.bf16.msra.mxu0 %v5633
      %5927 = vmatpush.bf16.msra.mxu0 %v5630
      %5928 = vmatmul.bf16.gmra.mxu0 %v5443
      %v5929 = vpop.f32.mrf.mxu0
      %v5930 = vadd.f32 0.0, %v5929
      %v5931 = vpop.f32.mrf.mxu0
      %v5932 = vadd.f32 0.0, %v5931
      %5933 = vmatmul.bf16.gmra.mxu0 %v5445
      %v5934 = vpop.f32.mrf.mxu0
      %v5935 = vadd.f32 0.0, %v5934
      %v5936 = vpop.f32.mrf.mxu0
      %v5937 = vadd.f32 0.0, %v5936
      %5938 = vmatmul.bf16.gmra.mxu0 %v5447
      %v5939 = vpop.f32.mrf.mxu0
      %v5940 = vadd.f32 0.0, %v5939
      %v5941 = vpop.f32.mrf.mxu0
      %v5942 = vadd.f32 0.0, %v5941
      %5943 = vmatmul.bf16.gmra.mxu0 %v5449
      %v5944 = vpop.f32.mrf.mxu0
      %v5945 = vadd.f32 0.0, %v5944
      %v5946 = vpop.f32.mrf.mxu0
      %v5947 = vadd.f32 0.0, %v5946
      %5948 = vmatmul.bf16.gmra.mxu0 %v5451
      %v5949 = vpop.f32.mrf.mxu0
      %v5950 = vadd.f32 0.0, %v5949
      %v5951 = vpop.f32.mrf.mxu0
      %v5952 = vadd.f32 0.0, %v5951
      %5953 = vmatmul.bf16.gmra.mxu0 %v5453
      %v5954 = vpop.f32.mrf.mxu0
      %v5955 = vadd.f32 0.0, %v5954
      %v5956 = vpop.f32.mrf.mxu0
      %v5957 = vadd.f32 0.0, %v5956
      %5958 = vmatmul.bf16.gmra.mxu0 %v5455
      %v5959 = vpop.f32.mrf.mxu0
      %v5960 = vadd.f32 0.0, %v5959
      %v5961 = vpop.f32.mrf.mxu0
      %v5962 = vadd.f32 0.0, %v5961
      %5963 = vmatmul.bf16.gmra.mxu0 %v5457
      %v5964 = vpop.f32.mrf.mxu0
      %v5965 = vadd.f32 0.0, %v5964
      %v5966 = vpop.f32.mrf.mxu0
      %v5967 = vadd.f32 0.0, %v5966
      %5968 = vdwg.mxu0
      %5969 = vmatpush.bf16.msra.mxu0 0
      %5970 = vmatpush.bf16.msra.mxu0 0
      %5971 = vmatpush.bf16.msra.mxu0 0
      %5972 = vmatpush.bf16.msra.mxu0 0
      %5973 = vmatpush.bf16.msra.mxu0 %v5663
      %5974 = vmatpush.bf16.msra.mxu0 %v5660
      %5975 = vmatpush.bf16.msra.mxu0 %v5657
      %5976 = vmatpush.bf16.msra.mxu0 %v5654
      %5977 = vmatmul.bf16.gmra.mxu0 %v5701
      %v5978 = vpop.f32.mrf.mxu0
      %v5979 = vadd.f32 %v5930, %v5978
      %v5980 = vpop.f32.mrf.mxu0
      %v5981 = vadd.f32 %v5932, %v5980
      %5982 = vmatmul.bf16.gmra.mxu0 %v5704
      %v5983 = vpop.f32.mrf.mxu0
      %v5984 = vadd.f32 %v5935, %v5983
      %v5985 = vpop.f32.mrf.mxu0
      %v5986 = vadd.f32 %v5937, %v5985
      %5987 = vmatmul.bf16.gmra.mxu0 %v5707
      %v5988 = vpop.f32.mrf.mxu0
      %v5989 = vadd.f32 %v5940, %v5988
      %v5990 = vpop.f32.mrf.mxu0
      %v5991 = vadd.f32 %v5942, %v5990
      %5992 = vmatmul.bf16.gmra.mxu0 %v5710
      %v5993 = vpop.f32.mrf.mxu0
      %v5994 = vadd.f32 %v5945, %v5993
      %v5995 = vpop.f32.mrf.mxu0
      %v5996 = vadd.f32 %v5947, %v5995
      %5997 = vmatmul.bf16.gmra.mxu0 %v5713
      %v5998 = vpop.f32.mrf.mxu0
      %v5999 = vadd.f32 %v5950, %v5998
      %v6000 = vpop.f32.mrf.mxu0
      %v6001 = vadd.f32 %v5952, %v6000
      %6002 = vmatmul.bf16.gmra.mxu0 %v5716
      %v6003 = vpop.f32.mrf.mxu0
      %v6004 = vadd.f32 %v5955, %v6003
      %v6005 = vpop.f32.mrf.mxu0
      %v6006 = vadd.f32 %v5957, %v6005
      %6007 = vmatmul.bf16.gmra.mxu0 %v5719
      %v6008 = vpop.f32.mrf.mxu0
      %v6009 = vadd.f32 %v5960, %v6008
      %v6010 = vpop.f32.mrf.mxu0
      %v6011 = vadd.f32 %v5962, %v6010
      %6012 = vmatmul.bf16.gmra.mxu0 %v5722
      %v6013 = vpop.f32.mrf.mxu0
      %v6014 = vadd.f32 %v5965, %v6013
      %v6015 = vpop.f32.mrf.mxu0
      %v6016 = vadd.f32 %v5967, %v6015
      %6017 = vdwg.mxu0
      %v6018 = vadd.f32 %v5266, %v5783
      %v6019 = vadd.f32 %v5267, %v5881
      %v6020 = vadd.f32 %v5268, %v5979
      %v6021 = vadd.f32 %v5269, %v5785
      %v6022 = vadd.f32 %v5270, %v5883
      %v6023 = vadd.f32 %v5271, %v5981
      %v6024 = vadd.f32 %v5272, %v5788
      %v6025 = vadd.f32 %v5273, %v5886
      %v6026 = vadd.f32 %v5274, %v5984
      %v6027 = vadd.f32 %v5275, %v5790
      %v6028 = vadd.f32 %v5276, %v5888
      %v6029 = vadd.f32 %v5277, %v5986
      %v6030 = vadd.f32 %v5278, %v5793
      %v6031 = vadd.f32 %v5279, %v5891
      %v6032 = vadd.f32 %v5280, %v5989
      %v6033 = vadd.f32 %v5281, %v5795
      %v6034 = vadd.f32 %v5282, %v5893
      %v6035 = vadd.f32 %v5283, %v5991
      %v6036 = vadd.f32 %v5284, %v5798
      %v6037 = vadd.f32 %v5285, %v5896
      %v6038 = vadd.f32 %v5286, %v5994
      %v6039 = vadd.f32 %v5287, %v5800
      %v6040 = vadd.f32 %v5288, %v5898
      %v6041 = vadd.f32 %v5289, %v5996
      %v6042 = vadd.f32 %v5290, %v5803
      %v6043 = vadd.f32 %v5291, %v5901
      %v6044 = vadd.f32 %v5292, %v5999
      %v6045 = vadd.f32 %v5293, %v5805
      %v6046 = vadd.f32 %v5294, %v5903
      %v6047 = vadd.f32 %v5295, %v6001
      %v6048 = vadd.f32 %v5296, %v5808
      %v6049 = vadd.f32 %v5297, %v5906
      %v6050 = vadd.f32 %v5298, %v6004
      %v6051 = vadd.f32 %v5299, %v5810
      %v6052 = vadd.f32 %v5300, %v5908
      %v6053 = vadd.f32 %v5301, %v6006
      %v6054 = vadd.f32 %v5302, %v5813
      %v6055 = vadd.f32 %v5303, %v5911
      %v6056 = vadd.f32 %v5304, %v6009
      %v6057 = vadd.f32 %v5305, %v5815
      %v6058 = vadd.f32 %v5306, %v5913
      %v6059 = vadd.f32 %v5307, %v6011
      %v6060 = vadd.f32 %v5308, %v5818
      %v6061 = vadd.f32 %v5309, %v5916
      %v6062 = vadd.f32 %v5310, %v6014
      %v6063 = vadd.f32 %v5311, %v5820
      %v6064 = vadd.f32 %v5312, %v5918
      %v6065 = vadd.f32 %v5313, %v6016
      %v6066 = vmax.f32 %v6018, 0.0
      %v6067 = vmax.f32 %v6019, 0.0
      %v6068 = vmax.f32 %v6020, 0.0
      %v6069 = vmax.f32 %v6021, 0.0
      %v6070 = vmax.f32 %v6022, 0.0
      %v6071 = vmax.f32 %v6023, 0.0
      %v6072 = vmax.f32 %v6024, 0.0
      %v6073 = vmax.f32 %v6025, 0.0
      %v6074 = vmax.f32 %v6026, 0.0
      %v6075 = vmax.f32 %v6027, 0.0
      %v6076 = vmax.f32 %v6028, 0.0
      %v6077 = vmax.f32 %v6029, 0.0
      %v6078 = vmax.f32 %v6030, 0.0
      %v6079 = vmax.f32 %v6031, 0.0
      %v6080 = vmax.f32 %v6032, 0.0
      %v6081 = vmax.f32 %v6033, 0.0
      %v6082 = vmax.f32 %v6034, 0.0
      %v6083 = vmax.f32 %v6035, 0.0
      %v6084 = vmax.f32 %v6036, 0.0
      %v6085 = vmax.f32 %v6037, 0.0
      %v6086 = vmax.f32 %v6038, 0.0
      %v6087 = vmax.f32 %v6039, 0.0
      %v6088 = vmax.f32 %v6040, 0.0
      %v6089 = vmax.f32 %v6041, 0.0
      %v6090 = vmax.f32 %v6042, 0.0
      %v6091 = vmax.f32 %v6043, 0.0
      %v6092 = vmax.f32 %v6044, 0.0
      %v6093 = vmax.f32 %v6045, 0.0
      %v6094 = vmax.f32 %v6046, 0.0
      %v6095 = vmax.f32 %v6047, 0.0
      %v6096 = vmax.f32 %v6048, 0.0
      %v6097 = vmax.f32 %v6049, 0.0
      %v6098 = vmax.f32 %v6050, 0.0
      %v6099 = vmax.f32 %v6051, 0.0
      %v6100 = vmax.f32 %v6052, 0.0
      %v6101 = vmax.f32 %v6053, 0.0
      %v6102 = vmax.f32 %v6054, 0.0
      %v6103 = vmax.f32 %v6055, 0.0
      %v6104 = vmax.f32 %v6056, 0.0
      %v6105 = vmax.f32 %v6057, 0.0
      %v6106 = vmax.f32 %v6058, 0.0
      %v6107 = vmax.f32 %v6059, 0.0
      %v6108 = vmax.f32 %v6060, 0.0
      %v6109 = vmax.f32 %v6061, 0.0
      %v6110 = vmax.f32 %v6062, 0.0
      %v6111 = vmax.f32 %v6063, 0.0
      %v6112 = vmax.f32 %v6064, 0.0
      %v6113 = vmax.f32 %v6065, 0.0
      %v6114 = vmul.f32 %v6066, %v831
      %v6115 = vmul.f32 %v6067, %v831
      %v6116 = vmul.f32 %v6068, %v831
      %v6117 = vmul.f32 %v6069, %v832
      %v6118 = vmul.f32 %v6070, %v832
      %v6119 = vmul.f32 %v6071, %v832
      %v6120 = vmul.f32 %v6072, %v833
      %v6121 = vmul.f32 %v6073, %v833
      %v6122 = vmul.f32 %v6074, %v833
      %v6123 = vmul.f32 %v6075, %v834
      %v6124 = vmul.f32 %v6076, %v834
      %v6125 = vmul.f32 %v6077, %v834
      %v6126 = vmul.f32 %v6078, %v835
      %v6127 = vmul.f32 %v6079, %v835
      %v6128 = vmul.f32 %v6080, %v835
      %v6129 = vmul.f32 %v6081, %v836
      %v6130 = vmul.f32 %v6082, %v836
      %v6131 = vmul.f32 %v6083, %v836
      %v6132 = vmul.f32 %v6084, %v837
      %v6133 = vmul.f32 %v6085, %v837
      %v6134 = vmul.f32 %v6086, %v837
      %v6135 = vmul.f32 %v6087, %v838
      %v6136 = vmul.f32 %v6088, %v838
      %v6137 = vmul.f32 %v6089, %v838
      %v6138 = vmul.f32 %v6090, %v839
      %v6139 = vmul.f32 %v6091, %v839
      %v6140 = vmul.f32 %v6092, %v839
      %v6141 = vmul.f32 %v6093, %v840
      %v6142 = vmul.f32 %v6094, %v840
      %v6143 = vmul.f32 %v6095, %v840
      %v6144 = vmul.f32 %v6096, %v841
      %v6145 = vmul.f32 %v6097, %v841
      %v6146 = vmul.f32 %v6098, %v841
      %v6147 = vmul.f32 %v6099, %v842
      %v6148 = vmul.f32 %v6100, %v842
      %v6149 = vmul.f32 %v6101, %v842
      %v6150 = vmul.f32 %v6102, %v843
      %v6151 = vmul.f32 %v6103, %v843
      %v6152 = vmul.f32 %v6104, %v843
      %v6153 = vmul.f32 %v6105, %v844
      %v6154 = vmul.f32 %v6106, %v844
      %v6155 = vmul.f32 %v6107, %v844
      %v6156 = vmul.f32 %v6108, %v845
      %v6157 = vmul.f32 %v6109, %v845
      %v6158 = vmul.f32 %v6110, %v845
      %v6159 = vmul.f32 %v6111, %v846
      %v6160 = vmul.f32 %v6112, %v846
      %v6161 = vmul.f32 %v6113, %v846
      %v6162 = vld [vmem:[%s664] sm:$0x3]
      %v6164 = vperm.slane %v6162, 0
      %v6165 = vperm.slane %v6162, 1
      %v6168 = vadd.f32 %v6164, 0.0
      %v6169 = vadd.f32 %v6165, 0.0
      %v6170 = vrot.slane %v6114, 7
      %v6171 = vrot.slane %v6115, 7
      %v6172 = vrot.slane %v6116, 7
      %v6173 = vrot.slane %v6117, 7
      %v6174 = vrot.slane %v6118, 7
      %v6175 = vrot.slane %v6119, 7
      %v6176 = vrot.slane %v6120, 7
      %v6177 = vrot.slane %v6121, 7
      %v6178 = vrot.slane %v6122, 7
      %v6179 = vrot.slane %v6123, 7
      %v6180 = vrot.slane %v6124, 7
      %v6181 = vrot.slane %v6125, 7
      %v6182 = vrot.slane %v6126, 7
      %v6183 = vrot.slane %v6127, 7
      %v6184 = vrot.slane %v6128, 7
      %v6185 = vrot.slane %v6129, 7
      %v6186 = vrot.slane %v6130, 7
      %v6187 = vrot.slane %v6131, 7
      %v6188 = vrot.slane %v6132, 7
      %v6189 = vrot.slane %v6133, 7
      %v6190 = vrot.slane %v6134, 7
      %v6191 = vrot.slane %v6135, 7
      %v6192 = vrot.slane %v6136, 7
      %v6193 = vrot.slane %v6137, 7
      %v6194 = vrot.slane %v6138, 7
      %v6195 = vrot.slane %v6139, 7
      %v6196 = vrot.slane %v6140, 7
      %v6197 = vrot.slane %v6141, 7
      %v6198 = vrot.slane %v6142, 7
      %v6199 = vrot.slane %v6143, 7
      %v6200 = vrot.slane %v6144, 7
      %v6201 = vrot.slane %v6145, 7
      %v6202 = vrot.slane %v6146, 7
      %v6203 = vrot.slane %v6147, 7
      %v6204 = vrot.slane %v6148, 7
      %v6205 = vrot.slane %v6149, 7
      %v6206 = vrot.slane %v6150, 7
      %v6207 = vrot.slane %v6151, 7
      %v6208 = vrot.slane %v6152, 7
      %v6209 = vrot.slane %v6153, 7
      %v6210 = vrot.slane %v6154, 7
      %v6211 = vrot.slane %v6155, 7
      %v6212 = vrot.slane %v6156, 7
      %v6213 = vrot.slane %v6157, 7
      %v6214 = vrot.slane %v6158, 7
      %v6215 = vrot.slane %v6159, 7
      %v6216 = vrot.slane %v6160, 7
      %v6217 = vrot.slane %v6161, 7
      %v6218 = vsel %vm3972, %v6212, %v6215
      %v6219 = vsel %vm3972, %v6213, %v6216
      %v6220 = vsel %vm3972, %v6214, %v6217
      %v6221 = vsel %vm3972, %v6209, %v6212
      %v6222 = vsel %vm3972, %v6210, %v6213
      %v6223 = vsel %vm3972, %v6211, %v6214
      %v6224 = vsel %vm3972, %v6206, %v6209
      %v6225 = vsel %vm3972, %v6207, %v6210
      %v6226 = vsel %vm3972, %v6208, %v6211
      %v6227 = vsel %vm3972, %v6203, %v6206
      %v6228 = vsel %vm3972, %v6204, %v6207
      %v6229 = vsel %vm3972, %v6205, %v6208
      %v6230 = vsel %vm3972, %v6200, %v6203
      %v6231 = vsel %vm3972, %v6201, %v6204
      %v6232 = vsel %vm3972, %v6202, %v6205
      %v6233 = vsel %vm3972, %v6197, %v6200
      %v6234 = vsel %vm3972, %v6198, %v6201
      %v6235 = vsel %vm3972, %v6199, %v6202
      %v6236 = vsel %vm3972, %v6194, %v6197
      %v6237 = vsel %vm3972, %v6195, %v6198
      %v6238 = vsel %vm3972, %v6196, %v6199
      %v6239 = vsel %vm3972, %v6191, %v6194
      %v6240 = vsel %vm3972, %v6192, %v6195
      %v6241 = vsel %vm3972, %v6193, %v6196
      %v6242 = vsel %vm3972, %v6188, %v6191
      %v6243 = vsel %vm3972, %v6189, %v6192
      %v6244 = vsel %vm3972, %v6190, %v6193
      %v6245 = vsel %vm3972, %v6185, %v6188
      %v6246 = vsel %vm3972, %v6186, %v6189
      %v6247 = vsel %vm3972, %v6187, %v6190
      %v6248 = vsel %vm3972, %v6182, %v6185
      %v6249 = vsel %vm3972, %v6183, %v6186
      %v6250 = vsel %vm3972, %v6184, %v6187
      %v6251 = vsel %vm3972, %v6179, %v6182
      %v6252 = vsel %vm3972, %v6180, %v6183
      %v6253 = vsel %vm3972, %v6181, %v6184
      %v6254 = vsel %vm3972, %v6176, %v6179
      %v6255 = vsel %vm3972, %v6177, %v6180
      %v6256 = vsel %vm3972, %v6178, %v6181
      %v6257 = vsel %vm3972, %v6173, %v6176
      %v6258 = vsel %vm3972, %v6174, %v6177
      %v6259 = vsel %vm3972, %v6175, %v6178
      %v6260 = vsel %vm3972, %v6170, %v6173
      %v6261 = vsel %vm3972, %v6171, %v6174
      %v6262 = vsel %vm3972, %v6172, %v6175
      %v6263 = vsel %vm3972, %v6215, %v6170
      %v6264 = vsel %vm3972, %v6216, %v6171
      %v6265 = vsel %vm3972, %v6217, %v6172
      %v6266 = vsel %vm4021, %v6263, 0.0
      %v6267 = vsel %vm4021, %v6264, 0.0
      %v6268 = vsel %vm4021, %v6265, 0.0
      %v6269 = vsel %vm4022, %v6260, 0.0
      %v6270 = vsel %vm4022, %v6261, 0.0
      %v6271 = vsel %vm4022, %v6262, 0.0
      %v6272 = vsel %vm4023, %v6257, 0.0
      %v6273 = vsel %vm4023, %v6258, 0.0
      %v6274 = vsel %vm4023, %v6259, 0.0
      %v6275 = vsel %vm4024, %v6254, 0.0
      %v6276 = vsel %vm4024, %v6255, 0.0
      %v6277 = vsel %vm4024, %v6256, 0.0
      %v6278 = vsel %vm4025, %v6251, 0.0
      %v6279 = vsel %vm4025, %v6252, 0.0
      %v6280 = vsel %vm4025, %v6253, 0.0
      %v6281 = vsel %vm4026, %v6248, 0.0
      %v6282 = vsel %vm4026, %v6249, 0.0
      %v6283 = vsel %vm4026, %v6250, 0.0
      %v6284 = vsel %vm4027, %v6245, 0.0
      %v6285 = vsel %vm4027, %v6246, 0.0
      %v6286 = vsel %vm4027, %v6247, 0.0
      %v6287 = vsel %vm4028, %v6242, 0.0
      %v6288 = vsel %vm4028, %v6243, 0.0
      %v6289 = vsel %vm4028, %v6244, 0.0
      %v6290 = vsel %vm4029, %v6239, 0.0
      %v6291 = vsel %vm4029, %v6240, 0.0
      %v6292 = vsel %vm4029, %v6241, 0.0
      %v6293 = vsel %vm4030, %v6236, 0.0
      %v6294 = vsel %vm4030, %v6237, 0.0
      %v6295 = vsel %vm4030, %v6238, 0.0
      %v6296 = vsel %vm4031, %v6233, 0.0
      %v6297 = vsel %vm4031, %v6234, 0.0
      %v6298 = vsel %vm4031, %v6235, 0.0
      %v6299 = vsel %vm4032, %v6230, 0.0
      %v6300 = vsel %vm4032, %v6231, 0.0
      %v6301 = vsel %vm4032, %v6232, 0.0
      %v6302 = vsel %vm4033, %v6227, 0.0
      %v6303 = vsel %vm4033, %v6228, 0.0
      %v6304 = vsel %vm4033, %v6229, 0.0
      %v6305 = vsel %vm4034, %v6224, 0.0
      %v6306 = vsel %vm4034, %v6225, 0.0
      %v6307 = vsel %vm4034, %v6226, 0.0
      %v6308 = vsel %vm4035, %v6221, 0.0
      %v6309 = vsel %vm4035, %v6222, 0.0
      %v6310 = vsel %vm4035, %v6223, 0.0
      %v6311 = vsel %vm4036, %v6218, 0.0
      %v6312 = vsel %vm4036, %v6219, 0.0
      %v6313 = vsel %vm4036, %v6220, 0.0
      %v6314 = vpack.c.bf16 %v6269, %v6266
      %v6315 = vpack.c.bf16 %v6270, %v6267
      %v6316 = vpack.c.bf16 %v6271, %v6268
      %v6317 = vpack.c.bf16 %v6275, %v6272
      %v6318 = vpack.c.bf16 %v6276, %v6273
      %v6319 = vpack.c.bf16 %v6277, %v6274
      %v6320 = vpack.c.bf16 %v6281, %v6278
      %v6321 = vpack.c.bf16 %v6282, %v6279
      %v6322 = vpack.c.bf16 %v6283, %v6280
      %v6323 = vpack.c.bf16 %v6287, %v6284
      %v6324 = vpack.c.bf16 %v6288, %v6285
      %v6325 = vpack.c.bf16 %v6289, %v6286
      %v6326 = vpack.c.bf16 %v6293, %v6290
      %v6327 = vpack.c.bf16 %v6294, %v6291
      %v6328 = vpack.c.bf16 %v6295, %v6292
      %v6329 = vpack.c.bf16 %v6299, %v6296
      %v6330 = vpack.c.bf16 %v6300, %v6297
      %v6331 = vpack.c.bf16 %v6301, %v6298
      %v6332 = vpack.c.bf16 %v6305, %v6302
      %v6333 = vpack.c.bf16 %v6306, %v6303
      %v6334 = vpack.c.bf16 %v6307, %v6304
      %v6335 = vpack.c.bf16 %v6311, %v6308
      %v6336 = vpack.c.bf16 %v6312, %v6309
      %v6337 = vpack.c.bf16 %v6313, %v6310
      %v6338 = vld [vmem:[%s660] sm:$0xff]
      %v6339 = vld [vmem:[%s660 + $0x8] sm:$0xff]
      %v6340 = vld [vmem:[%s660 + $0x10] sm:$0xff]
      %v6341 = vld [vmem:[%s660 + $0x18] sm:$0xff]
      %v6342 = vld [vmem:[%s660 + $0x20] sm:$0xff]
      %v6343 = vld [vmem:[%s660 + $0x28] sm:$0xff]
      %v6344 = vld [vmem:[%s660 + $0x30] sm:$0xff]
      %v6345 = vld [vmem:[%s660 + $0x38] sm:$0xff]
      %v6346 = vld [vmem:[%s660 + $0x40] sm:$0xff]
      %v6347 = vld [vmem:[%s660 + $0x48] sm:$0xff]
      %v6348 = vld [vmem:[%s660 + $0x50] sm:$0xff]
      %v6349 = vld [vmem:[%s660 + $0x58] sm:$0xff]
      %v6350 = vld [vmem:[%s660 + $0x60] sm:$0xff]
      %v6351 = vld [vmem:[%s660 + $0x68] sm:$0xff]
      %v6352 = vld [vmem:[%s660 + $0x70] sm:$0xff]
      %v6353 = vld [vmem:[%s660 + $0x78] sm:$0xff]
      %v6354 = vld [vmem:[%s660 + $0x80] sm:$0xff]
      %v6355 = vld [vmem:[%s660 + $0x88] sm:$0xff]
      %v6356 = vld [vmem:[%s660 + $0x90] sm:$0xff]
      %v6357 = vld [vmem:[%s660 + $0x98] sm:$0xff]
      %v6358 = vld [vmem:[%s660 + $0xa0] sm:$0xff]
      %v6359 = vld [vmem:[%s660 + $0xa8] sm:$0xff]
      %v6360 = vld [vmem:[%s660 + $0xb0] sm:$0xff]
      %v6361 = vld [vmem:[%s660 + $0xb8] sm:$0xff]
      %v6362 = vld [vmem:[%s660 + $0xc0] sm:$0xff]
      %v6363 = vld [vmem:[%s660 + $0xc8] sm:$0xff]
      %v6364 = vld [vmem:[%s660 + $0xd0] sm:$0xff]
      %v6365 = vld [vmem:[%s660 + $0xd8] sm:$0xff]
      %v6366 = vld [vmem:[%s660 + $0xe0] sm:$0xff]
      %v6367 = vld [vmem:[%s660 + $0xe8] sm:$0xff]
      %v6368 = vld [vmem:[%s660 + $0xf0] sm:$0xff]
      %v6369 = vld [vmem:[%s660 + $0xf8] sm:$0xff]
      %v6370 = vld [vmem:[%s660 + $0x100] sm:$0xff]
      %v6371 = vld [vmem:[%s660 + $0x108] sm:$0xff]
      %v6372 = vld [vmem:[%s660 + $0x110] sm:$0xff]
      %v6373 = vld [vmem:[%s660 + $0x118] sm:$0xff]
      %v6374 = vld [vmem:[%s660 + $0x120] sm:$0xff]
      %v6375 = vld [vmem:[%s660 + $0x128] sm:$0xff]
      %v6376 = vld [vmem:[%s660 + $0x130] sm:$0xff]
      %v6377 = vld [vmem:[%s660 + $0x138] sm:$0xff]
      %v6378 = vld [vmem:[%s660 + $0x140] sm:$0xff]
      %v6379 = vld [vmem:[%s660 + $0x148] sm:$0xff]
      %v6380 = vld [vmem:[%s660 + $0x150] sm:$0xff]
      %v6381 = vld [vmem:[%s660 + $0x158] sm:$0xff]
      %v6382 = vld [vmem:[%s660 + $0x160] sm:$0xff]
      %v6383 = vld [vmem:[%s660 + $0x168] sm:$0xff]
      %v6384 = vld [vmem:[%s660 + $0x170] sm:$0xff]
      %v6385 = vld [vmem:[%s660 + $0x178] sm:$0xff]
      %v6434 = vunpack.c.l.b16 %v6338
      %v6435 = vunpack.c.h.b16 %v6338
      %v6436 = vunpack.c.l.b16 %v6339
      %v6437 = vunpack.c.h.b16 %v6339
      %v6438 = vunpack.c.l.b16 %v6340
      %v6439 = vunpack.c.h.b16 %v6340
      %v6440 = vunpack.c.l.b16 %v6341
      %v6441 = vunpack.c.h.b16 %v6341
      %v6442 = vunpack.c.l.b16 %v6342
      %v6443 = vunpack.c.h.b16 %v6342
      %v6444 = vunpack.c.l.b16 %v6343
      %v6445 = vunpack.c.h.b16 %v6343
      %v6446 = vunpack.c.l.b16 %v6344
      %v6447 = vunpack.c.h.b16 %v6344
      %v6448 = vunpack.c.l.b16 %v6345
      %v6449 = vunpack.c.h.b16 %v6345
      %v6450 = vunpack.c.l.b16 %v6346
      %v6451 = vunpack.c.h.b16 %v6346
      %v6452 = vunpack.c.l.b16 %v6347
      %v6453 = vunpack.c.h.b16 %v6347
      %v6454 = vunpack.c.l.b16 %v6348
      %v6455 = vunpack.c.h.b16 %v6348
      %v6456 = vunpack.c.l.b16 %v6349
      %v6457 = vunpack.c.h.b16 %v6349
      %v6458 = vunpack.c.l.b16 %v6350
      %v6459 = vunpack.c.h.b16 %v6350
      %v6460 = vunpack.c.l.b16 %v6351
      %v6461 = vunpack.c.h.b16 %v6351
      %v6462 = vunpack.c.l.b16 %v6352
      %v6463 = vunpack.c.h.b16 %v6352
      %v6464 = vunpack.c.l.b16 %v6353
      %v6465 = vunpack.c.h.b16 %v6353
      %v6466 = vunpack.c.l.b16 %v6354
      %v6467 = vunpack.c.h.b16 %v6354
      %v6468 = vunpack.c.l.b16 %v6355
      %v6469 = vunpack.c.h.b16 %v6355
      %v6470 = vunpack.c.l.b16 %v6356
      %v6471 = vunpack.c.h.b16 %v6356
      %v6472 = vunpack.c.l.b16 %v6357
      %v6473 = vunpack.c.h.b16 %v6357
      %v6474 = vunpack.c.l.b16 %v6358
      %v6475 = vunpack.c.h.b16 %v6358
      %v6476 = vunpack.c.l.b16 %v6359
      %v6477 = vunpack.c.h.b16 %v6359
      %v6478 = vunpack.c.l.b16 %v6360
      %v6479 = vunpack.c.h.b16 %v6360
      %v6480 = vunpack.c.l.b16 %v6361
      %v6481 = vunpack.c.h.b16 %v6361
      %v6482 = vunpack.c.l.b16 %v6362
      %v6483 = vunpack.c.h.b16 %v6362
      %v6484 = vunpack.c.l.b16 %v6363
      %v6485 = vunpack.c.h.b16 %v6363
      %v6486 = vunpack.c.l.b16 %v6364
      %v6487 = vunpack.c.h.b16 %v6364
      %v6488 = vunpack.c.l.b16 %v6365
      %v6489 = vunpack.c.h.b16 %v6365
      %v6490 = vunpack.c.l.b16 %v6366
      %v6491 = vunpack.c.h.b16 %v6366
      %v6492 = vunpack.c.l.b16 %v6367
      %v6493 = vunpack.c.h.b16 %v6367
      %v6494 = vunpack.c.l.b16 %v6368
      %v6495 = vunpack.c.h.b16 %v6368
      %v6496 = vunpack.c.l.b16 %v6369
      %v6497 = vunpack.c.h.b16 %v6369
      %v6498 = vunpack.c.l.b16 %v6370
      %v6499 = vunpack.c.h.b16 %v6370
      %v6500 = vunpack.c.l.b16 %v6371
      %v6501 = vunpack.c.h.b16 %v6371
      %v6502 = vunpack.c.l.b16 %v6372
      %v6503 = vunpack.c.h.b16 %v6372
      %v6504 = vunpack.c.l.b16 %v6373
      %v6505 = vunpack.c.h.b16 %v6373
      %v6506 = vunpack.c.l.b16 %v6374
      %v6507 = vunpack.c.h.b16 %v6374
      %v6508 = vunpack.c.l.b16 %v6375
      %v6509 = vunpack.c.h.b16 %v6375
      %v6510 = vunpack.c.l.b16 %v6376
      %v6511 = vunpack.c.h.b16 %v6376
      %v6512 = vunpack.c.l.b16 %v6377
      %v6513 = vunpack.c.h.b16 %v6377
      %v6514 = vunpack.c.l.b16 %v6378
      %v6515 = vunpack.c.h.b16 %v6378
      %v6516 = vunpack.c.l.b16 %v6379
      %v6517 = vunpack.c.h.b16 %v6379
      %v6518 = vunpack.c.l.b16 %v6380
      %v6519 = vunpack.c.h.b16 %v6380
      %v6520 = vunpack.c.l.b16 %v6381
      %v6521 = vunpack.c.h.b16 %v6381
      %v6522 = vunpack.c.l.b16 %v6382
      %v6523 = vunpack.c.h.b16 %v6382
      %v6524 = vunpack.c.l.b16 %v6383
      %v6525 = vunpack.c.h.b16 %v6383
      %v6526 = vunpack.c.l.b16 %v6384
      %v6527 = vunpack.c.h.b16 %v6384
      %v6528 = vunpack.c.l.b16 %v6385
      %v6529 = vunpack.c.h.b16 %v6385
      %v6530 = vpack.c.b16 %v6436, %v6434
      %v6531 = vpack.c.b16 %v6437, %v6435
      %v6532 = vpack.c.b16 %v6440, %v6438
      %v6533 = vpack.c.b16 %v6441, %v6439
      %v6534 = vpack.c.b16 %v6444, %v6442
      %v6535 = vpack.c.b16 %v6445, %v6443
      %v6536 = vpack.c.b16 %v6448, %v6446
      %v6537 = vpack.c.b16 %v6449, %v6447
      %v6538 = vpack.c.b16 %v6452, %v6450
      %v6539 = vpack.c.b16 %v6453, %v6451
      %v6540 = vpack.c.b16 %v6456, %v6454
      %v6541 = vpack.c.b16 %v6457, %v6455
      %v6542 = vpack.c.b16 %v6460, %v6458
      %v6543 = vpack.c.b16 %v6461, %v6459
      %v6544 = vpack.c.b16 %v6464, %v6462
      %v6545 = vpack.c.b16 %v6465, %v6463
      %v6546 = vpack.c.b16 %v6468, %v6466
      %v6547 = vpack.c.b16 %v6469, %v6467
      %v6548 = vpack.c.b16 %v6472, %v6470
      %v6549 = vpack.c.b16 %v6473, %v6471
      %v6550 = vpack.c.b16 %v6476, %v6474
      %v6551 = vpack.c.b16 %v6477, %v6475
      %v6552 = vpack.c.b16 %v6480, %v6478
      %v6553 = vpack.c.b16 %v6481, %v6479
      %v6554 = vpack.c.b16 %v6484, %v6482
      %v6555 = vpack.c.b16 %v6485, %v6483
      %v6556 = vpack.c.b16 %v6488, %v6486
      %v6557 = vpack.c.b16 %v6489, %v6487
      %v6558 = vpack.c.b16 %v6492, %v6490
      %v6559 = vpack.c.b16 %v6493, %v6491
      %v6560 = vpack.c.b16 %v6496, %v6494
      %v6561 = vpack.c.b16 %v6497, %v6495
      %v6562 = vpack.c.b16 %v6500, %v6498
      %v6563 = vpack.c.b16 %v6501, %v6499
      %v6564 = vpack.c.b16 %v6504, %v6502
      %v6565 = vpack.c.b16 %v6505, %v6503
      %v6566 = vpack.c.b16 %v6508, %v6506
      %v6567 = vpack.c.b16 %v6509, %v6507
      %v6568 = vpack.c.b16 %v6512, %v6510
      %v6569 = vpack.c.b16 %v6513, %v6511
      %v6570 = vpack.c.b16 %v6516, %v6514
      %v6571 = vpack.c.b16 %v6517, %v6515
      %v6572 = vpack.c.b16 %v6520, %v6518
      %v6573 = vpack.c.b16 %v6521, %v6519
      %v6574 = vpack.c.b16 %v6524, %v6522
      %v6575 = vpack.c.b16 %v6525, %v6523
      %v6576 = vpack.c.b16 %v6528, %v6526
      %v6577 = vpack.c.b16 %v6529, %v6527
      %6626 = vmatpush.bf16.msra.mxu0 %v6544
      %6627 = vmatpush.bf16.msra.mxu0 %v6542
      %6628 = vmatpush.bf16.msra.mxu0 %v6540
      %6629 = vmatpush.bf16.msra.mxu0 %v6538
      %6630 = vmatpush.bf16.msra.mxu0 %v6536
      %6631 = vmatpush.bf16.msra.mxu0 %v6534
      %6632 = vmatpush.bf16.msra.mxu0 %v6532
      %6633 = vmatpush.bf16.msra.mxu0 %v6530
      %6634 = vmatmul.bf16.gmra.mxu0 %v6314
      %v6635 = vpop.f32.mrf.mxu0
      %v6636 = vadd.f32 0.0, %v6635
      %v6637 = vpop.f32.mrf.mxu0
      %v6638 = vadd.f32 0.0, %v6637
      %6639 = vmatmul.bf16.gmra.mxu0 %v6317
      %v6640 = vpop.f32.mrf.mxu0
      %v6641 = vadd.f32 0.0, %v6640
      %v6642 = vpop.f32.mrf.mxu0
      %v6643 = vadd.f32 0.0, %v6642
      %6644 = vmatmul.bf16.gmra.mxu0 %v6320
      %v6645 = vpop.f32.mrf.mxu0
      %v6646 = vadd.f32 0.0, %v6645
      %v6647 = vpop.f32.mrf.mxu0
      %v6648 = vadd.f32 0.0, %v6647
      %6649 = vmatmul.bf16.gmra.mxu0 %v6323
      %v6650 = vpop.f32.mrf.mxu0
      %v6651 = vadd.f32 0.0, %v6650
      %v6652 = vpop.f32.mrf.mxu0
      %v6653 = vadd.f32 0.0, %v6652
      %6654 = vmatmul.bf16.gmra.mxu0 %v6326
      %v6655 = vpop.f32.mrf.mxu0
      %v6656 = vadd.f32 0.0, %v6655
      %v6657 = vpop.f32.mrf.mxu0
      %v6658 = vadd.f32 0.0, %v6657
      %6659 = vmatmul.bf16.gmra.mxu0 %v6329
      %v6660 = vpop.f32.mrf.mxu0
      %v6661 = vadd.f32 0.0, %v6660
      %v6662 = vpop.f32.mrf.mxu0
      %v6663 = vadd.f32 0.0, %v6662
      %6664 = vmatmul.bf16.gmra.mxu0 %v6332
      %v6665 = vpop.f32.mrf.mxu0
      %v6666 = vadd.f32 0.0, %v6665
      %v6667 = vpop.f32.mrf.mxu0
      %v6668 = vadd.f32 0.0, %v6667
      %6669 = vmatmul.bf16.gmra.mxu0 %v6335
      %v6670 = vpop.f32.mrf.mxu0
      %v6671 = vadd.f32 0.0, %v6670
      %v6672 = vpop.f32.mrf.mxu0
      %v6673 = vadd.f32 0.0, %v6672
      %6674 = vdwg.mxu0
      %6675 = vmatpush.bf16.msra.mxu0 %v6560
      %6676 = vmatpush.bf16.msra.mxu0 %v6558
      %6677 = vmatpush.bf16.msra.mxu0 %v6556
      %6678 = vmatpush.bf16.msra.mxu0 %v6554
      %6679 = vmatpush.bf16.msra.mxu0 %v6552
      %6680 = vmatpush.bf16.msra.mxu0 %v6550
      %6681 = vmatpush.bf16.msra.mxu0 %v6548
      %6682 = vmatpush.bf16.msra.mxu0 %v6546
      %6683 = vmatmul.bf16.gmra.mxu0 %v6315
      %v6684 = vpop.f32.mrf.mxu0
      %v6685 = vadd.f32 %v6636, %v6684
      %v6686 = vpop.f32.mrf.mxu0
      %v6687 = vadd.f32 %v6638, %v6686
      %6688 = vmatmul.bf16.gmra.mxu0 %v6318
      %v6689 = vpop.f32.mrf.mxu0
      %v6690 = vadd.f32 %v6641, %v6689
      %v6691 = vpop.f32.mrf.mxu0
      %v6692 = vadd.f32 %v6643, %v6691
      %6693 = vmatmul.bf16.gmra.mxu0 %v6321
      %v6694 = vpop.f32.mrf.mxu0
      %v6695 = vadd.f32 %v6646, %v6694
      %v6696 = vpop.f32.mrf.mxu0
      %v6697 = vadd.f32 %v6648, %v6696
      %6698 = vmatmul.bf16.gmra.mxu0 %v6324
      %v6699 = vpop.f32.mrf.mxu0
      %v6700 = vadd.f32 %v6651, %v6699
      %v6701 = vpop.f32.mrf.mxu0
      %v6702 = vadd.f32 %v6653, %v6701
      %6703 = vmatmul.bf16.gmra.mxu0 %v6327
      %v6704 = vpop.f32.mrf.mxu0
      %v6705 = vadd.f32 %v6656, %v6704
      %v6706 = vpop.f32.mrf.mxu0
      %v6707 = vadd.f32 %v6658, %v6706
      %6708 = vmatmul.bf16.gmra.mxu0 %v6330
      %v6709 = vpop.f32.mrf.mxu0
      %v6710 = vadd.f32 %v6661, %v6709
      %v6711 = vpop.f32.mrf.mxu0
      %v6712 = vadd.f32 %v6663, %v6711
      %6713 = vmatmul.bf16.gmra.mxu0 %v6333
      %v6714 = vpop.f32.mrf.mxu0
      %v6715 = vadd.f32 %v6666, %v6714
      %v6716 = vpop.f32.mrf.mxu0
      %v6717 = vadd.f32 %v6668, %v6716
      %6718 = vmatmul.bf16.gmra.mxu0 %v6336
      %v6719 = vpop.f32.mrf.mxu0
      %v6720 = vadd.f32 %v6671, %v6719
      %v6721 = vpop.f32.mrf.mxu0
      %v6722 = vadd.f32 %v6673, %v6721
      %6723 = vdwg.mxu0
      %6724 = vmatpush.bf16.msra.mxu0 %v6576
      %6725 = vmatpush.bf16.msra.mxu0 %v6574
      %6726 = vmatpush.bf16.msra.mxu0 %v6572
      %6727 = vmatpush.bf16.msra.mxu0 %v6570
      %6728 = vmatpush.bf16.msra.mxu0 %v6568
      %6729 = vmatpush.bf16.msra.mxu0 %v6566
      %6730 = vmatpush.bf16.msra.mxu0 %v6564
      %6731 = vmatpush.bf16.msra.mxu0 %v6562
      %6732 = vmatmul.bf16.gmra.mxu0 %v6316
      %v6733 = vpop.f32.mrf.mxu0
      %v6734 = vadd.f32 %v6685, %v6733
      %v6735 = vpop.f32.mrf.mxu0
      %v6736 = vadd.f32 %v6687, %v6735
      %6737 = vmatmul.bf16.gmra.mxu0 %v6319
      %v6738 = vpop.f32.mrf.mxu0
      %v6739 = vadd.f32 %v6690, %v6738
      %v6740 = vpop.f32.mrf.mxu0
      %v6741 = vadd.f32 %v6692, %v6740
      %6742 = vmatmul.bf16.gmra.mxu0 %v6322
      %v6743 = vpop.f32.mrf.mxu0
      %v6744 = vadd.f32 %v6695, %v6743
      %v6745 = vpop.f32.mrf.mxu0
      %v6746 = vadd.f32 %v6697, %v6745
      %6747 = vmatmul.bf16.gmra.mxu0 %v6325
      %v6748 = vpop.f32.mrf.mxu0
      %v6749 = vadd.f32 %v6700, %v6748
      %v6750 = vpop.f32.mrf.mxu0
      %v6751 = vadd.f32 %v6702, %v6750
      %6752 = vmatmul.bf16.gmra.mxu0 %v6328
      %v6753 = vpop.f32.mrf.mxu0
      %v6754 = vadd.f32 %v6705, %v6753
      %v6755 = vpop.f32.mrf.mxu0
      %v6756 = vadd.f32 %v6707, %v6755
      %6757 = vmatmul.bf16.gmra.mxu0 %v6331
      %v6758 = vpop.f32.mrf.mxu0
      %v6759 = vadd.f32 %v6710, %v6758
      %v6760 = vpop.f32.mrf.mxu0
      %v6761 = vadd.f32 %v6712, %v6760
      %6762 = vmatmul.bf16.gmra.mxu0 %v6334
      %v6763 = vpop.f32.mrf.mxu0
      %v6764 = vadd.f32 %v6715, %v6763
      %v6765 = vpop.f32.mrf.mxu0
      %v6766 = vadd.f32 %v6717, %v6765
      %6767 = vmatmul.bf16.gmra.mxu0 %v6337
      %v6768 = vpop.f32.mrf.mxu0
      %v6769 = vadd.f32 %v6720, %v6768
      %v6770 = vpop.f32.mrf.mxu0
      %v6771 = vadd.f32 %v6722, %v6770
      %6772 = vdwg.mxu0
      %6773 = vmatpush.bf16.msra.mxu0 %v6545
      %6774 = vmatpush.bf16.msra.mxu0 %v6543
      %6775 = vmatpush.bf16.msra.mxu0 %v6541
      %6776 = vmatpush.bf16.msra.mxu0 %v6539
      %6777 = vmatpush.bf16.msra.mxu0 %v6537
      %6778 = vmatpush.bf16.msra.mxu0 %v6535
      %6779 = vmatpush.bf16.msra.mxu0 %v6533
      %6780 = vmatpush.bf16.msra.mxu0 %v6531
      %6781 = vmatmul.bf16.gmra.mxu0 %v6314
      %v6782 = vpop.f32.mrf.mxu0
      %v6783 = vadd.f32 0.0, %v6782
      %v6784 = vpop.f32.mrf.mxu0
      %v6785 = vadd.f32 0.0, %v6784
      %6786 = vmatmul.bf16.gmra.mxu0 %v6317
      %v6787 = vpop.f32.mrf.mxu0
      %v6788 = vadd.f32 0.0, %v6787
      %v6789 = vpop.f32.mrf.mxu0
      %v6790 = vadd.f32 0.0, %v6789
      %6791 = vmatmul.bf16.gmra.mxu0 %v6320
      %v6792 = vpop.f32.mrf.mxu0
      %v6793 = vadd.f32 0.0, %v6792
      %v6794 = vpop.f32.mrf.mxu0
      %v6795 = vadd.f32 0.0, %v6794
      %6796 = vmatmul.bf16.gmra.mxu0 %v6323
      %v6797 = vpop.f32.mrf.mxu0
      %v6798 = vadd.f32 0.0, %v6797
      %v6799 = vpop.f32.mrf.mxu0
      %v6800 = vadd.f32 0.0, %v6799
      %6801 = vmatmul.bf16.gmra.mxu0 %v6326
      %v6802 = vpop.f32.mrf.mxu0
      %v6803 = vadd.f32 0.0, %v6802
      %v6804 = vpop.f32.mrf.mxu0
      %v6805 = vadd.f32 0.0, %v6804
      %6806 = vmatmul.bf16.gmra.mxu0 %v6329
      %v6807 = vpop.f32.mrf.mxu0
      %v6808 = vadd.f32 0.0, %v6807
      %v6809 = vpop.f32.mrf.mxu0
      %v6810 = vadd.f32 0.0, %v6809
      %6811 = vmatmul.bf16.gmra.mxu0 %v6332
      %v6812 = vpop.f32.mrf.mxu0
      %v6813 = vadd.f32 0.0, %v6812
      %v6814 = vpop.f32.mrf.mxu0
      %v6815 = vadd.f32 0.0, %v6814
      %6816 = vmatmul.bf16.gmra.mxu0 %v6335
      %v6817 = vpop.f32.mrf.mxu0
      %v6818 = vadd.f32 0.0, %v6817
      %v6819 = vpop.f32.mrf.mxu0
      %v6820 = vadd.f32 0.0, %v6819
      %6821 = vdwg.mxu0
      %6822 = vmatpush.bf16.msra.mxu0 %v6561
      %6823 = vmatpush.bf16.msra.mxu0 %v6559
      %6824 = vmatpush.bf16.msra.mxu0 %v6557
      %6825 = vmatpush.bf16.msra.mxu0 %v6555
      %6826 = vmatpush.bf16.msra.mxu0 %v6553
      %6827 = vmatpush.bf16.msra.mxu0 %v6551
      %6828 = vmatpush.bf16.msra.mxu0 %v6549
      %6829 = vmatpush.bf16.msra.mxu0 %v6547
      %6830 = vmatmul.bf16.gmra.mxu0 %v6315
      %v6831 = vpop.f32.mrf.mxu0
      %v6832 = vadd.f32 %v6783, %v6831
      %v6833 = vpop.f32.mrf.mxu0
      %v6834 = vadd.f32 %v6785, %v6833
      %6835 = vmatmul.bf16.gmra.mxu0 %v6318
      %v6836 = vpop.f32.mrf.mxu0
      %v6837 = vadd.f32 %v6788, %v6836
      %v6838 = vpop.f32.mrf.mxu0
      %v6839 = vadd.f32 %v6790, %v6838
      %6840 = vmatmul.bf16.gmra.mxu0 %v6321
      %v6841 = vpop.f32.mrf.mxu0
      %v6842 = vadd.f32 %v6793, %v6841
      %v6843 = vpop.f32.mrf.mxu0
      %v6844 = vadd.f32 %v6795, %v6843
      %6845 = vmatmul.bf16.gmra.mxu0 %v6324
      %v6846 = vpop.f32.mrf.mxu0
      %v6847 = vadd.f32 %v6798, %v6846
      %v6848 = vpop.f32.mrf.mxu0
      %v6849 = vadd.f32 %v6800, %v6848
      %6850 = vmatmul.bf16.gmra.mxu0 %v6327
      %v6851 = vpop.f32.mrf.mxu0
      %v6852 = vadd.f32 %v6803, %v6851
      %v6853 = vpop.f32.mrf.mxu0
      %v6854 = vadd.f32 %v6805, %v6853
      %6855 = vmatmul.bf16.gmra.mxu0 %v6330
      %v6856 = vpop.f32.mrf.mxu0
      %v6857 = vadd.f32 %v6808, %v6856
      %v6858 = vpop.f32.mrf.mxu0
      %v6859 = vadd.f32 %v6810, %v6858
      %6860 = vmatmul.bf16.gmra.mxu0 %v6333
      %v6861 = vpop.f32.mrf.mxu0
      %v6862 = vadd.f32 %v6813, %v6861
      %v6863 = vpop.f32.mrf.mxu0
      %v6864 = vadd.f32 %v6815, %v6863
      %6865 = vmatmul.bf16.gmra.mxu0 %v6336
      %v6866 = vpop.f32.mrf.mxu0
      %v6867 = vadd.f32 %v6818, %v6866
      %v6868 = vpop.f32.mrf.mxu0
      %v6869 = vadd.f32 %v6820, %v6868
      %6870 = vdwg.mxu0
      %6871 = vmatpush.bf16.msra.mxu0 %v6577
      %6872 = vmatpush.bf16.msra.mxu0 %v6575
      %6873 = vmatpush.bf16.msra.mxu0 %v6573
      %6874 = vmatpush.bf16.msra.mxu0 %v6571
      %6875 = vmatpush.bf16.msra.mxu0 %v6569
      %6876 = vmatpush.bf16.msra.mxu0 %v6567
      %6877 = vmatpush.bf16.msra.mxu0 %v6565
      %6878 = vmatpush.bf16.msra.mxu0 %v6563
      %6879 = vmatmul.bf16.gmra.mxu0 %v6316
      %v6880 = vpop.f32.mrf.mxu0
      %v6881 = vadd.f32 %v6832, %v6880
      %v6882 = vpop.f32.mrf.mxu0
      %v6883 = vadd.f32 %v6834, %v6882
      %6884 = vmatmul.bf16.gmra.mxu0 %v6319
      %v6885 = vpop.f32.mrf.mxu0
      %v6886 = vadd.f32 %v6837, %v6885
      %v6887 = vpop.f32.mrf.mxu0
      %v6888 = vadd.f32 %v6839, %v6887
      %6889 = vmatmul.bf16.gmra.mxu0 %v6322
      %v6890 = vpop.f32.mrf.mxu0
      %v6891 = vadd.f32 %v6842, %v6890
      %v6892 = vpop.f32.mrf.mxu0
      %v6893 = vadd.f32 %v6844, %v6892
      %6894 = vmatmul.bf16.gmra.mxu0 %v6325
      %v6895 = vpop.f32.mrf.mxu0
      %v6896 = vadd.f32 %v6847, %v6895
      %v6897 = vpop.f32.mrf.mxu0
      %v6898 = vadd.f32 %v6849, %v6897
      %6899 = vmatmul.bf16.gmra.mxu0 %v6328
      %v6900 = vpop.f32.mrf.mxu0
      %v6901 = vadd.f32 %v6852, %v6900
      %v6902 = vpop.f32.mrf.mxu0
      %v6903 = vadd.f32 %v6854, %v6902
      %6904 = vmatmul.bf16.gmra.mxu0 %v6331
      %v6905 = vpop.f32.mrf.mxu0
      %v6906 = vadd.f32 %v6857, %v6905
      %v6907 = vpop.f32.mrf.mxu0
      %v6908 = vadd.f32 %v6859, %v6907
      %6909 = vmatmul.bf16.gmra.mxu0 %v6334
      %v6910 = vpop.f32.mrf.mxu0
      %v6911 = vadd.f32 %v6862, %v6910
      %v6912 = vpop.f32.mrf.mxu0
      %v6913 = vadd.f32 %v6864, %v6912
      %6914 = vmatmul.bf16.gmra.mxu0 %v6337
      %v6915 = vpop.f32.mrf.mxu0
      %v6916 = vadd.f32 %v6867, %v6915
      %v6917 = vpop.f32.mrf.mxu0
      %v6918 = vadd.f32 %v6869, %v6917
      %6919 = vdwg.mxu0
      %v6920 = vadd.f32 %v6168, %v6734
      %v6921 = vadd.f32 %v6169, %v6881
      %v6922 = vadd.f32 %v6168, %v6736
      %v6923 = vadd.f32 %v6169, %v6883
      %v6924 = vadd.f32 %v6168, %v6739
      %v6925 = vadd.f32 %v6169, %v6886
      %v6926 = vadd.f32 %v6168, %v6741
      %v6927 = vadd.f32 %v6169, %v6888
      %v6928 = vadd.f32 %v6168, %v6744
      %v6929 = vadd.f32 %v6169, %v6891
      %v6930 = vadd.f32 %v6168, %v6746
      %v6931 = vadd.f32 %v6169, %v6893
      %v6932 = vadd.f32 %v6168, %v6749
      %v6933 = vadd.f32 %v6169, %v6896
      %v6934 = vadd.f32 %v6168, %v6751
      %v6935 = vadd.f32 %v6169, %v6898
      %v6936 = vadd.f32 %v6168, %v6754
      %v6937 = vadd.f32 %v6169, %v6901
      %v6938 = vadd.f32 %v6168, %v6756
      %v6939 = vadd.f32 %v6169, %v6903
      %v6940 = vadd.f32 %v6168, %v6759
      %v6941 = vadd.f32 %v6169, %v6906
      %v6942 = vadd.f32 %v6168, %v6761
      %v6943 = vadd.f32 %v6169, %v6908
      %v6944 = vadd.f32 %v6168, %v6764
      %v6945 = vadd.f32 %v6169, %v6911
      %v6946 = vadd.f32 %v6168, %v6766
      %v6947 = vadd.f32 %v6169, %v6913
      %v6948 = vadd.f32 %v6168, %v6769
      %v6949 = vadd.f32 %v6169, %v6916
      %v6950 = vadd.f32 %v6168, %v6771
      %v6951 = vadd.f32 %v6169, %v6918
      %v6952 = vpack.c.bf16 %v6117, %v6114
      %v6953 = vpack.c.bf16 %v6118, %v6115
      %v6954 = vpack.c.bf16 %v6119, %v6116
      %v6955 = vpack.c.bf16 %v6123, %v6120
      %v6956 = vpack.c.bf16 %v6124, %v6121
      %v6957 = vpack.c.bf16 %v6125, %v6122
      %v6958 = vpack.c.bf16 %v6129, %v6126
      %v6959 = vpack.c.bf16 %v6130, %v6127
      %v6960 = vpack.c.bf16 %v6131, %v6128
      %v6961 = vpack.c.bf16 %v6135, %v6132
      %v6962 = vpack.c.bf16 %v6136, %v6133
      %v6963 = vpack.c.bf16 %v6137, %v6134
      %v6964 = vpack.c.bf16 %v6141, %v6138
      %v6965 = vpack.c.bf16 %v6142, %v6139
      %v6966 = vpack.c.bf16 %v6143, %v6140
      %v6967 = vpack.c.bf16 %v6147, %v6144
      %v6968 = vpack.c.bf16 %v6148, %v6145
      %v6969 = vpack.c.bf16 %v6149, %v6146
      %v6970 = vpack.c.bf16 %v6153, %v6150
      %v6971 = vpack.c.bf16 %v6154, %v6151
      %v6972 = vpack.c.bf16 %v6155, %v6152
      %v6973 = vpack.c.bf16 %v6159, %v6156
      %v6974 = vpack.c.bf16 %v6160, %v6157
      %v6975 = vpack.c.bf16 %v6161, %v6158
      %s6976 = scalar_lea.vmem %s660, 384
      %v6977 = vld [vmem:[%s6976] sm:$0xff]
      %v6978 = vld [vmem:[%s6976 + $0x8] sm:$0xff]
      %v6979 = vld [vmem:[%s6976 + $0x10] sm:$0xff]
      %v6980 = vld [vmem:[%s6976 + $0x18] sm:$0xff]
      %v6981 = vld [vmem:[%s6976 + $0x20] sm:$0xff]
      %v6982 = vld [vmem:[%s6976 + $0x28] sm:$0xff]
      %v6983 = vld [vmem:[%s6976 + $0x30] sm:$0xff]
      %v6984 = vld [vmem:[%s6976 + $0x38] sm:$0xff]
      %v6985 = vld [vmem:[%s6976 + $0x40] sm:$0xff]
      %v6986 = vld [vmem:[%s6976 + $0x48] sm:$0xff]
      %v6987 = vld [vmem:[%s6976 + $0x50] sm:$0xff]
      %v6988 = vld [vmem:[%s6976 + $0x58] sm:$0xff]
      %v6989 = vld [vmem:[%s6976 + $0x60] sm:$0xff]
      %v6990 = vld [vmem:[%s6976 + $0x68] sm:$0xff]
      %v6991 = vld [vmem:[%s6976 + $0x70] sm:$0xff]
      %v6992 = vld [vmem:[%s6976 + $0x78] sm:$0xff]
      %v6993 = vld [vmem:[%s6976 + $0x80] sm:$0xff]
      %v6994 = vld [vmem:[%s6976 + $0x88] sm:$0xff]
      %v6995 = vld [vmem:[%s6976 + $0x90] sm:$0xff]
      %v6996 = vld [vmem:[%s6976 + $0x98] sm:$0xff]
      %v6997 = vld [vmem:[%s6976 + $0xa0] sm:$0xff]
      %v6998 = vld [vmem:[%s6976 + $0xa8] sm:$0xff]
      %v6999 = vld [vmem:[%s6976 + $0xb0] sm:$0xff]
      %v7000 = vld [vmem:[%s6976 + $0xb8] sm:$0xff]
      %v7001 = vld [vmem:[%s6976 + $0xc0] sm:$0xff]
      %v7002 = vld [vmem:[%s6976 + $0xc8] sm:$0xff]
      %v7003 = vld [vmem:[%s6976 + $0xd0] sm:$0xff]
      %v7004 = vld [vmem:[%s6976 + $0xd8] sm:$0xff]
      %v7005 = vld [vmem:[%s6976 + $0xe0] sm:$0xff]
      %v7006 = vld [vmem:[%s6976 + $0xe8] sm:$0xff]
      %v7007 = vld [vmem:[%s6976 + $0xf0] sm:$0xff]
      %v7008 = vld [vmem:[%s6976 + $0xf8] sm:$0xff]
      %v7009 = vld [vmem:[%s6976 + $0x100] sm:$0xff]
      %v7010 = vld [vmem:[%s6976 + $0x108] sm:$0xff]
      %v7011 = vld [vmem:[%s6976 + $0x110] sm:$0xff]
      %v7012 = vld [vmem:[%s6976 + $0x118] sm:$0xff]
      %v7013 = vld [vmem:[%s6976 + $0x120] sm:$0xff]
      %v7014 = vld [vmem:[%s6976 + $0x128] sm:$0xff]
      %v7015 = vld [vmem:[%s6976 + $0x130] sm:$0xff]
      %v7016 = vld [vmem:[%s6976 + $0x138] sm:$0xff]
      %v7017 = vld [vmem:[%s6976 + $0x140] sm:$0xff]
      %v7018 = vld [vmem:[%s6976 + $0x148] sm:$0xff]
      %v7019 = vld [vmem:[%s6976 + $0x150] sm:$0xff]
      %v7020 = vld [vmem:[%s6976 + $0x158] sm:$0xff]
      %v7021 = vld [vmem:[%s6976 + $0x160] sm:$0xff]
      %v7022 = vld [vmem:[%s6976 + $0x168] sm:$0xff]
      %v7023 = vld [vmem:[%s6976 + $0x170] sm:$0xff]
      %v7024 = vld [vmem:[%s6976 + $0x178] sm:$0xff]
      %v7073 = vunpack.c.l.b16 %v6977
      %v7074 = vunpack.c.h.b16 %v6977
      %v7075 = vunpack.c.l.b16 %v6978
      %v7076 = vunpack.c.h.b16 %v6978
      %v7077 = vunpack.c.l.b16 %v6979
      %v7078 = vunpack.c.h.b16 %v6979
      %v7079 = vunpack.c.l.b16 %v6980
      %v7080 = vunpack.c.h.b16 %v6980
      %v7081 = vunpack.c.l.b16 %v6981
      %v7082 = vunpack.c.h.b16 %v6981
      %v7083 = vunpack.c.l.b16 %v6982
      %v7084 = vunpack.c.h.b16 %v6982
      %v7085 = vunpack.c.l.b16 %v6983
      %v7086 = vunpack.c.h.b16 %v6983
      %v7087 = vunpack.c.l.b16 %v6984
      %v7088 = vunpack.c.h.b16 %v6984
      %v7089 = vunpack.c.l.b16 %v6985
      %v7090 = vunpack.c.h.b16 %v6985
      %v7091 = vunpack.c.l.b16 %v6986
      %v7092 = vunpack.c.h.b16 %v6986
      %v7093 = vunpack.c.l.b16 %v6987
      %v7094 = vunpack.c.h.b16 %v6987
      %v7095 = vunpack.c.l.b16 %v6988
      %v7096 = vunpack.c.h.b16 %v6988
      %v7097 = vunpack.c.l.b16 %v6989
      %v7098 = vunpack.c.h.b16 %v6989
      %v7099 = vunpack.c.l.b16 %v6990
      %v7100 = vunpack.c.h.b16 %v6990
      %v7101 = vunpack.c.l.b16 %v6991
      %v7102 = vunpack.c.h.b16 %v6991
      %v7103 = vunpack.c.l.b16 %v6992
      %v7104 = vunpack.c.h.b16 %v6992
      %v7105 = vunpack.c.l.b16 %v6993
      %v7106 = vunpack.c.h.b16 %v6993
      %v7107 = vunpack.c.l.b16 %v6994
      %v7108 = vunpack.c.h.b16 %v6994
      %v7109 = vunpack.c.l.b16 %v6995
      %v7110 = vunpack.c.h.b16 %v6995
      %v7111 = vunpack.c.l.b16 %v6996
      %v7112 = vunpack.c.h.b16 %v6996
      %v7113 = vunpack.c.l.b16 %v6997
      %v7114 = vunpack.c.h.b16 %v6997
      %v7115 = vunpack.c.l.b16 %v6998
      %v7116 = vunpack.c.h.b16 %v6998
      %v7117 = vunpack.c.l.b16 %v6999
      %v7118 = vunpack.c.h.b16 %v6999
      %v7119 = vunpack.c.l.b16 %v7000
      %v7120 = vunpack.c.h.b16 %v7000
      %v7121 = vunpack.c.l.b16 %v7001
      %v7122 = vunpack.c.h.b16 %v7001
      %v7123 = vunpack.c.l.b16 %v7002
      %v7124 = vunpack.c.h.b16 %v7002
      %v7125 = vunpack.c.l.b16 %v7003
      %v7126 = vunpack.c.h.b16 %v7003
      %v7127 = vunpack.c.l.b16 %v7004
      %v7128 = vunpack.c.h.b16 %v7004
      %v7129 = vunpack.c.l.b16 %v7005
      %v7130 = vunpack.c.h.b16 %v7005
      %v7131 = vunpack.c.l.b16 %v7006
      %v7132 = vunpack.c.h.b16 %v7006
      %v7133 = vunpack.c.l.b16 %v7007
      %v7134 = vunpack.c.h.b16 %v7007
      %v7135 = vunpack.c.l.b16 %v7008
      %v7136 = vunpack.c.h.b16 %v7008
      %v7137 = vunpack.c.l.b16 %v7009
      %v7138 = vunpack.c.h.b16 %v7009
      %v7139 = vunpack.c.l.b16 %v7010
      %v7140 = vunpack.c.h.b16 %v7010
      %v7141 = vunpack.c.l.b16 %v7011
      %v7142 = vunpack.c.h.b16 %v7011
      %v7143 = vunpack.c.l.b16 %v7012
      %v7144 = vunpack.c.h.b16 %v7012
      %v7145 = vunpack.c.l.b16 %v7013
      %v7146 = vunpack.c.h.b16 %v7013
      %v7147 = vunpack.c.l.b16 %v7014
      %v7148 = vunpack.c.h.b16 %v7014
      %v7149 = vunpack.c.l.b16 %v7015
      %v7150 = vunpack.c.h.b16 %v7015
      %v7151 = vunpack.c.l.b16 %v7016
      %v7152 = vunpack.c.h.b16 %v7016
      %v7153 = vunpack.c.l.b16 %v7017
      %v7154 = vunpack.c.h.b16 %v7017
      %v7155 = vunpack.c.l.b16 %v7018
      %v7156 = vunpack.c.h.b16 %v7018
      %v7157 = vunpack.c.l.b16 %v7019
      %v7158 = vunpack.c.h.b16 %v7019
      %v7159 = vunpack.c.l.b16 %v7020
      %v7160 = vunpack.c.h.b16 %v7020
      %v7161 = vunpack.c.l.b16 %v7021
      %v7162 = vunpack.c.h.b16 %v7021
      %v7163 = vunpack.c.l.b16 %v7022
      %v7164 = vunpack.c.h.b16 %v7022
      %v7165 = vunpack.c.l.b16 %v7023
      %v7166 = vunpack.c.h.b16 %v7023
      %v7167 = vunpack.c.l.b16 %v7024
      %v7168 = vunpack.c.h.b16 %v7024
      %v7169 = vpack.c.b16 %v7075, %v7073
      %v7170 = vpack.c.b16 %v7076, %v7074
      %v7171 = vpack.c.b16 %v7079, %v7077
      %v7172 = vpack.c.b16 %v7080, %v7078
      %v7173 = vpack.c.b16 %v7083, %v7081
      %v7174 = vpack.c.b16 %v7084, %v7082
      %v7175 = vpack.c.b16 %v7087, %v7085
      %v7176 = vpack.c.b16 %v7088, %v7086
      %v7177 = vpack.c.b16 %v7091, %v7089
      %v7178 = vpack.c.b16 %v7092, %v7090
      %v7179 = vpack.c.b16 %v7095, %v7093
      %v7180 = vpack.c.b16 %v7096, %v7094
      %v7181 = vpack.c.b16 %v7099, %v7097
      %v7182 = vpack.c.b16 %v7100, %v7098
      %v7183 = vpack.c.b16 %v7103, %v7101
      %v7184 = vpack.c.b16 %v7104, %v7102
      %v7185 = vpack.c.b16 %v7107, %v7105
      %v7186 = vpack.c.b16 %v7108, %v7106
      %v7187 = vpack.c.b16 %v7111, %v7109
      %v7188 = vpack.c.b16 %v7112, %v7110
      %v7189 = vpack.c.b16 %v7115, %v7113
      %v7190 = vpack.c.b16 %v7116, %v7114
      %v7191 = vpack.c.b16 %v7119, %v7117
      %v7192 = vpack.c.b16 %v7120, %v7118
      %v7193 = vpack.c.b16 %v7123, %v7121
      %v7194 = vpack.c.b16 %v7124, %v7122
      %v7195 = vpack.c.b16 %v7127, %v7125
      %v7196 = vpack.c.b16 %v7128, %v7126
      %v7197 = vpack.c.b16 %v7131, %v7129
      %v7198 = vpack.c.b16 %v7132, %v7130
      %v7199 = vpack.c.b16 %v7135, %v7133
      %v7200 = vpack.c.b16 %v7136, %v7134
      %v7201 = vpack.c.b16 %v7139, %v7137
      %v7202 = vpack.c.b16 %v7140, %v7138
      %v7203 = vpack.c.b16 %v7143, %v7141
      %v7204 = vpack.c.b16 %v7144, %v7142
      %v7205 = vpack.c.b16 %v7147, %v7145
      %v7206 = vpack.c.b16 %v7148, %v7146
      %v7207 = vpack.c.b16 %v7151, %v7149
      %v7208 = vpack.c.b16 %v7152, %v7150
      %v7209 = vpack.c.b16 %v7155, %v7153
      %v7210 = vpack.c.b16 %v7156, %v7154
      %v7211 = vpack.c.b16 %v7159, %v7157
      %v7212 = vpack.c.b16 %v7160, %v7158
      %v7213 = vpack.c.b16 %v7163, %v7161
      %v7214 = vpack.c.b16 %v7164, %v7162
      %v7215 = vpack.c.b16 %v7167, %v7165
      %v7216 = vpack.c.b16 %v7168, %v7166
      %7265 = vmatpush.bf16.msra.mxu0 %v7183
      %7266 = vmatpush.bf16.msra.mxu0 %v7181
      %7267 = vmatpush.bf16.msra.mxu0 %v7179
      %7268 = vmatpush.bf16.msra.mxu0 %v7177
      %7269 = vmatpush.bf16.msra.mxu0 %v7175
      %7270 = vmatpush.bf16.msra.mxu0 %v7173
      %7271 = vmatpush.bf16.msra.mxu0 %v7171
      %7272 = vmatpush.bf16.msra.mxu0 %v7169
      %7273 = vmatmul.bf16.gmra.mxu0 %v6952
      %v7274 = vpop.f32.mrf.mxu0
      %v7275 = vadd.f32 0.0, %v7274
      %v7276 = vpop.f32.mrf.mxu0
      %v7277 = vadd.f32 0.0, %v7276
      %7278 = vmatmul.bf16.gmra.mxu0 %v6955
      %v7279 = vpop.f32.mrf.mxu0
      %v7280 = vadd.f32 0.0, %v7279
      %v7281 = vpop.f32.mrf.mxu0
      %v7282 = vadd.f32 0.0, %v7281
      %7283 = vmatmul.bf16.gmra.mxu0 %v6958
      %v7284 = vpop.f32.mrf.mxu0
      %v7285 = vadd.f32 0.0, %v7284
      %v7286 = vpop.f32.mrf.mxu0
      %v7287 = vadd.f32 0.0, %v7286
      %7288 = vmatmul.bf16.gmra.mxu0 %v6961
      %v7289 = vpop.f32.mrf.mxu0
      %v7290 = vadd.f32 0.0, %v7289
      %v7291 = vpop.f32.mrf.mxu0
      %v7292 = vadd.f32 0.0, %v7291
      %7293 = vmatmul.bf16.gmra.mxu0 %v6964
      %v7294 = vpop.f32.mrf.mxu0
      %v7295 = vadd.f32 0.0, %v7294
      %v7296 = vpop.f32.mrf.mxu0
      %v7297 = vadd.f32 0.0, %v7296
      %7298 = vmatmul.bf16.gmra.mxu0 %v6967
      %v7299 = vpop.f32.mrf.mxu0
      %v7300 = vadd.f32 0.0, %v7299
      %v7301 = vpop.f32.mrf.mxu0
      %v7302 = vadd.f32 0.0, %v7301
      %7303 = vmatmul.bf16.gmra.mxu0 %v6970
      %v7304 = vpop.f32.mrf.mxu0
      %v7305 = vadd.f32 0.0, %v7304
      %v7306 = vpop.f32.mrf.mxu0
      %v7307 = vadd.f32 0.0, %v7306
      %7308 = vmatmul.bf16.gmra.mxu0 %v6973
      %v7309 = vpop.f32.mrf.mxu0
      %v7310 = vadd.f32 0.0, %v7309
      %v7311 = vpop.f32.mrf.mxu0
      %v7312 = vadd.f32 0.0, %v7311
      %7313 = vdwg.mxu0
      %7314 = vmatpush.bf16.msra.mxu0 %v7199
      %7315 = vmatpush.bf16.msra.mxu0 %v7197
      %7316 = vmatpush.bf16.msra.mxu0 %v7195
      %7317 = vmatpush.bf16.msra.mxu0 %v7193
      %7318 = vmatpush.bf16.msra.mxu0 %v7191
      %7319 = vmatpush.bf16.msra.mxu0 %v7189
      %7320 = vmatpush.bf16.msra.mxu0 %v7187
      %7321 = vmatpush.bf16.msra.mxu0 %v7185
      %7322 = vmatmul.bf16.gmra.mxu0 %v6953
      %v7323 = vpop.f32.mrf.mxu0
      %v7324 = vadd.f32 %v7275, %v7323
      %v7325 = vpop.f32.mrf.mxu0
      %v7326 = vadd.f32 %v7277, %v7325
      %7327 = vmatmul.bf16.gmra.mxu0 %v6956
      %v7328 = vpop.f32.mrf.mxu0
      %v7329 = vadd.f32 %v7280, %v7328
      %v7330 = vpop.f32.mrf.mxu0
      %v7331 = vadd.f32 %v7282, %v7330
      %7332 = vmatmul.bf16.gmra.mxu0 %v6959
      %v7333 = vpop.f32.mrf.mxu0
      %v7334 = vadd.f32 %v7285, %v7333
      %v7335 = vpop.f32.mrf.mxu0
      %v7336 = vadd.f32 %v7287, %v7335
      %7337 = vmatmul.bf16.gmra.mxu0 %v6962
      %v7338 = vpop.f32.mrf.mxu0
      %v7339 = vadd.f32 %v7290, %v7338
      %v7340 = vpop.f32.mrf.mxu0
      %v7341 = vadd.f32 %v7292, %v7340
      %7342 = vmatmul.bf16.gmra.mxu0 %v6965
      %v7343 = vpop.f32.mrf.mxu0
      %v7344 = vadd.f32 %v7295, %v7343
      %v7345 = vpop.f32.mrf.mxu0
      %v7346 = vadd.f32 %v7297, %v7345
      %7347 = vmatmul.bf16.gmra.mxu0 %v6968
      %v7348 = vpop.f32.mrf.mxu0
      %v7349 = vadd.f32 %v7300, %v7348
      %v7350 = vpop.f32.mrf.mxu0
      %v7351 = vadd.f32 %v7302, %v7350
      %7352 = vmatmul.bf16.gmra.mxu0 %v6971
      %v7353 = vpop.f32.mrf.mxu0
      %v7354 = vadd.f32 %v7305, %v7353
      %v7355 = vpop.f32.mrf.mxu0
      %v7356 = vadd.f32 %v7307, %v7355
      %7357 = vmatmul.bf16.gmra.mxu0 %v6974
      %v7358 = vpop.f32.mrf.mxu0
      %v7359 = vadd.f32 %v7310, %v7358
      %v7360 = vpop.f32.mrf.mxu0
      %v7361 = vadd.f32 %v7312, %v7360
      %7362 = vdwg.mxu0
      %7363 = vmatpush.bf16.msra.mxu0 %v7215
      %7364 = vmatpush.bf16.msra.mxu0 %v7213
      %7365 = vmatpush.bf16.msra.mxu0 %v7211
      %7366 = vmatpush.bf16.msra.mxu0 %v7209
      %7367 = vmatpush.bf16.msra.mxu0 %v7207
      %7368 = vmatpush.bf16.msra.mxu0 %v7205
      %7369 = vmatpush.bf16.msra.mxu0 %v7203
      %7370 = vmatpush.bf16.msra.mxu0 %v7201
      %7371 = vmatmul.bf16.gmra.mxu0 %v6954
      %v7372 = vpop.f32.mrf.mxu0
      %v7373 = vadd.f32 %v7324, %v7372
      %v7374 = vpop.f32.mrf.mxu0
      %v7375 = vadd.f32 %v7326, %v7374
      %7376 = vmatmul.bf16.gmra.mxu0 %v6957
      %v7377 = vpop.f32.mrf.mxu0
      %v7378 = vadd.f32 %v7329, %v7377
      %v7379 = vpop.f32.mrf.mxu0
      %v7380 = vadd.f32 %v7331, %v7379
      %7381 = vmatmul.bf16.gmra.mxu0 %v6960
      %v7382 = vpop.f32.mrf.mxu0
      %v7383 = vadd.f32 %v7334, %v7382
      %v7384 = vpop.f32.mrf.mxu0
      %v7385 = vadd.f32 %v7336, %v7384
      %7386 = vmatmul.bf16.gmra.mxu0 %v6963
      %v7387 = vpop.f32.mrf.mxu0
      %v7388 = vadd.f32 %v7339, %v7387
      %v7389 = vpop.f32.mrf.mxu0
      %v7390 = vadd.f32 %v7341, %v7389
      %7391 = vmatmul.bf16.gmra.mxu0 %v6966
      %v7392 = vpop.f32.mrf.mxu0
      %v7393 = vadd.f32 %v7344, %v7392
      %v7394 = vpop.f32.mrf.mxu0
      %v7395 = vadd.f32 %v7346, %v7394
      %7396 = vmatmul.bf16.gmra.mxu0 %v6969
      %v7397 = vpop.f32.mrf.mxu0
      %v7398 = vadd.f32 %v7349, %v7397
      %v7399 = vpop.f32.mrf.mxu0
      %v7400 = vadd.f32 %v7351, %v7399
      %7401 = vmatmul.bf16.gmra.mxu0 %v6972
      %v7402 = vpop.f32.mrf.mxu0
      %v7403 = vadd.f32 %v7354, %v7402
      %v7404 = vpop.f32.mrf.mxu0
      %v7405 = vadd.f32 %v7356, %v7404
      %7406 = vmatmul.bf16.gmra.mxu0 %v6975
      %v7407 = vpop.f32.mrf.mxu0
      %v7408 = vadd.f32 %v7359, %v7407
      %v7409 = vpop.f32.mrf.mxu0
      %v7410 = vadd.f32 %v7361, %v7409
      %7411 = vdwg.mxu0
      %7412 = vmatpush.bf16.msra.mxu0 %v7184
      %7413 = vmatpush.bf16.msra.mxu0 %v7182
      %7414 = vmatpush.bf16.msra.mxu0 %v7180
      %7415 = vmatpush.bf16.msra.mxu0 %v7178
      %7416 = vmatpush.bf16.msra.mxu0 %v7176
      %7417 = vmatpush.bf16.msra.mxu0 %v7174
      %7418 = vmatpush.bf16.msra.mxu0 %v7172
      %7419 = vmatpush.bf16.msra.mxu0 %v7170
      %7420 = vmatmul.bf16.gmra.mxu0 %v6952
      %v7421 = vpop.f32.mrf.mxu0
      %v7422 = vadd.f32 0.0, %v7421
      %v7423 = vpop.f32.mrf.mxu0
      %v7424 = vadd.f32 0.0, %v7423
      %7425 = vmatmul.bf16.gmra.mxu0 %v6955
      %v7426 = vpop.f32.mrf.mxu0
      %v7427 = vadd.f32 0.0, %v7426
      %v7428 = vpop.f32.mrf.mxu0
      %v7429 = vadd.f32 0.0, %v7428
      %7430 = vmatmul.bf16.gmra.mxu0 %v6958
      %v7431 = vpop.f32.mrf.mxu0
      %v7432 = vadd.f32 0.0, %v7431
      %v7433 = vpop.f32.mrf.mxu0
      %v7434 = vadd.f32 0.0, %v7433
      %7435 = vmatmul.bf16.gmra.mxu0 %v6961
      %v7436 = vpop.f32.mrf.mxu0
      %v7437 = vadd.f32 0.0, %v7436
      %v7438 = vpop.f32.mrf.mxu0
      %v7439 = vadd.f32 0.0, %v7438
      %7440 = vmatmul.bf16.gmra.mxu0 %v6964
      %v7441 = vpop.f32.mrf.mxu0
      %v7442 = vadd.f32 0.0, %v7441
      %v7443 = vpop.f32.mrf.mxu0
      %v7444 = vadd.f32 0.0, %v7443
      %7445 = vmatmul.bf16.gmra.mxu0 %v6967
      %v7446 = vpop.f32.mrf.mxu0
      %v7447 = vadd.f32 0.0, %v7446
      %v7448 = vpop.f32.mrf.mxu0
      %v7449 = vadd.f32 0.0, %v7448
      %7450 = vmatmul.bf16.gmra.mxu0 %v6970
      %v7451 = vpop.f32.mrf.mxu0
      %v7452 = vadd.f32 0.0, %v7451
      %v7453 = vpop.f32.mrf.mxu0
      %v7454 = vadd.f32 0.0, %v7453
      %7455 = vmatmul.bf16.gmra.mxu0 %v6973
      %v7456 = vpop.f32.mrf.mxu0
      %v7457 = vadd.f32 0.0, %v7456
      %v7458 = vpop.f32.mrf.mxu0
      %v7459 = vadd.f32 0.0, %v7458
      %7460 = vdwg.mxu0
      %7461 = vmatpush.bf16.msra.mxu0 %v7200
      %7462 = vmatpush.bf16.msra.mxu0 %v7198
      %7463 = vmatpush.bf16.msra.mxu0 %v7196
      %7464 = vmatpush.bf16.msra.mxu0 %v7194
      %7465 = vmatpush.bf16.msra.mxu0 %v7192
      %7466 = vmatpush.bf16.msra.mxu0 %v7190
      %7467 = vmatpush.bf16.msra.mxu0 %v7188
      %7468 = vmatpush.bf16.msra.mxu0 %v7186
      %7469 = vmatmul.bf16.gmra.mxu0 %v6953
      %v7470 = vpop.f32.mrf.mxu0
      %v7471 = vadd.f32 %v7422, %v7470
      %v7472 = vpop.f32.mrf.mxu0
      %v7473 = vadd.f32 %v7424, %v7472
      %7474 = vmatmul.bf16.gmra.mxu0 %v6956
      %v7475 = vpop.f32.mrf.mxu0
      %v7476 = vadd.f32 %v7427, %v7475
      %v7477 = vpop.f32.mrf.mxu0
      %v7478 = vadd.f32 %v7429, %v7477
      %7479 = vmatmul.bf16.gmra.mxu0 %v6959
      %v7480 = vpop.f32.mrf.mxu0
      %v7481 = vadd.f32 %v7432, %v7480
      %v7482 = vpop.f32.mrf.mxu0
      %v7483 = vadd.f32 %v7434, %v7482
      %7484 = vmatmul.bf16.gmra.mxu0 %v6962
      %v7485 = vpop.f32.mrf.mxu0
      %v7486 = vadd.f32 %v7437, %v7485
      %v7487 = vpop.f32.mrf.mxu0
      %v7488 = vadd.f32 %v7439, %v7487
      %7489 = vmatmul.bf16.gmra.mxu0 %v6965
      %v7490 = vpop.f32.mrf.mxu0
      %v7491 = vadd.f32 %v7442, %v7490
      %v7492 = vpop.f32.mrf.mxu0
      %v7493 = vadd.f32 %v7444, %v7492
      %7494 = vmatmul.bf16.gmra.mxu0 %v6968
      %v7495 = vpop.f32.mrf.mxu0
      %v7496 = vadd.f32 %v7447, %v7495
      %v7497 = vpop.f32.mrf.mxu0
      %v7498 = vadd.f32 %v7449, %v7497
      %7499 = vmatmul.bf16.gmra.mxu0 %v6971
      %v7500 = vpop.f32.mrf.mxu0
      %v7501 = vadd.f32 %v7452, %v7500
      %v7502 = vpop.f32.mrf.mxu0
      %v7503 = vadd.f32 %v7454, %v7502
      %7504 = vmatmul.bf16.gmra.mxu0 %v6974
      %v7505 = vpop.f32.mrf.mxu0
      %v7506 = vadd.f32 %v7457, %v7505
      %v7507 = vpop.f32.mrf.mxu0
      %v7508 = vadd.f32 %v7459, %v7507
      %7509 = vdwg.mxu0
      %7510 = vmatpush.bf16.msra.mxu0 %v7216
      %7511 = vmatpush.bf16.msra.mxu0 %v7214
      %7512 = vmatpush.bf16.msra.mxu0 %v7212
      %7513 = vmatpush.bf16.msra.mxu0 %v7210
      %7514 = vmatpush.bf16.msra.mxu0 %v7208
      %7515 = vmatpush.bf16.msra.mxu0 %v7206
      %7516 = vmatpush.bf16.msra.mxu0 %v7204
      %7517 = vmatpush.bf16.msra.mxu0 %v7202
      %7518 = vmatmul.bf16.gmra.mxu0 %v6954
      %v7519 = vpop.f32.mrf.mxu0
      %v7520 = vadd.f32 %v7471, %v7519
      %v7521 = vpop.f32.mrf.mxu0
      %v7522 = vadd.f32 %v7473, %v7521
      %7523 = vmatmul.bf16.gmra.mxu0 %v6957
      %v7524 = vpop.f32.mrf.mxu0
      %v7525 = vadd.f32 %v7476, %v7524
      %v7526 = vpop.f32.mrf.mxu0
      %v7527 = vadd.f32 %v7478, %v7526
      %7528 = vmatmul.bf16.gmra.mxu0 %v6960
      %v7529 = vpop.f32.mrf.mxu0
      %v7530 = vadd.f32 %v7481, %v7529
      %v7531 = vpop.f32.mrf.mxu0
      %v7532 = vadd.f32 %v7483, %v7531
      %7533 = vmatmul.bf16.gmra.mxu0 %v6963
      %v7534 = vpop.f32.mrf.mxu0
      %v7535 = vadd.f32 %v7486, %v7534
      %v7536 = vpop.f32.mrf.mxu0
      %v7537 = vadd.f32 %v7488, %v7536
      %7538 = vmatmul.bf16.gmra.mxu0 %v6966
      %v7539 = vpop.f32.mrf.mxu0
      %v7540 = vadd.f32 %v7491, %v7539
      %v7541 = vpop.f32.mrf.mxu0
      %v7542 = vadd.f32 %v7493, %v7541
      %7543 = vmatmul.bf16.gmra.mxu0 %v6969
      %v7544 = vpop.f32.mrf.mxu0
      %v7545 = vadd.f32 %v7496, %v7544
      %v7546 = vpop.f32.mrf.mxu0
      %v7547 = vadd.f32 %v7498, %v7546
      %7548 = vmatmul.bf16.gmra.mxu0 %v6972
      %v7549 = vpop.f32.mrf.mxu0
      %v7550 = vadd.f32 %v7501, %v7549
      %v7551 = vpop.f32.mrf.mxu0
      %v7552 = vadd.f32 %v7503, %v7551
      %7553 = vmatmul.bf16.gmra.mxu0 %v6975
      %v7554 = vpop.f32.mrf.mxu0
      %v7555 = vadd.f32 %v7506, %v7554
      %v7556 = vpop.f32.mrf.mxu0
      %v7557 = vadd.f32 %v7508, %v7556
      %7558 = vdwg.mxu0
      %v7559 = vadd.f32 %v6920, %v7373
      %v7560 = vadd.f32 %v6921, %v7520
      %v7561 = vadd.f32 %v6922, %v7375
      %v7562 = vadd.f32 %v6923, %v7522
      %v7563 = vadd.f32 %v6924, %v7378
      %v7564 = vadd.f32 %v6925, %v7525
      %v7565 = vadd.f32 %v6926, %v7380
      %v7566 = vadd.f32 %v6927, %v7527
      %v7567 = vadd.f32 %v6928, %v7383
      %v7568 = vadd.f32 %v6929, %v7530
      %v7569 = vadd.f32 %v6930, %v7385
      %v7570 = vadd.f32 %v6931, %v7532
      %v7571 = vadd.f32 %v6932, %v7388
      %v7572 = vadd.f32 %v6933, %v7535
      %v7573 = vadd.f32 %v6934, %v7390
      %v7574 = vadd.f32 %v6935, %v7537
      %v7575 = vadd.f32 %v6936, %v7393
      %v7576 = vadd.f32 %v6937, %v7540
      %v7577 = vadd.f32 %v6938, %v7395
      %v7578 = vadd.f32 %v6939, %v7542
      %v7579 = vadd.f32 %v6940, %v7398
      %v7580 = vadd.f32 %v6941, %v7545
      %v7581 = vadd.f32 %v6942, %v7400
      %v7582 = vadd.f32 %v6943, %v7547
      %v7583 = vadd.f32 %v6944, %v7403
      %v7584 = vadd.f32 %v6945, %v7550
      %v7585 = vadd.f32 %v6946, %v7405
      %v7586 = vadd.f32 %v6947, %v7552
      %v7587 = vadd.f32 %v6948, %v7408
      %v7588 = vadd.f32 %v6949, %v7555
      %v7589 = vadd.f32 %v6950, %v7410
      %v7590 = vadd.f32 %v6951, %v7557
      %v7591 = vrot.slane %v6114, 1
      %v7592 = vrot.slane %v6115, 1
      %v7593 = vrot.slane %v6116, 1
      %v7594 = vrot.slane %v6117, 1
      %v7595 = vrot.slane %v6118, 1
      %v7596 = vrot.slane %v6119, 1
      %v7597 = vrot.slane %v6120, 1
      %v7598 = vrot.slane %v6121, 1
      %v7599 = vrot.slane %v6122, 1
      %v7600 = vrot.slane %v6123, 1
      %v7601 = vrot.slane %v6124, 1
      %v7602 = vrot.slane %v6125, 1
      %v7603 = vrot.slane %v6126, 1
      %v7604 = vrot.slane %v6127, 1
      %v7605 = vrot.slane %v6128, 1
      %v7606 = vrot.slane %v6129, 1
      %v7607 = vrot.slane %v6130, 1
      %v7608 = vrot.slane %v6131, 1
      %v7609 = vrot.slane %v6132, 1
      %v7610 = vrot.slane %v6133, 1
      %v7611 = vrot.slane %v6134, 1
      %v7612 = vrot.slane %v6135, 1
      %v7613 = vrot.slane %v6136, 1
      %v7614 = vrot.slane %v6137, 1
      %v7615 = vrot.slane %v6138, 1
      %v7616 = vrot.slane %v6139, 1
      %v7617 = vrot.slane %v6140, 1
      %v7618 = vrot.slane %v6141, 1
      %v7619 = vrot.slane %v6142, 1
      %v7620 = vrot.slane %v6143, 1
      %v7621 = vrot.slane %v6144, 1
      %v7622 = vrot.slane %v6145, 1
      %v7623 = vrot.slane %v6146, 1
      %v7624 = vrot.slane %v6147, 1
      %v7625 = vrot.slane %v6148, 1
      %v7626 = vrot.slane %v6149, 1
      %v7627 = vrot.slane %v6150, 1
      %v7628 = vrot.slane %v6151, 1
      %v7629 = vrot.slane %v6152, 1
      %v7630 = vrot.slane %v6153, 1
      %v7631 = vrot.slane %v6154, 1
      %v7632 = vrot.slane %v6155, 1
      %v7633 = vrot.slane %v6156, 1
      %v7634 = vrot.slane %v6157, 1
      %v7635 = vrot.slane %v6158, 1
      %v7636 = vrot.slane %v6159, 1
      %v7637 = vrot.slane %v6160, 1
      %v7638 = vrot.slane %v6161, 1
      %v7639 = vsel %vm5346, %v7633, %v7636
      %v7640 = vsel %vm5346, %v7634, %v7637
      %v7641 = vsel %vm5346, %v7635, %v7638
      %v7642 = vsel %vm5346, %v7630, %v7633
      %v7643 = vsel %vm5346, %v7631, %v7634
      %v7644 = vsel %vm5346, %v7632, %v7635
      %v7645 = vsel %vm5346, %v7627, %v7630
      %v7646 = vsel %vm5346, %v7628, %v7631
      %v7647 = vsel %vm5346, %v7629, %v7632
      %v7648 = vsel %vm5346, %v7624, %v7627
      %v7649 = vsel %vm5346, %v7625, %v7628
      %v7650 = vsel %vm5346, %v7626, %v7629
      %v7651 = vsel %vm5346, %v7621, %v7624
      %v7652 = vsel %vm5346, %v7622, %v7625
      %v7653 = vsel %vm5346, %v7623, %v7626
      %v7654 = vsel %vm5346, %v7618, %v7621
      %v7655 = vsel %vm5346, %v7619, %v7622
      %v7656 = vsel %vm5346, %v7620, %v7623
      %v7657 = vsel %vm5346, %v7615, %v7618
      %v7658 = vsel %vm5346, %v7616, %v7619
      %v7659 = vsel %vm5346, %v7617, %v7620
      %v7660 = vsel %vm5346, %v7612, %v7615
      %v7661 = vsel %vm5346, %v7613, %v7616
      %v7662 = vsel %vm5346, %v7614, %v7617
      %v7663 = vsel %vm5346, %v7609, %v7612
      %v7664 = vsel %vm5346, %v7610, %v7613
      %v7665 = vsel %vm5346, %v7611, %v7614
      %v7666 = vsel %vm5346, %v7606, %v7609
      %v7667 = vsel %vm5346, %v7607, %v7610
      %v7668 = vsel %vm5346, %v7608, %v7611
      %v7669 = vsel %vm5346, %v7603, %v7606
      %v7670 = vsel %vm5346, %v7604, %v7607
      %v7671 = vsel %vm5346, %v7605, %v7608
      %v7672 = vsel %vm5346, %v7600, %v7603
      %v7673 = vsel %vm5346, %v7601, %v7604
      %v7674 = vsel %vm5346, %v7602, %v7605
      %v7675 = vsel %vm5346, %v7597, %v7600
      %v7676 = vsel %vm5346, %v7598, %v7601
      %v7677 = vsel %vm5346, %v7599, %v7602
      %v7678 = vsel %vm5346, %v7594, %v7597
      %v7679 = vsel %vm5346, %v7595, %v7598
      %v7680 = vsel %vm5346, %v7596, %v7599
      %v7681 = vsel %vm5346, %v7591, %v7594
      %v7682 = vsel %vm5346, %v7592, %v7595
      %v7683 = vsel %vm5346, %v7593, %v7596
      %v7684 = vsel %vm5346, %v7636, %v7591
      %v7685 = vsel %vm5346, %v7637, %v7592
      %v7686 = vsel %vm5346, %v7638, %v7593
      %v7687 = vsel %vm5395, %v7681, 0.0
      %v7688 = vsel %vm5395, %v7682, 0.0
      %v7689 = vsel %vm5395, %v7683, 0.0
      %v7690 = vsel %vm5396, %v7678, 0.0
      %v7691 = vsel %vm5396, %v7679, 0.0
      %v7692 = vsel %vm5396, %v7680, 0.0
      %v7693 = vsel %vm5397, %v7675, 0.0
      %v7694 = vsel %vm5397, %v7676, 0.0
      %v7695 = vsel %vm5397, %v7677, 0.0
      %v7696 = vsel %vm5398, %v7672, 0.0
      %v7697 = vsel %vm5398, %v7673, 0.0
      %v7698 = vsel %vm5398, %v7674, 0.0
      %v7699 = vsel %vm5399, %v7669, 0.0
      %v7700 = vsel %vm5399, %v7670, 0.0
      %v7701 = vsel %vm5399, %v7671, 0.0
      %v7702 = vsel %vm5400, %v7666, 0.0
      %v7703 = vsel %vm5400, %v7667, 0.0
      %v7704 = vsel %vm5400, %v7668, 0.0
      %v7705 = vsel %vm5401, %v7663, 0.0
      %v7706 = vsel %vm5401, %v7664, 0.0
      %v7707 = vsel %vm5401, %v7665, 0.0
      %v7708 = vsel %vm5402, %v7660, 0.0
      %v7709 = vsel %vm5402, %v7661, 0.0
      %v7710 = vsel %vm5402, %v7662, 0.0
      %v7711 = vsel %vm5403, %v7657, 0.0
      %v7712 = vsel %vm5403, %v7658, 0.0
      %v7713 = vsel %vm5403, %v7659, 0.0
      %v7714 = vsel %vm5404, %v7654, 0.0
      %v7715 = vsel %vm5404, %v7655, 0.0
      %v7716 = vsel %vm5404, %v7656, 0.0
      %v7717 = vsel %vm5405, %v7651, 0.0
      %v7718 = vsel %vm5405, %v7652, 0.0
      %v7719 = vsel %vm5405, %v7653, 0.0
      %v7720 = vsel %vm5406, %v7648, 0.0
      %v7721 = vsel %vm5406, %v7649, 0.0
      %v7722 = vsel %vm5406, %v7650, 0.0
      %v7723 = vsel %vm5407, %v7645, 0.0
      %v7724 = vsel %vm5407, %v7646, 0.0
      %v7725 = vsel %vm5407, %v7647, 0.0
      %v7726 = vsel %vm5408, %v7642, 0.0
      %v7727 = vsel %vm5408, %v7643, 0.0
      %v7728 = vsel %vm5408, %v7644, 0.0
      %v7729 = vsel %vm5409, %v7639, 0.0
      %v7730 = vsel %vm5409, %v7640, 0.0
      %v7731 = vsel %vm5409, %v7641, 0.0
      %v7732 = vsel %vm5410, %v7684, 0.0
      %v7733 = vsel %vm5410, %v7685, 0.0
      %v7734 = vsel %vm5410, %v7686, 0.0
      %v7735 = vpack.c.bf16 %v7690, %v7687
      %v7736 = vpack.c.bf16 %v7691, %v7688
      %v7737 = vpack.c.bf16 %v7692, %v7689
      %v7738 = vpack.c.bf16 %v7696, %v7693
      %v7739 = vpack.c.bf16 %v7697, %v7694
      %v7740 = vpack.c.bf16 %v7698, %v7695
      %v7741 = vpack.c.bf16 %v7702, %v7699
      %v7742 = vpack.c.bf16 %v7703, %v7700
      %v7743 = vpack.c.bf16 %v7704, %v7701
      %v7744 = vpack.c.bf16 %v7708, %v7705
      %v7745 = vpack.c.bf16 %v7709, %v7706
      %v7746 = vpack.c.bf16 %v7710, %v7707
      %v7747 = vpack.c.bf16 %v7714, %v7711
      %v7748 = vpack.c.bf16 %v7715, %v7712
      %v7749 = vpack.c.bf16 %v7716, %v7713
      %v7750 = vpack.c.bf16 %v7720, %v7717
      %v7751 = vpack.c.bf16 %v7721, %v7718
      %v7752 = vpack.c.bf16 %v7722, %v7719
      %v7753 = vpack.c.bf16 %v7726, %v7723
      %v7754 = vpack.c.bf16 %v7727, %v7724
      %v7755 = vpack.c.bf16 %v7728, %v7725
      %v7756 = vpack.c.bf16 %v7732, %v7729
      %v7757 = vpack.c.bf16 %v7733, %v7730
      %v7758 = vpack.c.bf16 %v7734, %v7731
      %s7759 = scalar_lea.vmem %s660, 768
      %v7760 = vld [vmem:[%s7759] sm:$0xff]
      %v7761 = vld [vmem:[%s7759 + $0x8] sm:$0xff]
      %v7762 = vld [vmem:[%s7759 + $0x10] sm:$0xff]
      %v7763 = vld [vmem:[%s7759 + $0x18] sm:$0xff]
      %v7764 = vld [vmem:[%s7759 + $0x20] sm:$0xff]
      %v7765 = vld [vmem:[%s7759 + $0x28] sm:$0xff]
      %v7766 = vld [vmem:[%s7759 + $0x30] sm:$0xff]
      %v7767 = vld [vmem:[%s7759 + $0x38] sm:$0xff]
      %v7768 = vld [vmem:[%s7759 + $0x40] sm:$0xff]
      %v7769 = vld [vmem:[%s7759 + $0x48] sm:$0xff]
      %v7770 = vld [vmem:[%s7759 + $0x50] sm:$0xff]
      %v7771 = vld [vmem:[%s7759 + $0x58] sm:$0xff]
      %v7772 = vld [vmem:[%s7759 + $0x60] sm:$0xff]
      %v7773 = vld [vmem:[%s7759 + $0x68] sm:$0xff]
      %v7774 = vld [vmem:[%s7759 + $0x70] sm:$0xff]
      %v7775 = vld [vmem:[%s7759 + $0x78] sm:$0xff]
      %v7776 = vld [vmem:[%s7759 + $0x80] sm:$0xff]
      %v7777 = vld [vmem:[%s7759 + $0x88] sm:$0xff]
      %v7778 = vld [vmem:[%s7759 + $0x90] sm:$0xff]
      %v7779 = vld [vmem:[%s7759 + $0x98] sm:$0xff]
      %v7780 = vld [vmem:[%s7759 + $0xa0] sm:$0xff]
      %v7781 = vld [vmem:[%s7759 + $0xa8] sm:$0xff]
      %v7782 = vld [vmem:[%s7759 + $0xb0] sm:$0xff]
      %v7783 = vld [vmem:[%s7759 + $0xb8] sm:$0xff]
      %v7784 = vld [vmem:[%s7759 + $0xc0] sm:$0xff]
      %v7785 = vld [vmem:[%s7759 + $0xc8] sm:$0xff]
      %v7786 = vld [vmem:[%s7759 + $0xd0] sm:$0xff]
      %v7787 = vld [vmem:[%s7759 + $0xd8] sm:$0xff]
      %v7788 = vld [vmem:[%s7759 + $0xe0] sm:$0xff]
      %v7789 = vld [vmem:[%s7759 + $0xe8] sm:$0xff]
      %v7790 = vld [vmem:[%s7759 + $0xf0] sm:$0xff]
      %v7791 = vld [vmem:[%s7759 + $0xf8] sm:$0xff]
      %v7792 = vld [vmem:[%s7759 + $0x100] sm:$0xff]
      %v7793 = vld [vmem:[%s7759 + $0x108] sm:$0xff]
      %v7794 = vld [vmem:[%s7759 + $0x110] sm:$0xff]
      %v7795 = vld [vmem:[%s7759 + $0x118] sm:$0xff]
      %v7796 = vld [vmem:[%s7759 + $0x120] sm:$0xff]
      %v7797 = vld [vmem:[%s7759 + $0x128] sm:$0xff]
      %v7798 = vld [vmem:[%s7759 + $0x130] sm:$0xff]
      %v7799 = vld [vmem:[%s7759 + $0x138] sm:$0xff]
      %v7800 = vld [vmem:[%s7759 + $0x140] sm:$0xff]
      %v7801 = vld [vmem:[%s7759 + $0x148] sm:$0xff]
      %v7802 = vld [vmem:[%s7759 + $0x150] sm:$0xff]
      %v7803 = vld [vmem:[%s7759 + $0x158] sm:$0xff]
      %v7804 = vld [vmem:[%s7759 + $0x160] sm:$0xff]
      %v7805 = vld [vmem:[%s7759 + $0x168] sm:$0xff]
      %v7806 = vld [vmem:[%s7759 + $0x170] sm:$0xff]
      %v7807 = vld [vmem:[%s7759 + $0x178] sm:$0xff]
      %v7856 = vunpack.c.l.b16 %v7760
      %v7857 = vunpack.c.h.b16 %v7760
      %v7858 = vunpack.c.l.b16 %v7761
      %v7859 = vunpack.c.h.b16 %v7761
      %v7860 = vunpack.c.l.b16 %v7762
      %v7861 = vunpack.c.h.b16 %v7762
      %v7862 = vunpack.c.l.b16 %v7763
      %v7863 = vunpack.c.h.b16 %v7763
      %v7864 = vunpack.c.l.b16 %v7764
      %v7865 = vunpack.c.h.b16 %v7764
      %v7866 = vunpack.c.l.b16 %v7765
      %v7867 = vunpack.c.h.b16 %v7765
      %v7868 = vunpack.c.l.b16 %v7766
      %v7869 = vunpack.c.h.b16 %v7766
      %v7870 = vunpack.c.l.b16 %v7767
      %v7871 = vunpack.c.h.b16 %v7767
      %v7872 = vunpack.c.l.b16 %v7768
      %v7873 = vunpack.c.h.b16 %v7768
      %v7874 = vunpack.c.l.b16 %v7769
      %v7875 = vunpack.c.h.b16 %v7769
      %v7876 = vunpack.c.l.b16 %v7770
      %v7877 = vunpack.c.h.b16 %v7770
      %v7878 = vunpack.c.l.b16 %v7771
      %v7879 = vunpack.c.h.b16 %v7771
      %v7880 = vunpack.c.l.b16 %v7772
      %v7881 = vunpack.c.h.b16 %v7772
      %v7882 = vunpack.c.l.b16 %v7773
      %v7883 = vunpack.c.h.b16 %v7773
      %v7884 = vunpack.c.l.b16 %v7774
      %v7885 = vunpack.c.h.b16 %v7774
      %v7886 = vunpack.c.l.b16 %v7775
      %v7887 = vunpack.c.h.b16 %v7775
      %v7888 = vunpack.c.l.b16 %v7776
      %v7889 = vunpack.c.h.b16 %v7776
      %v7890 = vunpack.c.l.b16 %v7777
      %v7891 = vunpack.c.h.b16 %v7777
      %v7892 = vunpack.c.l.b16 %v7778
      %v7893 = vunpack.c.h.b16 %v7778
      %v7894 = vunpack.c.l.b16 %v7779
      %v7895 = vunpack.c.h.b16 %v7779
      %v7896 = vunpack.c.l.b16 %v7780
      %v7897 = vunpack.c.h.b16 %v7780
      %v7898 = vunpack.c.l.b16 %v7781
      %v7899 = vunpack.c.h.b16 %v7781
      %v7900 = vunpack.c.l.b16 %v7782
      %v7901 = vunpack.c.h.b16 %v7782
      %v7902 = vunpack.c.l.b16 %v7783
      %v7903 = vunpack.c.h.b16 %v7783
      %v7904 = vunpack.c.l.b16 %v7784
      %v7905 = vunpack.c.h.b16 %v7784
      %v7906 = vunpack.c.l.b16 %v7785
      %v7907 = vunpack.c.h.b16 %v7785
      %v7908 = vunpack.c.l.b16 %v7786
      %v7909 = vunpack.c.h.b16 %v7786
      %v7910 = vunpack.c.l.b16 %v7787
      %v7911 = vunpack.c.h.b16 %v7787
      %v7912 = vunpack.c.l.b16 %v7788
      %v7913 = vunpack.c.h.b16 %v7788
      %v7914 = vunpack.c.l.b16 %v7789
      %v7915 = vunpack.c.h.b16 %v7789
      %v7916 = vunpack.c.l.b16 %v7790
      %v7917 = vunpack.c.h.b16 %v7790
      %v7918 = vunpack.c.l.b16 %v7791
      %v7919 = vunpack.c.h.b16 %v7791
      %v7920 = vunpack.c.l.b16 %v7792
      %v7921 = vunpack.c.h.b16 %v7792
      %v7922 = vunpack.c.l.b16 %v7793
      %v7923 = vunpack.c.h.b16 %v7793
      %v7924 = vunpack.c.l.b16 %v7794
      %v7925 = vunpack.c.h.b16 %v7794
      %v7926 = vunpack.c.l.b16 %v7795
      %v7927 = vunpack.c.h.b16 %v7795
      %v7928 = vunpack.c.l.b16 %v7796
      %v7929 = vunpack.c.h.b16 %v7796
      %v7930 = vunpack.c.l.b16 %v7797
      %v7931 = vunpack.c.h.b16 %v7797
      %v7932 = vunpack.c.l.b16 %v7798
      %v7933 = vunpack.c.h.b16 %v7798
      %v7934 = vunpack.c.l.b16 %v7799
      %v7935 = vunpack.c.h.b16 %v7799
      %v7936 = vunpack.c.l.b16 %v7800
      %v7937 = vunpack.c.h.b16 %v7800
      %v7938 = vunpack.c.l.b16 %v7801
      %v7939 = vunpack.c.h.b16 %v7801
      %v7940 = vunpack.c.l.b16 %v7802
      %v7941 = vunpack.c.h.b16 %v7802
      %v7942 = vunpack.c.l.b16 %v7803
      %v7943 = vunpack.c.h.b16 %v7803
      %v7944 = vunpack.c.l.b16 %v7804
      %v7945 = vunpack.c.h.b16 %v7804
      %v7946 = vunpack.c.l.b16 %v7805
      %v7947 = vunpack.c.h.b16 %v7805
      %v7948 = vunpack.c.l.b16 %v7806
      %v7949 = vunpack.c.h.b16 %v7806
      %v7950 = vunpack.c.l.b16 %v7807
      %v7951 = vunpack.c.h.b16 %v7807
      %v7952 = vpack.c.b16 %v7858, %v7856
      %v7953 = vpack.c.b16 %v7859, %v7857
      %v7954 = vpack.c.b16 %v7862, %v7860
      %v7955 = vpack.c.b16 %v7863, %v7861
      %v7956 = vpack.c.b16 %v7866, %v7864
      %v7957 = vpack.c.b16 %v7867, %v7865
      %v7958 = vpack.c.b16 %v7870, %v7868
      %v7959 = vpack.c.b16 %v7871, %v7869
      %v7960 = vpack.c.b16 %v7874, %v7872
      %v7961 = vpack.c.b16 %v7875, %v7873
      %v7962 = vpack.c.b16 %v7878, %v7876
      %v7963 = vpack.c.b16 %v7879, %v7877
      %v7964 = vpack.c.b16 %v7882, %v7880
      %v7965 = vpack.c.b16 %v7883, %v7881
      %v7966 = vpack.c.b16 %v7886, %v7884
      %v7967 = vpack.c.b16 %v7887, %v7885
      %v7968 = vpack.c.b16 %v7890, %v7888
      %v7969 = vpack.c.b16 %v7891, %v7889
      %v7970 = vpack.c.b16 %v7894, %v7892
      %v7971 = vpack.c.b16 %v7895, %v7893
      %v7972 = vpack.c.b16 %v7898, %v7896
      %v7973 = vpack.c.b16 %v7899, %v7897
      %v7974 = vpack.c.b16 %v7902, %v7900
      %v7975 = vpack.c.b16 %v7903, %v7901
      %v7976 = vpack.c.b16 %v7906, %v7904
      %v7977 = vpack.c.b16 %v7907, %v7905
      %v7978 = vpack.c.b16 %v7910, %v7908
      %v7979 = vpack.c.b16 %v7911, %v7909
      %v7980 = vpack.c.b16 %v7914, %v7912
      %v7981 = vpack.c.b16 %v7915, %v7913
      %v7982 = vpack.c.b16 %v7918, %v7916
      %v7983 = vpack.c.b16 %v7919, %v7917
      %v7984 = vpack.c.b16 %v7922, %v7920
      %v7985 = vpack.c.b16 %v7923, %v7921
      %v7986 = vpack.c.b16 %v7926, %v7924
      %v7987 = vpack.c.b16 %v7927, %v7925
      %v7988 = vpack.c.b16 %v7930, %v7928
      %v7989 = vpack.c.b16 %v7931, %v7929
      %v7990 = vpack.c.b16 %v7934, %v7932
      %v7991 = vpack.c.b16 %v7935, %v7933
      %v7992 = vpack.c.b16 %v7938, %v7936
      %v7993 = vpack.c.b16 %v7939, %v7937
      %v7994 = vpack.c.b16 %v7942, %v7940
      %v7995 = vpack.c.b16 %v7943, %v7941
      %v7996 = vpack.c.b16 %v7946, %v7944
      %v7997 = vpack.c.b16 %v7947, %v7945
      %v7998 = vpack.c.b16 %v7950, %v7948
      %v7999 = vpack.c.b16 %v7951, %v7949
      %8048 = vmatpush.bf16.msra.mxu0 %v7966
      %8049 = vmatpush.bf16.msra.mxu0 %v7964
      %8050 = vmatpush.bf16.msra.mxu0 %v7962
      %8051 = vmatpush.bf16.msra.mxu0 %v7960
      %8052 = vmatpush.bf16.msra.mxu0 %v7958
      %8053 = vmatpush.bf16.msra.mxu0 %v7956
      %8054 = vmatpush.bf16.msra.mxu0 %v7954
      %8055 = vmatpush.bf16.msra.mxu0 %v7952
      %8056 = vmatmul.bf16.gmra.mxu0 %v7735
      %v8057 = vpop.f32.mrf.mxu0
      %v8058 = vadd.f32 0.0, %v8057
      %v8059 = vpop.f32.mrf.mxu0
      %v8060 = vadd.f32 0.0, %v8059
      %8061 = vmatmul.bf16.gmra.mxu0 %v7738
      %v8062 = vpop.f32.mrf.mxu0
      %v8063 = vadd.f32 0.0, %v8062
      %v8064 = vpop.f32.mrf.mxu0
      %v8065 = vadd.f32 0.0, %v8064
      %8066 = vmatmul.bf16.gmra.mxu0 %v7741
      %v8067 = vpop.f32.mrf.mxu0
      %v8068 = vadd.f32 0.0, %v8067
      %v8069 = vpop.f32.mrf.mxu0
      %v8070 = vadd.f32 0.0, %v8069
      %8071 = vmatmul.bf16.gmra.mxu0 %v7744
      %v8072 = vpop.f32.mrf.mxu0
      %v8073 = vadd.f32 0.0, %v8072
      %v8074 = vpop.f32.mrf.mxu0
      %v8075 = vadd.f32 0.0, %v8074
      %8076 = vmatmul.bf16.gmra.mxu0 %v7747
      %v8077 = vpop.f32.mrf.mxu0
      %v8078 = vadd.f32 0.0, %v8077
      %v8079 = vpop.f32.mrf.mxu0
      %v8080 = vadd.f32 0.0, %v8079
      %8081 = vmatmul.bf16.gmra.mxu0 %v7750
      %v8082 = vpop.f32.mrf.mxu0
      %v8083 = vadd.f32 0.0, %v8082
      %v8084 = vpop.f32.mrf.mxu0
      %v8085 = vadd.f32 0.0, %v8084
      %8086 = vmatmul.bf16.gmra.mxu0 %v7753
      %v8087 = vpop.f32.mrf.mxu0
      %v8088 = vadd.f32 0.0, %v8087
      %v8089 = vpop.f32.mrf.mxu0
      %v8090 = vadd.f32 0.0, %v8089
      %8091 = vmatmul.bf16.gmra.mxu0 %v7756
      %v8092 = vpop.f32.mrf.mxu0
      %v8093 = vadd.f32 0.0, %v8092
      %v8094 = vpop.f32.mrf.mxu0
      %v8095 = vadd.f32 0.0, %v8094
      %8096 = vdwg.mxu0
      %8097 = vmatpush.bf16.msra.mxu0 %v7982
      %8098 = vmatpush.bf16.msra.mxu0 %v7980
      %8099 = vmatpush.bf16.msra.mxu0 %v7978
      %8100 = vmatpush.bf16.msra.mxu0 %v7976
      %8101 = vmatpush.bf16.msra.mxu0 %v7974
      %8102 = vmatpush.bf16.msra.mxu0 %v7972
      %8103 = vmatpush.bf16.msra.mxu0 %v7970
      %8104 = vmatpush.bf16.msra.mxu0 %v7968
      %8105 = vmatmul.bf16.gmra.mxu0 %v7736
      %v8106 = vpop.f32.mrf.mxu0
      %v8107 = vadd.f32 %v8058, %v8106
      %v8108 = vpop.f32.mrf.mxu0
      %v8109 = vadd.f32 %v8060, %v8108
      %8110 = vmatmul.bf16.gmra.mxu0 %v7739
      %v8111 = vpop.f32.mrf.mxu0
      %v8112 = vadd.f32 %v8063, %v8111
      %v8113 = vpop.f32.mrf.mxu0
      %v8114 = vadd.f32 %v8065, %v8113
      %8115 = vmatmul.bf16.gmra.mxu0 %v7742
      %v8116 = vpop.f32.mrf.mxu0
      %v8117 = vadd.f32 %v8068, %v8116
      %v8118 = vpop.f32.mrf.mxu0
      %v8119 = vadd.f32 %v8070, %v8118
      %8120 = vmatmul.bf16.gmra.mxu0 %v7745
      %v8121 = vpop.f32.mrf.mxu0
      %v8122 = vadd.f32 %v8073, %v8121
      %v8123 = vpop.f32.mrf.mxu0
      %v8124 = vadd.f32 %v8075, %v8123
      %8125 = vmatmul.bf16.gmra.mxu0 %v7748
      %v8126 = vpop.f32.mrf.mxu0
      %v8127 = vadd.f32 %v8078, %v8126
      %v8128 = vpop.f32.mrf.mxu0
      %v8129 = vadd.f32 %v8080, %v8128
      %8130 = vmatmul.bf16.gmra.mxu0 %v7751
      %v8131 = vpop.f32.mrf.mxu0
      %v8132 = vadd.f32 %v8083, %v8131
      %v8133 = vpop.f32.mrf.mxu0
      %v8134 = vadd.f32 %v8085, %v8133
      %8135 = vmatmul.bf16.gmra.mxu0 %v7754
      %v8136 = vpop.f32.mrf.mxu0
      %v8137 = vadd.f32 %v8088, %v8136
      %v8138 = vpop.f32.mrf.mxu0
      %v8139 = vadd.f32 %v8090, %v8138
      %8140 = vmatmul.bf16.gmra.mxu0 %v7757
      %v8141 = vpop.f32.mrf.mxu0
      %v8142 = vadd.f32 %v8093, %v8141
      %v8143 = vpop.f32.mrf.mxu0
      %v8144 = vadd.f32 %v8095, %v8143
      %8145 = vdwg.mxu0
      %8146 = vmatpush.bf16.msra.mxu0 %v7998
      %8147 = vmatpush.bf16.msra.mxu0 %v7996
      %8148 = vmatpush.bf16.msra.mxu0 %v7994
      %8149 = vmatpush.bf16.msra.mxu0 %v7992
      %8150 = vmatpush.bf16.msra.mxu0 %v7990
      %8151 = vmatpush.bf16.msra.mxu0 %v7988
      %8152 = vmatpush.bf16.msra.mxu0 %v7986
      %8153 = vmatpush.bf16.msra.mxu0 %v7984
      %8154 = vmatmul.bf16.gmra.mxu0 %v7737
      %v8155 = vpop.f32.mrf.mxu0
      %v8156 = vadd.f32 %v8107, %v8155
      %v8157 = vpop.f32.mrf.mxu0
      %v8158 = vadd.f32 %v8109, %v8157
      %8159 = vmatmul.bf16.gmra.mxu0 %v7740
      %v8160 = vpop.f32.mrf.mxu0
      %v8161 = vadd.f32 %v8112, %v8160
      %v8162 = vpop.f32.mrf.mxu0
      %v8163 = vadd.f32 %v8114, %v8162
      %8164 = vmatmul.bf16.gmra.mxu0 %v7743
      %v8165 = vpop.f32.mrf.mxu0
      %v8166 = vadd.f32 %v8117, %v8165
      %v8167 = vpop.f32.mrf.mxu0
      %v8168 = vadd.f32 %v8119, %v8167
      %8169 = vmatmul.bf16.gmra.mxu0 %v7746
      %v8170 = vpop.f32.mrf.mxu0
      %v8171 = vadd.f32 %v8122, %v8170
      %v8172 = vpop.f32.mrf.mxu0
      %v8173 = vadd.f32 %v8124, %v8172
      %8174 = vmatmul.bf16.gmra.mxu0 %v7749
      %v8175 = vpop.f32.mrf.mxu0
      %v8176 = vadd.f32 %v8127, %v8175
      %v8177 = vpop.f32.mrf.mxu0
      %v8178 = vadd.f32 %v8129, %v8177
      %8179 = vmatmul.bf16.gmra.mxu0 %v7752
      %v8180 = vpop.f32.mrf.mxu0
      %v8181 = vadd.f32 %v8132, %v8180
      %v8182 = vpop.f32.mrf.mxu0
      %v8183 = vadd.f32 %v8134, %v8182
      %8184 = vmatmul.bf16.gmra.mxu0 %v7755
      %v8185 = vpop.f32.mrf.mxu0
      %v8186 = vadd.f32 %v8137, %v8185
      %v8187 = vpop.f32.mrf.mxu0
      %v8188 = vadd.f32 %v8139, %v8187
      %8189 = vmatmul.bf16.gmra.mxu0 %v7758
      %v8190 = vpop.f32.mrf.mxu0
      %v8191 = vadd.f32 %v8142, %v8190
      %v8192 = vpop.f32.mrf.mxu0
      %v8193 = vadd.f32 %v8144, %v8192
      %8194 = vdwg.mxu0
      %8195 = vmatpush.bf16.msra.mxu0 %v7967
      %8196 = vmatpush.bf16.msra.mxu0 %v7965
      %8197 = vmatpush.bf16.msra.mxu0 %v7963
      %8198 = vmatpush.bf16.msra.mxu0 %v7961
      %8199 = vmatpush.bf16.msra.mxu0 %v7959
      %8200 = vmatpush.bf16.msra.mxu0 %v7957
      %8201 = vmatpush.bf16.msra.mxu0 %v7955
      %8202 = vmatpush.bf16.msra.mxu0 %v7953
      %8203 = vmatmul.bf16.gmra.mxu0 %v7735
      %v8204 = vpop.f32.mrf.mxu0
      %v8205 = vadd.f32 0.0, %v8204
      %v8206 = vpop.f32.mrf.mxu0
      %v8207 = vadd.f32 0.0, %v8206
      %8208 = vmatmul.bf16.gmra.mxu0 %v7738
      %v8209 = vpop.f32.mrf.mxu0
      %v8210 = vadd.f32 0.0, %v8209
      %v8211 = vpop.f32.mrf.mxu0
      %v8212 = vadd.f32 0.0, %v8211
      %8213 = vmatmul.bf16.gmra.mxu0 %v7741
      %v8214 = vpop.f32.mrf.mxu0
      %v8215 = vadd.f32 0.0, %v8214
      %v8216 = vpop.f32.mrf.mxu0
      %v8217 = vadd.f32 0.0, %v8216
      %8218 = vmatmul.bf16.gmra.mxu0 %v7744
      %v8219 = vpop.f32.mrf.mxu0
      %v8220 = vadd.f32 0.0, %v8219
      %v8221 = vpop.f32.mrf.mxu0
      %v8222 = vadd.f32 0.0, %v8221
      %8223 = vmatmul.bf16.gmra.mxu0 %v7747
      %v8224 = vpop.f32.mrf.mxu0
      %v8225 = vadd.f32 0.0, %v8224
      %v8226 = vpop.f32.mrf.mxu0
      %v8227 = vadd.f32 0.0, %v8226
      %8228 = vmatmul.bf16.gmra.mxu0 %v7750
      %v8229 = vpop.f32.mrf.mxu0
      %v8230 = vadd.f32 0.0, %v8229
      %v8231 = vpop.f32.mrf.mxu0
      %v8232 = vadd.f32 0.0, %v8231
      %8233 = vmatmul.bf16.gmra.mxu0 %v7753
      %v8234 = vpop.f32.mrf.mxu0
      %v8235 = vadd.f32 0.0, %v8234
      %v8236 = vpop.f32.mrf.mxu0
      %v8237 = vadd.f32 0.0, %v8236
      %8238 = vmatmul.bf16.gmra.mxu0 %v7756
      %v8239 = vpop.f32.mrf.mxu0
      %v8240 = vadd.f32 0.0, %v8239
      %v8241 = vpop.f32.mrf.mxu0
      %v8242 = vadd.f32 0.0, %v8241
      %8243 = vdwg.mxu0
      %8244 = vmatpush.bf16.msra.mxu0 %v7983
      %8245 = vmatpush.bf16.msra.mxu0 %v7981
      %8246 = vmatpush.bf16.msra.mxu0 %v7979
      %8247 = vmatpush.bf16.msra.mxu0 %v7977
      %8248 = vmatpush.bf16.msra.mxu0 %v7975
      %8249 = vmatpush.bf16.msra.mxu0 %v7973
      %8250 = vmatpush.bf16.msra.mxu0 %v7971
      %8251 = vmatpush.bf16.msra.mxu0 %v7969
      %8252 = vmatmul.bf16.gmra.mxu0 %v7736
      %v8253 = vpop.f32.mrf.mxu0
      %v8254 = vadd.f32 %v8205, %v8253
      %v8255 = vpop.f32.mrf.mxu0
      %v8256 = vadd.f32 %v8207, %v8255
      %8257 = vmatmul.bf16.gmra.mxu0 %v7739
      %v8258 = vpop.f32.mrf.mxu0
      %v8259 = vadd.f32 %v8210, %v8258
      %v8260 = vpop.f32.mrf.mxu0
      %v8261 = vadd.f32 %v8212, %v8260
      %8262 = vmatmul.bf16.gmra.mxu0 %v7742
      %v8263 = vpop.f32.mrf.mxu0
      %v8264 = vadd.f32 %v8215, %v8263
      %v8265 = vpop.f32.mrf.mxu0
      %v8266 = vadd.f32 %v8217, %v8265
      %8267 = vmatmul.bf16.gmra.mxu0 %v7745
      %v8268 = vpop.f32.mrf.mxu0
      %v8269 = vadd.f32 %v8220, %v8268
      %v8270 = vpop.f32.mrf.mxu0
      %v8271 = vadd.f32 %v8222, %v8270
      %8272 = vmatmul.bf16.gmra.mxu0 %v7748
      %v8273 = vpop.f32.mrf.mxu0
      %v8274 = vadd.f32 %v8225, %v8273
      %v8275 = vpop.f32.mrf.mxu0
      %v8276 = vadd.f32 %v8227, %v8275
      %8277 = vmatmul.bf16.gmra.mxu0 %v7751
      %v8278 = vpop.f32.mrf.mxu0
      %v8279 = vadd.f32 %v8230, %v8278
      %v8280 = vpop.f32.mrf.mxu0
      %v8281 = vadd.f32 %v8232, %v8280
      %8282 = vmatmul.bf16.gmra.mxu0 %v7754
      %v8283 = vpop.f32.mrf.mxu0
      %v8284 = vadd.f32 %v8235, %v8283
      %v8285 = vpop.f32.mrf.mxu0
      %v8286 = vadd.f32 %v8237, %v8285
      %8287 = vmatmul.bf16.gmra.mxu0 %v7757
      %v8288 = vpop.f32.mrf.mxu0
      %v8289 = vadd.f32 %v8240, %v8288
      %v8290 = vpop.f32.mrf.mxu0
      %v8291 = vadd.f32 %v8242, %v8290
      %8292 = vdwg.mxu0
      %8293 = vmatpush.bf16.msra.mxu0 %v7999
      %8294 = vmatpush.bf16.msra.mxu0 %v7997
      %8295 = vmatpush.bf16.msra.mxu0 %v7995
      %8296 = vmatpush.bf16.msra.mxu0 %v7993
      %8297 = vmatpush.bf16.msra.mxu0 %v7991
      %8298 = vmatpush.bf16.msra.mxu0 %v7989
      %8299 = vmatpush.bf16.msra.mxu0 %v7987
      %8300 = vmatpush.bf16.msra.mxu0 %v7985
      %8301 = vmatmul.bf16.gmra.mxu0 %v7737
      %v8302 = vpop.f32.mrf.mxu0
      %v8303 = vadd.f32 %v8254, %v8302
      %v8304 = vpop.f32.mrf.mxu0
      %v8305 = vadd.f32 %v8256, %v8304
      %8306 = vmatmul.bf16.gmra.mxu0 %v7740
      %v8307 = vpop.f32.mrf.mxu0
      %v8308 = vadd.f32 %v8259, %v8307
      %v8309 = vpop.f32.mrf.mxu0
      %v8310 = vadd.f32 %v8261, %v8309
      %8311 = vmatmul.bf16.gmra.mxu0 %v7743
      %v8312 = vpop.f32.mrf.mxu0
      %v8313 = vadd.f32 %v8264, %v8312
      %v8314 = vpop.f32.mrf.mxu0
      %v8315 = vadd.f32 %v8266, %v8314
      %8316 = vmatmul.bf16.gmra.mxu0 %v7746
      %v8317 = vpop.f32.mrf.mxu0
      %v8318 = vadd.f32 %v8269, %v8317
      %v8319 = vpop.f32.mrf.mxu0
      %v8320 = vadd.f32 %v8271, %v8319
      %8321 = vmatmul.bf16.gmra.mxu0 %v7749
      %v8322 = vpop.f32.mrf.mxu0
      %v8323 = vadd.f32 %v8274, %v8322
      %v8324 = vpop.f32.mrf.mxu0
      %v8325 = vadd.f32 %v8276, %v8324
      %8326 = vmatmul.bf16.gmra.mxu0 %v7752
      %v8327 = vpop.f32.mrf.mxu0
      %v8328 = vadd.f32 %v8279, %v8327
      %v8329 = vpop.f32.mrf.mxu0
      %v8330 = vadd.f32 %v8281, %v8329
      %8331 = vmatmul.bf16.gmra.mxu0 %v7755
      %v8332 = vpop.f32.mrf.mxu0
      %v8333 = vadd.f32 %v8284, %v8332
      %v8334 = vpop.f32.mrf.mxu0
      %v8335 = vadd.f32 %v8286, %v8334
      %8336 = vmatmul.bf16.gmra.mxu0 %v7758
      %v8337 = vpop.f32.mrf.mxu0
      %v8338 = vadd.f32 %v8289, %v8337
      %v8339 = vpop.f32.mrf.mxu0
      %v8340 = vadd.f32 %v8291, %v8339
      %8341 = vdwg.mxu0
      %v8342 = vadd.f32 %v7559, %v8156
      %v8343 = vadd.f32 %v7560, %v8303
      %v8344 = vadd.f32 %v7561, %v8158
      %v8345 = vadd.f32 %v7562, %v8305
      %v8346 = vadd.f32 %v7563, %v8161
      %v8347 = vadd.f32 %v7564, %v8308
      %v8348 = vadd.f32 %v7565, %v8163
      %v8349 = vadd.f32 %v7566, %v8310
      %v8350 = vadd.f32 %v7567, %v8166
      %v8351 = vadd.f32 %v7568, %v8313
      %v8352 = vadd.f32 %v7569, %v8168
      %v8353 = vadd.f32 %v7570, %v8315
      %v8354 = vadd.f32 %v7571, %v8171
      %v8355 = vadd.f32 %v7572, %v8318
      %v8356 = vadd.f32 %v7573, %v8173
      %v8357 = vadd.f32 %v7574, %v8320
      %v8358 = vadd.f32 %v7575, %v8176
      %v8359 = vadd.f32 %v7576, %v8323
      %v8360 = vadd.f32 %v7577, %v8178
      %v8361 = vadd.f32 %v7578, %v8325
      %v8362 = vadd.f32 %v7579, %v8181
      %v8363 = vadd.f32 %v7580, %v8328
      %v8364 = vadd.f32 %v7581, %v8183
      %v8365 = vadd.f32 %v7582, %v8330
      %v8366 = vadd.f32 %v7583, %v8186
      %v8367 = vadd.f32 %v7584, %v8333
      %v8368 = vadd.f32 %v7585, %v8188
      %v8369 = vadd.f32 %v7586, %v8335
      %v8370 = vadd.f32 %v7587, %v8191
      %v8371 = vadd.f32 %v7588, %v8338
      %v8372 = vadd.f32 %v7589, %v8193
      %v8373 = vadd.f32 %v7590, %v8340
      %v8374 = vmul.f32 %v8342, %v831
      %v8375 = vmul.f32 %v8343, %v831
      %v8376 = vmul.f32 %v8344, %v832
      %v8377 = vmul.f32 %v8345, %v832
      %v8378 = vmul.f32 %v8346, %v833
      %v8379 = vmul.f32 %v8347, %v833
      %v8380 = vmul.f32 %v8348, %v834
      %v8381 = vmul.f32 %v8349, %v834
      %v8382 = vmul.f32 %v8350, %v835
      %v8383 = vmul.f32 %v8351, %v835
      %v8384 = vmul.f32 %v8352, %v836
      %v8385 = vmul.f32 %v8353, %v836
      %v8386 = vmul.f32 %v8354, %v837
      %v8387 = vmul.f32 %v8355, %v837
      %v8388 = vmul.f32 %v8356, %v838
      %v8389 = vmul.f32 %v8357, %v838
      %v8390 = vmul.f32 %v8358, %v839
      %v8391 = vmul.f32 %v8359, %v839
      %v8392 = vmul.f32 %v8360, %v840
      %v8393 = vmul.f32 %v8361, %v840
      %v8394 = vmul.f32 %v8362, %v841
      %v8395 = vmul.f32 %v8363, %v841
      %v8396 = vmul.f32 %v8364, %v842
      %v8397 = vmul.f32 %v8365, %v842
      %v8398 = vmul.f32 %v8366, %v843
      %v8399 = vmul.f32 %v8367, %v843
      %v8400 = vmul.f32 %v8368, %v844
      %v8401 = vmul.f32 %v8369, %v844
      %v8402 = vmul.f32 %v8370, %v845
      %v8403 = vmul.f32 %v8371, %v845
      %v8404 = vmul.f32 %v8372, %v846
      %v8405 = vmul.f32 %v8373, %v846
      %v8406 = vadd.f32 %v3737, %v8374
      %v8407 = vadd.f32 %v3738, %v8375
      %v8408 = vadd.f32 %v3739, %v8376
      %v8409 = vadd.f32 %v3740, %v8377
      %v8410 = vadd.f32 %v3741, %v8378
      %v8411 = vadd.f32 %v3742, %v8379
      %v8412 = vadd.f32 %v3743, %v8380
      %v8413 = vadd.f32 %v3744, %v8381
      %v8414 = vadd.f32 %v3745, %v8382
      %v8415 = vadd.f32 %v3746, %v8383
      %v8416 = vadd.f32 %v3747, %v8384
      %v8417 = vadd.f32 %v3748, %v8385
      %v8418 = vadd.f32 %v3749, %v8386
      %v8419 = vadd.f32 %v3750, %v8387
      %v8420 = vadd.f32 %v3751, %v8388
      %v8421 = vadd.f32 %v3752, %v8389
      %v8422 = vadd.f32 %v3753, %v8390
      %v8423 = vadd.f32 %v3754, %v8391
      %v8424 = vadd.f32 %v3755, %v8392
      %v8425 = vadd.f32 %v3756, %v8393
      %v8426 = vadd.f32 %v3757, %v8394
      %v8427 = vadd.f32 %v3758, %v8395
      %v8428 = vadd.f32 %v3759, %v8396
      %v8429 = vadd.f32 %v3760, %v8397
      %v8430 = vadd.f32 %v3761, %v8398
      %v8431 = vadd.f32 %v3762, %v8399
      %v8432 = vadd.f32 %v3763, %v8400
      %v8433 = vadd.f32 %v3764, %v8401
      %v8434 = vadd.f32 %v3765, %v8402
      %v8435 = vadd.f32 %v3766, %v8403
      %v8436 = vadd.f32 %v3767, %v8404
      %v8437 = vadd.f32 %v3768, %v8405
      %v8438 = vld [vmem:[%s668] sm:$0x3]
      %v8439 = vld [vmem:[%s672] sm:$0x3]
      %v8440 = vsel %vm1263, %v8407, 0.0
      %v8441 = vadd.f32 %v8406, %v8440
      %8442 = vadd.xlane.f32.xlu0 %v8441
      %v8443 = vpop.xlane.xlu0 %8442
      %v8444 = vsel %vm1263, %v8409, 0.0
      %v8445 = vadd.f32 %v8408, %v8444
      %8446 = vadd.xlane.f32.xlu0 %v8445
      %v8447 = vpop.xlane.xlu0 %8446
      %v8448 = vsel %vm1263, %v8411, 0.0
      %v8449 = vadd.f32 %v8410, %v8448
      %8450 = vadd.xlane.f32.xlu0 %v8449
      %v8451 = vpop.xlane.xlu0 %8450
      %v8452 = vsel %vm1263, %v8413, 0.0
      %v8453 = vadd.f32 %v8412, %v8452
      %8454 = vadd.xlane.f32.xlu0 %v8453
      %v8455 = vpop.xlane.xlu0 %8454
      %v8456 = vsel %vm1263, %v8415, 0.0
      %v8457 = vadd.f32 %v8414, %v8456
      %8458 = vadd.xlane.f32.xlu0 %v8457
      %v8459 = vpop.xlane.xlu0 %8458
      %v8460 = vsel %vm1263, %v8417, 0.0
      %v8461 = vadd.f32 %v8416, %v8460
      %8462 = vadd.xlane.f32.xlu0 %v8461
      %v8463 = vpop.xlane.xlu0 %8462
      %v8464 = vsel %vm1263, %v8419, 0.0
      %v8465 = vadd.f32 %v8418, %v8464
      %8466 = vadd.xlane.f32.xlu0 %v8465
      %v8467 = vpop.xlane.xlu0 %8466
      %v8468 = vsel %vm1263, %v8421, 0.0
      %v8469 = vadd.f32 %v8420, %v8468
      %8470 = vadd.xlane.f32.xlu0 %v8469
      %v8471 = vpop.xlane.xlu0 %8470
      %v8472 = vsel %vm1263, %v8423, 0.0
      %v8473 = vadd.f32 %v8422, %v8472
      %8474 = vadd.xlane.f32.xlu0 %v8473
      %v8475 = vpop.xlane.xlu0 %8474
      %v8476 = vsel %vm1263, %v8425, 0.0
      %v8477 = vadd.f32 %v8424, %v8476
      %8478 = vadd.xlane.f32.xlu0 %v8477
      %v8479 = vpop.xlane.xlu0 %8478
      %v8480 = vsel %vm1263, %v8427, 0.0
      %v8481 = vadd.f32 %v8426, %v8480
      %8482 = vadd.xlane.f32.xlu0 %v8481
      %v8483 = vpop.xlane.xlu0 %8482
      %v8484 = vsel %vm1263, %v8429, 0.0
      %v8485 = vadd.f32 %v8428, %v8484
      %8486 = vadd.xlane.f32.xlu0 %v8485
      %v8487 = vpop.xlane.xlu0 %8486
      %v8488 = vsel %vm1263, %v8431, 0.0
      %v8489 = vadd.f32 %v8430, %v8488
      %8490 = vadd.xlane.f32.xlu0 %v8489
      %v8491 = vpop.xlane.xlu0 %8490
      %v8492 = vsel %vm1263, %v8433, 0.0
      %v8493 = vadd.f32 %v8432, %v8492
      %8494 = vadd.xlane.f32.xlu0 %v8493
      %v8495 = vpop.xlane.xlu0 %8494
      %v8496 = vsel %vm1263, %v8435, 0.0
      %v8497 = vadd.f32 %v8434, %v8496
      %8498 = vadd.xlane.f32.xlu0 %v8497
      %v8499 = vpop.xlane.xlu0 %8498
      %v8500 = vsel %vm1263, %v8437, 0.0
      %v8501 = vadd.f32 %v8436, %v8500
      %8502 = vadd.xlane.f32.xlu0 %v8501
      %v8503 = vpop.xlane.xlu0 %8502
      %v8504 = vmul.f32 %v8443, %v3326
      %v8505 = vmul.f32 %v8447, %v3326
      %v8506 = vmul.f32 %v8451, %v3326
      %v8507 = vmul.f32 %v8455, %v3326
      %v8508 = vmul.f32 %v8459, %v3326
      %v8509 = vmul.f32 %v8463, %v3326
      %v8510 = vmul.f32 %v8467, %v3326
      %v8511 = vmul.f32 %v8471, %v3326
      %v8512 = vmul.f32 %v8475, %v3326
      %v8513 = vmul.f32 %v8479, %v3326
      %v8514 = vmul.f32 %v8483, %v3326
      %v8515 = vmul.f32 %v8487, %v3326
      %v8516 = vmul.f32 %v8491, %v3326
      %v8517 = vmul.f32 %v8495, %v3326
      %v8518 = vmul.f32 %v8499, %v3326
      %v8519 = vmul.f32 %v8503, %v3326
      %v8520 = vsub.f32 %v8406, %v8504
      %v8521 = vsub.f32 %v8407, %v8504
      %v8522 = vsub.f32 %v8408, %v8505
      %v8523 = vsub.f32 %v8409, %v8505
      %v8524 = vsub.f32 %v8410, %v8506
      %v8525 = vsub.f32 %v8411, %v8506
      %v8526 = vsub.f32 %v8412, %v8507
      %v8527 = vsub.f32 %v8413, %v8507
      %v8528 = vsub.f32 %v8414, %v8508
      %v8529 = vsub.f32 %v8415, %v8508
      %v8530 = vsub.f32 %v8416, %v8509
      %v8531 = vsub.f32 %v8417, %v8509
      %v8532 = vsub.f32 %v8418, %v8510
      %v8533 = vsub.f32 %v8419, %v8510
      %v8534 = vsub.f32 %v8420, %v8511
      %v8535 = vsub.f32 %v8421, %v8511
      %v8536 = vsub.f32 %v8422, %v8512
      %v8537 = vsub.f32 %v8423, %v8512
      %v8538 = vsub.f32 %v8424, %v8513
      %v8539 = vsub.f32 %v8425, %v8513
      %v8540 = vsub.f32 %v8426, %v8514
      %v8541 = vsub.f32 %v8427, %v8514
      %v8542 = vsub.f32 %v8428, %v8515
      %v8543 = vsub.f32 %v8429, %v8515
      %v8544 = vsub.f32 %v8430, %v8516
      %v8545 = vsub.f32 %v8431, %v8516
      %v8546 = vsub.f32 %v8432, %v8517
      %v8547 = vsub.f32 %v8433, %v8517
      %v8548 = vsub.f32 %v8434, %v8518
      %v8549 = vsub.f32 %v8435, %v8518
      %v8550 = vsub.f32 %v8436, %v8519
      %v8551 = vsub.f32 %v8437, %v8519
      %v8552 = vmul.f32 %v8520, %v8520
      %v8553 = vmul.f32 %v8521, %v8521
      %v8554 = vmul.f32 %v8522, %v8522
      %v8555 = vmul.f32 %v8523, %v8523
      %v8556 = vmul.f32 %v8524, %v8524
      %v8557 = vmul.f32 %v8525, %v8525
      %v8558 = vmul.f32 %v8526, %v8526
      %v8559 = vmul.f32 %v8527, %v8527
      %v8560 = vmul.f32 %v8528, %v8528
      %v8561 = vmul.f32 %v8529, %v8529
      %v8562 = vmul.f32 %v8530, %v8530
      %v8563 = vmul.f32 %v8531, %v8531
      %v8564 = vmul.f32 %v8532, %v8532
      %v8565 = vmul.f32 %v8533, %v8533
      %v8566 = vmul.f32 %v8534, %v8534
      %v8567 = vmul.f32 %v8535, %v8535
      %v8568 = vmul.f32 %v8536, %v8536
      %v8569 = vmul.f32 %v8537, %v8537
      %v8570 = vmul.f32 %v8538, %v8538
      %v8571 = vmul.f32 %v8539, %v8539
      %v8572 = vmul.f32 %v8540, %v8540
      %v8573 = vmul.f32 %v8541, %v8541
      %v8574 = vmul.f32 %v8542, %v8542
      %v8575 = vmul.f32 %v8543, %v8543
      %v8576 = vmul.f32 %v8544, %v8544
      %v8577 = vmul.f32 %v8545, %v8545
      %v8578 = vmul.f32 %v8546, %v8546
      %v8579 = vmul.f32 %v8547, %v8547
      %v8580 = vmul.f32 %v8548, %v8548
      %v8581 = vmul.f32 %v8549, %v8549
      %v8582 = vmul.f32 %v8550, %v8550
      %v8583 = vmul.f32 %v8551, %v8551
      %v8584 = vsel %vm1263, %v8553, 0.0
      %v8585 = vadd.f32 %v8552, %v8584
      %8586 = vadd.xlane.f32.xlu0 %v8585
      %v8587 = vpop.xlane.xlu0 %8586
      %v8588 = vsel %vm1263, %v8555, 0.0
      %v8589 = vadd.f32 %v8554, %v8588
      %8590 = vadd.xlane.f32.xlu0 %v8589
      %v8591 = vpop.xlane.xlu0 %8590
      %v8592 = vsel %vm1263, %v8557, 0.0
      %v8593 = vadd.f32 %v8556, %v8592
      %8594 = vadd.xlane.f32.xlu0 %v8593
      %v8595 = vpop.xlane.xlu0 %8594
      %v8596 = vsel %vm1263, %v8559, 0.0
      %v8597 = vadd.f32 %v8558, %v8596
      %8598 = vadd.xlane.f32.xlu0 %v8597
      %v8599 = vpop.xlane.xlu0 %8598
      %v8600 = vsel %vm1263, %v8561, 0.0
      %v8601 = vadd.f32 %v8560, %v8600
      %8602 = vadd.xlane.f32.xlu0 %v8601
      %v8603 = vpop.xlane.xlu0 %8602
      %v8604 = vsel %vm1263, %v8563, 0.0
      %v8605 = vadd.f32 %v8562, %v8604
      %8606 = vadd.xlane.f32.xlu0 %v8605
      %v8607 = vpop.xlane.xlu0 %8606
      %v8608 = vsel %vm1263, %v8565, 0.0
      %v8609 = vadd.f32 %v8564, %v8608
      %8610 = vadd.xlane.f32.xlu0 %v8609
      %v8611 = vpop.xlane.xlu0 %8610
      %v8612 = vsel %vm1263, %v8567, 0.0
      %v8613 = vadd.f32 %v8566, %v8612
      %8614 = vadd.xlane.f32.xlu0 %v8613
      %v8615 = vpop.xlane.xlu0 %8614
      %v8616 = vsel %vm1263, %v8569, 0.0
      %v8617 = vadd.f32 %v8568, %v8616
      %8618 = vadd.xlane.f32.xlu0 %v8617
      %v8619 = vpop.xlane.xlu0 %8618
      %v8620 = vsel %vm1263, %v8571, 0.0
      %v8621 = vadd.f32 %v8570, %v8620
      %8622 = vadd.xlane.f32.xlu0 %v8621
      %v8623 = vpop.xlane.xlu0 %8622
      %v8624 = vsel %vm1263, %v8573, 0.0
      %v8625 = vadd.f32 %v8572, %v8624
      %8626 = vadd.xlane.f32.xlu0 %v8625
      %v8627 = vpop.xlane.xlu0 %8626
      %v8628 = vsel %vm1263, %v8575, 0.0
      %v8629 = vadd.f32 %v8574, %v8628
      %8630 = vadd.xlane.f32.xlu0 %v8629
      %v8631 = vpop.xlane.xlu0 %8630
      %v8632 = vsel %vm1263, %v8577, 0.0
      %v8633 = vadd.f32 %v8576, %v8632
      %8634 = vadd.xlane.f32.xlu0 %v8633
      %v8635 = vpop.xlane.xlu0 %8634
      %v8636 = vsel %vm1263, %v8579, 0.0
      %v8637 = vadd.f32 %v8578, %v8636
      %8638 = vadd.xlane.f32.xlu0 %v8637
      %v8639 = vpop.xlane.xlu0 %8638
      %v8640 = vsel %vm1263, %v8581, 0.0
      %v8641 = vadd.f32 %v8580, %v8640
      %8642 = vadd.xlane.f32.xlu0 %v8641
      %v8643 = vpop.xlane.xlu0 %8642
      %v8644 = vsel %vm1263, %v8583, 0.0
      %v8645 = vadd.f32 %v8582, %v8644
      %8646 = vadd.xlane.f32.xlu0 %v8645
      %v8647 = vpop.xlane.xlu0 %8646
      %v8648 = vmul.f32 %v8587, %v3326
      %v8649 = vmul.f32 %v8591, %v3326
      %v8650 = vmul.f32 %v8595, %v3326
      %v8651 = vmul.f32 %v8599, %v3326
      %v8652 = vmul.f32 %v8603, %v3326
      %v8653 = vmul.f32 %v8607, %v3326
      %v8654 = vmul.f32 %v8611, %v3326
      %v8655 = vmul.f32 %v8615, %v3326
      %v8656 = vmul.f32 %v8619, %v3326
      %v8657 = vmul.f32 %v8623, %v3326
      %v8658 = vmul.f32 %v8627, %v3326
      %v8659 = vmul.f32 %v8631, %v3326
      %v8660 = vmul.f32 %v8635, %v3326
      %v8661 = vmul.f32 %v8639, %v3326
      %v8662 = vmul.f32 %v8643, %v3326
      %v8663 = vmul.f32 %v8647, %v3326
      %v8664 = vadd.f32 %v8648, 1e-05
      %v8665 = vadd.f32 %v8649, 1e-05
      %v8666 = vadd.f32 %v8650, 1e-05
      %v8667 = vadd.f32 %v8651, 1e-05
      %v8668 = vadd.f32 %v8652, 1e-05
      %v8669 = vadd.f32 %v8653, 1e-05
      %v8670 = vadd.f32 %v8654, 1e-05
      %v8671 = vadd.f32 %v8655, 1e-05
      %v8672 = vadd.f32 %v8656, 1e-05
      %v8673 = vadd.f32 %v8657, 1e-05
      %v8674 = vadd.f32 %v8658, 1e-05
      %v8675 = vadd.f32 %v8659, 1e-05
      %v8676 = vadd.f32 %v8660, 1e-05
      %v8677 = vadd.f32 %v8661, 1e-05
      %v8678 = vadd.f32 %v8662, 1e-05
      %v8679 = vadd.f32 %v8663, 1e-05
      %v8680 = vrsqrt.pop %v8664
      %v8681 = vmul.f32 %v8680, %v8664
      %v8682 = vmul.f32 %v8681, %v8680
      %v8683 = vmul.f32 0.5, %v8682
      %v8684 = vsub.f32 1.5, %v8683
      %v8685 = vmul.f32 %v8680, %v8684
      %vm8686 = vweird.f32 %v8664
      %vm8687 = vweird.f32 %v8680
      %vm8688 = vmor %vm8686, %vm8687
      %v8689 = vsel %vm8688, %v8680, %v8685
      %v8690 = vrsqrt.pop %v8665
      %v8691 = vmul.f32 %v8690, %v8665
      %v8692 = vmul.f32 %v8691, %v8690
      %v8693 = vmul.f32 0.5, %v8692
      %v8694 = vsub.f32 1.5, %v8693
      %v8695 = vmul.f32 %v8690, %v8694
      %vm8696 = vweird.f32 %v8665
      %vm8697 = vweird.f32 %v8690
      %vm8698 = vmor %vm8696, %vm8697
      %v8699 = vsel %vm8698, %v8690, %v8695
      %v8700 = vrsqrt.pop %v8666
      %v8701 = vmul.f32 %v8700, %v8666
      %v8702 = vmul.f32 %v8701, %v8700
      %v8703 = vmul.f32 0.5, %v8702
      %v8704 = vsub.f32 1.5, %v8703
      %v8705 = vmul.f32 %v8700, %v8704
      %vm8706 = vweird.f32 %v8666
      %vm8707 = vweird.f32 %v8700
      %vm8708 = vmor %vm8706, %vm8707
      %v8709 = vsel %vm8708, %v8700, %v8705
      %v8710 = vrsqrt.pop %v8667
      %v8711 = vmul.f32 %v8710, %v8667
      %v8712 = vmul.f32 %v8711, %v8710
      %v8713 = vmul.f32 0.5, %v8712
      %v8714 = vsub.f32 1.5, %v8713
      %v8715 = vmul.f32 %v8710, %v8714
      %vm8716 = vweird.f32 %v8667
      %vm8717 = vweird.f32 %v8710
      %vm8718 = vmor %vm8716, %vm8717
      %v8719 = vsel %vm8718, %v8710, %v8715
      %v8720 = vrsqrt.pop %v8668
      %v8721 = vmul.f32 %v8720, %v8668
      %v8722 = vmul.f32 %v8721, %v8720
      %v8723 = vmul.f32 0.5, %v8722
      %v8724 = vsub.f32 1.5, %v8723
      %v8725 = vmul.f32 %v8720, %v8724
      %vm8726 = vweird.f32 %v8668
      %vm8727 = vweird.f32 %v8720
      %vm8728 = vmor %vm8726, %vm8727
      %v8729 = vsel %vm8728, %v8720, %v8725
      %v8730 = vrsqrt.pop %v8669
      %v8731 = vmul.f32 %v8730, %v8669
      %v8732 = vmul.f32 %v8731, %v8730
      %v8733 = vmul.f32 0.5, %v8732
      %v8734 = vsub.f32 1.5, %v8733
      %v8735 = vmul.f32 %v8730, %v8734
      %vm8736 = vweird.f32 %v8669
      %vm8737 = vweird.f32 %v8730
      %vm8738 = vmor %vm8736, %vm8737
      %v8739 = vsel %vm8738, %v8730, %v8735
      %v8740 = vrsqrt.pop %v8670
      %v8741 = vmul.f32 %v8740, %v8670
      %v8742 = vmul.f32 %v8741, %v8740
      %v8743 = vmul.f32 0.5, %v8742
      %v8744 = vsub.f32 1.5, %v8743
      %v8745 = vmul.f32 %v8740, %v8744
      %vm8746 = vweird.f32 %v8670
      %vm8747 = vweird.f32 %v8740
      %vm8748 = vmor %vm8746, %vm8747
      %v8749 = vsel %vm8748, %v8740, %v8745
      %v8750 = vrsqrt.pop %v8671
      %v8751 = vmul.f32 %v8750, %v8671
      %v8752 = vmul.f32 %v8751, %v8750
      %v8753 = vmul.f32 0.5, %v8752
      %v8754 = vsub.f32 1.5, %v8753
      %v8755 = vmul.f32 %v8750, %v8754
      %vm8756 = vweird.f32 %v8671
      %vm8757 = vweird.f32 %v8750
      %vm8758 = vmor %vm8756, %vm8757
      %v8759 = vsel %vm8758, %v8750, %v8755
      %v8760 = vrsqrt.pop %v8672
      %v8761 = vmul.f32 %v8760, %v8672
      %v8762 = vmul.f32 %v8761, %v8760
      %v8763 = vmul.f32 0.5, %v8762
      %v8764 = vsub.f32 1.5, %v8763
      %v8765 = vmul.f32 %v8760, %v8764
      %vm8766 = vweird.f32 %v8672
      %vm8767 = vweird.f32 %v8760
      %vm8768 = vmor %vm8766, %vm8767
      %v8769 = vsel %vm8768, %v8760, %v8765
      %v8770 = vrsqrt.pop %v8673
      %v8771 = vmul.f32 %v8770, %v8673
      %v8772 = vmul.f32 %v8771, %v8770
      %v8773 = vmul.f32 0.5, %v8772
      %v8774 = vsub.f32 1.5, %v8773
      %v8775 = vmul.f32 %v8770, %v8774
      %vm8776 = vweird.f32 %v8673
      %vm8777 = vweird.f32 %v8770
      %vm8778 = vmor %vm8776, %vm8777
      %v8779 = vsel %vm8778, %v8770, %v8775
      %v8780 = vrsqrt.pop %v8674
      %v8781 = vmul.f32 %v8780, %v8674
      %v8782 = vmul.f32 %v8781, %v8780
      %v8783 = vmul.f32 0.5, %v8782
      %v8784 = vsub.f32 1.5, %v8783
      %v8785 = vmul.f32 %v8780, %v8784
      %vm8786 = vweird.f32 %v8674
      %vm8787 = vweird.f32 %v8780
      %vm8788 = vmor %vm8786, %vm8787
      %v8789 = vsel %vm8788, %v8780, %v8785
      %v8790 = vrsqrt.pop %v8675
      %v8791 = vmul.f32 %v8790, %v8675
      %v8792 = vmul.f32 %v8791, %v8790
      %v8793 = vmul.f32 0.5, %v8792
      %v8794 = vsub.f32 1.5, %v8793
      %v8795 = vmul.f32 %v8790, %v8794
      %vm8796 = vweird.f32 %v8675
      %vm8797 = vweird.f32 %v8790
      %vm8798 = vmor %vm8796, %vm8797
      %v8799 = vsel %vm8798, %v8790, %v8795
      %v8800 = vrsqrt.pop %v8676
      %v8801 = vmul.f32 %v8800, %v8676
      %v8802 = vmul.f32 %v8801, %v8800
      %v8803 = vmul.f32 0.5, %v8802
      %v8804 = vsub.f32 1.5, %v8803
      %v8805 = vmul.f32 %v8800, %v8804
      %vm8806 = vweird.f32 %v8676
      %vm8807 = vweird.f32 %v8800
      %vm8808 = vmor %vm8806, %vm8807
      %v8809 = vsel %vm8808, %v8800, %v8805
      %v8810 = vrsqrt.pop %v8677
      %v8811 = vmul.f32 %v8810, %v8677
      %v8812 = vmul.f32 %v8811, %v8810
      %v8813 = vmul.f32 0.5, %v8812
      %v8814 = vsub.f32 1.5, %v8813
      %v8815 = vmul.f32 %v8810, %v8814
      %vm8816 = vweird.f32 %v8677
      %vm8817 = vweird.f32 %v8810
      %vm8818 = vmor %vm8816, %vm8817
      %v8819 = vsel %vm8818, %v8810, %v8815
      %v8820 = vrsqrt.pop %v8678
      %v8821 = vmul.f32 %v8820, %v8678
      %v8822 = vmul.f32 %v8821, %v8820
      %v8823 = vmul.f32 0.5, %v8822
      %v8824 = vsub.f32 1.5, %v8823
      %v8825 = vmul.f32 %v8820, %v8824
      %vm8826 = vweird.f32 %v8678
      %vm8827 = vweird.f32 %v8820
      %vm8828 = vmor %vm8826, %vm8827
      %v8829 = vsel %vm8828, %v8820, %v8825
      %v8830 = vrsqrt.pop %v8679
      %v8831 = vmul.f32 %v8830, %v8679
      %v8832 = vmul.f32 %v8831, %v8830
      %v8833 = vmul.f32 0.5, %v8832
      %v8834 = vsub.f32 1.5, %v8833
      %v8835 = vmul.f32 %v8830, %v8834
      %vm8836 = vweird.f32 %v8679
      %vm8837 = vweird.f32 %v8830
      %vm8838 = vmor %vm8836, %vm8837
      %v8839 = vsel %vm8838, %v8830, %v8835
      %v8840 = vmul.f32 %v8520, %v8689
      %v8841 = vmul.f32 %v8521, %v8689
      %v8842 = vmul.f32 %v8522, %v8699
      %v8843 = vmul.f32 %v8523, %v8699
      %v8844 = vmul.f32 %v8524, %v8709
      %v8845 = vmul.f32 %v8525, %v8709
      %v8846 = vmul.f32 %v8526, %v8719
      %v8847 = vmul.f32 %v8527, %v8719
      %v8848 = vmul.f32 %v8528, %v8729
      %v8849 = vmul.f32 %v8529, %v8729
      %v8850 = vmul.f32 %v8530, %v8739
      %v8851 = vmul.f32 %v8531, %v8739
      %v8852 = vmul.f32 %v8532, %v8749
      %v8853 = vmul.f32 %v8533, %v8749
      %v8854 = vmul.f32 %v8534, %v8759
      %v8855 = vmul.f32 %v8535, %v8759
      %v8856 = vmul.f32 %v8536, %v8769
      %v8857 = vmul.f32 %v8537, %v8769
      %v8858 = vmul.f32 %v8538, %v8779
      %v8859 = vmul.f32 %v8539, %v8779
      %v8860 = vmul.f32 %v8540, %v8789
      %v8861 = vmul.f32 %v8541, %v8789
      %v8862 = vmul.f32 %v8542, %v8799
      %v8863 = vmul.f32 %v8543, %v8799
      %v8864 = vmul.f32 %v8544, %v8809
      %v8865 = vmul.f32 %v8545, %v8809
      %v8866 = vmul.f32 %v8546, %v8819
      %v8867 = vmul.f32 %v8547, %v8819
      %v8868 = vmul.f32 %v8548, %v8829
      %v8869 = vmul.f32 %v8549, %v8829
      %v8870 = vmul.f32 %v8550, %v8839
      %v8871 = vmul.f32 %v8551, %v8839
      %v8873 = vperm.slane %v8438, 0
      %v8874 = vperm.slane %v8438, 1
      %v8877 = vmul.f32 %v8840, %v8873
      %v8878 = vmul.f32 %v8841, %v8874
      %v8879 = vmul.f32 %v8842, %v8873
      %v8880 = vmul.f32 %v8843, %v8874
      %v8881 = vmul.f32 %v8844, %v8873
      %v8882 = vmul.f32 %v8845, %v8874
      %v8883 = vmul.f32 %v8846, %v8873
      %v8884 = vmul.f32 %v8847, %v8874
      %v8885 = vmul.f32 %v8848, %v8873
      %v8886 = vmul.f32 %v8849, %v8874
      %v8887 = vmul.f32 %v8850, %v8873
      %v8888 = vmul.f32 %v8851, %v8874
      %v8889 = vmul.f32 %v8852, %v8873
      %v8890 = vmul.f32 %v8853, %v8874
      %v8891 = vmul.f32 %v8854, %v8873
      %v8892 = vmul.f32 %v8855, %v8874
      %v8893 = vmul.f32 %v8856, %v8873
      %v8894 = vmul.f32 %v8857, %v8874
      %v8895 = vmul.f32 %v8858, %v8873
      %v8896 = vmul.f32 %v8859, %v8874
      %v8897 = vmul.f32 %v8860, %v8873
      %v8898 = vmul.f32 %v8861, %v8874
      %v8899 = vmul.f32 %v8862, %v8873
      %v8900 = vmul.f32 %v8863, %v8874
      %v8901 = vmul.f32 %v8864, %v8873
      %v8902 = vmul.f32 %v8865, %v8874
      %v8903 = vmul.f32 %v8866, %v8873
      %v8904 = vmul.f32 %v8867, %v8874
      %v8905 = vmul.f32 %v8868, %v8873
      %v8906 = vmul.f32 %v8869, %v8874
      %v8907 = vmul.f32 %v8870, %v8873
      %v8908 = vmul.f32 %v8871, %v8874
      %v8910 = vperm.slane %v8439, 0
      %v8911 = vperm.slane %v8439, 1
      %v8914 = vadd.f32 %v8877, %v8910
      %v8915 = vadd.f32 %v8878, %v8911
      %v8916 = vadd.f32 %v8879, %v8910
      %v8917 = vadd.f32 %v8880, %v8911
      %v8918 = vadd.f32 %v8881, %v8910
      %v8919 = vadd.f32 %v8882, %v8911
      %v8920 = vadd.f32 %v8883, %v8910
      %v8921 = vadd.f32 %v8884, %v8911
      %v8922 = vadd.f32 %v8885, %v8910
      %v8923 = vadd.f32 %v8886, %v8911
      %v8924 = vadd.f32 %v8887, %v8910
      %v8925 = vadd.f32 %v8888, %v8911
      %v8926 = vadd.f32 %v8889, %v8910
      %v8927 = vadd.f32 %v8890, %v8911
      %v8928 = vadd.f32 %v8891, %v8910
      %v8929 = vadd.f32 %v8892, %v8911
      %v8930 = vadd.f32 %v8893, %v8910
      %v8931 = vadd.f32 %v8894, %v8911
      %v8932 = vadd.f32 %v8895, %v8910
      %v8933 = vadd.f32 %v8896, %v8911
      %v8934 = vadd.f32 %v8897, %v8910
      %v8935 = vadd.f32 %v8898, %v8911
      %v8936 = vadd.f32 %v8899, %v8910
      %v8937 = vadd.f32 %v8900, %v8911
      %v8938 = vadd.f32 %v8901, %v8910
      %v8939 = vadd.f32 %v8902, %v8911
      %v8940 = vadd.f32 %v8903, %v8910
      %v8941 = vadd.f32 %v8904, %v8911
      %v8942 = vadd.f32 %v8905, %v8910
      %v8943 = vadd.f32 %v8906, %v8911
      %v8944 = vadd.f32 %v8907, %v8910
      %v8945 = vadd.f32 %v8908, %v8911
      %8946 = vst [vmem:[#allocation2] sm:$0xff] %v8914
      %8947 = vst.msk [vmem:[#allocation2 + $0x8] sm:$0xff] %vm1263, %v8915
      %8948 = vst [vmem:[#allocation2 + $0x10] sm:$0xff] %v8916
      %8949 = vst.msk [vmem:[#allocation2 + $0x18] sm:$0xff] %vm1263, %v8917
      %8950 = vst [vmem:[#allocation2 + $0x20] sm:$0xff] %v8918
      %8951 = vst.msk [vmem:[#allocation2 + $0x28] sm:$0xff] %vm1263, %v8919
      %8952 = vst [vmem:[#allocation2 + $0x30] sm:$0xff] %v8920
      %8953 = vst.msk [vmem:[#allocation2 + $0x38] sm:$0xff] %vm1263, %v8921
      %8954 = vst [vmem:[#allocation2 + $0x40] sm:$0xff] %v8922
      %8955 = vst.msk [vmem:[#allocation2 + $0x48] sm:$0xff] %vm1263, %v8923
      %8956 = vst [vmem:[#allocation2 + $0x50] sm:$0xff] %v8924
      %8957 = vst.msk [vmem:[#allocation2 + $0x58] sm:$0xff] %vm1263, %v8925
      %8958 = vst [vmem:[#allocation2 + $0x60] sm:$0xff] %v8926
      %8959 = vst.msk [vmem:[#allocation2 + $0x68] sm:$0xff] %vm1263, %v8927
      %8960 = vst [vmem:[#allocation2 + $0x70] sm:$0xff] %v8928
      %8961 = vst.msk [vmem:[#allocation2 + $0x78] sm:$0xff] %vm1263, %v8929
      %8962 = vst [vmem:[#allocation2 + $0x80] sm:$0xff] %v8930
      %8963 = vst.msk [vmem:[#allocation2 + $0x88] sm:$0xff] %vm1263, %v8931
      %8964 = vst [vmem:[#allocation2 + $0x90] sm:$0xff] %v8932
      %8965 = vst.msk [vmem:[#allocation2 + $0x98] sm:$0xff] %vm1263, %v8933
      %8966 = vst [vmem:[#allocation2 + $0xa0] sm:$0xff] %v8934
      %8967 = vst.msk [vmem:[#allocation2 + $0xa8] sm:$0xff] %vm1263, %v8935
      %8968 = vst [vmem:[#allocation2 + $0xb0] sm:$0xff] %v8936
      %8969 = vst.msk [vmem:[#allocation2 + $0xb8] sm:$0xff] %vm1263, %v8937
      %8970 = vst [vmem:[#allocation2 + $0xc0] sm:$0xff] %v8938
      %8971 = vst.msk [vmem:[#allocation2 + $0xc8] sm:$0xff] %vm1263, %v8939
      %8972 = vst [vmem:[#allocation2 + $0xd0] sm:$0xff] %v8940
      %8973 = vst.msk [vmem:[#allocation2 + $0xd8] sm:$0xff] %vm1263, %v8941
      %8974 = vst [vmem:[#allocation2 + $0xe0] sm:$0xff] %v8942
      %8975 = vst.msk [vmem:[#allocation2 + $0xe8] sm:$0xff] %vm1263, %v8943
      %8976 = vst [vmem:[#allocation2 + $0xf0] sm:$0xff] %v8944
      %8977 = vst.msk [vmem:[#allocation2 + $0xf8] sm:$0xff] %vm1263, %v8945
      %p8978 = scmp.eq.s32.totalorder %s38, 1
      // Predicated region
      $region77: #{text_encoder_forward.1} parent=71 // pred_check
        %p8979 = pneg %p8978
      $region78: #{text_encoder_forward.1} parent=71 // pred_check_branch
        %8981 = sbr.rel (%p8979) target = $region80
      $region79: #{text_encoder_forward.1} parent=71 // pred_region
        %8982 = vst [vmem:[%s677] sm:$0xff] %v8914
        %8983 = vst.msk [vmem:[%s677 + $0x8] sm:$0xff] %vm1263, %v8915
        %8984 = vst [vmem:[%s677 + $0x10] sm:$0xff] %v8916
        %8985 = vst.msk [vmem:[%s677 + $0x18] sm:$0xff] %vm1263, %v8917
        %8986 = vst [vmem:[%s677 + $0x20] sm:$0xff] %v8918
        %8987 = vst.msk [vmem:[%s677 + $0x28] sm:$0xff] %vm1263, %v8919
        %8988 = vst [vmem:[%s677 + $0x30] sm:$0xff] %v8920
        %8989 = vst.msk [vmem:[%s677 + $0x38] sm:$0xff] %vm1263, %v8921
        %8990 = vst [vmem:[%s677 + $0x40] sm:$0xff] %v8922
        %8991 = vst.msk [vmem:[%s677 + $0x48] sm:$0xff] %vm1263, %v8923
        %8992 = vst [vmem:[%s677 + $0x50] sm:$0xff] %v8924
        %8993 = vst.msk [vmem:[%s677 + $0x58] sm:$0xff] %vm1263, %v8925
        %8994 = vst [vmem:[%s677 + $0x60] sm:$0xff] %v8926
        %8995 = vst.msk [vmem:[%s677 + $0x68] sm:$0xff] %vm1263, %v8927
        %8996 = vst [vmem:[%s677 + $0x70] sm:$0xff] %v8928
        %8997 = vst.msk [vmem:[%s677 + $0x78] sm:$0xff] %vm1263, %v8929
        %8998 = vst [vmem:[%s677 + $0x80] sm:$0xff] %v8930
        %8999 = vst.msk [vmem:[%s677 + $0x88] sm:$0xff] %vm1263, %v8931
        %9000 = vst [vmem:[%s677 + $0x90] sm:$0xff] %v8932
        %9001 = vst.msk [vmem:[%s677 + $0x98] sm:$0xff] %vm1263, %v8933
        %9002 = vst [vmem:[%s677 + $0xa0] sm:$0xff] %v8934
        %9003 = vst.msk [vmem:[%s677 + $0xa8] sm:$0xff] %vm1263, %v8935
        %9004 = vst [vmem:[%s677 + $0xb0] sm:$0xff] %v8936
        %9005 = vst.msk [vmem:[%s677 + $0xb8] sm:$0xff] %vm1263, %v8937
        %9006 = vst [vmem:[%s677 + $0xc0] sm:$0xff] %v8938
        %9007 = vst.msk [vmem:[%s677 + $0xc8] sm:$0xff] %vm1263, %v8939
        %9008 = vst [vmem:[%s677 + $0xd0] sm:$0xff] %v8940
        %9009 = vst.msk [vmem:[%s677 + $0xd8] sm:$0xff] %vm1263, %v8941
        %9010 = vst [vmem:[%s677 + $0xe0] sm:$0xff] %v8942
        %9011 = vst.msk [vmem:[%s677 + $0xe8] sm:$0xff] %vm1263, %v8943
        %9012 = vst [vmem:[%s677 + $0xf0] sm:$0xff] %v8944
        %9013 = vst.msk [vmem:[%s677 + $0xf8] sm:$0xff] %vm1263, %v8945
      $region80: #{text_encoder_forward.1} parent=71 // pred_fallthru
        _
      %p9014 = scmp.lt.s32.totalorder %s37, 1
      %s9015 = scalar_select %p9014, %s37, 1
      %s9016 = smul.addr %s9015, 32
      %s9017 = smul.addr %s9016, 8
      %s9018 = scalar_lea.vmem %s14, %s9017
      // Predicated region
      $region81: #{text_encoder_forward.1} parent=71 // pred_check
        %p9019 = pneg %p401
      $region82: #{text_encoder_forward.1} parent=71 // pred_check_branch
        %9021 = sbr.rel (%p9019) target = $region84
      $region83: #{text_encoder_forward.1} parent=71 // pred_region
        _
      $region84: #{text_encoder_forward.1} parent=71 // pred_fallthru
        _
    $region72: #{text_encoder_forward.1} parent=5 // pred_fallthru
      _
    %p9022 = scmp.le.s32.totalorder 2, %s28
    // Predicated region
    $region85: #{text_encoder_forward.1} parent=5 // pred_check
      %p9023 = pneg %p9022
    $region86: #{text_encoder_forward.1} parent=5 // pred_check_branch
      %9025 = sbr.rel (%p9023) target = $region88
    $region87: #{text_encoder_forward.1} parent=5 // pred_region
      %s9026 = ssub.s32 %s28, 2
      // Predicated region
      $region89: #{text_encoder_forward.1} parent=87 // pred_check
        %p9027 = pneg %p407
      $region90: #{text_encoder_forward.1} parent=87 // pred_check_branch
        %9029 = sbr.rel (%p9027) target = $region92
      $region91: #{text_encoder_forward.1} parent=87 // pred_region
        %p9030 = scmp.lt.s32.totalorder %s39, 1
        %s9031 = scalar_select %p9030, %s39, 1
        %s9032 = smul.addr %s9031, 32
        %s9033 = smul.addr %s9032, 8
        %s9034 = scalar_lea.vmem %s14, %s9033
      $region92: #{text_encoder_forward.1} parent=87 // pred_fallthru
        _
    $region88: #{text_encoder_forward.1} parent=5 // pred_fallthru
      _
  $region6: #{text_encoder_forward.1} parent=0 // loop_footer
    %s32 = sadd.s32 1, %s28
  $region7: #{text_encoder_forward.1} parent=0 // loop_footer_branch
    %27 = sbr.rel target = $region3
  $region8: #{text_encoder_forward.1} parent=0 // loop_exit
    _

</llo_original>
